<compile_context>
chip_gen: v7x
topology: tpu7x:2x2x1
jax: 0.10.0
libtpu: 0.0.40
codegen_flags: <defaults>
</compile_context>

<pallas_src>
import functools

import jax
import jax.numpy as jnp
from jax.experimental import pallas as pl
from jax.experimental.pallas import tpu as pltpu


def _round_up(x, m):
    return (x + m - 1) // m * m


# ----------------------------------------------------------------------------
# Pallas kernel: tiled matmul with fused bias (+ optional ReLU)
#   out = maybe_relu(x @ w + bias)
# When nk == 1 the reduction fits in one tile and we write the result directly.
# When nk > 1 we accumulate into the (resident, f32) output block and apply the
# epilogue on the last K step.
# ----------------------------------------------------------------------------
def _matmul_bias_kernel(x_ref, w_ref, b_ref, o_ref, *, apply_relu, nk):
    if nk == 1:
        y = jnp.dot(x_ref[...], w_ref[...], preferred_element_type=jnp.float32)
        y = y + b_ref[...]
        if apply_relu:
            y = jnp.maximum(y, 0.0)
        o_ref[...] = y.astype(o_ref.dtype)
    else:
        k = pl.program_id(2)

        @pl.when(k == 0)
        def _():
            o_ref[...] = jnp.zeros_like(o_ref)

        o_ref[...] += jnp.dot(x_ref[...], w_ref[...],
                              preferred_element_type=jnp.float32)

        @pl.when(k == nk - 1)
        def _():
            y = o_ref[...] + b_ref[...]
            if apply_relu:
                y = jnp.maximum(y, 0.0)
            o_ref[...] = y


def matmul_bias(x, w, bias, *, apply_relu, tm=None, tn=None, tk=None):
    """x: (M, K) f32, w: (K, N) f32, bias: (N,) f32 -> (M, N) f32.

    MXU inputs are cast to bf16; accumulation is in f32.
    """
    M, K = x.shape
    K2, N = w.shape
    assert K == K2

    tm = M if tm is None else tm
    tn = N if tn is None else tn
    tk = K if tk is None else tk

    Mp = _round_up(M, tm)
    Kp = _round_up(K, tk)
    Np = _round_up(N, tn)

    xb = x.astype(jnp.bfloat16)
    wb = w.astype(jnp.bfloat16)
    if (Mp, Kp) != (M, K):
        xb = jnp.pad(xb, ((0, Mp - M), (0, Kp - K)))
    if (Kp, Np) != (K, N):
        wb = jnp.pad(wb, ((0, Kp - K), (0, Np - N)))
    b2 = bias.reshape(1, N).astype(jnp.float32)
    if Np != N:
        b2 = jnp.pad(b2, ((0, 0), (0, Np - N)))

    nk = Kp // tk
    grid = (Mp // tm, Np // tn, nk)

    out = pl.pallas_call(
        functools.partial(_matmul_bias_kernel, apply_relu=apply_relu, nk=nk),
        out_shape=jax.ShapeDtypeStruct((Mp, Np), jnp.float32),
        grid_spec=pltpu.PrefetchScalarGridSpec(
            num_scalar_prefetch=0,
            grid=grid,
            in_specs=[
                pl.BlockSpec((tm, tk), lambda i, j, k: (i, k)),
                pl.BlockSpec((tk, tn), lambda i, j, k: (k, j)),
                pl.BlockSpec((1, tn), lambda i, j, k: (0, j)),
            ],
            out_specs=pl.BlockSpec((tm, tn), lambda i, j, k: (i, j)),
        ),
        compiler_params=pltpu.CompilerParams(
            dimension_semantics=("parallel", "parallel", "arbitrary")),
    )(xb, wb, b2)

    if (Mp, Np) != (M, N):
        out = out[:M, :N]
    return out


# ----------------------------------------------------------------------------
# Conv2d (valid padding, stride s) via im2col + Pallas matmul
# ----------------------------------------------------------------------------
def im2col(x, kh, kw, stride):
    """x: (B, H, W, C) -> patches (B*OH*OW, KH*KW*C), plus (B, OH, OW)."""
    B, H, W, C = x.shape
    oh = (H - kh) // stride + 1
    ow = (W - kw) // stride + 1
    pieces = []
    for i in range(kh):
        for j in range(kw):
            pieces.append(x[:, i:i + stride * oh:stride,
                              j:j + stride * ow:stride, :])
    p = jnp.stack(pieces, axis=3)                 # (B, OH, OW, KH*KW, C)
    return p.reshape(B * oh * ow, kh * kw * C), (B, oh, ow)


def conv_bn_relu(x_nhwc, w_oihw, conv_b, gamma, beta, run_mean, run_var,
                 stride, *, tm=None, eps=1e-5):
    """Fused Conv2d -> BatchNorm (inference) -> ReLU. Returns NHWC output."""
    oc, ic, kh, kw = w_oihw.shape

    # Pad input channels up to a multiple of 8 so im2col stays lane-friendly.
    icp = _round_up(ic, 8)
    if icp != ic:
        x_nhwc = jnp.pad(x_nhwc, ((0, 0), (0, 0), (0, 0), (0, icp - ic)))

    patches, (B, oh, ow) = im2col(x_nhwc, kh, kw, stride)

    # weight -> (KH, KW, ICp, OC) -> (KH*KW*ICp, OC), matching patch order.
    w_hwio = jnp.transpose(w_oihw, (2, 3, 1, 0))          # (KH, KW, IC, OC)
    if icp != ic:
        w_hwio = jnp.pad(w_hwio, ((0, 0), (0, 0), (0, icp - ic), (0, 0)))
    w_mat = w_hwio.reshape(kh * kw * icp, oc)

    # Fold BN (inference) into weights and bias.
    inv_std = 1.0 / jnp.sqrt(run_var + eps)
    scale = gamma * inv_std                               # per output channel
    w_mat = w_mat * scale[None, :]
    bias = beta + (conv_b - run_mean) * scale

    # Single full-K tile; K is small (<=576), so the reduction grid collapses.
    out = matmul_bias(patches, w_mat, bias, apply_relu=True,
                      tm=tm, tn=oc, tk=kh * kw * icp)
    return out.reshape(B, oh, ow, oc)


def linear(x, w, b, *, apply_relu, tm=8, tn=None, tk=None):
    """x: (B, in), w: (in, out), b: (out,)."""
    return matmul_bias(x, w, b, apply_relu=apply_relu, tm=tm, tn=tn, tk=tk)


# ----------------------------------------------------------------------------
# Parameter construction (deterministic, synthetic)
# ----------------------------------------------------------------------------
def init_params(key, action_size):
    def nrm(k, shape, scale=0.05):
        return (scale * jax.random.normal(k, shape)).astype(jnp.float32)

    keys = jax.random.split(key, 16)
    p = {}
    # conv weights in PyTorch layout (OC, IC, KH, KW)
    p["w1"] = nrm(keys[0], (32, 3, 8, 8));    p["b1"] = nrm(keys[1], (32,))
    p["w2"] = nrm(keys[2], (64, 32, 4, 4));   p["b2"] = nrm(keys[3], (64,))
    p["w3"] = nrm(keys[4], (64, 64, 3, 3));   p["b3"] = nrm(keys[5], (64,))
    p["w4"] = nrm(keys[6], (128, 64, 3, 3));  p["b4"] = nrm(keys[7], (128,))
    for i, c in zip(range(1, 5), (32, 64, 64, 128)):
        p[f"bn{i}_gamma"] = jnp.ones((c,), jnp.float32)
        p[f"bn{i}_beta"] = jnp.zeros((c,), jnp.float32)
        p[f"bn{i}_mean"] = jnp.zeros((c,), jnp.float32)
        p[f"bn{i}_var"] = jnp.ones((c,), jnp.float32)
    # fc weights stored as (in, out)
    p["fc1_w"] = nrm(keys[8], (10 * 10 * 128, 512), 0.01)
    p["fc1_b"] = nrm(keys[9], (512,), 0.01)
    p["fc2_w"] = nrm(keys[10], (512, 256), 0.01)
    p["fc2_b"] = nrm(keys[11], (256,), 0.01)
    p["fc3_w"] = nrm(keys[12], (256, action_size), 0.01)
    p["fc3_b"] = nrm(keys[13], (action_size,), 0.01)
    return p


# ----------------------------------------------------------------------------
# Forward pass (matches Network.forward)
# ----------------------------------------------------------------------------
def network_forward(params, state_nchw):
    p = params
    x = jnp.transpose(state_nchw, (0, 2, 3, 1))   # NCHW -> NHWC

    # conv1: M = B*30*30 = 1800 -> 3 parallel M tiles of 600.
    x = conv_bn_relu(x, p["w1"], p["b1"], p["bn1_gamma"], p["bn1_beta"],
                     p["bn1_mean"], p["bn1_var"], stride=4, tm=600)
    # conv2-4: tiny layers -> single full-M tile each (1 grid step).
    x = conv_bn_relu(x, p["w2"], p["b2"], p["bn2_gamma"], p["bn2_beta"],
                     p["bn2_mean"], p["bn2_var"], stride=2)
    x = conv_bn_relu(x, p["w3"], p["b3"], p["bn3_gamma"], p["bn3_beta"],
                     p["bn3_mean"], p["bn3_var"], stride=1)
    x = conv_bn_relu(x, p["w4"], p["b4"], p["bn4_gamma"], p["bn4_beta"],
                     p["bn4_mean"], p["bn4_var"], stride=1)

    # Flatten in PyTorch (NCHW) order: (B, C, H, W) -> (B, C*H*W)
    B = x.shape[0]
    x = jnp.transpose(x, (0, 3, 1, 2)).reshape(B, -1)

    # fc1: K=12800 split into 5 tiles of 2560; N=512 split into 2 tiles of 256
    # (keeps weight tiles ~1.25 MiB bf16 and gives both v7x cores work).
    x = linear(x, p["fc1_w"], p["fc1_b"], apply_relu=True,
               tm=8, tn=256, tk=2560)
    x = linear(x, p["fc2_w"], p["fc2_b"], apply_relu=True,
               tm=8, tn=128, tk=512)
    x = linear(x, p["fc3_w"], p["fc3_b"], apply_relu=False, tm=8)
    return x


if __name__ == "__main__":
    action_size = 4
    batch = 2
    # fc1 = Linear(10*10*128, 512) implies 124x124 spatial input:
    # 124 -(k8,s4)-> 30 -(k4,s2)-> 14 -(k3,s1)-> 12 -(k3,s1)-> 10
    key = jax.random.PRNGKey(0)
    k_x, k_p = jax.random.split(key)
    state = jax.random.normal(k_x, (batch, 3, 124, 124), dtype=jnp.float32)

    params = init_params(k_p, action_size)

    fwd = jax.jit(functools.partial(network_forward, params))
    out = fwd(state)
    jax.block_until_ready(out)

    assert out.shape == (batch, action_size), out.shape
    assert jnp.all(jnp.isfinite(out))
    print("KERNEL_OK")
</pallas_src>

<mosaic_0001>
module attributes {stable_mosaic.version = 11 : i64} {
  func.func @_matmul_bias_kernel(%arg0: i32, %arg1: i32, %arg2: i32, %arg3: memref<600x512xbf16, #tpu.memory_space<vmem>>, %arg4: memref<512x32xbf16, #tpu.memory_space<vmem>>, %arg5: memref<1x32xf32, #tpu.memory_space<vmem>>, %arg6: memref<600x32xf32, #tpu.memory_space<vmem>>) attributes {dimension_semantics = [#tpu.dimension_semantics<parallel>, #tpu.dimension_semantics<parallel>, #tpu.dimension_semantics<arbitrary>], iteration_bounds = array<i64: 3, 1, 1>, scalar_prefetch = 0 : i64, scratch_operands = 0 : i64, tpu.core_type = #tpu.core_type<tc>, window_params = [{transform_indices = @transform_0, window_bounds = array<i64: 600, 512>}, {transform_indices = @transform_1, window_bounds = array<i64: 512, 32>}, {transform_indices = @transform_2, window_bounds = array<i64: 1, 32>}, {transform_indices = @transform_3, window_bounds = array<i64: 600, 32>}]} {
    %c0 = arith.constant 0 : index
    %c0_0 = arith.constant 0 : index
    %0 = vector.load %arg3[%c0, %c0_0] : memref<600x512xbf16, #tpu.memory_space<vmem>>, vector<600x512xbf16>
    %c0_1 = arith.constant 0 : index
    %c0_2 = arith.constant 0 : index
    %1 = vector.load %arg4[%c0_1, %c0_2] : memref<512x32xbf16, #tpu.memory_space<vmem>>, vector<512x32xbf16>
    %cst = arith.constant dense<0.000000e+00> : vector<600x32xf32>
    %2 = tpu.matmul %0, %1, %cst {dimension_numbers = #tpu.dot_dimension_numbers<[1], [0], [0], [1], [0, 0, 1, 1], [], []>} : vector<600x512xbf16>, vector<512x32xbf16>, vector<600x32xf32> -> vector<600x32xf32>
    %c0_3 = arith.constant 0 : index
    %c0_4 = arith.constant 0 : index
    %3 = vector.load %arg5[%c0_3, %c0_4] : memref<1x32xf32, #tpu.memory_space<vmem>>, vector<1x32xf32>
    %4 = vector.broadcast %3 : vector<1x32xf32> to vector<600x32xf32>
    %5 = arith.addf %2, %4 : vector<600x32xf32>
    %cst_5 = arith.constant 0.000000e+00 : f32
    %6 = vector.broadcast %cst_5 : f32 to vector<600x32xf32>
    %7 = arith.maximumf %5, %6 : vector<600x32xf32>
    %c0_6 = arith.constant 0 : index
    %c0_7 = arith.constant 0 : index
    %8 = vector.load %arg6[%c0_6, %c0_7] : memref<600x32xf32, #tpu.memory_space<vmem>>, vector<600x32xf32>
    tpu.vector_store %arg6[%c0_6, %c0_7], %7 {strides = array<i32>} : memref<600x32xf32, #tpu.memory_space<vmem>>, vector<600x32xf32>,
    return
  }
  func.func @transform_0(%arg0: i32, %arg1: i32, %arg2: i32) -> (i32, i32) {
    %c0_i32 = arith.constant 0 : i32
    return %arg0, %arg2 : i32, i32
  }
  func.func @transform_1(%arg0: i32, %arg1: i32, %arg2: i32) -> (i32, i32) {
    %c0_i32 = arith.constant 0 : i32
    return %arg2, %arg1 : i32, i32
  }
  func.func @transform_2(%arg0: i32, %arg1: i32, %arg2: i32) -> (i32, i32) {
    %c0_i32 = arith.constant 0 : i32
    %c0_i32_0 = arith.constant 0 : i32
    return %c0_i32, %arg1 : i32, i32
  }
  func.func @transform_3(%arg0: i32, %arg1: i32, %arg2: i32) -> (i32, i32) {
    %c0_i32 = arith.constant 0 : i32
    return %arg0, %arg1 : i32, i32
  }
}

module attributes {stable_mosaic.version = 11 : i64} {
  func.func @_matmul_bias_kernel(%arg0: i32, %arg1: i32, %arg2: i32, %arg3: memref<392x512xbf16, #tpu.memory_space<vmem>>, %arg4: memref<512x64xbf16, #tpu.memory_space<vmem>>, %arg5: memref<1x64xf32, #tpu.memory_space<vmem>>, %arg6: memref<392x64xf32, #tpu.memory_space<vmem>>) attributes {dimension_semantics = [#tpu.dimension_semantics<parallel>, #tpu.dimension_semantics<parallel>, #tpu.dimension_semantics<arbitrary>], iteration_bounds = array<i64: 1, 1, 1>, scalar_prefetch = 0 : i64, scratch_operands = 0 : i64, tpu.core_type = #tpu.core_type<tc>, window_params = [{transform_indices = @transform_0, window_bounds = array<i64: 392, 512>}, {transform_indices = @transform_1, window_bounds = array<i64: 512, 64>}, {transform_indices = @transform_2, window_bounds = array<i64: 1, 64>}, {transform_indices = @transform_3, window_bounds = array<i64: 392, 64>}]} {
    %c0 = arith.constant 0 : index
    %c0_0 = arith.constant 0 : index
    %0 = vector.load %arg3[%c0, %c0_0] : memref<392x512xbf16, #tpu.memory_space<vmem>>, vector<392x512xbf16>
    %c0_1 = arith.constant 0 : index
    %c0_2 = arith.constant 0 : index
    %1 = vector.load %arg4[%c0_1, %c0_2] : memref<512x64xbf16, #tpu.memory_space<vmem>>, vector<512x64xbf16>
    %cst = arith.constant dense<0.000000e+00> : vector<392x64xf32>
    %2 = tpu.matmul %0, %1, %cst {dimension_numbers = #tpu.dot_dimension_numbers<[1], [0], [0], [1], [0, 0, 1, 1], [], []>} : vector<392x512xbf16>, vector<512x64xbf16>, vector<392x64xf32> -> vector<392x64xf32>
    %c0_3 = arith.constant 0 : index
    %c0_4 = arith.constant 0 : index
    %3 = vector.load %arg5[%c0_3, %c0_4] : memref<1x64xf32, #tpu.memory_space<vmem>>, vector<1x64xf32>
    %4 = vector.broadcast %3 : vector<1x64xf32> to vector<392x64xf32>
    %5 = arith.addf %2, %4 : vector<392x64xf32>
    %cst_5 = arith.constant 0.000000e+00 : f32
    %6 = vector.broadcast %cst_5 : f32 to vector<392x64xf32>
    %7 = arith.maximumf %5, %6 : vector<392x64xf32>
    %c0_6 = arith.constant 0 : index
    %c0_7 = arith.constant 0 : index
    %8 = vector.load %arg6[%c0_6, %c0_7] : memref<392x64xf32, #tpu.memory_space<vmem>>, vector<392x64xf32>
    tpu.vector_store %arg6[%c0_6, %c0_7], %7 {strides = array<i32>} : memref<392x64xf32, #tpu.memory_space<vmem>>, vector<392x64xf32>,
    return
  }
  func.func @transform_0(%arg0: i32, %arg1: i32, %arg2: i32) -> (i32, i32) {
    %c0_i32 = arith.constant 0 : i32
    return %arg0, %arg2 : i32, i32
  }
  func.func @transform_1(%arg0: i32, %arg1: i32, %arg2: i32) -> (i32, i32) {
    %c0_i32 = arith.constant 0 : i32
    return %arg2, %arg1 : i32, i32
  }
  func.func @transform_2(%arg0: i32, %arg1: i32, %arg2: i32) -> (i32, i32) {
    %c0_i32 = arith.constant 0 : i32
    %c0_i32_0 = arith.constant 0 : i32
    return %c0_i32, %arg1 : i32, i32
  }
  func.func @transform_3(%arg0: i32, %arg1: i32, %arg2: i32) -> (i32, i32) {
    %c0_i32 = arith.constant 0 : i32
    return %arg0, %arg1 : i32, i32
  }
}

module attributes {stable_mosaic.version = 11 : i64} {
  func.func @_matmul_bias_kernel(%arg0: i32, %arg1: i32, %arg2: i32, %arg3: memref<288x576xbf16, #tpu.memory_space<vmem>>, %arg4: memref<576x64xbf16, #tpu.memory_space<vmem>>, %arg5: memref<1x64xf32, #tpu.memory_space<vmem>>, %arg6: memref<288x64xf32, #tpu.memory_space<vmem>>) attributes {dimension_semantics = [#tpu.dimension_semantics<parallel>, #tpu.dimension_semantics<parallel>, #tpu.dimension_semantics<arbitrary>], iteration_bounds = array<i64: 1, 1, 1>, scalar_prefetch = 0 : i64, scratch_operands = 0 : i64, tpu.core_type = #tpu.core_type<tc>, window_params = [{transform_indices = @transform_0, window_bounds = array<i64: 288, 576>}, {transform_indices = @transform_1, window_bounds = array<i64: 576, 64>}, {transform_indices = @transform_2, window_bounds = array<i64: 1, 64>}, {transform_indices = @transform_3, window_bounds = array<i64: 288, 64>}]} {
    %c0 = arith.constant 0 : index
    %c0_0 = arith.constant 0 : index
    %0 = vector.load %arg3[%c0, %c0_0] : memref<288x576xbf16, #tpu.memory_space<vmem>>, vector<288x576xbf16>
    %c0_1 = arith.constant 0 : index
    %c0_2 = arith.constant 0 : index
    %1 = vector.load %arg4[%c0_1, %c0_2] : memref<576x64xbf16, #tpu.memory_space<vmem>>, vector<576x64xbf16>
    %cst = arith.constant dense<0.000000e+00> : vector<288x64xf32>
    %2 = tpu.matmul %0, %1, %cst {dimension_numbers = #tpu.dot_dimension_numbers<[1], [0], [0], [1], [0, 0, 1, 1], [], []>} : vector<288x576xbf16>, vector<576x64xbf16>, vector<288x64xf32> -> vector<288x64xf32>
    %c0_3 = arith.constant 0 : index
    %c0_4 = arith.constant 0 : index
    %3 = vector.load %arg5[%c0_3, %c0_4] : memref<1x64xf32, #tpu.memory_space<vmem>>, vector<1x64xf32>
    %4 = vector.broadcast %3 : vector<1x64xf32> to vector<288x64xf32>
    %5 = arith.addf %2, %4 : vector<288x64xf32>
    %cst_5 = arith.constant 0.000000e+00 : f32
    %6 = vector.broadcast %cst_5 : f32 to vector<288x64xf32>
    %7 = arith.maximumf %5, %6 : vector<288x64xf32>
    %c0_6 = arith.constant 0 : index
    %c0_7 = arith.constant 0 : index
    %8 = vector.load %arg6[%c0_6, %c0_7] : memref<288x64xf32, #tpu.memory_space<vmem>>, vector<288x64xf32>
    tpu.vector_store %arg6[%c0_6, %c0_7], %7 {strides = array<i32>} : memref<288x64xf32, #tpu.memory_space<vmem>>, vector<288x64xf32>,
    return
  }
  func.func @transform_0(%arg0: i32, %arg1: i32, %arg2: i32) -> (i32, i32) {
    %c0_i32 = arith.constant 0 : i32
    return %arg0, %arg2 : i32, i32
  }
  func.func @transform_1(%arg0: i32, %arg1: i32, %arg2: i32) -> (i32, i32) {
    %c0_i32 = arith.constant 0 : i32
    return %arg2, %arg1 : i32, i32
  }
  func.func @transform_2(%arg0: i32, %arg1: i32, %arg2: i32) -> (i32, i32) {
    %c0_i32 = arith.constant 0 : i32
    %c0_i32_0 = arith.constant 0 : i32
    return %c0_i32, %arg1 : i32, i32
  }
  func.func @transform_3(%arg0: i32, %arg1: i32, %arg2: i32) -> (i32, i32) {
    %c0_i32 = arith.constant 0 : i32
    return %arg0, %arg1 : i32, i32
  }
}

module attributes {stable_mosaic.version = 11 : i64} {
  func.func @_matmul_bias_kernel(%arg0: i32, %arg1: i32, %arg2: i32, %arg3: memref<200x576xbf16, #tpu.memory_space<vmem>>, %arg4: memref<576x128xbf16, #tpu.memory_space<vmem>>, %arg5: memref<1x128xf32, #tpu.memory_space<vmem>>, %arg6: memref<200x128xf32, #tpu.memory_space<vmem>>) attributes {dimension_semantics = [#tpu.dimension_semantics<parallel>, #tpu.dimension_semantics<parallel>, #tpu.dimension_semantics<arbitrary>], iteration_bounds = array<i64: 1, 1, 1>, scalar_prefetch = 0 : i64, scratch_operands = 0 : i64, tpu.core_type = #tpu.core_type<tc>, window_params = [{transform_indices = @transform_0, window_bounds = array<i64: 200, 576>}, {transform_indices = @transform_1, window_bounds = array<i64: 576, 128>}, {transform_indices = @transform_2, window_bounds = array<i64: 1, 128>}, {transform_indices = @transform_3, window_bounds = array<i64: 200, 128>}]} {
    %c0 = arith.constant 0 : index
    %c0_0 = arith.constant 0 : index
    %0 = vector.load %arg3[%c0, %c0_0] : memref<200x576xbf16, #tpu.memory_space<vmem>>, vector<200x576xbf16>
    %c0_1 = arith.constant 0 : index
    %c0_2 = arith.constant 0 : index
    %1 = vector.load %arg4[%c0_1, %c0_2] : memref<576x128xbf16, #tpu.memory_space<vmem>>, vector<576x128xbf16>
    %cst = arith.constant dense<0.000000e+00> : vector<200x128xf32>
    %2 = tpu.matmul %0, %1, %cst {dimension_numbers = #tpu.dot_dimension_numbers<[1], [0], [0], [1], [0, 0, 1, 1], [], []>} : vector<200x576xbf16>, vector<576x128xbf16>, vector<200x128xf32> -> vector<200x128xf32>
    %c0_3 = arith.constant 0 : index
    %c0_4 = arith.constant 0 : index
    %3 = vector.load %arg5[%c0_3, %c0_4] : memref<1x128xf32, #tpu.memory_space<vmem>>, vector<1x128xf32>
    %4 = vector.broadcast %3 : vector<1x128xf32> to vector<200x128xf32>
    %5 = arith.addf %2, %4 : vector<200x128xf32>
    %cst_5 = arith.constant 0.000000e+00 : f32
    %6 = vector.broadcast %cst_5 : f32 to vector<200x128xf32>
    %7 = arith.maximumf %5, %6 : vector<200x128xf32>
    %c0_6 = arith.constant 0 : index
    %c0_7 = arith.constant 0 : index
    %8 = vector.load %arg6[%c0_6, %c0_7] : memref<200x128xf32, #tpu.memory_space<vmem>>, vector<200x128xf32>
    tpu.vector_store %arg6[%c0_6, %c0_7], %7 {strides = array<i32>} : memref<200x128xf32, #tpu.memory_space<vmem>>, vector<200x128xf32>,
    return
  }
  func.func @transform_0(%arg0: i32, %arg1: i32, %arg2: i32) -> (i32, i32) {
    %c0_i32 = arith.constant 0 : i32
    return %arg0, %arg2 : i32, i32
  }
  func.func @transform_1(%arg0: i32, %arg1: i32, %arg2: i32) -> (i32, i32) {
    %c0_i32 = arith.constant 0 : i32
    return %arg2, %arg1 : i32, i32
  }
  func.func @transform_2(%arg0: i32, %arg1: i32, %arg2: i32) -> (i32, i32) {
    %c0_i32 = arith.constant 0 : i32
    %c0_i32_0 = arith.constant 0 : i32
    return %c0_i32, %arg1 : i32, i32
  }
  func.func @transform_3(%arg0: i32, %arg1: i32, %arg2: i32) -> (i32, i32) {
    %c0_i32 = arith.constant 0 : i32
    return %arg0, %arg1 : i32, i32
  }
}

module attributes {stable_mosaic.version = 11 : i64} {
  func.func @_matmul_bias_kernel(%arg0: i32, %arg1: i32, %arg2: i32, %arg3: memref<8x2560xbf16, #tpu.memory_space<vmem>>, %arg4: memref<2560x256xbf16, #tpu.memory_space<vmem>>, %arg5: memref<1x256xf32, #tpu.memory_space<vmem>>, %arg6: memref<8x256xf32, #tpu.memory_space<vmem>>) attributes {dimension_semantics = [#tpu.dimension_semantics<parallel>, #tpu.dimension_semantics<parallel>, #tpu.dimension_semantics<arbitrary>], iteration_bounds = array<i64: 1, 2, 5>, scalar_prefetch = 0 : i64, scratch_operands = 0 : i64, tpu.core_type = #tpu.core_type<tc>, window_params = [{transform_indices = @transform_0, window_bounds = array<i64: 8, 2560>}, {transform_indices = @transform_1, window_bounds = array<i64: 2560, 256>}, {transform_indices = @transform_2, window_bounds = array<i64: 1, 256>}, {transform_indices = @transform_3, window_bounds = array<i64: 8, 256>}]} {
    %c0_i32 = arith.constant 0 : i32
    %0 = arith.cmpi eq, %arg2, %c0_i32 : i32
    %1 = arith.extui %0 : i1 to i32
    %c0_i32_0 = arith.constant 0 : i32
    %2 = arith.cmpi ne, %1, %c0_i32_0 : i32
    scf.if %2 {
      %cst_9 = arith.constant 0.000000e+00 : f32
      %12 = vector.broadcast %cst_9 : f32 to vector<8x256xf32>
      %c0_10 = arith.constant 0 : index
      %c0_11 = arith.constant 0 : index
      %13 = vector.load %arg6[%c0_10, %c0_11] : memref<8x256xf32, #tpu.memory_space<vmem>>, vector<8x256xf32>
      tpu.vector_store %arg6[%c0_10, %c0_11], %12 {strides = array<i32>} : memref<8x256xf32, #tpu.memory_space<vmem>>, vector<8x256xf32>,
    } else {
    }
    %c0 = arith.constant 0 : index
    %c0_1 = arith.constant 0 : index
    %3 = vector.load %arg6[%c0, %c0_1] : memref<8x256xf32, #tpu.memory_space<vmem>>, vector<8x256xf32>
    %c0_2 = arith.constant 0 : index
    %c0_3 = arith.constant 0 : index
    %4 = vector.load %arg3[%c0_2, %c0_3] : memref<8x2560xbf16, #tpu.memory_space<vmem>>, vector<8x2560xbf16>
    %c0_4 = arith.constant 0 : index
    %c0_5 = arith.constant 0 : index
    %5 = vector.load %arg4[%c0_4, %c0_5] : memref<2560x256xbf16, #tpu.memory_space<vmem>>, vector<2560x256xbf16>
    %cst = arith.constant dense<0.000000e+00> : vector<8x256xf32>
    %6 = tpu.matmul %4, %5, %cst {dimension_numbers = #tpu.dot_dimension_numbers<[1], [0], [0], [1], [0, 0, 1, 1], [], []>} : vector<8x2560xbf16>, vector<2560x256xbf16>, vector<8x256xf32> -> vector<8x256xf32>
    %7 = arith.addf %3, %6 : vector<8x256xf32>
    %c0_6 = arith.constant 0 : index
    %c0_7 = arith.constant 0 : index
    %8 = vector.load %arg6[%c0_6, %c0_7] : memref<8x256xf32, #tpu.memory_space<vmem>>, vector<8x256xf32>
    tpu.vector_store %arg6[%c0_6, %c0_7], %7 {strides = array<i32>} : memref<8x256xf32, #tpu.memory_space<vmem>>, vector<8x256xf32>,
    %c4_i32 = arith.constant 4 : i32
    %9 = arith.cmpi eq, %arg2, %c4_i32 : i32
    %10 = arith.extui %9 : i1 to i32
    %c0_i32_8 = arith.constant 0 : i32
    %11 = arith.cmpi ne, %10, %c0_i32_8 : i32
    scf.if %11 {
      %c0_9 = arith.constant 0 : index
      %c0_10 = arith.constant 0 : index
      %12 = vector.load %arg6[%c0_9, %c0_10] : memref<8x256xf32, #tpu.memory_space<vmem>>, vector<8x256xf32>
      %c0_11 = arith.constant 0 : index
      %c0_12 = arith.constant 0 : index
      %13 = vector.load %arg5[%c0_11, %c0_12] : memref<1x256xf32, #tpu.memory_space<vmem>>, vector<1x256xf32>
      %14 = vector.broadcast %13 : vector<1x256xf32> to vector<8x256xf32>
      %15 = arith.addf %12, %14 : vector<8x256xf32>
      %cst_13 = arith.constant 0.000000e+00 : f32
      %16 = vector.broadcast %cst_13 : f32 to vector<8x256xf32>
      %17 = arith.maximumf %15, %16 : vector<8x256xf32>
      %c0_14 = arith.constant 0 : index
      %c0_15 = arith.constant 0 : index
      %18 = vector.load %arg6[%c0_14, %c0_15] : memref<8x256xf32, #tpu.memory_space<vmem>>, vector<8x256xf32>
      tpu.vector_store %arg6[%c0_14, %c0_15], %17 {strides = array<i32>} : memref<8x256xf32, #tpu.memory_space<vmem>>, vector<8x256xf32>,
    } else {
    }
    return
  }
  func.func @transform_0(%arg0: i32, %arg1: i32, %arg2: i32) -> (i32, i32) {
    %c0_i32 = arith.constant 0 : i32
    return %arg0, %arg2 : i32, i32
  }
  func.func @transform_1(%arg0: i32, %arg1: i32, %arg2: i32) -> (i32, i32) {
    %c0_i32 = arith.constant 0 : i32
    return %arg2, %arg1 : i32, i32
  }
  func.func @transform_2(%arg0: i32, %arg1: i32, %arg2: i32) -> (i32, i32) {
    %c0_i32 = arith.constant 0 : i32
    %c0_i32_0 = arith.constant 0 : i32
    return %c0_i32, %arg1 : i32, i32
  }
  func.func @transform_3(%arg0: i32, %arg1: i32, %arg2: i32) -> (i32, i32) {
    %c0_i32 = arith.constant 0 : i32
    return %arg0, %arg1 : i32, i32
  }
}

module attributes {stable_mosaic.version = 11 : i64} {
  func.func @_matmul_bias_kernel(%arg0: i32, %arg1: i32, %arg2: i32, %arg3: memref<8x512xbf16, #tpu.memory_space<vmem>>, %arg4: memref<512x128xbf16, #tpu.memory_space<vmem>>, %arg5: memref<1x128xf32, #tpu.memory_space<vmem>>, %arg6: memref<8x128xf32, #tpu.memory_space<vmem>>) attributes {dimension_semantics = [#tpu.dimension_semantics<parallel>, #tpu.dimension_semantics<parallel>, #tpu.dimension_semantics<arbitrary>], iteration_bounds = array<i64: 1, 2, 1>, scalar_prefetch = 0 : i64, scratch_operands = 0 : i64, tpu.core_type = #tpu.core_type<tc>, window_params = [{transform_indices = @transform_0, window_bounds = array<i64: 8, 512>}, {transform_indices = @transform_1, window_bounds = array<i64: 512, 128>}, {transform_indices = @transform_2, window_bounds = array<i64: 1, 128>}, {transform_indices = @transform_3, window_bounds = array<i64: 8, 128>}]} {
    %c0 = arith.constant 0 : index
    %c0_0 = arith.constant 0 : index
    %0 = vector.load %arg3[%c0, %c0_0] : memref<8x512xbf16, #tpu.memory_space<vmem>>, vector<8x512xbf16>
    %c0_1 = arith.constant 0 : index
    %c0_2 = arith.constant 0 : index
    %1 = vector.load %arg4[%c0_1, %c0_2] : memref<512x128xbf16, #tpu.memory_space<vmem>>, vector<512x128xbf16>
    %cst = arith.constant dense<0.000000e+00> : vector<8x128xf32>
    %2 = tpu.matmul %0, %1, %cst {dimension_numbers = #tpu.dot_dimension_numbers<[1], [0], [0], [1], [0, 0, 1, 1], [], []>} : vector<8x512xbf16>, vector<512x128xbf16>, vector<8x128xf32> -> vector<8x128xf32>
    %c0_3 = arith.constant 0 : index
    %c0_4 = arith.constant 0 : index
    %3 = vector.load %arg5[%c0_3, %c0_4] : memref<1x128xf32, #tpu.memory_space<vmem>>, vector<1x128xf32>
    %4 = vector.broadcast %3 : vector<1x128xf32> to vector<8x128xf32>
    %5 = arith.addf %2, %4 : vector<8x128xf32>
    %cst_5 = arith.constant 0.000000e+00 : f32
    %6 = vector.broadcast %cst_5 : f32 to vector<8x128xf32>
    %7 = arith.maximumf %5, %6 : vector<8x128xf32>
    %c0_6 = arith.constant 0 : index
    %c0_7 = arith.constant 0 : index
    %8 = vector.load %arg6[%c0_6, %c0_7] : memref<8x128xf32, #tpu.memory_space<vmem>>, vector<8x128xf32>
    tpu.vector_store %arg6[%c0_6, %c0_7], %7 {strides = array<i32>} : memref<8x128xf32, #tpu.memory_space<vmem>>, vector<8x128xf32>,
    return
  }
  func.func @transform_0(%arg0: i32, %arg1: i32, %arg2: i32) -> (i32, i32) {
    %c0_i32 = arith.constant 0 : i32
    return %arg0, %arg2 : i32, i32
  }
  func.func @transform_1(%arg0: i32, %arg1: i32, %arg2: i32) -> (i32, i32) {
    %c0_i32 = arith.constant 0 : i32
    return %arg2, %arg1 : i32, i32
  }
  func.func @transform_2(%arg0: i32, %arg1: i32, %arg2: i32) -> (i32, i32) {
    %c0_i32 = arith.constant 0 : i32
    %c0_i32_0 = arith.constant 0 : i32
    return %c0_i32, %arg1 : i32, i32
  }
  func.func @transform_3(%arg0: i32, %arg1: i32, %arg2: i32) -> (i32, i32) {
    %c0_i32 = arith.constant 0 : i32
    return %arg0, %arg1 : i32, i32
  }
}

module attributes {stable_mosaic.version = 11 : i64} {
  func.func @_matmul_bias_kernel(%arg0: i32, %arg1: i32, %arg2: i32, %arg3: memref<8x256xbf16, #tpu.memory_space<vmem>>, %arg4: memref<256x4xbf16, #tpu.memory_space<vmem>>, %arg5: memref<1x4xf32, #tpu.memory_space<vmem>>, %arg6: memref<8x4xf32, #tpu.memory_space<vmem>>) attributes {dimension_semantics = [#tpu.dimension_semantics<parallel>, #tpu.dimension_semantics<parallel>, #tpu.dimension_semantics<arbitrary>], iteration_bounds = array<i64: 1, 1, 1>, scalar_prefetch = 0 : i64, scratch_operands = 0 : i64, tpu.core_type = #tpu.core_type<tc>, window_params = [{transform_indices = @transform_0, window_bounds = array<i64: 8, 256>}, {transform_indices = @transform_1, window_bounds = array<i64: 256, 4>}, {transform_indices = @transform_2, window_bounds = array<i64: 1, 4>}, {transform_indices = @transform_3, window_bounds = array<i64: 8, 4>}]} {
    %c0 = arith.constant 0 : index
    %c0_0 = arith.constant 0 : index
    %0 = vector.load %arg3[%c0, %c0_0] : memref<8x256xbf16, #tpu.memory_space<vmem>>, vector<8x256xbf16>
    %c0_1 = arith.constant 0 : index
    %c0_2 = arith.constant 0 : index
    %1 = vector.load %arg4[%c0_1, %c0_2] : memref<256x4xbf16, #tpu.memory_space<vmem>>, vector<256x4xbf16>
    %cst = arith.constant dense<0.000000e+00> : vector<8x4xf32>
    %2 = tpu.matmul %0, %1, %cst {dimension_numbers = #tpu.dot_dimension_numbers<[1], [0], [0], [1], [0, 0, 1, 1], [], []>} : vector<8x256xbf16>, vector<256x4xbf16>, vector<8x4xf32> -> vector<8x4xf32>
    %c0_3 = arith.constant 0 : index
    %c0_4 = arith.constant 0 : index
    %3 = vector.load %arg5[%c0_3, %c0_4] : memref<1x4xf32, #tpu.memory_space<vmem>>, vector<1x4xf32>
    %4 = vector.broadcast %3 : vector<1x4xf32> to vector<8x4xf32>
    %5 = arith.addf %2, %4 : vector<8x4xf32>
    %c0_5 = arith.constant 0 : index
    %c0_6 = arith.constant 0 : index
    %6 = vector.load %arg6[%c0_5, %c0_6] : memref<8x4xf32, #tpu.memory_space<vmem>>, vector<8x4xf32>
    tpu.vector_store %arg6[%c0_5, %c0_6], %5 {strides = array<i32>} : memref<8x4xf32, #tpu.memory_space<vmem>>, vector<8x4xf32>,
    return
  }
  func.func @transform_0(%arg0: i32, %arg1: i32, %arg2: i32) -> (i32, i32) {
    %c0_i32 = arith.constant 0 : i32
    return %arg0, %arg2 : i32, i32
  }
  func.func @transform_1(%arg0: i32, %arg1: i32, %arg2: i32) -> (i32, i32) {
    %c0_i32 = arith.constant 0 : i32
    return %arg2, %arg1 : i32, i32
  }
  func.func @transform_2(%arg0: i32, %arg1: i32, %arg2: i32) -> (i32, i32) {
    %c0_i32 = arith.constant 0 : i32
    %c0_i32_0 = arith.constant 0 : i32
    return %c0_i32, %arg1 : i32, i32
  }
  func.func @transform_3(%arg0: i32, %arg1: i32, %arg2: i32) -> (i32, i32) {
    %c0_i32 = arith.constant 0 : i32
    return %arg0, %arg1 : i32, i32
  }
}

</mosaic_0001>

<llo_original>
// kernel: network_forward.7
$region0: #{network_forward.7}
  #allocation0 [shape = 'u32[]', space=smem, size = 0x4, offset = 0x4, fixed_abs, tag = 'smem constant byte address 0x4 - core index']
  #allocation1 [shape = 'u32[144,128]{1,0:T(1,128)}', space=vmem, size = 0x12000, scoped, tag = 'internal scratch']
  %s0 = inlined_call_operand.vmem [shape: bf16[1800,512], index: 0, kind: input, shape index: {}]
  %s1 = inlined_call_operand.vmem [shape: bf16[512,32], index: 1, kind: input, shape index: {}]
  %s2 = inlined_call_operand.vmem [shape: f32[1,32], index: 2, kind: input, shape index: {}]
  %s3 = inlined_call_operand.vmem [shape: f32[1800,32], index: 3, kind: output, shape index: {}]
  %s4 = sld [smem:[#allocation0]]
  $region45: #{network_forward.7} parent=0
    _
  %s6 = ssub.s32 1, %s4
  %s7 = scalar_select 0, %s6, %s4
  loop: start=0, step=1, limit=5
  $region2: #{network_forward.7} parent=0 // loop_pre_header
    _
  $region3: #{network_forward.7} parent=0 // loop_header
    %s9 = sphi 0, %s13
    %p10 = scmp.ge.s32.totalorder %s9, 5
    %s16 = sphi 0, %s35
    %s17 = sphi 0, %s31
    %s18 = sphi 0, %s27
    %s19 = sphi 0, %s16
    %s20 = sphi 0, %s17
    %s21 = sphi 0, %s18
    %s22 = sphi 0, %s19
    %s23 = sphi 0, %s20
    %s24 = sphi 0, %s21
    %s40 = sphi 0, %s42
    %s43 = sphi 0, %s40
    %s44 = sphi 0, %s43
    %s60 = sphi 0, %s44
    %s68 = sphi 0, %s70
    %s71 = sphi 0, %s68
    %s72 = sphi 0, %s71
    %s88 = sphi 0, %s72
    %s94 = sphi 0, %s96
    %s97 = sphi 0, %s94
    %s98 = sphi 0, %s97
    %s114 = sphi 0, %s98
    %s122 = sphi 0, %s124
    %s125 = sphi 0, %s122
    %s126 = sphi 0, %s125
    %s142 = sphi 0, %s126
  $region4: #{network_forward.7} parent=0 // loop_header_branch
    %12 = sbr.rel (%p10) target = $region8
  $region5: #{network_forward.7} parent=0 // loop_body
    %s14 = ssub.s32 %s9, 1
    %s15 = ssub.s32 %s9, 2
    %s25 = sadd.s32 1, %s18
    %p26 = scmp.ge.s32.totalorder %s25, 1
    %s27 = scalar_select %p26, 0, %s25
    %s28 = sadd.s32 1, %s17
    %s29 = scalar_select %p26, %s28, %s17
    %p30 = scmp.ge.s32.totalorder %s29, 1
    %s31 = scalar_select %p30, 0, %s29
    %s32 = sadd.s32 1, %s16
    %s33 = scalar_select %p30, %s32, %s16
    %p34 = scmp.ge.s32.totalorder %s33, 3
    %s35 = scalar_select %p34, 0, %s33
    %s36 = ssub.s32 %s16, %s35
    %s37 = ssub.s32 %s18, %s27
    %s38 = sor.u32 %s36, %s37
    %p39 = scmp.eq.s32.totalorder %s38, 0
    %s41 = sadd.s32 %s40, 1
    %s42 = scalar_select %p39, %s40, %s41
    %p45 = pneg %p39
    %p46 = scmp.eq.s32.totalorder %s9, 2
    %p47 = por %p45, %p46
    %p48 = scmp.ne.s32.totalorder %s40, %s43
    %p49 = scmp.eq.s32.totalorder %s9, 0
    %p50 = por %p48, %p49
    %p51 = scmp.ne.s32.totalorder %s40, %s43
    %p52 = scmp.eq.s32.totalorder %s14, 2
    %p53 = por %p51, %p52
    %p54 = scmp.ne.s32.totalorder %s43, %s44
    %p55 = scmp.eq.s32.totalorder %s14, 0
    %p56 = por %p54, %p55
    %p57 = scmp.ne.s32.totalorder %s43, %s44
    %p58 = scmp.eq.s32.totalorder %s15, 2
    %p59 = por %p57, %p58
    %p61 = scmp.ne.s32.totalorder %s44, %s60
    %p62 = scmp.eq.s32.totalorder %s15, 0
    %p63 = por %p61, %p62
    %s64 = ssub.s32 %s18, %s27
    %s65 = ssub.s32 %s17, %s31
    %s66 = sor.u32 %s64, %s65
    %p67 = scmp.eq.s32.totalorder %s66, 0
    %s69 = sadd.s32 %s68, 1
    %s70 = scalar_select %p67, %s68, %s69
    %p73 = pneg %p67
    %p74 = scmp.eq.s32.totalorder %s9, 2
    %p75 = por %p73, %p74
    %p76 = scmp.ne.s32.totalorder %s68, %s71
    %p77 = scmp.eq.s32.totalorder %s9, 0
    %p78 = por %p76, %p77
    %p79 = scmp.ne.s32.totalorder %s68, %s71
    %p80 = scmp.eq.s32.totalorder %s14, 2
    %p81 = por %p79, %p80
    %p82 = scmp.ne.s32.totalorder %s71, %s72
    %p83 = scmp.eq.s32.totalorder %s14, 0
    %p84 = por %p82, %p83
    %p85 = scmp.ne.s32.totalorder %s71, %s72
    %p86 = scmp.eq.s32.totalorder %s15, 2
    %p87 = por %p85, %p86
    %p89 = scmp.ne.s32.totalorder %s72, %s88
    %p90 = scmp.eq.s32.totalorder %s15, 0
    %p91 = por %p89, %p90
    %s92 = ssub.s32 %s17, %s31
    %p93 = scmp.eq.s32.totalorder %s92, 0
    %s95 = sadd.s32 %s94, 1
    %s96 = scalar_select %p93, %s94, %s95
    %p99 = pneg %p93
    %p100 = scmp.eq.s32.totalorder %s9, 2
    %p101 = por %p99, %p100
    %p102 = scmp.ne.s32.totalorder %s94, %s97
    %p103 = scmp.eq.s32.totalorder %s9, 0
    %p104 = por %p102, %p103
    %p105 = scmp.ne.s32.totalorder %s94, %s97
    %p106 = scmp.eq.s32.totalorder %s14, 2
    %p107 = por %p105, %p106
    %p108 = scmp.ne.s32.totalorder %s97, %s98
    %p109 = scmp.eq.s32.totalorder %s14, 0
    %p110 = por %p108, %p109
    %p111 = scmp.ne.s32.totalorder %s97, %s98
    %p112 = scmp.eq.s32.totalorder %s15, 2
    %p113 = por %p111, %p112
    %p115 = scmp.ne.s32.totalorder %s98, %s114
    %p116 = scmp.eq.s32.totalorder %s15, 0
    %p117 = por %p115, %p116
    %s118 = ssub.s32 %s16, %s35
    %s119 = ssub.s32 %s17, %s31
    %s120 = sor.u32 %s118, %s119
    %p121 = scmp.eq.s32.totalorder %s120, 0
    %s123 = sadd.s32 %s122, 1
    %s124 = scalar_select %p121, %s122, %s123
    %p127 = pneg %p121
    %p128 = scmp.eq.s32.totalorder %s9, 2
    %p129 = por %p127, %p128
    %p130 = scmp.ne.s32.totalorder %s122, %s125
    %p131 = scmp.eq.s32.totalorder %s9, 0
    %p132 = por %p130, %p131
    %p133 = scmp.ne.s32.totalorder %s122, %s125
    %p134 = scmp.eq.s32.totalorder %s14, 2
    %p135 = por %p133, %p134
    %p136 = scmp.ne.s32.totalorder %s125, %s126
    %p137 = scmp.eq.s32.totalorder %s14, 0
    %p138 = por %p136, %p137
    %p139 = scmp.ne.s32.totalorder %s125, %s126
    %p140 = scmp.eq.s32.totalorder %s15, 2
    %p141 = por %p139, %p140
    %p143 = scmp.ne.s32.totalorder %s126, %s142
    %p144 = scmp.eq.s32.totalorder %s15, 0
    %p145 = por %p143, %p144
    %p146 = scmp.le.s32.totalorder 1, %s9
    %p147 = scmp.lt.s32.totalorder %s9, 4
    %p148 = pnand %p146, %p147
    %p149 = pneg %p148
    // Predicated region
    $region9: #{network_forward.7} parent=5 // pred_check
      _
    $region10: #{network_forward.7} parent=5 // pred_check_branch
      %151 = sbr.rel (%p148) target = $region12
    $region11: #{network_forward.7} parent=5 // pred_region
      %s152 = ssub.s32 %s9, 1
      // Predicated region
      $region13: #{network_forward.7} parent=11 // pred_check
        %p153 = pneg %p84
      $region14: #{network_forward.7} parent=11 // pred_check_branch
        %155 = sbr.rel (%p153) target = $region16
      $region15: #{network_forward.7} parent=11 // pred_region
        %s156 = smul.u32 64, %s21
        %p157 = scmp.lt.s32.totalorder %s156, 63
        %s158 = scalar_select %p157, %s156, 63
        %p159 = scmp.lt.s32.totalorder %s20, 0
        %s160 = scalar_select %p159, %s20, 0
        %s161 = sadd.s32 %s160, %s158
        %s162 = smul.addr %s161, 4
        %s163 = scalar_lea.vmem %s1, %s162
        %s164 = smul.u32 64, %s21
      $region16: #{network_forward.7} parent=11 // pred_fallthru
        _
      // Predicated region
      $region17: #{network_forward.7} parent=11 // pred_check
        %p165 = pneg %p110
      $region18: #{network_forward.7} parent=11 // pred_check_branch
        %167 = sbr.rel (%p165) target = $region20
      $region19: #{network_forward.7} parent=11 // pred_region
        %p168 = scmp.lt.s32.totalorder %s20, 0
        %s169 = scalar_select %p168, %s20, 0
        %s170 = scalar_lea.vmem %s2, %s169
      $region20: #{network_forward.7} parent=11 // pred_fallthru
        _
    $region12: #{network_forward.7} parent=5 // pred_fallthru
      _
    %p171 = scmp.lt.s32.totalorder %s9, 3
    // Predicated region
    $region21: #{network_forward.7} parent=5 // pred_check
      %p172 = pneg %p171
    $region22: #{network_forward.7} parent=5 // pred_check_branch
      %174 = sbr.rel (%p172) target = $region24
    $region23: #{network_forward.7} parent=5 // pred_region
      // Predicated region
      $region25: #{network_forward.7} parent=23 // pred_check
        %p175 = pneg %p50
      $region26: #{network_forward.7} parent=23 // pred_check_branch
        %177 = sbr.rel (%p175) target = $region28
      $region27: #{network_forward.7} parent=23 // pred_region
        %s178 = smul.u32 75, %s16
        %s179 = smul.u32 4, %s18
        %p180 = scmp.lt.s32.totalorder %s178, 224
        %s181 = scalar_select %p180, %s178, 224
        %p182 = scmp.lt.s32.totalorder %s179, 3
        %s183 = scalar_select %p182, %s179, 3
        %s184 = smul.addr %s181, 4
        %s185 = sadd.s32 %s183, %s184
        %s186 = smul.addr %s185, 4
        %s187 = scalar_lea.vmem %s0, %s186
        %s188 = smul.u32 75, %s16
        %s189 = smul.u32 4, %s18
      $region28: #{network_forward.7} parent=23 // pred_fallthru
        _
    $region24: #{network_forward.7} parent=5 // pred_fallthru
      _
    %p190 = scmp.le.s32.totalorder 1, %s9
    %p191 = scmp.lt.s32.totalorder %s9, 4
    %p192 = pnand %p190, %p191
    %p193 = pneg %p192
    // Predicated region
    $region29: #{network_forward.7} parent=5 // pred_check
      _
    $region30: #{network_forward.7} parent=5 // pred_check_branch
      %195 = sbr.rel (%p192) target = $region32
    $region31: #{network_forward.7} parent=5 // pred_region
      %s196 = ssub.s32 %s9, 1
      %s197 = smul.u32 75, %s19
      %s198 = smul.u32 4, %s21
      %p199 = scmp.lt.s32.totalorder %s197, 224
      %s200 = scalar_select %p199, %s197, 224
      %p201 = scmp.lt.s32.totalorder %s198, 3
      %s202 = scalar_select %p201, %s198, 3
      %s203 = smul.addr %s200, 4
      %s204 = sadd.s32 %s202, %s203
      %s205 = smul.addr %s204, 4
      %s206 = scalar_lea.vmem %s0, %s205
      %p207 = pneg %p56
      %p208 = pneg %p53
      %s209 = smul.u32 64, %s21
      %p210 = scmp.lt.s32.totalorder %s209, 63
      %s211 = scalar_select %p210, %s209, 63
      %p212 = scmp.lt.s32.totalorder %s20, 0
      %s213 = scalar_select %p212, %s20, 0
      %s214 = sadd.s32 %s213, %s211
      %s215 = smul.addr %s214, 4
      %s216 = scalar_lea.vmem %s1, %s215
      %p217 = pneg %p84
      %p218 = pneg %p81
      %p219 = scmp.lt.s32.totalorder %s20, 0
      %s220 = scalar_select %p219, %s20, 0
      %s221 = scalar_lea.vmem %s2, %s220
      %p222 = pneg %p110
      %p223 = pneg %p107
      %p224 = pneg %p138
      %p225 = pneg %p135
      %s226 = smul.u32 75, %s19
      %p227 = scmp.lt.s32.totalorder %s226, 224
      %s228 = scalar_select %p227, %s226, 224
      %p229 = scmp.lt.s32.totalorder %s20, 0
      %s230 = scalar_select %p229, %s20, 0
      %s231 = sadd.s32 %s230, %s228
      %s232 = smul.addr %s231, 8
      %s233 = scalar_lea.vmem %s3, %s232
      %s234 = smul.u32 75, %s19
      %s235 = smul.u32 4, %s21
      %p236 = scmp.lt.s32.totalorder %s234, 224
      %s237 = scalar_select %p236, %s234, 224
      %p238 = scmp.lt.s32.totalorder %s235, 3
      %s239 = scalar_select %p238, %s235, 3
      %s240 = smul.addr %s237, 4
      %s241 = sadd.s32 %s239, %s240
      %s242 = smul.addr %s241, 4
      %s243 = scalar_lea.vmem %s0, %s242
      %s244 = smul.u32 75, %s19
      %s245 = smul.u32 4, %s21
      %s246 = smul.u32 64, %s21
      %p247 = scmp.lt.s32.totalorder %s246, 63
      %s248 = scalar_select %p247, %s246, 63
      %p249 = scmp.lt.s32.totalorder %s20, 0
      %s250 = scalar_select %p249, %s20, 0
      %s251 = sadd.s32 %s250, %s248
      %s252 = smul.addr %s251, 4
      %s253 = scalar_lea.vmem %s1, %s252
      %s254 = smul.u32 64, %s21
      %p255 = scmp.lt.s32.totalorder %s20, 0
      %s256 = scalar_select %p255, %s20, 0
      %s257 = scalar_lea.vmem %s2, %s256
      %s258 = smul.u32 75, %s19
      %p259 = scmp.lt.s32.totalorder %s258, 224
      %s260 = scalar_select %p259, %s258, 224
      %p261 = scmp.lt.s32.totalorder %s20, 0
      %s262 = scalar_select %p261, %s20, 0
      %s263 = sadd.s32 %s262, %s260
      %s264 = smul.addr %s263, 8
      %s265 = scalar_lea.vmem %s3, %s264
      %s266 = smul.u32 75, %s19
      %v268 = vld [vmem:[%s243] sm:$0xff]
      %v269 = vld [vmem:[%s243 + $0x8] sm:$0xff]
      %v270 = vld [vmem:[%s243 + $0x10] sm:$0xff]
      %v271 = vld [vmem:[%s243 + $0x18] sm:$0xff]
      %v272 = vld [vmem:[%s243 + $0x20] sm:$0xff]
      %v273 = vld [vmem:[%s243 + $0x28] sm:$0xff]
      %v274 = vld [vmem:[%s243 + $0x30] sm:$0xff]
      %v275 = vld [vmem:[%s243 + $0x38] sm:$0xff]
      %v276 = vld [vmem:[%s243 + $0x40] sm:$0xff]
      %v277 = vld [vmem:[%s243 + $0x48] sm:$0xff]
      %v278 = vld [vmem:[%s243 + $0x50] sm:$0xff]
      %v279 = vld [vmem:[%s243 + $0x58] sm:$0xff]
      %v280 = vld [vmem:[%s243 + $0x60] sm:$0xff]
      %v281 = vld [vmem:[%s243 + $0x68] sm:$0xff]
      %v282 = vld [vmem:[%s243 + $0x70] sm:$0xff]
      %v283 = vld [vmem:[%s243 + $0x78] sm:$0xff]
      %v284 = vld [vmem:[%s243 + $0x80] sm:$0xff]
      %v285 = vld [vmem:[%s243 + $0x88] sm:$0xff]
      %v286 = vld [vmem:[%s243 + $0x90] sm:$0xff]
      %v287 = vld [vmem:[%s243 + $0x98] sm:$0xff]
      %v288 = vld [vmem:[%s243 + $0xa0] sm:$0xff]
      %v289 = vld [vmem:[%s243 + $0xa8] sm:$0xff]
      %v290 = vld [vmem:[%s243 + $0xb0] sm:$0xff]
      %v291 = vld [vmem:[%s243 + $0xb8] sm:$0xff]
      %v292 = vld [vmem:[%s243 + $0xc0] sm:$0xff]
      %v293 = vld [vmem:[%s243 + $0xc8] sm:$0xff]
      %v294 = vld [vmem:[%s243 + $0xd0] sm:$0xff]
      %v295 = vld [vmem:[%s243 + $0xd8] sm:$0xff]
      %v296 = vld [vmem:[%s243 + $0xe0] sm:$0xff]
      %v297 = vld [vmem:[%s243 + $0xe8] sm:$0xff]
      %v298 = vld [vmem:[%s243 + $0xf0] sm:$0xff]
      %v299 = vld [vmem:[%s243 + $0xf8] sm:$0xff]
      %v300 = vld [vmem:[%s243 + $0x100] sm:$0xff]
      %v301 = vld [vmem:[%s243 + $0x108] sm:$0xff]
      %v302 = vld [vmem:[%s243 + $0x110] sm:$0xff]
      %v303 = vld [vmem:[%s243 + $0x118] sm:$0xff]
      %v304 = vld [vmem:[%s243 + $0x120] sm:$0xff]
      %v305 = vld [vmem:[%s243 + $0x128] sm:$0xff]
      %v306 = vld [vmem:[%s243 + $0x130] sm:$0xff]
      %v307 = vld [vmem:[%s243 + $0x138] sm:$0xff]
      %v308 = vld [vmem:[%s243 + $0x140] sm:$0xff]
      %v309 = vld [vmem:[%s243 + $0x148] sm:$0xff]
      %v310 = vld [vmem:[%s243 + $0x150] sm:$0xff]
      %v311 = vld [vmem:[%s243 + $0x158] sm:$0xff]
      %v312 = vld [vmem:[%s243 + $0x160] sm:$0xff]
      %v313 = vld [vmem:[%s243 + $0x168] sm:$0xff]
      %v314 = vld [vmem:[%s243 + $0x170] sm:$0xff]
      %v315 = vld [vmem:[%s243 + $0x178] sm:$0xff]
      %v316 = vld [vmem:[%s243 + $0x180] sm:$0xff]
      %v317 = vld [vmem:[%s243 + $0x188] sm:$0xff]
      %v318 = vld [vmem:[%s243 + $0x190] sm:$0xff]
      %v319 = vld [vmem:[%s243 + $0x198] sm:$0xff]
      %v320 = vld [vmem:[%s243 + $0x1a0] sm:$0xff]
      %v321 = vld [vmem:[%s243 + $0x1a8] sm:$0xff]
      %v322 = vld [vmem:[%s243 + $0x1b0] sm:$0xff]
      %v323 = vld [vmem:[%s243 + $0x1b8] sm:$0xff]
      %v324 = vld [vmem:[%s243 + $0x1c0] sm:$0xff]
      %v325 = vld [vmem:[%s243 + $0x1c8] sm:$0xff]
      %v326 = vld [vmem:[%s243 + $0x1d0] sm:$0xff]
      %v327 = vld [vmem:[%s243 + $0x1d8] sm:$0xff]
      %v328 = vld [vmem:[%s243 + $0x1e0] sm:$0xff]
      %v329 = vld [vmem:[%s243 + $0x1e8] sm:$0xff]
      %v330 = vld [vmem:[%s243 + $0x1f0] sm:$0xff]
      %v331 = vld [vmem:[%s243 + $0x1f8] sm:$0xff]
      %v332 = vld [vmem:[%s243 + $0x200] sm:$0xff]
      %v333 = vld [vmem:[%s243 + $0x208] sm:$0xff]
      %v334 = vld [vmem:[%s243 + $0x210] sm:$0xff]
      %v335 = vld [vmem:[%s243 + $0x218] sm:$0xff]
      %v336 = vld [vmem:[%s243 + $0x220] sm:$0xff]
      %v337 = vld [vmem:[%s243 + $0x228] sm:$0xff]
      %v338 = vld [vmem:[%s243 + $0x230] sm:$0xff]
      %v339 = vld [vmem:[%s243 + $0x238] sm:$0xff]
      %v340 = vld [vmem:[%s243 + $0x240] sm:$0xff]
      %v341 = vld [vmem:[%s243 + $0x248] sm:$0xff]
      %v342 = vld [vmem:[%s243 + $0x250] sm:$0xff]
      %v343 = vld [vmem:[%s243 + $0x258] sm:$0xff]
      %v344 = vld [vmem:[%s243 + $0x260] sm:$0xff]
      %v345 = vld [vmem:[%s243 + $0x268] sm:$0xff]
      %v346 = vld [vmem:[%s243 + $0x270] sm:$0xff]
      %v347 = vld [vmem:[%s243 + $0x278] sm:$0xff]
      %v348 = vld [vmem:[%s243 + $0x280] sm:$0xff]
      %v349 = vld [vmem:[%s243 + $0x288] sm:$0xff]
      %v350 = vld [vmem:[%s243 + $0x290] sm:$0xff]
      %v351 = vld [vmem:[%s243 + $0x298] sm:$0xff]
      %v352 = vld [vmem:[%s243 + $0x2a0] sm:$0xff]
      %v353 = vld [vmem:[%s243 + $0x2a8] sm:$0xff]
      %v354 = vld [vmem:[%s243 + $0x2b0] sm:$0xff]
      %v355 = vld [vmem:[%s243 + $0x2b8] sm:$0xff]
      %v356 = vld [vmem:[%s243 + $0x2c0] sm:$0xff]
      %v357 = vld [vmem:[%s243 + $0x2c8] sm:$0xff]
      %v358 = vld [vmem:[%s243 + $0x2d0] sm:$0xff]
      %v359 = vld [vmem:[%s243 + $0x2d8] sm:$0xff]
      %v360 = vld [vmem:[%s243 + $0x2e0] sm:$0xff]
      %v361 = vld [vmem:[%s243 + $0x2e8] sm:$0xff]
      %v362 = vld [vmem:[%s243 + $0x2f0] sm:$0xff]
      %v363 = vld [vmem:[%s243 + $0x2f8] sm:$0xff]
      %v364 = vld [vmem:[%s243 + $0x300] sm:$0xff]
      %v365 = vld [vmem:[%s243 + $0x308] sm:$0xff]
      %v366 = vld [vmem:[%s243 + $0x310] sm:$0xff]
      %v367 = vld [vmem:[%s243 + $0x318] sm:$0xff]
      %v368 = vld [vmem:[%s243 + $0x320] sm:$0xff]
      %v369 = vld [vmem:[%s243 + $0x328] sm:$0xff]
      %v370 = vld [vmem:[%s243 + $0x330] sm:$0xff]
      %v371 = vld [vmem:[%s243 + $0x338] sm:$0xff]
      %v372 = vld [vmem:[%s243 + $0x340] sm:$0xff]
      %v373 = vld [vmem:[%s243 + $0x348] sm:$0xff]
      %v374 = vld [vmem:[%s243 + $0x350] sm:$0xff]
      %v375 = vld [vmem:[%s243 + $0x358] sm:$0xff]
      %v376 = vld [vmem:[%s243 + $0x360] sm:$0xff]
      %v377 = vld [vmem:[%s243 + $0x368] sm:$0xff]
      %v378 = vld [vmem:[%s243 + $0x370] sm:$0xff]
      %v379 = vld [vmem:[%s243 + $0x378] sm:$0xff]
      %v380 = vld [vmem:[%s243 + $0x380] sm:$0xff]
      %v381 = vld [vmem:[%s243 + $0x388] sm:$0xff]
      %v382 = vld [vmem:[%s243 + $0x390] sm:$0xff]
      %v383 = vld [vmem:[%s243 + $0x398] sm:$0xff]
      %v384 = vld [vmem:[%s243 + $0x3a0] sm:$0xff]
      %v385 = vld [vmem:[%s243 + $0x3a8] sm:$0xff]
      %v386 = vld [vmem:[%s243 + $0x3b0] sm:$0xff]
      %v387 = vld [vmem:[%s243 + $0x3b8] sm:$0xff]
      %v388 = vld [vmem:[%s243 + $0x3c0] sm:$0xff]
      %v389 = vld [vmem:[%s243 + $0x3c8] sm:$0xff]
      %v390 = vld [vmem:[%s243 + $0x3d0] sm:$0xff]
      %v391 = vld [vmem:[%s243 + $0x3d8] sm:$0xff]
      %v392 = vld [vmem:[%s243 + $0x3e0] sm:$0xff]
      %v393 = vld [vmem:[%s243 + $0x3e8] sm:$0xff]
      %v394 = vld [vmem:[%s243 + $0x3f0] sm:$0xff]
      %v395 = vld [vmem:[%s243 + $0x3f8] sm:$0xff]
      %v396 = vld [vmem:[%s243 + $0x400] sm:$0xff]
      %v397 = vld [vmem:[%s243 + $0x408] sm:$0xff]
      %v398 = vld [vmem:[%s243 + $0x410] sm:$0xff]
      %v399 = vld [vmem:[%s243 + $0x418] sm:$0xff]
      %v400 = vld [vmem:[%s243 + $0x420] sm:$0xff]
      %v401 = vld [vmem:[%s243 + $0x428] sm:$0xff]
      %v402 = vld [vmem:[%s243 + $0x430] sm:$0xff]
      %v403 = vld [vmem:[%s243 + $0x438] sm:$0xff]
      %v404 = vld [vmem:[%s243 + $0x440] sm:$0xff]
      %v405 = vld [vmem:[%s243 + $0x448] sm:$0xff]
      %v406 = vld [vmem:[%s243 + $0x450] sm:$0xff]
      %v407 = vld [vmem:[%s243 + $0x458] sm:$0xff]
      %v408 = vld [vmem:[%s243 + $0x460] sm:$0xff]
      %v409 = vld [vmem:[%s243 + $0x468] sm:$0xff]
      %v410 = vld [vmem:[%s243 + $0x470] sm:$0xff]
      %v411 = vld [vmem:[%s243 + $0x478] sm:$0xff]
      %v412 = vld [vmem:[%s243 + $0x480] sm:$0xff]
      %v413 = vld [vmem:[%s243 + $0x488] sm:$0xff]
      %v414 = vld [vmem:[%s243 + $0x490] sm:$0xff]
      %v415 = vld [vmem:[%s243 + $0x498] sm:$0xff]
      %v416 = vld [vmem:[%s243 + $0x4a0] sm:$0xff]
      %v417 = vld [vmem:[%s243 + $0x4a8] sm:$0xff]
      %v418 = vld [vmem:[%s253] sm:$0xf]
      %v419 = vld [vmem:[%s253 + $0x4] sm:$0xf]
      %v420 = vld [vmem:[%s253 + $0x8] sm:$0xf]
      %v421 = vld [vmem:[%s253 + $0xc] sm:$0xf]
      %v422 = vld [vmem:[%s253 + $0x10] sm:$0xf]
      %v423 = vld [vmem:[%s253 + $0x14] sm:$0xf]
      %v424 = vld [vmem:[%s253 + $0x18] sm:$0xf]
      %v425 = vld [vmem:[%s253 + $0x1c] sm:$0xf]
      %v426 = vld [vmem:[%s253 + $0x20] sm:$0xf]
      %v427 = vld [vmem:[%s253 + $0x24] sm:$0xf]
      %v428 = vld [vmem:[%s253 + $0x28] sm:$0xf]
      %v429 = vld [vmem:[%s253 + $0x2c] sm:$0xf]
      %v430 = vld [vmem:[%s253 + $0x30] sm:$0xf]
      %v431 = vld [vmem:[%s253 + $0x34] sm:$0xf]
      %v432 = vld [vmem:[%s253 + $0x38] sm:$0xf]
      %v433 = vld [vmem:[%s253 + $0x3c] sm:$0xf]
      %v434 = vld [vmem:[%s253 + $0x40] sm:$0xf]
      %v435 = vld [vmem:[%s253 + $0x44] sm:$0xf]
      %v436 = vld [vmem:[%s253 + $0x48] sm:$0xf]
      %v437 = vld [vmem:[%s253 + $0x4c] sm:$0xf]
      %v438 = vld [vmem:[%s253 + $0x50] sm:$0xf]
      %v439 = vld [vmem:[%s253 + $0x54] sm:$0xf]
      %v440 = vld [vmem:[%s253 + $0x58] sm:$0xf]
      %v441 = vld [vmem:[%s253 + $0x5c] sm:$0xf]
      %v442 = vld [vmem:[%s253 + $0x60] sm:$0xf]
      %v443 = vld [vmem:[%s253 + $0x64] sm:$0xf]
      %v444 = vld [vmem:[%s253 + $0x68] sm:$0xf]
      %v445 = vld [vmem:[%s253 + $0x6c] sm:$0xf]
      %v446 = vld [vmem:[%s253 + $0x70] sm:$0xf]
      %v447 = vld [vmem:[%s253 + $0x74] sm:$0xf]
      %v448 = vld [vmem:[%s253 + $0x78] sm:$0xf]
      %v449 = vld [vmem:[%s253 + $0x7c] sm:$0xf]
      %v450 = vld [vmem:[%s253 + $0x80] sm:$0xf]
      %v451 = vld [vmem:[%s253 + $0x84] sm:$0xf]
      %v452 = vld [vmem:[%s253 + $0x88] sm:$0xf]
      %v453 = vld [vmem:[%s253 + $0x8c] sm:$0xf]
      %v454 = vld [vmem:[%s253 + $0x90] sm:$0xf]
      %v455 = vld [vmem:[%s253 + $0x94] sm:$0xf]
      %v456 = vld [vmem:[%s253 + $0x98] sm:$0xf]
      %v457 = vld [vmem:[%s253 + $0x9c] sm:$0xf]
      %v458 = vld [vmem:[%s253 + $0xa0] sm:$0xf]
      %v459 = vld [vmem:[%s253 + $0xa4] sm:$0xf]
      %v460 = vld [vmem:[%s253 + $0xa8] sm:$0xf]
      %v461 = vld [vmem:[%s253 + $0xac] sm:$0xf]
      %v462 = vld [vmem:[%s253 + $0xb0] sm:$0xf]
      %v463 = vld [vmem:[%s253 + $0xb4] sm:$0xf]
      %v464 = vld [vmem:[%s253 + $0xb8] sm:$0xf]
      %v465 = vld [vmem:[%s253 + $0xbc] sm:$0xf]
      %v466 = vld [vmem:[%s253 + $0xc0] sm:$0xf]
      %v467 = vld [vmem:[%s253 + $0xc4] sm:$0xf]
      %v468 = vld [vmem:[%s253 + $0xc8] sm:$0xf]
      %v469 = vld [vmem:[%s253 + $0xcc] sm:$0xf]
      %v470 = vld [vmem:[%s253 + $0xd0] sm:$0xf]
      %v471 = vld [vmem:[%s253 + $0xd4] sm:$0xf]
      %v472 = vld [vmem:[%s253 + $0xd8] sm:$0xf]
      %v473 = vld [vmem:[%s253 + $0xdc] sm:$0xf]
      %v474 = vld [vmem:[%s253 + $0xe0] sm:$0xf]
      %v475 = vld [vmem:[%s253 + $0xe4] sm:$0xf]
      %v476 = vld [vmem:[%s253 + $0xe8] sm:$0xf]
      %v477 = vld [vmem:[%s253 + $0xec] sm:$0xf]
      %v478 = vld [vmem:[%s253 + $0xf0] sm:$0xf]
      %v479 = vld [vmem:[%s253 + $0xf4] sm:$0xf]
      %v480 = vld [vmem:[%s253 + $0xf8] sm:$0xf]
      %v481 = vld [vmem:[%s253 + $0xfc] sm:$0xf]
      %v482 = vld [vmem:[%s257] sm:$0x1]
      %v484 = vlaneseq
      %v485 = vshrl.u32 %v484, 7
      %v486 = vsub.s32 0, %v485
      %v487 = vrot.slane %v482, %v486
      %v639 = vunpack.c.l.b16 %v268
      %v640 = vunpack.c.h.b16 %v268
      %v641 = vunpack.c.l.b16 %v269
      %v642 = vunpack.c.h.b16 %v269
      %v643 = vunpack.c.l.b16 %v270
      %v644 = vunpack.c.h.b16 %v270
      %v645 = vunpack.c.l.b16 %v271
      %v646 = vunpack.c.h.b16 %v271
      %v647 = vunpack.c.l.b16 %v272
      %v648 = vunpack.c.h.b16 %v272
      %v649 = vunpack.c.l.b16 %v273
      %v650 = vunpack.c.h.b16 %v273
      %v651 = vunpack.c.l.b16 %v274
      %v652 = vunpack.c.h.b16 %v274
      %v653 = vunpack.c.l.b16 %v275
      %v654 = vunpack.c.h.b16 %v275
      %v655 = vunpack.c.l.b16 %v276
      %v656 = vunpack.c.h.b16 %v276
      %v657 = vunpack.c.l.b16 %v277
      %v658 = vunpack.c.h.b16 %v277
      %v659 = vunpack.c.l.b16 %v278
      %v660 = vunpack.c.h.b16 %v278
      %v661 = vunpack.c.l.b16 %v279
      %v662 = vunpack.c.h.b16 %v279
      %v663 = vunpack.c.l.b16 %v280
      %v664 = vunpack.c.h.b16 %v280
      %v665 = vunpack.c.l.b16 %v281
      %v666 = vunpack.c.h.b16 %v281
      %v667 = vunpack.c.l.b16 %v282
      %v668 = vunpack.c.h.b16 %v282
      %v669 = vunpack.c.l.b16 %v283
      %v670 = vunpack.c.h.b16 %v283
      %v671 = vunpack.c.l.b16 %v284
      %v672 = vunpack.c.h.b16 %v284
      %v673 = vunpack.c.l.b16 %v285
      %v674 = vunpack.c.h.b16 %v285
      %v675 = vunpack.c.l.b16 %v286
      %v676 = vunpack.c.h.b16 %v286
      %v677 = vunpack.c.l.b16 %v287
      %v678 = vunpack.c.h.b16 %v287
      %v679 = vunpack.c.l.b16 %v288
      %v680 = vunpack.c.h.b16 %v288
      %v681 = vunpack.c.l.b16 %v289
      %v682 = vunpack.c.h.b16 %v289
      %v683 = vunpack.c.l.b16 %v290
      %v684 = vunpack.c.h.b16 %v290
      %v685 = vunpack.c.l.b16 %v291
      %v686 = vunpack.c.h.b16 %v291
      %v687 = vunpack.c.l.b16 %v292
      %v688 = vunpack.c.h.b16 %v292
      %v689 = vunpack.c.l.b16 %v293
      %v690 = vunpack.c.h.b16 %v293
      %v691 = vunpack.c.l.b16 %v294
      %v692 = vunpack.c.h.b16 %v294
      %v693 = vunpack.c.l.b16 %v295
      %v694 = vunpack.c.h.b16 %v295
      %v695 = vunpack.c.l.b16 %v296
      %v696 = vunpack.c.h.b16 %v296
      %v697 = vunpack.c.l.b16 %v297
      %v698 = vunpack.c.h.b16 %v297
      %v699 = vunpack.c.l.b16 %v298
      %v700 = vunpack.c.h.b16 %v298
      %v701 = vunpack.c.l.b16 %v299
      %v702 = vunpack.c.h.b16 %v299
      %v703 = vunpack.c.l.b16 %v300
      %v704 = vunpack.c.h.b16 %v300
      %v705 = vunpack.c.l.b16 %v301
      %v706 = vunpack.c.h.b16 %v301
      %v707 = vunpack.c.l.b16 %v302
      %v708 = vunpack.c.h.b16 %v302
      %v709 = vunpack.c.l.b16 %v303
      %v710 = vunpack.c.h.b16 %v303
      %v711 = vunpack.c.l.b16 %v304
      %v712 = vunpack.c.h.b16 %v304
      %v713 = vunpack.c.l.b16 %v305
      %v714 = vunpack.c.h.b16 %v305
      %v715 = vunpack.c.l.b16 %v306
      %v716 = vunpack.c.h.b16 %v306
      %v717 = vunpack.c.l.b16 %v307
      %v718 = vunpack.c.h.b16 %v307
      %v719 = vunpack.c.l.b16 %v308
      %v720 = vunpack.c.h.b16 %v308
      %v721 = vunpack.c.l.b16 %v309
      %v722 = vunpack.c.h.b16 %v309
      %v723 = vunpack.c.l.b16 %v310
      %v724 = vunpack.c.h.b16 %v310
      %v725 = vunpack.c.l.b16 %v311
      %v726 = vunpack.c.h.b16 %v311
      %v727 = vunpack.c.l.b16 %v312
      %v728 = vunpack.c.h.b16 %v312
      %v729 = vunpack.c.l.b16 %v313
      %v730 = vunpack.c.h.b16 %v313
      %v731 = vunpack.c.l.b16 %v314
      %v732 = vunpack.c.h.b16 %v314
      %v733 = vunpack.c.l.b16 %v315
      %v734 = vunpack.c.h.b16 %v315
      %v735 = vunpack.c.l.b16 %v316
      %v736 = vunpack.c.h.b16 %v316
      %v737 = vunpack.c.l.b16 %v317
      %v738 = vunpack.c.h.b16 %v317
      %v739 = vunpack.c.l.b16 %v318
      %v740 = vunpack.c.h.b16 %v318
      %v741 = vunpack.c.l.b16 %v319
      %v742 = vunpack.c.h.b16 %v319
      %v743 = vunpack.c.l.b16 %v320
      %v744 = vunpack.c.h.b16 %v320
      %v745 = vunpack.c.l.b16 %v321
      %v746 = vunpack.c.h.b16 %v321
      %v747 = vunpack.c.l.b16 %v322
      %v748 = vunpack.c.h.b16 %v322
      %v749 = vunpack.c.l.b16 %v323
      %v750 = vunpack.c.h.b16 %v323
      %v751 = vunpack.c.l.b16 %v324
      %v752 = vunpack.c.h.b16 %v324
      %v753 = vunpack.c.l.b16 %v325
      %v754 = vunpack.c.h.b16 %v325
      %v755 = vunpack.c.l.b16 %v326
      %v756 = vunpack.c.h.b16 %v326
      %v757 = vunpack.c.l.b16 %v327
      %v758 = vunpack.c.h.b16 %v327
      %v759 = vunpack.c.l.b16 %v328
      %v760 = vunpack.c.h.b16 %v328
      %v761 = vunpack.c.l.b16 %v329
      %v762 = vunpack.c.h.b16 %v329
      %v763 = vunpack.c.l.b16 %v330
      %v764 = vunpack.c.h.b16 %v330
      %v765 = vunpack.c.l.b16 %v331
      %v766 = vunpack.c.h.b16 %v331
      %v767 = vunpack.c.l.b16 %v332
      %v768 = vunpack.c.h.b16 %v332
      %v769 = vunpack.c.l.b16 %v333
      %v770 = vunpack.c.h.b16 %v333
      %v771 = vunpack.c.l.b16 %v334
      %v772 = vunpack.c.h.b16 %v334
      %v773 = vunpack.c.l.b16 %v335
      %v774 = vunpack.c.h.b16 %v335
      %v775 = vunpack.c.l.b16 %v336
      %v776 = vunpack.c.h.b16 %v336
      %v777 = vunpack.c.l.b16 %v337
      %v778 = vunpack.c.h.b16 %v337
      %v779 = vunpack.c.l.b16 %v338
      %v780 = vunpack.c.h.b16 %v338
      %v781 = vunpack.c.l.b16 %v339
      %v782 = vunpack.c.h.b16 %v339
      %v783 = vunpack.c.l.b16 %v340
      %v784 = vunpack.c.h.b16 %v340
      %v785 = vunpack.c.l.b16 %v341
      %v786 = vunpack.c.h.b16 %v341
      %v787 = vunpack.c.l.b16 %v342
      %v788 = vunpack.c.h.b16 %v342
      %v789 = vunpack.c.l.b16 %v343
      %v790 = vunpack.c.h.b16 %v343
      %v791 = vunpack.c.l.b16 %v344
      %v792 = vunpack.c.h.b16 %v344
      %v793 = vunpack.c.l.b16 %v345
      %v794 = vunpack.c.h.b16 %v345
      %v795 = vunpack.c.l.b16 %v346
      %v796 = vunpack.c.h.b16 %v346
      %v797 = vunpack.c.l.b16 %v347
      %v798 = vunpack.c.h.b16 %v347
      %v799 = vunpack.c.l.b16 %v348
      %v800 = vunpack.c.h.b16 %v348
      %v801 = vunpack.c.l.b16 %v349
      %v802 = vunpack.c.h.b16 %v349
      %v803 = vunpack.c.l.b16 %v350
      %v804 = vunpack.c.h.b16 %v350
      %v805 = vunpack.c.l.b16 %v351
      %v806 = vunpack.c.h.b16 %v351
      %v807 = vunpack.c.l.b16 %v352
      %v808 = vunpack.c.h.b16 %v352
      %v809 = vunpack.c.l.b16 %v353
      %v810 = vunpack.c.h.b16 %v353
      %v811 = vunpack.c.l.b16 %v354
      %v812 = vunpack.c.h.b16 %v354
      %v813 = vunpack.c.l.b16 %v355
      %v814 = vunpack.c.h.b16 %v355
      %v815 = vunpack.c.l.b16 %v356
      %v816 = vunpack.c.h.b16 %v356
      %v817 = vunpack.c.l.b16 %v357
      %v818 = vunpack.c.h.b16 %v357
      %v819 = vunpack.c.l.b16 %v358
      %v820 = vunpack.c.h.b16 %v358
      %v821 = vunpack.c.l.b16 %v359
      %v822 = vunpack.c.h.b16 %v359
      %v823 = vunpack.c.l.b16 %v360
      %v824 = vunpack.c.h.b16 %v360
      %v825 = vunpack.c.l.b16 %v361
      %v826 = vunpack.c.h.b16 %v361
      %v827 = vunpack.c.l.b16 %v362
      %v828 = vunpack.c.h.b16 %v362
      %v829 = vunpack.c.l.b16 %v363
      %v830 = vunpack.c.h.b16 %v363
      %v831 = vunpack.c.l.b16 %v364
      %v832 = vunpack.c.h.b16 %v364
      %v833 = vunpack.c.l.b16 %v365
      %v834 = vunpack.c.h.b16 %v365
      %v835 = vunpack.c.l.b16 %v366
      %v836 = vunpack.c.h.b16 %v366
      %v837 = vunpack.c.l.b16 %v367
      %v838 = vunpack.c.h.b16 %v367
      %v839 = vunpack.c.l.b16 %v368
      %v840 = vunpack.c.h.b16 %v368
      %v841 = vunpack.c.l.b16 %v369
      %v842 = vunpack.c.h.b16 %v369
      %v843 = vunpack.c.l.b16 %v370
      %v844 = vunpack.c.h.b16 %v370
      %v845 = vunpack.c.l.b16 %v371
      %v846 = vunpack.c.h.b16 %v371
      %v847 = vunpack.c.l.b16 %v372
      %v848 = vunpack.c.h.b16 %v372
      %v849 = vunpack.c.l.b16 %v373
      %v850 = vunpack.c.h.b16 %v373
      %v851 = vunpack.c.l.b16 %v374
      %v852 = vunpack.c.h.b16 %v374
      %v853 = vunpack.c.l.b16 %v375
      %v854 = vunpack.c.h.b16 %v375
      %v855 = vunpack.c.l.b16 %v376
      %v856 = vunpack.c.h.b16 %v376
      %v857 = vunpack.c.l.b16 %v377
      %v858 = vunpack.c.h.b16 %v377
      %v859 = vunpack.c.l.b16 %v378
      %v860 = vunpack.c.h.b16 %v378
      %v861 = vunpack.c.l.b16 %v379
      %v862 = vunpack.c.h.b16 %v379
      %v863 = vunpack.c.l.b16 %v380
      %v864 = vunpack.c.h.b16 %v380
      %v865 = vunpack.c.l.b16 %v381
      %v866 = vunpack.c.h.b16 %v381
      %v867 = vunpack.c.l.b16 %v382
      %v868 = vunpack.c.h.b16 %v382
      %v869 = vunpack.c.l.b16 %v383
      %v870 = vunpack.c.h.b16 %v383
      %v871 = vunpack.c.l.b16 %v384
      %v872 = vunpack.c.h.b16 %v384
      %v873 = vunpack.c.l.b16 %v385
      %v874 = vunpack.c.h.b16 %v385
      %v875 = vunpack.c.l.b16 %v386
      %v876 = vunpack.c.h.b16 %v386
      %v877 = vunpack.c.l.b16 %v387
      %v878 = vunpack.c.h.b16 %v387
      %v879 = vunpack.c.l.b16 %v388
      %v880 = vunpack.c.h.b16 %v388
      %v881 = vunpack.c.l.b16 %v389
      %v882 = vunpack.c.h.b16 %v389
      %v883 = vunpack.c.l.b16 %v390
      %v884 = vunpack.c.h.b16 %v390
      %v885 = vunpack.c.l.b16 %v391
      %v886 = vunpack.c.h.b16 %v391
      %v887 = vunpack.c.l.b16 %v392
      %v888 = vunpack.c.h.b16 %v392
      %v889 = vunpack.c.l.b16 %v393
      %v890 = vunpack.c.h.b16 %v393
      %v891 = vunpack.c.l.b16 %v394
      %v892 = vunpack.c.h.b16 %v394
      %v893 = vunpack.c.l.b16 %v395
      %v894 = vunpack.c.h.b16 %v395
      %v895 = vunpack.c.l.b16 %v396
      %v896 = vunpack.c.h.b16 %v396
      %v897 = vunpack.c.l.b16 %v397
      %v898 = vunpack.c.h.b16 %v397
      %v899 = vunpack.c.l.b16 %v398
      %v900 = vunpack.c.h.b16 %v398
      %v901 = vunpack.c.l.b16 %v399
      %v902 = vunpack.c.h.b16 %v399
      %v903 = vunpack.c.l.b16 %v400
      %v904 = vunpack.c.h.b16 %v400
      %v905 = vunpack.c.l.b16 %v401
      %v906 = vunpack.c.h.b16 %v401
      %v907 = vunpack.c.l.b16 %v402
      %v908 = vunpack.c.h.b16 %v402
      %v909 = vunpack.c.l.b16 %v403
      %v910 = vunpack.c.h.b16 %v403
      %v911 = vunpack.c.l.b16 %v404
      %v912 = vunpack.c.h.b16 %v404
      %v913 = vunpack.c.l.b16 %v405
      %v914 = vunpack.c.h.b16 %v405
      %v915 = vunpack.c.l.b16 %v406
      %v916 = vunpack.c.h.b16 %v406
      %v917 = vunpack.c.l.b16 %v407
      %v918 = vunpack.c.h.b16 %v407
      %v919 = vunpack.c.l.b16 %v408
      %v920 = vunpack.c.h.b16 %v408
      %v921 = vunpack.c.l.b16 %v409
      %v922 = vunpack.c.h.b16 %v409
      %v923 = vunpack.c.l.b16 %v410
      %v924 = vunpack.c.h.b16 %v410
      %v925 = vunpack.c.l.b16 %v411
      %v926 = vunpack.c.h.b16 %v411
      %v927 = vunpack.c.l.b16 %v412
      %v928 = vunpack.c.h.b16 %v412
      %v929 = vunpack.c.l.b16 %v413
      %v930 = vunpack.c.h.b16 %v413
      %v931 = vunpack.c.l.b16 %v414
      %v932 = vunpack.c.h.b16 %v414
      %v933 = vunpack.c.l.b16 %v415
      %v934 = vunpack.c.h.b16 %v415
      %v935 = vunpack.c.l.b16 %v416
      %v936 = vunpack.c.h.b16 %v416
      %v937 = vunpack.c.l.b16 %v417
      %v938 = vunpack.c.h.b16 %v417
      %v939 = vpack.c.b16 %v643, %v639
      %v940 = vpack.c.b16 %v644, %v640
      %v941 = vpack.c.b16 %v645, %v641
      %v942 = vpack.c.b16 %v646, %v642
      %v943 = vpack.c.b16 %v651, %v647
      %v944 = vpack.c.b16 %v652, %v648
      %v945 = vpack.c.b16 %v653, %v649
      %v946 = vpack.c.b16 %v654, %v650
      %v947 = vpack.c.b16 %v659, %v655
      %v948 = vpack.c.b16 %v660, %v656
      %v949 = vpack.c.b16 %v661, %v657
      %v950 = vpack.c.b16 %v662, %v658
      %v951 = vpack.c.b16 %v667, %v663
      %v952 = vpack.c.b16 %v668, %v664
      %v953 = vpack.c.b16 %v669, %v665
      %v954 = vpack.c.b16 %v670, %v666
      %v955 = vpack.c.b16 %v675, %v671
      %v956 = vpack.c.b16 %v676, %v672
      %v957 = vpack.c.b16 %v677, %v673
      %v958 = vpack.c.b16 %v678, %v674
      %v959 = vpack.c.b16 %v683, %v679
      %v960 = vpack.c.b16 %v684, %v680
      %v961 = vpack.c.b16 %v685, %v681
      %v962 = vpack.c.b16 %v686, %v682
      %v963 = vpack.c.b16 %v691, %v687
      %v964 = vpack.c.b16 %v692, %v688
      %v965 = vpack.c.b16 %v693, %v689
      %v966 = vpack.c.b16 %v694, %v690
      %v967 = vpack.c.b16 %v699, %v695
      %v968 = vpack.c.b16 %v700, %v696
      %v969 = vpack.c.b16 %v701, %v697
      %v970 = vpack.c.b16 %v702, %v698
      %v971 = vpack.c.b16 %v707, %v703
      %v972 = vpack.c.b16 %v708, %v704
      %v973 = vpack.c.b16 %v709, %v705
      %v974 = vpack.c.b16 %v710, %v706
      %v975 = vpack.c.b16 %v715, %v711
      %v976 = vpack.c.b16 %v716, %v712
      %v977 = vpack.c.b16 %v717, %v713
      %v978 = vpack.c.b16 %v718, %v714
      %v979 = vpack.c.b16 %v723, %v719
      %v980 = vpack.c.b16 %v724, %v720
      %v981 = vpack.c.b16 %v725, %v721
      %v982 = vpack.c.b16 %v726, %v722
      %v983 = vpack.c.b16 %v731, %v727
      %v984 = vpack.c.b16 %v732, %v728
      %v985 = vpack.c.b16 %v733, %v729
      %v986 = vpack.c.b16 %v734, %v730
      %v987 = vpack.c.b16 %v739, %v735
      %v988 = vpack.c.b16 %v740, %v736
      %v989 = vpack.c.b16 %v741, %v737
      %v990 = vpack.c.b16 %v742, %v738
      %v991 = vpack.c.b16 %v747, %v743
      %v992 = vpack.c.b16 %v748, %v744
      %v993 = vpack.c.b16 %v749, %v745
      %v994 = vpack.c.b16 %v750, %v746
      %v995 = vpack.c.b16 %v755, %v751
      %v996 = vpack.c.b16 %v756, %v752
      %v997 = vpack.c.b16 %v757, %v753
      %v998 = vpack.c.b16 %v758, %v754
      %v999 = vpack.c.b16 %v763, %v759
      %v1000 = vpack.c.b16 %v764, %v760
      %v1001 = vpack.c.b16 %v765, %v761
      %v1002 = vpack.c.b16 %v766, %v762
      %v1003 = vpack.c.b16 %v771, %v767
      %v1004 = vpack.c.b16 %v772, %v768
      %v1005 = vpack.c.b16 %v773, %v769
      %v1006 = vpack.c.b16 %v774, %v770
      %v1007 = vpack.c.b16 %v779, %v775
      %v1008 = vpack.c.b16 %v780, %v776
      %v1009 = vpack.c.b16 %v781, %v777
      %v1010 = vpack.c.b16 %v782, %v778
      %v1011 = vpack.c.b16 %v787, %v783
      %v1012 = vpack.c.b16 %v788, %v784
      %v1013 = vpack.c.b16 %v789, %v785
      %v1014 = vpack.c.b16 %v790, %v786
      %v1015 = vpack.c.b16 %v795, %v791
      %v1016 = vpack.c.b16 %v796, %v792
      %v1017 = vpack.c.b16 %v797, %v793
      %v1018 = vpack.c.b16 %v798, %v794
      %v1019 = vpack.c.b16 %v803, %v799
      %v1020 = vpack.c.b16 %v804, %v800
      %v1021 = vpack.c.b16 %v805, %v801
      %v1022 = vpack.c.b16 %v806, %v802
      %v1023 = vpack.c.b16 %v811, %v807
      %v1024 = vpack.c.b16 %v812, %v808
      %v1025 = vpack.c.b16 %v813, %v809
      %v1026 = vpack.c.b16 %v814, %v810
      %v1027 = vpack.c.b16 %v819, %v815
      %v1028 = vpack.c.b16 %v820, %v816
      %v1029 = vpack.c.b16 %v821, %v817
      %v1030 = vpack.c.b16 %v822, %v818
      %v1031 = vpack.c.b16 %v827, %v823
      %v1032 = vpack.c.b16 %v828, %v824
      %v1033 = vpack.c.b16 %v829, %v825
      %v1034 = vpack.c.b16 %v830, %v826
      %v1035 = vpack.c.b16 %v835, %v831
      %v1036 = vpack.c.b16 %v836, %v832
      %v1037 = vpack.c.b16 %v837, %v833
      %v1038 = vpack.c.b16 %v838, %v834
      %v1039 = vpack.c.b16 %v843, %v839
      %v1040 = vpack.c.b16 %v844, %v840
      %v1041 = vpack.c.b16 %v845, %v841
      %v1042 = vpack.c.b16 %v846, %v842
      %v1043 = vpack.c.b16 %v851, %v847
      %v1044 = vpack.c.b16 %v852, %v848
      %v1045 = vpack.c.b16 %v853, %v849
      %v1046 = vpack.c.b16 %v854, %v850
      %v1047 = vpack.c.b16 %v859, %v855
      %v1048 = vpack.c.b16 %v860, %v856
      %v1049 = vpack.c.b16 %v861, %v857
      %v1050 = vpack.c.b16 %v862, %v858
      %v1051 = vpack.c.b16 %v867, %v863
      %v1052 = vpack.c.b16 %v868, %v864
      %v1053 = vpack.c.b16 %v869, %v865
      %v1054 = vpack.c.b16 %v870, %v866
      %v1055 = vpack.c.b16 %v875, %v871
      %v1056 = vpack.c.b16 %v876, %v872
      %v1057 = vpack.c.b16 %v877, %v873
      %v1058 = vpack.c.b16 %v878, %v874
      %v1059 = vpack.c.b16 %v883, %v879
      %v1060 = vpack.c.b16 %v884, %v880
      %v1061 = vpack.c.b16 %v885, %v881
      %v1062 = vpack.c.b16 %v886, %v882
      %v1063 = vpack.c.b16 %v891, %v887
      %v1064 = vpack.c.b16 %v892, %v888
      %v1065 = vpack.c.b16 %v893, %v889
      %v1066 = vpack.c.b16 %v894, %v890
      %v1067 = vpack.c.b16 %v899, %v895
      %v1068 = vpack.c.b16 %v900, %v896
      %v1069 = vpack.c.b16 %v901, %v897
      %v1070 = vpack.c.b16 %v902, %v898
      %v1071 = vpack.c.b16 %v907, %v903
      %v1072 = vpack.c.b16 %v908, %v904
      %v1073 = vpack.c.b16 %v909, %v905
      %v1074 = vpack.c.b16 %v910, %v906
      %v1075 = vpack.c.b16 %v915, %v911
      %v1076 = vpack.c.b16 %v916, %v912
      %v1077 = vpack.c.b16 %v917, %v913
      %v1078 = vpack.c.b16 %v918, %v914
      %v1079 = vpack.c.b16 %v923, %v919
      %v1080 = vpack.c.b16 %v924, %v920
      %v1081 = vpack.c.b16 %v925, %v921
      %v1082 = vpack.c.b16 %v926, %v922
      %v1083 = vpack.c.b16 %v931, %v927
      %v1084 = vpack.c.b16 %v932, %v928
      %v1085 = vpack.c.b16 %v933, %v929
      %v1086 = vpack.c.b16 %v934, %v930
      %v1087 = vpack.c.b16 %v935, %v935
      %v1088 = vpack.c.b16 %v936, %v936
      %v1089 = vpack.c.b16 %v937, %v937
      %v1090 = vpack.c.b16 %v938, %v938
      %v1307 = vunpack.c.l.b16 %v418
      %v1308 = vunpack.c.l.b16 %v419
      %v1309 = vunpack.c.l.b16 %v420
      %v1310 = vunpack.c.l.b16 %v421
      %v1311 = vunpack.c.l.b16 %v422
      %v1312 = vunpack.c.l.b16 %v423
      %v1313 = vunpack.c.l.b16 %v424
      %v1314 = vunpack.c.l.b16 %v425
      %v1315 = vunpack.c.l.b16 %v426
      %v1316 = vunpack.c.l.b16 %v427
      %v1317 = vunpack.c.l.b16 %v428
      %v1318 = vunpack.c.l.b16 %v429
      %v1319 = vunpack.c.l.b16 %v430
      %v1320 = vunpack.c.l.b16 %v431
      %v1321 = vunpack.c.l.b16 %v432
      %v1322 = vunpack.c.l.b16 %v433
      %v1323 = vunpack.c.l.b16 %v434
      %v1324 = vunpack.c.l.b16 %v435
      %v1325 = vunpack.c.l.b16 %v436
      %v1326 = vunpack.c.l.b16 %v437
      %v1327 = vunpack.c.l.b16 %v438
      %v1328 = vunpack.c.l.b16 %v439
      %v1329 = vunpack.c.l.b16 %v440
      %v1330 = vunpack.c.l.b16 %v441
      %v1331 = vunpack.c.l.b16 %v442
      %v1332 = vunpack.c.l.b16 %v443
      %v1333 = vunpack.c.l.b16 %v444
      %v1334 = vunpack.c.l.b16 %v445
      %v1335 = vunpack.c.l.b16 %v446
      %v1336 = vunpack.c.l.b16 %v447
      %v1337 = vunpack.c.l.b16 %v448
      %v1338 = vunpack.c.l.b16 %v449
      %v1339 = vunpack.c.l.b16 %v450
      %v1340 = vunpack.c.l.b16 %v451
      %v1341 = vunpack.c.l.b16 %v452
      %v1342 = vunpack.c.l.b16 %v453
      %v1343 = vunpack.c.l.b16 %v454
      %v1344 = vunpack.c.l.b16 %v455
      %v1345 = vunpack.c.l.b16 %v456
      %v1346 = vunpack.c.l.b16 %v457
      %v1347 = vunpack.c.l.b16 %v458
      %v1348 = vunpack.c.l.b16 %v459
      %v1349 = vunpack.c.l.b16 %v460
      %v1350 = vunpack.c.l.b16 %v461
      %v1351 = vunpack.c.l.b16 %v462
      %v1352 = vunpack.c.l.b16 %v463
      %v1353 = vunpack.c.l.b16 %v464
      %v1354 = vunpack.c.l.b16 %v465
      %v1355 = vunpack.c.l.b16 %v466
      %v1356 = vunpack.c.l.b16 %v467
      %v1357 = vunpack.c.l.b16 %v468
      %v1358 = vunpack.c.l.b16 %v469
      %v1359 = vunpack.c.l.b16 %v470
      %v1360 = vunpack.c.l.b16 %v471
      %v1361 = vunpack.c.l.b16 %v472
      %v1362 = vunpack.c.l.b16 %v473
      %v1363 = vunpack.c.l.b16 %v474
      %v1364 = vunpack.c.l.b16 %v475
      %v1365 = vunpack.c.l.b16 %v476
      %v1366 = vunpack.c.l.b16 %v477
      %v1367 = vunpack.c.l.b16 %v478
      %v1368 = vunpack.c.l.b16 %v479
      %v1369 = vunpack.c.l.b16 %v480
      %v1370 = vunpack.c.l.b16 %v481
      %v1371 = vpack.c.b16 %v1308, %v1307
      %v1372 = vpack.c.b16 %v1310, %v1309
      %v1373 = vpack.c.b16 %v1312, %v1311
      %v1374 = vpack.c.b16 %v1314, %v1313
      %v1375 = vpack.c.b16 %v1316, %v1315
      %v1376 = vpack.c.b16 %v1318, %v1317
      %v1377 = vpack.c.b16 %v1320, %v1319
      %v1378 = vpack.c.b16 %v1322, %v1321
      %v1379 = vpack.c.b16 %v1324, %v1323
      %v1380 = vpack.c.b16 %v1326, %v1325
      %v1381 = vpack.c.b16 %v1328, %v1327
      %v1382 = vpack.c.b16 %v1330, %v1329
      %v1383 = vpack.c.b16 %v1332, %v1331
      %v1384 = vpack.c.b16 %v1334, %v1333
      %v1385 = vpack.c.b16 %v1336, %v1335
      %v1386 = vpack.c.b16 %v1338, %v1337
      %v1387 = vpack.c.b16 %v1340, %v1339
      %v1388 = vpack.c.b16 %v1342, %v1341
      %v1389 = vpack.c.b16 %v1344, %v1343
      %v1390 = vpack.c.b16 %v1346, %v1345
      %v1391 = vpack.c.b16 %v1348, %v1347
      %v1392 = vpack.c.b16 %v1350, %v1349
      %v1393 = vpack.c.b16 %v1352, %v1351
      %v1394 = vpack.c.b16 %v1354, %v1353
      %v1395 = vpack.c.b16 %v1356, %v1355
      %v1396 = vpack.c.b16 %v1358, %v1357
      %v1397 = vpack.c.b16 %v1360, %v1359
      %v1398 = vpack.c.b16 %v1362, %v1361
      %v1399 = vpack.c.b16 %v1364, %v1363
      %v1400 = vpack.c.b16 %v1366, %v1365
      %v1401 = vpack.c.b16 %v1368, %v1367
      %v1402 = vpack.c.b16 %v1370, %v1369
      %1435 = vmatprep.subr.bf16.mxu0 0
      %1436 = vmatpush1.bf16.msra.mxu0 %v1371
      %1437 = vmatprep.subr.bf16.mxu0 0
      %1438 = vmatpush1.bf16.msra.mxu0 %v1372
      %1439 = vmatprep.subr.bf16.mxu0 0
      %1440 = vmatpush1.bf16.msra.mxu0 %v1373
      %1441 = vmatprep.subr.bf16.mxu0 0
      %1442 = vmatpush1.bf16.msra.mxu0 %v1374
      %1443 = vmatprep.subr.bf16.mxu0 0
      %1444 = vmatpush1.bf16.msra.mxu0 %v1375
      %1445 = vmatprep.subr.bf16.mxu0 0
      %1446 = vmatpush1.bf16.msra.mxu0 %v1376
      %1447 = vmatprep.subr.bf16.mxu0 0
      %1448 = vmatpush1.bf16.msra.mxu0 %v1377
      %1449 = vmatprep.subr.bf16.mxu0 0
      %1450 = vmatpush1.bf16.msra.mxu0 %v1378
      %1451 = vmatprep.subr.bf16.mxu0 0
      %1452 = vmatpush1.bf16.msra.mxu0 %v1379
      %1453 = vmatprep.subr.bf16.mxu0 0
      %1454 = vmatpush1.bf16.msra.mxu0 %v1380
      %1455 = vmatprep.subr.bf16.mxu0 0
      %1456 = vmatpush1.bf16.msra.mxu0 %v1381
      %1457 = vmatprep.subr.bf16.mxu0 0
      %1458 = vmatpush1.bf16.msra.mxu0 %v1382
      %1459 = vmatprep.subr.bf16.mxu0 0
      %1460 = vmatpush1.bf16.msra.mxu0 %v1383
      %1461 = vmatprep.subr.bf16.mxu0 0
      %1462 = vmatpush1.bf16.msra.mxu0 %v1384
      %1463 = vmatprep.subr.bf16.mxu0 0
      %1464 = vmatpush1.bf16.msra.mxu0 %v1385
      %1465 = vmatprep.subr.bf16.mxu0 0
      %1466 = vmatpush1.bf16.msra.mxu0 %v1386
      %1467 = vmatprep.mubr.bf16.mxu0 %v940
      %1468 = vmatmul.mubr.bf16.gmra.mrb[0].mxu0 %v939
      %v1469 = vpop.f32.mrb[0].mxu0
      %v1470 = vadd.f32 %v487, %v1469
      %v1471 = vpop.f32.mrb[0].mxu0
      %v1472 = vpop.f32.mrb[0].mxu0
      %v1473 = vadd.f32 %v487, %v1472
      %v1474 = vpop.f32.mrb[0].mxu0
      %1475 = vmatprep.mubr.bf16.mxu0 %v944
      %1476 = vmatmul.mubr.bf16.gmra.mrb[0].mxu0 %v943
      %v1477 = vpop.f32.mrb[0].mxu0
      %v1478 = vadd.f32 %v487, %v1477
      %v1479 = vpop.f32.mrb[0].mxu0
      %v1480 = vpop.f32.mrb[0].mxu0
      %v1481 = vadd.f32 %v487, %v1480
      %v1482 = vpop.f32.mrb[0].mxu0
      %1483 = vmatprep.mubr.bf16.mxu0 %v948
      %1484 = vmatmul.mubr.bf16.gmra.mrb[0].mxu0 %v947
      %v1485 = vpop.f32.mrb[0].mxu0
      %v1486 = vadd.f32 %v487, %v1485
      %v1487 = vpop.f32.mrb[0].mxu0
      %v1488 = vpop.f32.mrb[0].mxu0
      %v1489 = vadd.f32 %v487, %v1488
      %v1490 = vpop.f32.mrb[0].mxu0
      %1491 = vmatprep.mubr.bf16.mxu0 %v952
      %1492 = vmatmul.mubr.bf16.gmra.mrb[0].mxu0 %v951
      %v1493 = vpop.f32.mrb[0].mxu0
      %v1494 = vadd.f32 %v487, %v1493
      %v1495 = vpop.f32.mrb[0].mxu0
      %v1496 = vpop.f32.mrb[0].mxu0
      %v1497 = vadd.f32 %v487, %v1496
      %v1498 = vpop.f32.mrb[0].mxu0
      %1499 = vmatprep.mubr.bf16.mxu0 %v956
      %1500 = vmatmul.mubr.bf16.gmra.mrb[0].mxu0 %v955
      %v1501 = vpop.f32.mrb[0].mxu0
      %v1502 = vadd.f32 %v487, %v1501
      %v1503 = vpop.f32.mrb[0].mxu0
      %v1504 = vpop.f32.mrb[0].mxu0
      %v1505 = vadd.f32 %v487, %v1504
      %v1506 = vpop.f32.mrb[0].mxu0
      %1507 = vmatprep.mubr.bf16.mxu0 %v960
      %1508 = vmatmul.mubr.bf16.gmra.mrb[0].mxu0 %v959
      %v1509 = vpop.f32.mrb[0].mxu0
      %v1510 = vadd.f32 %v487, %v1509
      %v1511 = vpop.f32.mrb[0].mxu0
      %v1512 = vpop.f32.mrb[0].mxu0
      %v1513 = vadd.f32 %v487, %v1512
      %v1514 = vpop.f32.mrb[0].mxu0
      %1515 = vmatprep.mubr.bf16.mxu0 %v964
      %1516 = vmatmul.mubr.bf16.gmra.mrb[0].mxu0 %v963
      %v1517 = vpop.f32.mrb[0].mxu0
      %v1518 = vadd.f32 %v487, %v1517
      %v1519 = vpop.f32.mrb[0].mxu0
      %v1520 = vpop.f32.mrb[0].mxu0
      %v1521 = vadd.f32 %v487, %v1520
      %v1522 = vpop.f32.mrb[0].mxu0
      %1523 = vmatprep.mubr.bf16.mxu0 %v968
      %1524 = vmatmul.mubr.bf16.gmra.mrb[0].mxu0 %v967
      %v1525 = vpop.f32.mrb[0].mxu0
      %v1526 = vadd.f32 %v487, %v1525
      %v1527 = vpop.f32.mrb[0].mxu0
      %v1528 = vpop.f32.mrb[0].mxu0
      %v1529 = vadd.f32 %v487, %v1528
      %v1530 = vpop.f32.mrb[0].mxu0
      %1531 = vmatprep.mubr.bf16.mxu0 %v972
      %1532 = vmatmul.mubr.bf16.gmra.mrb[0].mxu0 %v971
      %v1533 = vpop.f32.mrb[0].mxu0
      %v1534 = vadd.f32 %v487, %v1533
      %v1535 = vpop.f32.mrb[0].mxu0
      %v1536 = vpop.f32.mrb[0].mxu0
      %v1537 = vadd.f32 %v487, %v1536
      %v1538 = vpop.f32.mrb[0].mxu0
      %1539 = vmatprep.mubr.bf16.mxu0 %v976
      %1540 = vmatmul.mubr.bf16.gmra.mrb[0].mxu0 %v975
      %v1541 = vpop.f32.mrb[0].mxu0
      %v1542 = vadd.f32 %v487, %v1541
      %v1543 = vpop.f32.mrb[0].mxu0
      %v1544 = vpop.f32.mrb[0].mxu0
      %v1545 = vadd.f32 %v487, %v1544
      %v1546 = vpop.f32.mrb[0].mxu0
      %1547 = vmatprep.mubr.bf16.mxu0 %v980
      %1548 = vmatmul.mubr.bf16.gmra.mrb[0].mxu0 %v979
      %v1549 = vpop.f32.mrb[0].mxu0
      %v1550 = vadd.f32 %v487, %v1549
      %v1551 = vpop.f32.mrb[0].mxu0
      %v1552 = vpop.f32.mrb[0].mxu0
      %v1553 = vadd.f32 %v487, %v1552
      %v1554 = vpop.f32.mrb[0].mxu0
      %1555 = vmatprep.mubr.bf16.mxu0 %v984
      %1556 = vmatmul.mubr.bf16.gmra.mrb[0].mxu0 %v983
      %v1557 = vpop.f32.mrb[0].mxu0
      %v1558 = vadd.f32 %v487, %v1557
      %v1559 = vpop.f32.mrb[0].mxu0
      %v1560 = vpop.f32.mrb[0].mxu0
      %v1561 = vadd.f32 %v487, %v1560
      %v1562 = vpop.f32.mrb[0].mxu0
      %1563 = vmatprep.mubr.bf16.mxu0 %v988
      %1564 = vmatmul.mubr.bf16.gmra.mrb[0].mxu0 %v987
      %v1565 = vpop.f32.mrb[0].mxu0
      %v1566 = vadd.f32 %v487, %v1565
      %v1567 = vpop.f32.mrb[0].mxu0
      %v1568 = vpop.f32.mrb[0].mxu0
      %v1569 = vadd.f32 %v487, %v1568
      %v1570 = vpop.f32.mrb[0].mxu0
      %1571 = vmatprep.mubr.bf16.mxu0 %v992
      %1572 = vmatmul.mubr.bf16.gmra.mrb[0].mxu0 %v991
      %v1573 = vpop.f32.mrb[0].mxu0
      %v1574 = vadd.f32 %v487, %v1573
      %v1575 = vpop.f32.mrb[0].mxu0
      %v1576 = vpop.f32.mrb[0].mxu0
      %v1577 = vadd.f32 %v487, %v1576
      %v1578 = vpop.f32.mrb[0].mxu0
      %1579 = vmatprep.mubr.bf16.mxu0 %v996
      %1580 = vmatmul.mubr.bf16.gmra.mrb[0].mxu0 %v995
      %v1581 = vpop.f32.mrb[0].mxu0
      %v1582 = vadd.f32 %v487, %v1581
      %v1583 = vpop.f32.mrb[0].mxu0
      %v1584 = vpop.f32.mrb[0].mxu0
      %v1585 = vadd.f32 %v487, %v1584
      %v1586 = vpop.f32.mrb[0].mxu0
      %1587 = vmatprep.mubr.bf16.mxu0 %v1000
      %1588 = vmatmul.mubr.bf16.gmra.mrb[0].mxu0 %v999
      %v1589 = vpop.f32.mrb[0].mxu0
      %v1590 = vadd.f32 %v487, %v1589
      %v1591 = vpop.f32.mrb[0].mxu0
      %v1592 = vpop.f32.mrb[0].mxu0
      %v1593 = vadd.f32 %v487, %v1592
      %v1594 = vpop.f32.mrb[0].mxu0
      %1595 = vmatprep.mubr.bf16.mxu0 %v1004
      %1596 = vmatmul.mubr.bf16.gmra.mrb[0].mxu0 %v1003
      %v1597 = vpop.f32.mrb[0].mxu0
      %v1598 = vadd.f32 %v487, %v1597
      %v1599 = vpop.f32.mrb[0].mxu0
      %v1600 = vpop.f32.mrb[0].mxu0
      %v1601 = vadd.f32 %v487, %v1600
      %v1602 = vpop.f32.mrb[0].mxu0
      %1603 = vmatprep.mubr.bf16.mxu0 %v1008
      %1604 = vmatmul.mubr.bf16.gmra.mrb[0].mxu0 %v1007
      %v1605 = vpop.f32.mrb[0].mxu0
      %v1606 = vadd.f32 %v487, %v1605
      %v1607 = vpop.f32.mrb[0].mxu0
      %v1608 = vpop.f32.mrb[0].mxu0
      %v1609 = vadd.f32 %v487, %v1608
      %v1610 = vpop.f32.mrb[0].mxu0
      %1611 = vmatprep.mubr.bf16.mxu0 %v1012
      %1612 = vmatmul.mubr.bf16.gmra.mrb[0].mxu0 %v1011
      %v1613 = vpop.f32.mrb[0].mxu0
      %v1614 = vadd.f32 %v487, %v1613
      %v1615 = vpop.f32.mrb[0].mxu0
      %v1616 = vpop.f32.mrb[0].mxu0
      %v1617 = vadd.f32 %v487, %v1616
      %v1618 = vpop.f32.mrb[0].mxu0
      %1619 = vmatprep.mubr.bf16.mxu0 %v1016
      %1620 = vmatmul.mubr.bf16.gmra.mrb[0].mxu0 %v1015
      %v1621 = vpop.f32.mrb[0].mxu0
      %v1622 = vadd.f32 %v487, %v1621
      %v1623 = vpop.f32.mrb[0].mxu0
      %v1624 = vpop.f32.mrb[0].mxu0
      %v1625 = vadd.f32 %v487, %v1624
      %v1626 = vpop.f32.mrb[0].mxu0
      %1627 = vmatprep.mubr.bf16.mxu0 %v1020
      %1628 = vmatmul.mubr.bf16.gmra.mrb[0].mxu0 %v1019
      %v1629 = vpop.f32.mrb[0].mxu0
      %v1630 = vadd.f32 %v487, %v1629
      %v1631 = vpop.f32.mrb[0].mxu0
      %v1632 = vpop.f32.mrb[0].mxu0
      %v1633 = vadd.f32 %v487, %v1632
      %v1634 = vpop.f32.mrb[0].mxu0
      %1635 = vmatprep.mubr.bf16.mxu0 %v1024
      %1636 = vmatmul.mubr.bf16.gmra.mrb[0].mxu0 %v1023
      %v1637 = vpop.f32.mrb[0].mxu0
      %v1638 = vadd.f32 %v487, %v1637
      %v1639 = vpop.f32.mrb[0].mxu0
      %v1640 = vpop.f32.mrb[0].mxu0
      %v1641 = vadd.f32 %v487, %v1640
      %v1642 = vpop.f32.mrb[0].mxu0
      %1643 = vmatprep.mubr.bf16.mxu0 %v1028
      %1644 = vmatmul.mubr.bf16.gmra.mrb[0].mxu0 %v1027
      %v1645 = vpop.f32.mrb[0].mxu0
      %v1646 = vadd.f32 %v487, %v1645
      %v1647 = vpop.f32.mrb[0].mxu0
      %v1648 = vpop.f32.mrb[0].mxu0
      %v1649 = vadd.f32 %v487, %v1648
      %v1650 = vpop.f32.mrb[0].mxu0
      %1651 = vmatprep.mubr.bf16.mxu0 %v1032
      %1652 = vmatmul.mubr.bf16.gmra.mrb[0].mxu0 %v1031
      %v1653 = vpop.f32.mrb[0].mxu0
      %v1654 = vadd.f32 %v487, %v1653
      %v1655 = vpop.f32.mrb[0].mxu0
      %v1656 = vpop.f32.mrb[0].mxu0
      %v1657 = vadd.f32 %v487, %v1656
      %v1658 = vpop.f32.mrb[0].mxu0
      %1659 = vmatprep.mubr.bf16.mxu0 %v1036
      %1660 = vmatmul.mubr.bf16.gmra.mrb[0].mxu0 %v1035
      %v1661 = vpop.f32.mrb[0].mxu0
      %v1662 = vadd.f32 %v487, %v1661
      %v1663 = vpop.f32.mrb[0].mxu0
      %v1664 = vpop.f32.mrb[0].mxu0
      %v1665 = vadd.f32 %v487, %v1664
      %v1666 = vpop.f32.mrb[0].mxu0
      %1667 = vmatprep.mubr.bf16.mxu0 %v1040
      %1668 = vmatmul.mubr.bf16.gmra.mrb[0].mxu0 %v1039
      %v1669 = vpop.f32.mrb[0].mxu0
      %v1670 = vadd.f32 %v487, %v1669
      %v1671 = vpop.f32.mrb[0].mxu0
      %v1672 = vpop.f32.mrb[0].mxu0
      %v1673 = vadd.f32 %v487, %v1672
      %v1674 = vpop.f32.mrb[0].mxu0
      %1675 = vmatprep.mubr.bf16.mxu0 %v1044
      %1676 = vmatmul.mubr.bf16.gmra.mrb[0].mxu0 %v1043
      %v1677 = vpop.f32.mrb[0].mxu0
      %v1678 = vadd.f32 %v487, %v1677
      %v1679 = vpop.f32.mrb[0].mxu0
      %v1680 = vpop.f32.mrb[0].mxu0
      %v1681 = vadd.f32 %v487, %v1680
      %v1682 = vpop.f32.mrb[0].mxu0
      %1683 = vmatprep.mubr.bf16.mxu0 %v1048
      %1684 = vmatmul.mubr.bf16.gmra.mrb[0].mxu0 %v1047
      %v1685 = vpop.f32.mrb[0].mxu0
      %v1686 = vadd.f32 %v487, %v1685
      %v1687 = vpop.f32.mrb[0].mxu0
      %v1688 = vpop.f32.mrb[0].mxu0
      %v1689 = vadd.f32 %v487, %v1688
      %v1690 = vpop.f32.mrb[0].mxu0
      %1691 = vmatprep.mubr.bf16.mxu0 %v1052
      %1692 = vmatmul.mubr.bf16.gmra.mrb[0].mxu0 %v1051
      %v1693 = vpop.f32.mrb[0].mxu0
      %v1694 = vadd.f32 %v487, %v1693
      %v1695 = vpop.f32.mrb[0].mxu0
      %v1696 = vpop.f32.mrb[0].mxu0
      %v1697 = vadd.f32 %v487, %v1696
      %v1698 = vpop.f32.mrb[0].mxu0
      %1699 = vmatprep.mubr.bf16.mxu0 %v1056
      %1700 = vmatmul.mubr.bf16.gmra.mrb[0].mxu0 %v1055
      %v1701 = vpop.f32.mrb[0].mxu0
      %v1702 = vadd.f32 %v487, %v1701
      %v1703 = vpop.f32.mrb[0].mxu0
      %v1704 = vpop.f32.mrb[0].mxu0
      %v1705 = vadd.f32 %v487, %v1704
      %v1706 = vpop.f32.mrb[0].mxu0
      %1707 = vmatprep.mubr.bf16.mxu0 %v1060
      %1708 = vmatmul.mubr.bf16.gmra.mrb[0].mxu0 %v1059
      %v1709 = vpop.f32.mrb[0].mxu0
      %v1710 = vadd.f32 %v487, %v1709
      %v1711 = vpop.f32.mrb[0].mxu0
      %v1712 = vpop.f32.mrb[0].mxu0
      %v1713 = vadd.f32 %v487, %v1712
      %v1714 = vpop.f32.mrb[0].mxu0
      %1715 = vmatprep.mubr.bf16.mxu0 %v1064
      %1716 = vmatmul.mubr.bf16.gmra.mrb[0].mxu0 %v1063
      %v1717 = vpop.f32.mrb[0].mxu0
      %v1718 = vadd.f32 %v487, %v1717
      %v1719 = vpop.f32.mrb[0].mxu0
      %v1720 = vpop.f32.mrb[0].mxu0
      %v1721 = vadd.f32 %v487, %v1720
      %v1722 = vpop.f32.mrb[0].mxu0
      %1723 = vmatprep.mubr.bf16.mxu0 %v1068
      %1724 = vmatmul.mubr.bf16.gmra.mrb[0].mxu0 %v1067
      %v1725 = vpop.f32.mrb[0].mxu0
      %v1726 = vadd.f32 %v487, %v1725
      %v1727 = vpop.f32.mrb[0].mxu0
      %v1728 = vpop.f32.mrb[0].mxu0
      %v1729 = vadd.f32 %v487, %v1728
      %v1730 = vpop.f32.mrb[0].mxu0
      %1731 = vmatprep.mubr.bf16.mxu0 %v1072
      %1732 = vmatmul.mubr.bf16.gmra.mrb[0].mxu0 %v1071
      %v1733 = vpop.f32.mrb[0].mxu0
      %v1734 = vadd.f32 %v487, %v1733
      %v1735 = vpop.f32.mrb[0].mxu0
      %v1736 = vpop.f32.mrb[0].mxu0
      %v1737 = vadd.f32 %v487, %v1736
      %v1738 = vpop.f32.mrb[0].mxu0
      %1739 = vmatprep.mubr.bf16.mxu0 %v1076
      %1740 = vmatmul.mubr.bf16.gmra.mrb[0].mxu0 %v1075
      %v1741 = vpop.f32.mrb[0].mxu0
      %v1742 = vadd.f32 %v487, %v1741
      %v1743 = vpop.f32.mrb[0].mxu0
      %v1744 = vpop.f32.mrb[0].mxu0
      %v1745 = vadd.f32 %v487, %v1744
      %v1746 = vpop.f32.mrb[0].mxu0
      %1747 = vmatprep.mubr.bf16.mxu0 %v1080
      %1748 = vmatmul.mubr.bf16.gmra.mrb[0].mxu0 %v1079
      %v1749 = vpop.f32.mrb[0].mxu0
      %v1750 = vadd.f32 %v487, %v1749
      %v1751 = vpop.f32.mrb[0].mxu0
      %v1752 = vpop.f32.mrb[0].mxu0
      %v1753 = vadd.f32 %v487, %v1752
      %v1754 = vpop.f32.mrb[0].mxu0
      %1755 = vmatprep.mubr.bf16.mxu0 %v1084
      %1756 = vmatmul.mubr.bf16.gmra.mrb[0].mxu0 %v1083
      %v1757 = vpop.f32.mrb[0].mxu0
      %v1758 = vadd.f32 %v487, %v1757
      %v1759 = vpop.f32.mrb[0].mxu0
      %v1760 = vpop.f32.mrb[0].mxu0
      %v1761 = vadd.f32 %v487, %v1760
      %v1762 = vpop.f32.mrb[0].mxu0
      %1763 = vmatprep.mubr.bf16.mxu0 %v1088
      %1764 = vmatmul.mubr.bf16.gmra.mrb[0].mxu0 %v1087
      %v1765 = vpop.f32.mrb[0].mxu0
      %v1766 = vadd.f32 %v487, %v1765
      %v1767 = vpop.f32.mrb[0].mxu0
      %v1768 = vpop.f32.mrb[0].mxu0
      %v1769 = vpop.f32.mrb[0].mxu0
      %1770 = vdwg.mxu0
      %1771 = vmatprep.subr.bf16.mxu0 0
      %1772 = vmatpush1.bf16.msra.mxu0 %v1387
      %1773 = vmatprep.subr.bf16.mxu0 0
      %1774 = vmatpush1.bf16.msra.mxu0 %v1388
      %1775 = vmatprep.subr.bf16.mxu0 0
      %1776 = vmatpush1.bf16.msra.mxu0 %v1389
      %1777 = vmatprep.subr.bf16.mxu0 0
      %1778 = vmatpush1.bf16.msra.mxu0 %v1390
      %1779 = vmatprep.subr.bf16.mxu0 0
      %1780 = vmatpush1.bf16.msra.mxu0 %v1391
      %1781 = vmatprep.subr.bf16.mxu0 0
      %1782 = vmatpush1.bf16.msra.mxu0 %v1392
      %1783 = vmatprep.subr.bf16.mxu0 0
      %1784 = vmatpush1.bf16.msra.mxu0 %v1393
      %1785 = vmatprep.subr.bf16.mxu0 0
      %1786 = vmatpush1.bf16.msra.mxu0 %v1394
      %1787 = vmatprep.subr.bf16.mxu0 0
      %1788 = vmatpush1.bf16.msra.mxu0 %v1395
      %1789 = vmatprep.subr.bf16.mxu0 0
      %1790 = vmatpush1.bf16.msra.mxu0 %v1396
      %1791 = vmatprep.subr.bf16.mxu0 0
      %1792 = vmatpush1.bf16.msra.mxu0 %v1397
      %1793 = vmatprep.subr.bf16.mxu0 0
      %1794 = vmatpush1.bf16.msra.mxu0 %v1398
      %1795 = vmatprep.subr.bf16.mxu0 0
      %1796 = vmatpush1.bf16.msra.mxu0 %v1399
      %1797 = vmatprep.subr.bf16.mxu0 0
      %1798 = vmatpush1.bf16.msra.mxu0 %v1400
      %1799 = vmatprep.subr.bf16.mxu0 0
      %1800 = vmatpush1.bf16.msra.mxu0 %v1401
      %1801 = vmatprep.subr.bf16.mxu0 0
      %1802 = vmatpush1.bf16.msra.mxu0 %v1402
      %1803 = vmatprep.mubr.bf16.mxu0 %v942
      %1804 = vmatmul.mubr.bf16.gmra.mrb[0].mxu0 %v941
      %v1805 = vpop.f32.mrb[0].mxu0
      %v1806 = vadd.f32 %v1470, %v1805
      %v1807 = vpop.f32.mrb[0].mxu0
      %v1808 = vpop.f32.mrb[0].mxu0
      %v1809 = vadd.f32 %v1473, %v1808
      %v1810 = vpop.f32.mrb[0].mxu0
      %1811 = vmatprep.mubr.bf16.mxu0 %v946
      %1812 = vmatmul.mubr.bf16.gmra.mrb[0].mxu0 %v945
      %v1813 = vpop.f32.mrb[0].mxu0
      %v1814 = vadd.f32 %v1478, %v1813
      %v1815 = vpop.f32.mrb[0].mxu0
      %v1816 = vpop.f32.mrb[0].mxu0
      %v1817 = vadd.f32 %v1481, %v1816
      %v1818 = vpop.f32.mrb[0].mxu0
      %1819 = vmatprep.mubr.bf16.mxu0 %v950
      %1820 = vmatmul.mubr.bf16.gmra.mrb[0].mxu0 %v949
      %v1821 = vpop.f32.mrb[0].mxu0
      %v1822 = vadd.f32 %v1486, %v1821
      %v1823 = vpop.f32.mrb[0].mxu0
      %v1824 = vpop.f32.mrb[0].mxu0
      %v1825 = vadd.f32 %v1489, %v1824
      %v1826 = vpop.f32.mrb[0].mxu0
      %1827 = vmatprep.mubr.bf16.mxu0 %v954
      %1828 = vmatmul.mubr.bf16.gmra.mrb[0].mxu0 %v953
      %v1829 = vpop.f32.mrb[0].mxu0
      %v1830 = vadd.f32 %v1494, %v1829
      %v1831 = vpop.f32.mrb[0].mxu0
      %v1832 = vpop.f32.mrb[0].mxu0
      %v1833 = vadd.f32 %v1497, %v1832
      %v1834 = vpop.f32.mrb[0].mxu0
      %1835 = vmatprep.mubr.bf16.mxu0 %v958
      %1836 = vmatmul.mubr.bf16.gmra.mrb[0].mxu0 %v957
      %v1837 = vpop.f32.mrb[0].mxu0
      %v1838 = vadd.f32 %v1502, %v1837
      %v1839 = vpop.f32.mrb[0].mxu0
      %v1840 = vpop.f32.mrb[0].mxu0
      %v1841 = vadd.f32 %v1505, %v1840
      %v1842 = vpop.f32.mrb[0].mxu0
      %1843 = vmatprep.mubr.bf16.mxu0 %v962
      %1844 = vmatmul.mubr.bf16.gmra.mrb[0].mxu0 %v961
      %v1845 = vpop.f32.mrb[0].mxu0
      %v1846 = vadd.f32 %v1510, %v1845
      %v1847 = vpop.f32.mrb[0].mxu0
      %v1848 = vpop.f32.mrb[0].mxu0
      %v1849 = vadd.f32 %v1513, %v1848
      %v1850 = vpop.f32.mrb[0].mxu0
      %1851 = vmatprep.mubr.bf16.mxu0 %v966
      %1852 = vmatmul.mubr.bf16.gmra.mrb[0].mxu0 %v965
      %v1853 = vpop.f32.mrb[0].mxu0
      %v1854 = vadd.f32 %v1518, %v1853
      %v1855 = vpop.f32.mrb[0].mxu0
      %v1856 = vpop.f32.mrb[0].mxu0
      %v1857 = vadd.f32 %v1521, %v1856
      %v1858 = vpop.f32.mrb[0].mxu0
      %1859 = vmatprep.mubr.bf16.mxu0 %v970
      %1860 = vmatmul.mubr.bf16.gmra.mrb[0].mxu0 %v969
      %v1861 = vpop.f32.mrb[0].mxu0
      %v1862 = vadd.f32 %v1526, %v1861
      %v1863 = vpop.f32.mrb[0].mxu0
      %v1864 = vpop.f32.mrb[0].mxu0
      %v1865 = vadd.f32 %v1529, %v1864
      %v1866 = vpop.f32.mrb[0].mxu0
      %1867 = vmatprep.mubr.bf16.mxu0 %v974
      %1868 = vmatmul.mubr.bf16.gmra.mrb[0].mxu0 %v973
      %v1869 = vpop.f32.mrb[0].mxu0
      %v1870 = vadd.f32 %v1534, %v1869
      %v1871 = vpop.f32.mrb[0].mxu0
      %v1872 = vpop.f32.mrb[0].mxu0
      %v1873 = vadd.f32 %v1537, %v1872
      %v1874 = vpop.f32.mrb[0].mxu0
      %1875 = vmatprep.mubr.bf16.mxu0 %v978
      %1876 = vmatmul.mubr.bf16.gmra.mrb[0].mxu0 %v977
      %v1877 = vpop.f32.mrb[0].mxu0
      %v1878 = vadd.f32 %v1542, %v1877
      %v1879 = vpop.f32.mrb[0].mxu0
      %v1880 = vpop.f32.mrb[0].mxu0
      %v1881 = vadd.f32 %v1545, %v1880
      %v1882 = vpop.f32.mrb[0].mxu0
      %1883 = vmatprep.mubr.bf16.mxu0 %v982
      %1884 = vmatmul.mubr.bf16.gmra.mrb[0].mxu0 %v981
      %v1885 = vpop.f32.mrb[0].mxu0
      %v1886 = vadd.f32 %v1550, %v1885
      %v1887 = vpop.f32.mrb[0].mxu0
      %v1888 = vpop.f32.mrb[0].mxu0
      %v1889 = vadd.f32 %v1553, %v1888
      %v1890 = vpop.f32.mrb[0].mxu0
      %1891 = vmatprep.mubr.bf16.mxu0 %v986
      %1892 = vmatmul.mubr.bf16.gmra.mrb[0].mxu0 %v985
      %v1893 = vpop.f32.mrb[0].mxu0
      %v1894 = vadd.f32 %v1558, %v1893
      %v1895 = vpop.f32.mrb[0].mxu0
      %v1896 = vpop.f32.mrb[0].mxu0
      %v1897 = vadd.f32 %v1561, %v1896
      %v1898 = vpop.f32.mrb[0].mxu0
      %1899 = vmatprep.mubr.bf16.mxu0 %v990
      %1900 = vmatmul.mubr.bf16.gmra.mrb[0].mxu0 %v989
      %v1901 = vpop.f32.mrb[0].mxu0
      %v1902 = vadd.f32 %v1566, %v1901
      %v1903 = vpop.f32.mrb[0].mxu0
      %v1904 = vpop.f32.mrb[0].mxu0
      %v1905 = vadd.f32 %v1569, %v1904
      %v1906 = vpop.f32.mrb[0].mxu0
      %1907 = vmatprep.mubr.bf16.mxu0 %v994
      %1908 = vmatmul.mubr.bf16.gmra.mrb[0].mxu0 %v993
      %v1909 = vpop.f32.mrb[0].mxu0
      %v1910 = vadd.f32 %v1574, %v1909
      %v1911 = vpop.f32.mrb[0].mxu0
      %v1912 = vpop.f32.mrb[0].mxu0
      %v1913 = vadd.f32 %v1577, %v1912
      %v1914 = vpop.f32.mrb[0].mxu0
      %1915 = vmatprep.mubr.bf16.mxu0 %v998
      %1916 = vmatmul.mubr.bf16.gmra.mrb[0].mxu0 %v997
      %v1917 = vpop.f32.mrb[0].mxu0
      %v1918 = vadd.f32 %v1582, %v1917
      %v1919 = vpop.f32.mrb[0].mxu0
      %v1920 = vpop.f32.mrb[0].mxu0
      %v1921 = vadd.f32 %v1585, %v1920
      %v1922 = vpop.f32.mrb[0].mxu0
      %1923 = vmatprep.mubr.bf16.mxu0 %v1002
      %1924 = vmatmul.mubr.bf16.gmra.mrb[0].mxu0 %v1001
      %v1925 = vpop.f32.mrb[0].mxu0
      %v1926 = vadd.f32 %v1590, %v1925
      %v1927 = vpop.f32.mrb[0].mxu0
      %v1928 = vpop.f32.mrb[0].mxu0
      %v1929 = vadd.f32 %v1593, %v1928
      %v1930 = vpop.f32.mrb[0].mxu0
      %1931 = vmatprep.mubr.bf16.mxu0 %v1006
      %1932 = vmatmul.mubr.bf16.gmra.mrb[0].mxu0 %v1005
      %v1933 = vpop.f32.mrb[0].mxu0
      %v1934 = vadd.f32 %v1598, %v1933
      %v1935 = vpop.f32.mrb[0].mxu0
      %v1936 = vpop.f32.mrb[0].mxu0
      %v1937 = vadd.f32 %v1601, %v1936
      %v1938 = vpop.f32.mrb[0].mxu0
      %1939 = vmatprep.mubr.bf16.mxu0 %v1010
      %1940 = vmatmul.mubr.bf16.gmra.mrb[0].mxu0 %v1009
      %v1941 = vpop.f32.mrb[0].mxu0
      %v1942 = vadd.f32 %v1606, %v1941
      %v1943 = vpop.f32.mrb[0].mxu0
      %v1944 = vpop.f32.mrb[0].mxu0
      %v1945 = vadd.f32 %v1609, %v1944
      %v1946 = vpop.f32.mrb[0].mxu0
      %1947 = vmatprep.mubr.bf16.mxu0 %v1014
      %1948 = vmatmul.mubr.bf16.gmra.mrb[0].mxu0 %v1013
      %v1949 = vpop.f32.mrb[0].mxu0
      %v1950 = vadd.f32 %v1614, %v1949
      %v1951 = vpop.f32.mrb[0].mxu0
      %v1952 = vpop.f32.mrb[0].mxu0
      %v1953 = vadd.f32 %v1617, %v1952
      %v1954 = vpop.f32.mrb[0].mxu0
      %1955 = vmatprep.mubr.bf16.mxu0 %v1018
      %1956 = vmatmul.mubr.bf16.gmra.mrb[0].mxu0 %v1017
      %v1957 = vpop.f32.mrb[0].mxu0
      %v1958 = vadd.f32 %v1622, %v1957
      %v1959 = vpop.f32.mrb[0].mxu0
      %v1960 = vpop.f32.mrb[0].mxu0
      %v1961 = vadd.f32 %v1625, %v1960
      %v1962 = vpop.f32.mrb[0].mxu0
      %1963 = vmatprep.mubr.bf16.mxu0 %v1022
      %1964 = vmatmul.mubr.bf16.gmra.mrb[0].mxu0 %v1021
      %v1965 = vpop.f32.mrb[0].mxu0
      %v1966 = vadd.f32 %v1630, %v1965
      %v1967 = vpop.f32.mrb[0].mxu0
      %v1968 = vpop.f32.mrb[0].mxu0
      %v1969 = vadd.f32 %v1633, %v1968
      %v1970 = vpop.f32.mrb[0].mxu0
      %1971 = vmatprep.mubr.bf16.mxu0 %v1026
      %1972 = vmatmul.mubr.bf16.gmra.mrb[0].mxu0 %v1025
      %v1973 = vpop.f32.mrb[0].mxu0
      %v1974 = vadd.f32 %v1638, %v1973
      %v1975 = vpop.f32.mrb[0].mxu0
      %v1976 = vpop.f32.mrb[0].mxu0
      %v1977 = vadd.f32 %v1641, %v1976
      %v1978 = vpop.f32.mrb[0].mxu0
      %1979 = vmatprep.mubr.bf16.mxu0 %v1030
      %1980 = vmatmul.mubr.bf16.gmra.mrb[0].mxu0 %v1029
      %v1981 = vpop.f32.mrb[0].mxu0
      %v1982 = vadd.f32 %v1646, %v1981
      %v1983 = vpop.f32.mrb[0].mxu0
      %v1984 = vpop.f32.mrb[0].mxu0
      %v1985 = vadd.f32 %v1649, %v1984
      %v1986 = vpop.f32.mrb[0].mxu0
      %1987 = vmatprep.mubr.bf16.mxu0 %v1034
      %1988 = vmatmul.mubr.bf16.gmra.mrb[0].mxu0 %v1033
      %v1989 = vpop.f32.mrb[0].mxu0
      %v1990 = vadd.f32 %v1654, %v1989
      %v1991 = vpop.f32.mrb[0].mxu0
      %v1992 = vpop.f32.mrb[0].mxu0
      %v1993 = vadd.f32 %v1657, %v1992
      %v1994 = vpop.f32.mrb[0].mxu0
      %1995 = vmatprep.mubr.bf16.mxu0 %v1038
      %1996 = vmatmul.mubr.bf16.gmra.mrb[0].mxu0 %v1037
      %v1997 = vpop.f32.mrb[0].mxu0
      %v1998 = vadd.f32 %v1662, %v1997
      %v1999 = vpop.f32.mrb[0].mxu0
      %v2000 = vpop.f32.mrb[0].mxu0
      %v2001 = vadd.f32 %v1665, %v2000
      %v2002 = vpop.f32.mrb[0].mxu0
      %2003 = vmatprep.mubr.bf16.mxu0 %v1042
      %2004 = vmatmul.mubr.bf16.gmra.mrb[0].mxu0 %v1041
      %v2005 = vpop.f32.mrb[0].mxu0
      %v2006 = vadd.f32 %v1670, %v2005
      %v2007 = vpop.f32.mrb[0].mxu0
      %v2008 = vpop.f32.mrb[0].mxu0
      %v2009 = vadd.f32 %v1673, %v2008
      %v2010 = vpop.f32.mrb[0].mxu0
      %2011 = vmatprep.mubr.bf16.mxu0 %v1046
      %2012 = vmatmul.mubr.bf16.gmra.mrb[0].mxu0 %v1045
      %v2013 = vpop.f32.mrb[0].mxu0
      %v2014 = vadd.f32 %v1678, %v2013
      %v2015 = vpop.f32.mrb[0].mxu0
      %v2016 = vpop.f32.mrb[0].mxu0
      %v2017 = vadd.f32 %v1681, %v2016
      %v2018 = vpop.f32.mrb[0].mxu0
      %2019 = vmatprep.mubr.bf16.mxu0 %v1050
      %2020 = vmatmul.mubr.bf16.gmra.mrb[0].mxu0 %v1049
      %v2021 = vpop.f32.mrb[0].mxu0
      %v2022 = vadd.f32 %v1686, %v2021
      %v2023 = vpop.f32.mrb[0].mxu0
      %v2024 = vpop.f32.mrb[0].mxu0
      %v2025 = vadd.f32 %v1689, %v2024
      %v2026 = vpop.f32.mrb[0].mxu0
      %2027 = vmatprep.mubr.bf16.mxu0 %v1054
      %2028 = vmatmul.mubr.bf16.gmra.mrb[0].mxu0 %v1053
      %v2029 = vpop.f32.mrb[0].mxu0
      %v2030 = vadd.f32 %v1694, %v2029
      %v2031 = vpop.f32.mrb[0].mxu0
      %v2032 = vpop.f32.mrb[0].mxu0
      %v2033 = vadd.f32 %v1697, %v2032
      %v2034 = vpop.f32.mrb[0].mxu0
      %2035 = vmatprep.mubr.bf16.mxu0 %v1058
      %2036 = vmatmul.mubr.bf16.gmra.mrb[0].mxu0 %v1057
      %v2037 = vpop.f32.mrb[0].mxu0
      %v2038 = vadd.f32 %v1702, %v2037
      %v2039 = vpop.f32.mrb[0].mxu0
      %v2040 = vpop.f32.mrb[0].mxu0
      %v2041 = vadd.f32 %v1705, %v2040
      %v2042 = vpop.f32.mrb[0].mxu0
      %2043 = vmatprep.mubr.bf16.mxu0 %v1062
      %2044 = vmatmul.mubr.bf16.gmra.mrb[0].mxu0 %v1061
      %v2045 = vpop.f32.mrb[0].mxu0
      %v2046 = vadd.f32 %v1710, %v2045
      %v2047 = vpop.f32.mrb[0].mxu0
      %v2048 = vpop.f32.mrb[0].mxu0
      %v2049 = vadd.f32 %v1713, %v2048
      %v2050 = vpop.f32.mrb[0].mxu0
      %2051 = vmatprep.mubr.bf16.mxu0 %v1066
      %2052 = vmatmul.mubr.bf16.gmra.mrb[0].mxu0 %v1065
      %v2053 = vpop.f32.mrb[0].mxu0
      %v2054 = vadd.f32 %v1718, %v2053
      %v2055 = vpop.f32.mrb[0].mxu0
      %v2056 = vpop.f32.mrb[0].mxu0
      %v2057 = vadd.f32 %v1721, %v2056
      %v2058 = vpop.f32.mrb[0].mxu0
      %2059 = vmatprep.mubr.bf16.mxu0 %v1070
      %2060 = vmatmul.mubr.bf16.gmra.mrb[0].mxu0 %v1069
      %v2061 = vpop.f32.mrb[0].mxu0
      %v2062 = vadd.f32 %v1726, %v2061
      %v2063 = vpop.f32.mrb[0].mxu0
      %v2064 = vpop.f32.mrb[0].mxu0
      %v2065 = vadd.f32 %v1729, %v2064
      %v2066 = vpop.f32.mrb[0].mxu0
      %2067 = vmatprep.mubr.bf16.mxu0 %v1074
      %2068 = vmatmul.mubr.bf16.gmra.mrb[0].mxu0 %v1073
      %v2069 = vpop.f32.mrb[0].mxu0
      %v2070 = vadd.f32 %v1734, %v2069
      %v2071 = vpop.f32.mrb[0].mxu0
      %v2072 = vpop.f32.mrb[0].mxu0
      %v2073 = vadd.f32 %v1737, %v2072
      %v2074 = vpop.f32.mrb[0].mxu0
      %2075 = vmatprep.mubr.bf16.mxu0 %v1078
      %2076 = vmatmul.mubr.bf16.gmra.mrb[0].mxu0 %v1077
      %v2077 = vpop.f32.mrb[0].mxu0
      %v2078 = vadd.f32 %v1742, %v2077
      %v2079 = vpop.f32.mrb[0].mxu0
      %v2080 = vpop.f32.mrb[0].mxu0
      %v2081 = vadd.f32 %v1745, %v2080
      %v2082 = vpop.f32.mrb[0].mxu0
      %2083 = vmatprep.mubr.bf16.mxu0 %v1082
      %2084 = vmatmul.mubr.bf16.gmra.mrb[0].mxu0 %v1081
      %v2085 = vpop.f32.mrb[0].mxu0
      %v2086 = vadd.f32 %v1750, %v2085
      %v2087 = vpop.f32.mrb[0].mxu0
      %v2088 = vpop.f32.mrb[0].mxu0
      %v2089 = vadd.f32 %v1753, %v2088
      %v2090 = vpop.f32.mrb[0].mxu0
      %2091 = vmatprep.mubr.bf16.mxu0 %v1086
      %2092 = vmatmul.mubr.bf16.gmra.mrb[0].mxu0 %v1085
      %v2093 = vpop.f32.mrb[0].mxu0
      %v2094 = vadd.f32 %v1758, %v2093
      %v2095 = vpop.f32.mrb[0].mxu0
      %v2096 = vpop.f32.mrb[0].mxu0
      %v2097 = vadd.f32 %v1761, %v2096
      %v2098 = vpop.f32.mrb[0].mxu0
      %2099 = vmatprep.mubr.bf16.mxu0 %v1090
      %2100 = vmatmul.mubr.bf16.gmra.mrb[0].mxu0 %v1089
      %v2101 = vpop.f32.mrb[0].mxu0
      %v2102 = vadd.f32 %v1766, %v2101
      %v2103 = vpop.f32.mrb[0].mxu0
      %v2104 = vpop.f32.mrb[0].mxu0
      %v2105 = vpop.f32.mrb[0].mxu0
      %2106 = vdwg.mxu0
      %v2107 = vmax.f32 %v1806, 0.0
      %v2108 = vmax.f32 %v1809, 0.0
      %v2109 = vmax.f32 %v1814, 0.0
      %v2110 = vmax.f32 %v1817, 0.0
      %v2111 = vmax.f32 %v1822, 0.0
      %v2112 = vmax.f32 %v1825, 0.0
      %v2113 = vmax.f32 %v1830, 0.0
      %v2114 = vmax.f32 %v1833, 0.0
      %v2115 = vmax.f32 %v1838, 0.0
      %v2116 = vmax.f32 %v1841, 0.0
      %v2117 = vmax.f32 %v1846, 0.0
      %v2118 = vmax.f32 %v1849, 0.0
      %v2119 = vmax.f32 %v1854, 0.0
      %v2120 = vmax.f32 %v1857, 0.0
      %v2121 = vmax.f32 %v1862, 0.0
      %v2122 = vmax.f32 %v1865, 0.0
      %v2123 = vmax.f32 %v1870, 0.0
      %v2124 = vmax.f32 %v1873, 0.0
      %v2125 = vmax.f32 %v1878, 0.0
      %v2126 = vmax.f32 %v1881, 0.0
      %v2127 = vmax.f32 %v1886, 0.0
      %v2128 = vmax.f32 %v1889, 0.0
      %v2129 = vmax.f32 %v1894, 0.0
      %v2130 = vmax.f32 %v1897, 0.0
      %v2131 = vmax.f32 %v1902, 0.0
      %v2132 = vmax.f32 %v1905, 0.0
      %v2133 = vmax.f32 %v1910, 0.0
      %v2134 = vmax.f32 %v1913, 0.0
      %v2135 = vmax.f32 %v1918, 0.0
      %v2136 = vmax.f32 %v1921, 0.0
      %v2137 = vmax.f32 %v1926, 0.0
      %v2138 = vmax.f32 %v1929, 0.0
      %v2139 = vmax.f32 %v1934, 0.0
      %v2140 = vmax.f32 %v1937, 0.0
      %v2141 = vmax.f32 %v1942, 0.0
      %v2142 = vmax.f32 %v1945, 0.0
      %v2143 = vmax.f32 %v1950, 0.0
      %v2144 = vmax.f32 %v1953, 0.0
      %v2145 = vmax.f32 %v1958, 0.0
      %v2146 = vmax.f32 %v1961, 0.0
      %v2147 = vmax.f32 %v1966, 0.0
      %v2148 = vmax.f32 %v1969, 0.0
      %v2149 = vmax.f32 %v1974, 0.0
      %v2150 = vmax.f32 %v1977, 0.0
      %v2151 = vmax.f32 %v1982, 0.0
      %v2152 = vmax.f32 %v1985, 0.0
      %v2153 = vmax.f32 %v1990, 0.0
      %v2154 = vmax.f32 %v1993, 0.0
      %v2155 = vmax.f32 %v1998, 0.0
      %v2156 = vmax.f32 %v2001, 0.0
      %v2157 = vmax.f32 %v2006, 0.0
      %v2158 = vmax.f32 %v2009, 0.0
      %v2159 = vmax.f32 %v2014, 0.0
      %v2160 = vmax.f32 %v2017, 0.0
      %v2161 = vmax.f32 %v2022, 0.0
      %v2162 = vmax.f32 %v2025, 0.0
      %v2163 = vmax.f32 %v2030, 0.0
      %v2164 = vmax.f32 %v2033, 0.0
      %v2165 = vmax.f32 %v2038, 0.0
      %v2166 = vmax.f32 %v2041, 0.0
      %v2167 = vmax.f32 %v2046, 0.0
      %v2168 = vmax.f32 %v2049, 0.0
      %v2169 = vmax.f32 %v2054, 0.0
      %v2170 = vmax.f32 %v2057, 0.0
      %v2171 = vmax.f32 %v2062, 0.0
      %v2172 = vmax.f32 %v2065, 0.0
      %v2173 = vmax.f32 %v2070, 0.0
      %v2174 = vmax.f32 %v2073, 0.0
      %v2175 = vmax.f32 %v2078, 0.0
      %v2176 = vmax.f32 %v2081, 0.0
      %v2177 = vmax.f32 %v2086, 0.0
      %v2178 = vmax.f32 %v2089, 0.0
      %v2179 = vmax.f32 %v2094, 0.0
      %v2180 = vmax.f32 %v2097, 0.0
      %v2181 = vmax.f32 %v2102, 0.0
      %vm2182 = vcmask 261120
      %2183 = vst.msk [vmem:[%s265] sm:$0xff] %vm2182, %v2107
      %2184 = vst.msk [vmem:[%s265 + $0x8] sm:$0xff] %vm2182, %v2108
      %2185 = vst.msk [vmem:[%s265 + $0x10] sm:$0xff] %vm2182, %v2109
      %2186 = vst.msk [vmem:[%s265 + $0x18] sm:$0xff] %vm2182, %v2110
      %2187 = vst.msk [vmem:[%s265 + $0x20] sm:$0xff] %vm2182, %v2111
      %2188 = vst.msk [vmem:[%s265 + $0x28] sm:$0xff] %vm2182, %v2112
      %2189 = vst.msk [vmem:[%s265 + $0x30] sm:$0xff] %vm2182, %v2113
      %2190 = vst.msk [vmem:[%s265 + $0x38] sm:$0xff] %vm2182, %v2114
      %2191 = vst.msk [vmem:[%s265 + $0x40] sm:$0xff] %vm2182, %v2115
      %2192 = vst.msk [vmem:[%s265 + $0x48] sm:$0xff] %vm2182, %v2116
      %2193 = vst.msk [vmem:[%s265 + $0x50] sm:$0xff] %vm2182, %v2117
      %2194 = vst.msk [vmem:[%s265 + $0x58] sm:$0xff] %vm2182, %v2118
      %2195 = vst.msk [vmem:[%s265 + $0x60] sm:$0xff] %vm2182, %v2119
      %2196 = vst.msk [vmem:[%s265 + $0x68] sm:$0xff] %vm2182, %v2120
      %2197 = vst.msk [vmem:[%s265 + $0x70] sm:$0xff] %vm2182, %v2121
      %2198 = vst.msk [vmem:[%s265 + $0x78] sm:$0xff] %vm2182, %v2122
      %2199 = vst.msk [vmem:[%s265 + $0x80] sm:$0xff] %vm2182, %v2123
      %2200 = vst.msk [vmem:[%s265 + $0x88] sm:$0xff] %vm2182, %v2124
      %2201 = vst.msk [vmem:[%s265 + $0x90] sm:$0xff] %vm2182, %v2125
      %2202 = vst.msk [vmem:[%s265 + $0x98] sm:$0xff] %vm2182, %v2126
      %2203 = vst.msk [vmem:[%s265 + $0xa0] sm:$0xff] %vm2182, %v2127
      %2204 = vst.msk [vmem:[%s265 + $0xa8] sm:$0xff] %vm2182, %v2128
      %2205 = vst.msk [vmem:[%s265 + $0xb0] sm:$0xff] %vm2182, %v2129
      %2206 = vst.msk [vmem:[%s265 + $0xb8] sm:$0xff] %vm2182, %v2130
      %2207 = vst.msk [vmem:[%s265 + $0xc0] sm:$0xff] %vm2182, %v2131
      %2208 = vst.msk [vmem:[%s265 + $0xc8] sm:$0xff] %vm2182, %v2132
      %2209 = vst.msk [vmem:[%s265 + $0xd0] sm:$0xff] %vm2182, %v2133
      %2210 = vst.msk [vmem:[%s265 + $0xd8] sm:$0xff] %vm2182, %v2134
      %2211 = vst.msk [vmem:[%s265 + $0xe0] sm:$0xff] %vm2182, %v2135
      %2212 = vst.msk [vmem:[%s265 + $0xe8] sm:$0xff] %vm2182, %v2136
      %2213 = vst.msk [vmem:[%s265 + $0xf0] sm:$0xff] %vm2182, %v2137
      %2214 = vst.msk [vmem:[%s265 + $0xf8] sm:$0xff] %vm2182, %v2138
      %2215 = vst.msk [vmem:[%s265 + $0x100] sm:$0xff] %vm2182, %v2139
      %2216 = vst.msk [vmem:[%s265 + $0x108] sm:$0xff] %vm2182, %v2140
      %2217 = vst.msk [vmem:[%s265 + $0x110] sm:$0xff] %vm2182, %v2141
      %2218 = vst.msk [vmem:[%s265 + $0x118] sm:$0xff] %vm2182, %v2142
      %2219 = vst.msk [vmem:[%s265 + $0x120] sm:$0xff] %vm2182, %v2143
      %2220 = vst.msk [vmem:[%s265 + $0x128] sm:$0xff] %vm2182, %v2144
      %2221 = vst.msk [vmem:[%s265 + $0x130] sm:$0xff] %vm2182, %v2145
      %2222 = vst.msk [vmem:[%s265 + $0x138] sm:$0xff] %vm2182, %v2146
      %2223 = vst.msk [vmem:[%s265 + $0x140] sm:$0xff] %vm2182, %v2147
      %2224 = vst.msk [vmem:[%s265 + $0x148] sm:$0xff] %vm2182, %v2148
      %2225 = vst.msk [vmem:[%s265 + $0x150] sm:$0xff] %vm2182, %v2149
      %2226 = vst.msk [vmem:[%s265 + $0x158] sm:$0xff] %vm2182, %v2150
      %2227 = vst.msk [vmem:[%s265 + $0x160] sm:$0xff] %vm2182, %v2151
      %2228 = vst.msk [vmem:[%s265 + $0x168] sm:$0xff] %vm2182, %v2152
      %2229 = vst.msk [vmem:[%s265 + $0x170] sm:$0xff] %vm2182, %v2153
      %2230 = vst.msk [vmem:[%s265 + $0x178] sm:$0xff] %vm2182, %v2154
      %2231 = vst.msk [vmem:[%s265 + $0x180] sm:$0xff] %vm2182, %v2155
      %2232 = vst.msk [vmem:[%s265 + $0x188] sm:$0xff] %vm2182, %v2156
      %2233 = vst.msk [vmem:[%s265 + $0x190] sm:$0xff] %vm2182, %v2157
      %2234 = vst.msk [vmem:[%s265 + $0x198] sm:$0xff] %vm2182, %v2158
      %2235 = vst.msk [vmem:[%s265 + $0x1a0] sm:$0xff] %vm2182, %v2159
      %2236 = vst.msk [vmem:[%s265 + $0x1a8] sm:$0xff] %vm2182, %v2160
      %2237 = vst.msk [vmem:[%s265 + $0x1b0] sm:$0xff] %vm2182, %v2161
      %2238 = vst.msk [vmem:[%s265 + $0x1b8] sm:$0xff] %vm2182, %v2162
      %2239 = vst.msk [vmem:[%s265 + $0x1c0] sm:$0xff] %vm2182, %v2163
      %2240 = vst.msk [vmem:[%s265 + $0x1c8] sm:$0xff] %vm2182, %v2164
      %2241 = vst.msk [vmem:[%s265 + $0x1d0] sm:$0xff] %vm2182, %v2165
      %2242 = vst.msk [vmem:[%s265 + $0x1d8] sm:$0xff] %vm2182, %v2166
      %2243 = vst.msk [vmem:[%s265 + $0x1e0] sm:$0xff] %vm2182, %v2167
      %2244 = vst.msk [vmem:[%s265 + $0x1e8] sm:$0xff] %vm2182, %v2168
      %2245 = vst.msk [vmem:[%s265 + $0x1f0] sm:$0xff] %vm2182, %v2169
      %2246 = vst.msk [vmem:[%s265 + $0x1f8] sm:$0xff] %vm2182, %v2170
      %2247 = vst.msk [vmem:[%s265 + $0x200] sm:$0xff] %vm2182, %v2171
      %2248 = vst.msk [vmem:[%s265 + $0x208] sm:$0xff] %vm2182, %v2172
      %2249 = vst.msk [vmem:[%s265 + $0x210] sm:$0xff] %vm2182, %v2173
      %2250 = vst.msk [vmem:[%s265 + $0x218] sm:$0xff] %vm2182, %v2174
      %2251 = vst.msk [vmem:[%s265 + $0x220] sm:$0xff] %vm2182, %v2175
      %2252 = vst.msk [vmem:[%s265 + $0x228] sm:$0xff] %vm2182, %v2176
      %2253 = vst.msk [vmem:[%s265 + $0x230] sm:$0xff] %vm2182, %v2177
      %2254 = vst.msk [vmem:[%s265 + $0x238] sm:$0xff] %vm2182, %v2178
      %2255 = vst.msk [vmem:[%s265 + $0x240] sm:$0xff] %vm2182, %v2179
      %2256 = vst.msk [vmem:[%s265 + $0x248] sm:$0xff] %vm2182, %v2180
      %2257 = vst.msk [vmem:[%s265 + $0x250] sm:$0xff] %vm2182, %v2181
      %s2258 = smul.u32 75, %s19
      %p2259 = scmp.lt.s32.totalorder %s2258, 224
      %s2260 = scalar_select %p2259, %s2258, 224
      %p2261 = scmp.lt.s32.totalorder %s20, 0
      %s2262 = scalar_select %p2261, %s20, 0
      %s2263 = sadd.s32 %s2262, %s2260
      %s2264 = smul.addr %s2263, 8
      %s2265 = scalar_lea.vmem %s3, %s2264
      // Predicated region
      $region33: #{network_forward.7} parent=31 // pred_check
        %p2266 = pneg %p135
      $region34: #{network_forward.7} parent=31 // pred_check_branch
        %2268 = sbr.rel (%p2266) target = $region36
      $region35: #{network_forward.7} parent=31 // pred_region
        %s2269 = smul.u32 75, %s19
      $region36: #{network_forward.7} parent=31 // pred_fallthru
        _
    $region32: #{network_forward.7} parent=5 // pred_fallthru
      _
    %p2270 = scmp.le.s32.totalorder 2, %s9
    // Predicated region
    $region37: #{network_forward.7} parent=5 // pred_check
      %p2271 = pneg %p2270
    $region38: #{network_forward.7} parent=5 // pred_check_branch
      %2273 = sbr.rel (%p2271) target = $region40
    $region39: #{network_forward.7} parent=5 // pred_region
      %s2274 = ssub.s32 %s9, 2
      // Predicated region
      $region41: #{network_forward.7} parent=39 // pred_check
        %p2275 = pneg %p141
      $region42: #{network_forward.7} parent=39 // pred_check_branch
        %2277 = sbr.rel (%p2275) target = $region44
      $region43: #{network_forward.7} parent=39 // pred_region
        %s2278 = smul.u32 75, %s22
        %p2279 = scmp.lt.s32.totalorder %s2278, 224
        %s2280 = scalar_select %p2279, %s2278, 224
        %p2281 = scmp.lt.s32.totalorder %s23, 0
        %s2282 = scalar_select %p2281, %s23, 0
        %s2283 = sadd.s32 %s2282, %s2280
        %s2284 = smul.addr %s2283, 8
        %s2285 = scalar_lea.vmem %s3, %s2284
      $region44: #{network_forward.7} parent=39 // pred_fallthru
        _
    $region40: #{network_forward.7} parent=5 // pred_fallthru
      _
  $region6: #{network_forward.7} parent=0 // loop_footer
    %s13 = sadd.s32 1, %s9
  $region7: #{network_forward.7} parent=0 // loop_footer_branch
    %8 = sbr.rel target = $region3
  $region8: #{network_forward.7} parent=0 // loop_exit
    _

// kernel: network_forward.8
$region0: #{network_forward.8}
  #allocation0 [shape = 'u32[]', space=smem, size = 0x4, offset = 0x4, fixed_abs, tag = 'smem constant byte address 0x4 - core index']
  #allocation1 [shape = 'u32[144,128]{1,0:T(1,128)}', space=vmem, size = 0x12000, scoped, tag = 'internal scratch']
  %s0 = inlined_call_operand.vmem [shape: bf16[392,512], index: 0, kind: input, shape index: {}]
  %s1 = inlined_call_operand.vmem [shape: bf16[512,64], index: 1, kind: input, shape index: {}]
  %s2 = inlined_call_operand.vmem [shape: f32[1,64], index: 2, kind: input, shape index: {}]
  %s3 = inlined_call_operand.vmem [shape: f32[392,64], index: 3, kind: output, shape index: {}]
  %s4 = sld [smem:[#allocation0]]
  $region22: #{network_forward.8} parent=0
    _
  %s6 = ssub.s32 1, %s4
  %s7 = scalar_select 0, %s6, %s4
  // Predicated region
  $region2: #{network_forward.8} parent=0 // pred_check
    _
  $region3: #{network_forward.8} parent=0 // pred_check_branch
    %9 = sbr.rel (0) target = $region5
  $region4: #{network_forward.8} parent=0 // pred_region
    _
  $region5: #{network_forward.8} parent=0 // pred_fallthru
    _
  // Predicated region
  $region6: #{network_forward.8} parent=0 // pred_check
    _
  $region7: #{network_forward.8} parent=0 // pred_check_branch
    %11 = sbr.rel (0) target = $region9
  $region8: #{network_forward.8} parent=0 // pred_region
    _
  $region9: #{network_forward.8} parent=0 // pred_fallthru
    _
  // Predicated region
  $region10: #{network_forward.8} parent=0 // pred_check
    _
  $region11: #{network_forward.8} parent=0 // pred_check_branch
    %13 = sbr.rel (0) target = $region13
  $region12: #{network_forward.8} parent=0 // pred_region
    _
  $region13: #{network_forward.8} parent=0 // pred_fallthru
    _
  %v15 = vld [vmem:[%s0] sm:$0xff]
  %v16 = vld [vmem:[%s0 + $0x8] sm:$0xff]
  %v17 = vld [vmem:[%s0 + $0x10] sm:$0xff]
  %v18 = vld [vmem:[%s0 + $0x18] sm:$0xff]
  %v19 = vld [vmem:[%s0 + $0x20] sm:$0xff]
  %v20 = vld [vmem:[%s0 + $0x28] sm:$0xff]
  %v21 = vld [vmem:[%s0 + $0x30] sm:$0xff]
  %v22 = vld [vmem:[%s0 + $0x38] sm:$0xff]
  %v23 = vld [vmem:[%s0 + $0x40] sm:$0xff]
  %v24 = vld [vmem:[%s0 + $0x48] sm:$0xff]
  %v25 = vld [vmem:[%s0 + $0x50] sm:$0xff]
  %v26 = vld [vmem:[%s0 + $0x58] sm:$0xff]
  %v27 = vld [vmem:[%s0 + $0x60] sm:$0xff]
  %v28 = vld [vmem:[%s0 + $0x68] sm:$0xff]
  %v29 = vld [vmem:[%s0 + $0x70] sm:$0xff]
  %v30 = vld [vmem:[%s0 + $0x78] sm:$0xff]
  %v31 = vld [vmem:[%s0 + $0x80] sm:$0xff]
  %v32 = vld [vmem:[%s0 + $0x88] sm:$0xff]
  %v33 = vld [vmem:[%s0 + $0x90] sm:$0xff]
  %v34 = vld [vmem:[%s0 + $0x98] sm:$0xff]
  %v35 = vld [vmem:[%s0 + $0xa0] sm:$0xff]
  %v36 = vld [vmem:[%s0 + $0xa8] sm:$0xff]
  %v37 = vld [vmem:[%s0 + $0xb0] sm:$0xff]
  %v38 = vld [vmem:[%s0 + $0xb8] sm:$0xff]
  %v39 = vld [vmem:[%s0 + $0xc0] sm:$0xff]
  %v40 = vld [vmem:[%s0 + $0xc8] sm:$0xff]
  %v41 = vld [vmem:[%s0 + $0xd0] sm:$0xff]
  %v42 = vld [vmem:[%s0 + $0xd8] sm:$0xff]
  %v43 = vld [vmem:[%s0 + $0xe0] sm:$0xff]
  %v44 = vld [vmem:[%s0 + $0xe8] sm:$0xff]
  %v45 = vld [vmem:[%s0 + $0xf0] sm:$0xff]
  %v46 = vld [vmem:[%s0 + $0xf8] sm:$0xff]
  %v47 = vld [vmem:[%s0 + $0x100] sm:$0xff]
  %v48 = vld [vmem:[%s0 + $0x108] sm:$0xff]
  %v49 = vld [vmem:[%s0 + $0x110] sm:$0xff]
  %v50 = vld [vmem:[%s0 + $0x118] sm:$0xff]
  %v51 = vld [vmem:[%s0 + $0x120] sm:$0xff]
  %v52 = vld [vmem:[%s0 + $0x128] sm:$0xff]
  %v53 = vld [vmem:[%s0 + $0x130] sm:$0xff]
  %v54 = vld [vmem:[%s0 + $0x138] sm:$0xff]
  %v55 = vld [vmem:[%s0 + $0x140] sm:$0xff]
  %v56 = vld [vmem:[%s0 + $0x148] sm:$0xff]
  %v57 = vld [vmem:[%s0 + $0x150] sm:$0xff]
  %v58 = vld [vmem:[%s0 + $0x158] sm:$0xff]
  %v59 = vld [vmem:[%s0 + $0x160] sm:$0xff]
  %v60 = vld [vmem:[%s0 + $0x168] sm:$0xff]
  %v61 = vld [vmem:[%s0 + $0x170] sm:$0xff]
  %v62 = vld [vmem:[%s0 + $0x178] sm:$0xff]
  %v63 = vld [vmem:[%s0 + $0x180] sm:$0xff]
  %v64 = vld [vmem:[%s0 + $0x188] sm:$0xff]
  %v65 = vld [vmem:[%s0 + $0x190] sm:$0xff]
  %v66 = vld [vmem:[%s0 + $0x198] sm:$0xff]
  %v67 = vld [vmem:[%s0 + $0x1a0] sm:$0xff]
  %v68 = vld [vmem:[%s0 + $0x1a8] sm:$0xff]
  %v69 = vld [vmem:[%s0 + $0x1b0] sm:$0xff]
  %v70 = vld [vmem:[%s0 + $0x1b8] sm:$0xff]
  %v71 = vld [vmem:[%s0 + $0x1c0] sm:$0xff]
  %v72 = vld [vmem:[%s0 + $0x1c8] sm:$0xff]
  %v73 = vld [vmem:[%s0 + $0x1d0] sm:$0xff]
  %v74 = vld [vmem:[%s0 + $0x1d8] sm:$0xff]
  %v75 = vld [vmem:[%s0 + $0x1e0] sm:$0xff]
  %v76 = vld [vmem:[%s0 + $0x1e8] sm:$0xff]
  %v77 = vld [vmem:[%s0 + $0x1f0] sm:$0xff]
  %v78 = vld [vmem:[%s0 + $0x1f8] sm:$0xff]
  %v79 = vld [vmem:[%s0 + $0x200] sm:$0xff]
  %v80 = vld [vmem:[%s0 + $0x208] sm:$0xff]
  %v81 = vld [vmem:[%s0 + $0x210] sm:$0xff]
  %v82 = vld [vmem:[%s0 + $0x218] sm:$0xff]
  %v83 = vld [vmem:[%s0 + $0x220] sm:$0xff]
  %v84 = vld [vmem:[%s0 + $0x228] sm:$0xff]
  %v85 = vld [vmem:[%s0 + $0x230] sm:$0xff]
  %v86 = vld [vmem:[%s0 + $0x238] sm:$0xff]
  %v87 = vld [vmem:[%s0 + $0x240] sm:$0xff]
  %v88 = vld [vmem:[%s0 + $0x248] sm:$0xff]
  %v89 = vld [vmem:[%s0 + $0x250] sm:$0xff]
  %v90 = vld [vmem:[%s0 + $0x258] sm:$0xff]
  %v91 = vld [vmem:[%s0 + $0x260] sm:$0xff]
  %v92 = vld [vmem:[%s0 + $0x268] sm:$0xff]
  %v93 = vld [vmem:[%s0 + $0x270] sm:$0xff]
  %v94 = vld [vmem:[%s0 + $0x278] sm:$0xff]
  %v95 = vld [vmem:[%s0 + $0x280] sm:$0xff]
  %v96 = vld [vmem:[%s0 + $0x288] sm:$0xff]
  %v97 = vld [vmem:[%s0 + $0x290] sm:$0xff]
  %v98 = vld [vmem:[%s0 + $0x298] sm:$0xff]
  %v99 = vld [vmem:[%s0 + $0x2a0] sm:$0xff]
  %v100 = vld [vmem:[%s0 + $0x2a8] sm:$0xff]
  %v101 = vld [vmem:[%s0 + $0x2b0] sm:$0xff]
  %v102 = vld [vmem:[%s0 + $0x2b8] sm:$0xff]
  %v103 = vld [vmem:[%s0 + $0x2c0] sm:$0xff]
  %v104 = vld [vmem:[%s0 + $0x2c8] sm:$0xff]
  %v105 = vld [vmem:[%s0 + $0x2d0] sm:$0xff]
  %v106 = vld [vmem:[%s0 + $0x2d8] sm:$0xff]
  %v107 = vld [vmem:[%s0 + $0x2e0] sm:$0xff]
  %v108 = vld [vmem:[%s0 + $0x2e8] sm:$0xff]
  %v109 = vld [vmem:[%s0 + $0x2f0] sm:$0xff]
  %v110 = vld [vmem:[%s0 + $0x2f8] sm:$0xff]
  %v111 = vld [vmem:[%s0 + $0x300] sm:$0xff]
  %v112 = vld [vmem:[%s0 + $0x308] sm:$0xff]
  %v113 = vld [vmem:[%s1] sm:$0xf]
  %v114 = vld [vmem:[%s1 + $0x4] sm:$0xf]
  %v115 = vld [vmem:[%s1 + $0x8] sm:$0xf]
  %v116 = vld [vmem:[%s1 + $0xc] sm:$0xf]
  %v117 = vld [vmem:[%s1 + $0x10] sm:$0xf]
  %v118 = vld [vmem:[%s1 + $0x14] sm:$0xf]
  %v119 = vld [vmem:[%s1 + $0x18] sm:$0xf]
  %v120 = vld [vmem:[%s1 + $0x1c] sm:$0xf]
  %v121 = vld [vmem:[%s1 + $0x20] sm:$0xf]
  %v122 = vld [vmem:[%s1 + $0x24] sm:$0xf]
  %v123 = vld [vmem:[%s1 + $0x28] sm:$0xf]
  %v124 = vld [vmem:[%s1 + $0x2c] sm:$0xf]
  %v125 = vld [vmem:[%s1 + $0x30] sm:$0xf]
  %v126 = vld [vmem:[%s1 + $0x34] sm:$0xf]
  %v127 = vld [vmem:[%s1 + $0x38] sm:$0xf]
  %v128 = vld [vmem:[%s1 + $0x3c] sm:$0xf]
  %v129 = vld [vmem:[%s1 + $0x40] sm:$0xf]
  %v130 = vld [vmem:[%s1 + $0x44] sm:$0xf]
  %v131 = vld [vmem:[%s1 + $0x48] sm:$0xf]
  %v132 = vld [vmem:[%s1 + $0x4c] sm:$0xf]
  %v133 = vld [vmem:[%s1 + $0x50] sm:$0xf]
  %v134 = vld [vmem:[%s1 + $0x54] sm:$0xf]
  %v135 = vld [vmem:[%s1 + $0x58] sm:$0xf]
  %v136 = vld [vmem:[%s1 + $0x5c] sm:$0xf]
  %v137 = vld [vmem:[%s1 + $0x60] sm:$0xf]
  %v138 = vld [vmem:[%s1 + $0x64] sm:$0xf]
  %v139 = vld [vmem:[%s1 + $0x68] sm:$0xf]
  %v140 = vld [vmem:[%s1 + $0x6c] sm:$0xf]
  %v141 = vld [vmem:[%s1 + $0x70] sm:$0xf]
  %v142 = vld [vmem:[%s1 + $0x74] sm:$0xf]
  %v143 = vld [vmem:[%s1 + $0x78] sm:$0xf]
  %v144 = vld [vmem:[%s1 + $0x7c] sm:$0xf]
  %v145 = vld [vmem:[%s1 + $0x80] sm:$0xf]
  %v146 = vld [vmem:[%s1 + $0x84] sm:$0xf]
  %v147 = vld [vmem:[%s1 + $0x88] sm:$0xf]
  %v148 = vld [vmem:[%s1 + $0x8c] sm:$0xf]
  %v149 = vld [vmem:[%s1 + $0x90] sm:$0xf]
  %v150 = vld [vmem:[%s1 + $0x94] sm:$0xf]
  %v151 = vld [vmem:[%s1 + $0x98] sm:$0xf]
  %v152 = vld [vmem:[%s1 + $0x9c] sm:$0xf]
  %v153 = vld [vmem:[%s1 + $0xa0] sm:$0xf]
  %v154 = vld [vmem:[%s1 + $0xa4] sm:$0xf]
  %v155 = vld [vmem:[%s1 + $0xa8] sm:$0xf]
  %v156 = vld [vmem:[%s1 + $0xac] sm:$0xf]
  %v157 = vld [vmem:[%s1 + $0xb0] sm:$0xf]
  %v158 = vld [vmem:[%s1 + $0xb4] sm:$0xf]
  %v159 = vld [vmem:[%s1 + $0xb8] sm:$0xf]
  %v160 = vld [vmem:[%s1 + $0xbc] sm:$0xf]
  %v161 = vld [vmem:[%s1 + $0xc0] sm:$0xf]
  %v162 = vld [vmem:[%s1 + $0xc4] sm:$0xf]
  %v163 = vld [vmem:[%s1 + $0xc8] sm:$0xf]
  %v164 = vld [vmem:[%s1 + $0xcc] sm:$0xf]
  %v165 = vld [vmem:[%s1 + $0xd0] sm:$0xf]
  %v166 = vld [vmem:[%s1 + $0xd4] sm:$0xf]
  %v167 = vld [vmem:[%s1 + $0xd8] sm:$0xf]
  %v168 = vld [vmem:[%s1 + $0xdc] sm:$0xf]
  %v169 = vld [vmem:[%s1 + $0xe0] sm:$0xf]
  %v170 = vld [vmem:[%s1 + $0xe4] sm:$0xf]
  %v171 = vld [vmem:[%s1 + $0xe8] sm:$0xf]
  %v172 = vld [vmem:[%s1 + $0xec] sm:$0xf]
  %v173 = vld [vmem:[%s1 + $0xf0] sm:$0xf]
  %v174 = vld [vmem:[%s1 + $0xf4] sm:$0xf]
  %v175 = vld [vmem:[%s1 + $0xf8] sm:$0xf]
  %v176 = vld [vmem:[%s1 + $0xfc] sm:$0xf]
  %v177 = vld [vmem:[%s2] sm:$0x1]
  %v179 = vlaneseq
  %v180 = vshrl.u32 %v179, 7
  %v181 = vsub.s32 0, %v180
  %v182 = vrot.slane %v177, %v181
  %v282 = vunpack.c.l.b16 %v15
  %v283 = vunpack.c.h.b16 %v15
  %v284 = vunpack.c.l.b16 %v16
  %v285 = vunpack.c.h.b16 %v16
  %v286 = vunpack.c.l.b16 %v17
  %v287 = vunpack.c.h.b16 %v17
  %v288 = vunpack.c.l.b16 %v18
  %v289 = vunpack.c.h.b16 %v18
  %v290 = vunpack.c.l.b16 %v19
  %v291 = vunpack.c.h.b16 %v19
  %v292 = vunpack.c.l.b16 %v20
  %v293 = vunpack.c.h.b16 %v20
  %v294 = vunpack.c.l.b16 %v21
  %v295 = vunpack.c.h.b16 %v21
  %v296 = vunpack.c.l.b16 %v22
  %v297 = vunpack.c.h.b16 %v22
  %v298 = vunpack.c.l.b16 %v23
  %v299 = vunpack.c.h.b16 %v23
  %v300 = vunpack.c.l.b16 %v24
  %v301 = vunpack.c.h.b16 %v24
  %v302 = vunpack.c.l.b16 %v25
  %v303 = vunpack.c.h.b16 %v25
  %v304 = vunpack.c.l.b16 %v26
  %v305 = vunpack.c.h.b16 %v26
  %v306 = vunpack.c.l.b16 %v27
  %v307 = vunpack.c.h.b16 %v27
  %v308 = vunpack.c.l.b16 %v28
  %v309 = vunpack.c.h.b16 %v28
  %v310 = vunpack.c.l.b16 %v29
  %v311 = vunpack.c.h.b16 %v29
  %v312 = vunpack.c.l.b16 %v30
  %v313 = vunpack.c.h.b16 %v30
  %v314 = vunpack.c.l.b16 %v31
  %v315 = vunpack.c.h.b16 %v31
  %v316 = vunpack.c.l.b16 %v32
  %v317 = vunpack.c.h.b16 %v32
  %v318 = vunpack.c.l.b16 %v33
  %v319 = vunpack.c.h.b16 %v33
  %v320 = vunpack.c.l.b16 %v34
  %v321 = vunpack.c.h.b16 %v34
  %v322 = vunpack.c.l.b16 %v35
  %v323 = vunpack.c.h.b16 %v35
  %v324 = vunpack.c.l.b16 %v36
  %v325 = vunpack.c.h.b16 %v36
  %v326 = vunpack.c.l.b16 %v37
  %v327 = vunpack.c.h.b16 %v37
  %v328 = vunpack.c.l.b16 %v38
  %v329 = vunpack.c.h.b16 %v38
  %v330 = vunpack.c.l.b16 %v39
  %v331 = vunpack.c.h.b16 %v39
  %v332 = vunpack.c.l.b16 %v40
  %v333 = vunpack.c.h.b16 %v40
  %v334 = vunpack.c.l.b16 %v41
  %v335 = vunpack.c.h.b16 %v41
  %v336 = vunpack.c.l.b16 %v42
  %v337 = vunpack.c.h.b16 %v42
  %v338 = vunpack.c.l.b16 %v43
  %v339 = vunpack.c.h.b16 %v43
  %v340 = vunpack.c.l.b16 %v44
  %v341 = vunpack.c.h.b16 %v44
  %v342 = vunpack.c.l.b16 %v45
  %v343 = vunpack.c.h.b16 %v45
  %v344 = vunpack.c.l.b16 %v46
  %v345 = vunpack.c.h.b16 %v46
  %v346 = vunpack.c.l.b16 %v47
  %v347 = vunpack.c.h.b16 %v47
  %v348 = vunpack.c.l.b16 %v48
  %v349 = vunpack.c.h.b16 %v48
  %v350 = vunpack.c.l.b16 %v49
  %v351 = vunpack.c.h.b16 %v49
  %v352 = vunpack.c.l.b16 %v50
  %v353 = vunpack.c.h.b16 %v50
  %v354 = vunpack.c.l.b16 %v51
  %v355 = vunpack.c.h.b16 %v51
  %v356 = vunpack.c.l.b16 %v52
  %v357 = vunpack.c.h.b16 %v52
  %v358 = vunpack.c.l.b16 %v53
  %v359 = vunpack.c.h.b16 %v53
  %v360 = vunpack.c.l.b16 %v54
  %v361 = vunpack.c.h.b16 %v54
  %v362 = vunpack.c.l.b16 %v55
  %v363 = vunpack.c.h.b16 %v55
  %v364 = vunpack.c.l.b16 %v56
  %v365 = vunpack.c.h.b16 %v56
  %v366 = vunpack.c.l.b16 %v57
  %v367 = vunpack.c.h.b16 %v57
  %v368 = vunpack.c.l.b16 %v58
  %v369 = vunpack.c.h.b16 %v58
  %v370 = vunpack.c.l.b16 %v59
  %v371 = vunpack.c.h.b16 %v59
  %v372 = vunpack.c.l.b16 %v60
  %v373 = vunpack.c.h.b16 %v60
  %v374 = vunpack.c.l.b16 %v61
  %v375 = vunpack.c.h.b16 %v61
  %v376 = vunpack.c.l.b16 %v62
  %v377 = vunpack.c.h.b16 %v62
  %v378 = vunpack.c.l.b16 %v63
  %v379 = vunpack.c.h.b16 %v63
  %v380 = vunpack.c.l.b16 %v64
  %v381 = vunpack.c.h.b16 %v64
  %v382 = vunpack.c.l.b16 %v65
  %v383 = vunpack.c.h.b16 %v65
  %v384 = vunpack.c.l.b16 %v66
  %v385 = vunpack.c.h.b16 %v66
  %v386 = vunpack.c.l.b16 %v67
  %v387 = vunpack.c.h.b16 %v67
  %v388 = vunpack.c.l.b16 %v68
  %v389 = vunpack.c.h.b16 %v68
  %v390 = vunpack.c.l.b16 %v69
  %v391 = vunpack.c.h.b16 %v69
  %v392 = vunpack.c.l.b16 %v70
  %v393 = vunpack.c.h.b16 %v70
  %v394 = vunpack.c.l.b16 %v71
  %v395 = vunpack.c.h.b16 %v71
  %v396 = vunpack.c.l.b16 %v72
  %v397 = vunpack.c.h.b16 %v72
  %v398 = vunpack.c.l.b16 %v73
  %v399 = vunpack.c.h.b16 %v73
  %v400 = vunpack.c.l.b16 %v74
  %v401 = vunpack.c.h.b16 %v74
  %v402 = vunpack.c.l.b16 %v75
  %v403 = vunpack.c.h.b16 %v75
  %v404 = vunpack.c.l.b16 %v76
  %v405 = vunpack.c.h.b16 %v76
  %v406 = vunpack.c.l.b16 %v77
  %v407 = vunpack.c.h.b16 %v77
  %v408 = vunpack.c.l.b16 %v78
  %v409 = vunpack.c.h.b16 %v78
  %v410 = vunpack.c.l.b16 %v79
  %v411 = vunpack.c.h.b16 %v79
  %v412 = vunpack.c.l.b16 %v80
  %v413 = vunpack.c.h.b16 %v80
  %v414 = vunpack.c.l.b16 %v81
  %v415 = vunpack.c.h.b16 %v81
  %v416 = vunpack.c.l.b16 %v82
  %v417 = vunpack.c.h.b16 %v82
  %v418 = vunpack.c.l.b16 %v83
  %v419 = vunpack.c.h.b16 %v83
  %v420 = vunpack.c.l.b16 %v84
  %v421 = vunpack.c.h.b16 %v84
  %v422 = vunpack.c.l.b16 %v85
  %v423 = vunpack.c.h.b16 %v85
  %v424 = vunpack.c.l.b16 %v86
  %v425 = vunpack.c.h.b16 %v86
  %v426 = vunpack.c.l.b16 %v87
  %v427 = vunpack.c.h.b16 %v87
  %v428 = vunpack.c.l.b16 %v88
  %v429 = vunpack.c.h.b16 %v88
  %v430 = vunpack.c.l.b16 %v89
  %v431 = vunpack.c.h.b16 %v89
  %v432 = vunpack.c.l.b16 %v90
  %v433 = vunpack.c.h.b16 %v90
  %v434 = vunpack.c.l.b16 %v91
  %v435 = vunpack.c.h.b16 %v91
  %v436 = vunpack.c.l.b16 %v92
  %v437 = vunpack.c.h.b16 %v92
  %v438 = vunpack.c.l.b16 %v93
  %v439 = vunpack.c.h.b16 %v93
  %v440 = vunpack.c.l.b16 %v94
  %v441 = vunpack.c.h.b16 %v94
  %v442 = vunpack.c.l.b16 %v95
  %v443 = vunpack.c.h.b16 %v95
  %v444 = vunpack.c.l.b16 %v96
  %v445 = vunpack.c.h.b16 %v96
  %v446 = vunpack.c.l.b16 %v97
  %v447 = vunpack.c.h.b16 %v97
  %v448 = vunpack.c.l.b16 %v98
  %v449 = vunpack.c.h.b16 %v98
  %v450 = vunpack.c.l.b16 %v99
  %v451 = vunpack.c.h.b16 %v99
  %v452 = vunpack.c.l.b16 %v100
  %v453 = vunpack.c.h.b16 %v100
  %v454 = vunpack.c.l.b16 %v101
  %v455 = vunpack.c.h.b16 %v101
  %v456 = vunpack.c.l.b16 %v102
  %v457 = vunpack.c.h.b16 %v102
  %v458 = vunpack.c.l.b16 %v103
  %v459 = vunpack.c.h.b16 %v103
  %v460 = vunpack.c.l.b16 %v104
  %v461 = vunpack.c.h.b16 %v104
  %v462 = vunpack.c.l.b16 %v105
  %v463 = vunpack.c.h.b16 %v105
  %v464 = vunpack.c.l.b16 %v106
  %v465 = vunpack.c.h.b16 %v106
  %v466 = vunpack.c.l.b16 %v107
  %v467 = vunpack.c.h.b16 %v107
  %v468 = vunpack.c.l.b16 %v108
  %v469 = vunpack.c.h.b16 %v108
  %v470 = vunpack.c.l.b16 %v109
  %v471 = vunpack.c.h.b16 %v109
  %v472 = vunpack.c.l.b16 %v110
  %v473 = vunpack.c.h.b16 %v110
  %v474 = vunpack.c.l.b16 %v111
  %v475 = vunpack.c.h.b16 %v111
  %v476 = vunpack.c.l.b16 %v112
  %v477 = vunpack.c.h.b16 %v112
  %v478 = vpack.c.b16 %v286, %v282
  %v479 = vpack.c.b16 %v287, %v283
  %v480 = vpack.c.b16 %v288, %v284
  %v481 = vpack.c.b16 %v289, %v285
  %v482 = vpack.c.b16 %v294, %v290
  %v483 = vpack.c.b16 %v295, %v291
  %v484 = vpack.c.b16 %v296, %v292
  %v485 = vpack.c.b16 %v297, %v293
  %v486 = vpack.c.b16 %v302, %v298
  %v487 = vpack.c.b16 %v303, %v299
  %v488 = vpack.c.b16 %v304, %v300
  %v489 = vpack.c.b16 %v305, %v301
  %v490 = vpack.c.b16 %v310, %v306
  %v491 = vpack.c.b16 %v311, %v307
  %v492 = vpack.c.b16 %v312, %v308
  %v493 = vpack.c.b16 %v313, %v309
  %v494 = vpack.c.b16 %v318, %v314
  %v495 = vpack.c.b16 %v319, %v315
  %v496 = vpack.c.b16 %v320, %v316
  %v497 = vpack.c.b16 %v321, %v317
  %v498 = vpack.c.b16 %v326, %v322
  %v499 = vpack.c.b16 %v327, %v323
  %v500 = vpack.c.b16 %v328, %v324
  %v501 = vpack.c.b16 %v329, %v325
  %v502 = vpack.c.b16 %v334, %v330
  %v503 = vpack.c.b16 %v335, %v331
  %v504 = vpack.c.b16 %v336, %v332
  %v505 = vpack.c.b16 %v337, %v333
  %v506 = vpack.c.b16 %v342, %v338
  %v507 = vpack.c.b16 %v343, %v339
  %v508 = vpack.c.b16 %v344, %v340
  %v509 = vpack.c.b16 %v345, %v341
  %v510 = vpack.c.b16 %v350, %v346
  %v511 = vpack.c.b16 %v351, %v347
  %v512 = vpack.c.b16 %v352, %v348
  %v513 = vpack.c.b16 %v353, %v349
  %v514 = vpack.c.b16 %v358, %v354
  %v515 = vpack.c.b16 %v359, %v355
  %v516 = vpack.c.b16 %v360, %v356
  %v517 = vpack.c.b16 %v361, %v357
  %v518 = vpack.c.b16 %v366, %v362
  %v519 = vpack.c.b16 %v367, %v363
  %v520 = vpack.c.b16 %v368, %v364
  %v521 = vpack.c.b16 %v369, %v365
  %v522 = vpack.c.b16 %v374, %v370
  %v523 = vpack.c.b16 %v375, %v371
  %v524 = vpack.c.b16 %v376, %v372
  %v525 = vpack.c.b16 %v377, %v373
  %v526 = vpack.c.b16 %v382, %v378
  %v527 = vpack.c.b16 %v383, %v379
  %v528 = vpack.c.b16 %v384, %v380
  %v529 = vpack.c.b16 %v385, %v381
  %v530 = vpack.c.b16 %v390, %v386
  %v531 = vpack.c.b16 %v391, %v387
  %v532 = vpack.c.b16 %v392, %v388
  %v533 = vpack.c.b16 %v393, %v389
  %v534 = vpack.c.b16 %v398, %v394
  %v535 = vpack.c.b16 %v399, %v395
  %v536 = vpack.c.b16 %v400, %v396
  %v537 = vpack.c.b16 %v401, %v397
  %v538 = vpack.c.b16 %v406, %v402
  %v539 = vpack.c.b16 %v407, %v403
  %v540 = vpack.c.b16 %v408, %v404
  %v541 = vpack.c.b16 %v409, %v405
  %v542 = vpack.c.b16 %v414, %v410
  %v543 = vpack.c.b16 %v415, %v411
  %v544 = vpack.c.b16 %v416, %v412
  %v545 = vpack.c.b16 %v417, %v413
  %v546 = vpack.c.b16 %v422, %v418
  %v547 = vpack.c.b16 %v423, %v419
  %v548 = vpack.c.b16 %v424, %v420
  %v549 = vpack.c.b16 %v425, %v421
  %v550 = vpack.c.b16 %v430, %v426
  %v551 = vpack.c.b16 %v431, %v427
  %v552 = vpack.c.b16 %v432, %v428
  %v553 = vpack.c.b16 %v433, %v429
  %v554 = vpack.c.b16 %v438, %v434
  %v555 = vpack.c.b16 %v439, %v435
  %v556 = vpack.c.b16 %v440, %v436
  %v557 = vpack.c.b16 %v441, %v437
  %v558 = vpack.c.b16 %v446, %v442
  %v559 = vpack.c.b16 %v447, %v443
  %v560 = vpack.c.b16 %v448, %v444
  %v561 = vpack.c.b16 %v449, %v445
  %v562 = vpack.c.b16 %v454, %v450
  %v563 = vpack.c.b16 %v455, %v451
  %v564 = vpack.c.b16 %v456, %v452
  %v565 = vpack.c.b16 %v457, %v453
  %v566 = vpack.c.b16 %v462, %v458
  %v567 = vpack.c.b16 %v463, %v459
  %v568 = vpack.c.b16 %v464, %v460
  %v569 = vpack.c.b16 %v465, %v461
  %v570 = vpack.c.b16 %v470, %v466
  %v571 = vpack.c.b16 %v471, %v467
  %v572 = vpack.c.b16 %v472, %v468
  %v573 = vpack.c.b16 %v473, %v469
  %v574 = vpack.c.b16 %v474, %v474
  %v575 = vpack.c.b16 %v475, %v475
  %v576 = vpack.c.b16 %v476, %v476
  %v577 = vpack.c.b16 %v477, %v477
  %v742 = vunpack.c.l.b16 %v113
  %v743 = vunpack.c.l.b16 %v114
  %v744 = vunpack.c.l.b16 %v115
  %v745 = vunpack.c.l.b16 %v116
  %v746 = vunpack.c.l.b16 %v117
  %v747 = vunpack.c.l.b16 %v118
  %v748 = vunpack.c.l.b16 %v119
  %v749 = vunpack.c.l.b16 %v120
  %v750 = vunpack.c.l.b16 %v121
  %v751 = vunpack.c.l.b16 %v122
  %v752 = vunpack.c.l.b16 %v123
  %v753 = vunpack.c.l.b16 %v124
  %v754 = vunpack.c.l.b16 %v125
  %v755 = vunpack.c.l.b16 %v126
  %v756 = vunpack.c.l.b16 %v127
  %v757 = vunpack.c.l.b16 %v128
  %v758 = vunpack.c.l.b16 %v129
  %v759 = vunpack.c.l.b16 %v130
  %v760 = vunpack.c.l.b16 %v131
  %v761 = vunpack.c.l.b16 %v132
  %v762 = vunpack.c.l.b16 %v133
  %v763 = vunpack.c.l.b16 %v134
  %v764 = vunpack.c.l.b16 %v135
  %v765 = vunpack.c.l.b16 %v136
  %v766 = vunpack.c.l.b16 %v137
  %v767 = vunpack.c.l.b16 %v138
  %v768 = vunpack.c.l.b16 %v139
  %v769 = vunpack.c.l.b16 %v140
  %v770 = vunpack.c.l.b16 %v141
  %v771 = vunpack.c.l.b16 %v142
  %v772 = vunpack.c.l.b16 %v143
  %v773 = vunpack.c.l.b16 %v144
  %v774 = vunpack.c.l.b16 %v145
  %v775 = vunpack.c.l.b16 %v146
  %v776 = vunpack.c.l.b16 %v147
  %v777 = vunpack.c.l.b16 %v148
  %v778 = vunpack.c.l.b16 %v149
  %v779 = vunpack.c.l.b16 %v150
  %v780 = vunpack.c.l.b16 %v151
  %v781 = vunpack.c.l.b16 %v152
  %v782 = vunpack.c.l.b16 %v153
  %v783 = vunpack.c.l.b16 %v154
  %v784 = vunpack.c.l.b16 %v155
  %v785 = vunpack.c.l.b16 %v156
  %v786 = vunpack.c.l.b16 %v157
  %v787 = vunpack.c.l.b16 %v158
  %v788 = vunpack.c.l.b16 %v159
  %v789 = vunpack.c.l.b16 %v160
  %v790 = vunpack.c.l.b16 %v161
  %v791 = vunpack.c.l.b16 %v162
  %v792 = vunpack.c.l.b16 %v163
  %v793 = vunpack.c.l.b16 %v164
  %v794 = vunpack.c.l.b16 %v165
  %v795 = vunpack.c.l.b16 %v166
  %v796 = vunpack.c.l.b16 %v167
  %v797 = vunpack.c.l.b16 %v168
  %v798 = vunpack.c.l.b16 %v169
  %v799 = vunpack.c.l.b16 %v170
  %v800 = vunpack.c.l.b16 %v171
  %v801 = vunpack.c.l.b16 %v172
  %v802 = vunpack.c.l.b16 %v173
  %v803 = vunpack.c.l.b16 %v174
  %v804 = vunpack.c.l.b16 %v175
  %v805 = vunpack.c.l.b16 %v176
  %v806 = vpack.c.b16 %v743, %v742
  %v807 = vpack.c.b16 %v745, %v744
  %v808 = vpack.c.b16 %v747, %v746
  %v809 = vpack.c.b16 %v749, %v748
  %v810 = vpack.c.b16 %v751, %v750
  %v811 = vpack.c.b16 %v753, %v752
  %v812 = vpack.c.b16 %v755, %v754
  %v813 = vpack.c.b16 %v757, %v756
  %v814 = vpack.c.b16 %v759, %v758
  %v815 = vpack.c.b16 %v761, %v760
  %v816 = vpack.c.b16 %v763, %v762
  %v817 = vpack.c.b16 %v765, %v764
  %v818 = vpack.c.b16 %v767, %v766
  %v819 = vpack.c.b16 %v769, %v768
  %v820 = vpack.c.b16 %v771, %v770
  %v821 = vpack.c.b16 %v773, %v772
  %v822 = vpack.c.b16 %v775, %v774
  %v823 = vpack.c.b16 %v777, %v776
  %v824 = vpack.c.b16 %v779, %v778
  %v825 = vpack.c.b16 %v781, %v780
  %v826 = vpack.c.b16 %v783, %v782
  %v827 = vpack.c.b16 %v785, %v784
  %v828 = vpack.c.b16 %v787, %v786
  %v829 = vpack.c.b16 %v789, %v788
  %v830 = vpack.c.b16 %v791, %v790
  %v831 = vpack.c.b16 %v793, %v792
  %v832 = vpack.c.b16 %v795, %v794
  %v833 = vpack.c.b16 %v797, %v796
  %v834 = vpack.c.b16 %v799, %v798
  %v835 = vpack.c.b16 %v801, %v800
  %v836 = vpack.c.b16 %v803, %v802
  %v837 = vpack.c.b16 %v805, %v804
  %870 = vmatprep.subr.bf16.mxu0 0
  %871 = vmatpush1.bf16.msra.mxu0 %v806
  %872 = vmatprep.subr.bf16.mxu0 0
  %873 = vmatpush1.bf16.msra.mxu0 %v807
  %874 = vmatprep.subr.bf16.mxu0 0
  %875 = vmatpush1.bf16.msra.mxu0 %v808
  %876 = vmatprep.subr.bf16.mxu0 0
  %877 = vmatpush1.bf16.msra.mxu0 %v809
  %878 = vmatprep.subr.bf16.mxu0 0
  %879 = vmatpush1.bf16.msra.mxu0 %v810
  %880 = vmatprep.subr.bf16.mxu0 0
  %881 = vmatpush1.bf16.msra.mxu0 %v811
  %882 = vmatprep.subr.bf16.mxu0 0
  %883 = vmatpush1.bf16.msra.mxu0 %v812
  %884 = vmatprep.subr.bf16.mxu0 0
  %885 = vmatpush1.bf16.msra.mxu0 %v813
  %886 = vmatprep.subr.bf16.mxu0 0
  %887 = vmatpush1.bf16.msra.mxu0 %v814
  %888 = vmatprep.subr.bf16.mxu0 0
  %889 = vmatpush1.bf16.msra.mxu0 %v815
  %890 = vmatprep.subr.bf16.mxu0 0
  %891 = vmatpush1.bf16.msra.mxu0 %v816
  %892 = vmatprep.subr.bf16.mxu0 0
  %893 = vmatpush1.bf16.msra.mxu0 %v817
  %894 = vmatprep.subr.bf16.mxu0 0
  %895 = vmatpush1.bf16.msra.mxu0 %v818
  %896 = vmatprep.subr.bf16.mxu0 0
  %897 = vmatpush1.bf16.msra.mxu0 %v819
  %898 = vmatprep.subr.bf16.mxu0 0
  %899 = vmatpush1.bf16.msra.mxu0 %v820
  %900 = vmatprep.subr.bf16.mxu0 0
  %901 = vmatpush1.bf16.msra.mxu0 %v821
  %902 = vmatprep.mubr.bf16.mxu0 %v479
  %903 = vmatmul.mubr.bf16.gmra.mrb[0].mxu0 %v478
  %v904 = vpop.f32.mrb[0].mxu0
  %v905 = vadd.f32 %v182, %v904
  %v906 = vpop.f32.mrb[0].mxu0
  %v907 = vpop.f32.mrb[0].mxu0
  %v908 = vadd.f32 %v182, %v907
  %v909 = vpop.f32.mrb[0].mxu0
  %910 = vmatprep.mubr.bf16.mxu0 %v483
  %911 = vmatmul.mubr.bf16.gmra.mrb[0].mxu0 %v482
  %v912 = vpop.f32.mrb[0].mxu0
  %v913 = vadd.f32 %v182, %v912
  %v914 = vpop.f32.mrb[0].mxu0
  %v915 = vpop.f32.mrb[0].mxu0
  %v916 = vadd.f32 %v182, %v915
  %v917 = vpop.f32.mrb[0].mxu0
  %918 = vmatprep.mubr.bf16.mxu0 %v487
  %919 = vmatmul.mubr.bf16.gmra.mrb[0].mxu0 %v486
  %v920 = vpop.f32.mrb[0].mxu0
  %v921 = vadd.f32 %v182, %v920
  %v922 = vpop.f32.mrb[0].mxu0
  %v923 = vpop.f32.mrb[0].mxu0
  %v924 = vadd.f32 %v182, %v923
  %v925 = vpop.f32.mrb[0].mxu0
  %926 = vmatprep.mubr.bf16.mxu0 %v491
  %927 = vmatmul.mubr.bf16.gmra.mrb[0].mxu0 %v490
  %v928 = vpop.f32.mrb[0].mxu0
  %v929 = vadd.f32 %v182, %v928
  %v930 = vpop.f32.mrb[0].mxu0
  %v931 = vpop.f32.mrb[0].mxu0
  %v932 = vadd.f32 %v182, %v931
  %v933 = vpop.f32.mrb[0].mxu0
  %934 = vmatprep.mubr.bf16.mxu0 %v495
  %935 = vmatmul.mubr.bf16.gmra.mrb[0].mxu0 %v494
  %v936 = vpop.f32.mrb[0].mxu0
  %v937 = vadd.f32 %v182, %v936
  %v938 = vpop.f32.mrb[0].mxu0
  %v939 = vpop.f32.mrb[0].mxu0
  %v940 = vadd.f32 %v182, %v939
  %v941 = vpop.f32.mrb[0].mxu0
  %942 = vmatprep.mubr.bf16.mxu0 %v499
  %943 = vmatmul.mubr.bf16.gmra.mrb[0].mxu0 %v498
  %v944 = vpop.f32.mrb[0].mxu0
  %v945 = vadd.f32 %v182, %v944
  %v946 = vpop.f32.mrb[0].mxu0
  %v947 = vpop.f32.mrb[0].mxu0
  %v948 = vadd.f32 %v182, %v947
  %v949 = vpop.f32.mrb[0].mxu0
  %950 = vmatprep.mubr.bf16.mxu0 %v503
  %951 = vmatmul.mubr.bf16.gmra.mrb[0].mxu0 %v502
  %v952 = vpop.f32.mrb[0].mxu0
  %v953 = vadd.f32 %v182, %v952
  %v954 = vpop.f32.mrb[0].mxu0
  %v955 = vpop.f32.mrb[0].mxu0
  %v956 = vadd.f32 %v182, %v955
  %v957 = vpop.f32.mrb[0].mxu0
  %958 = vmatprep.mubr.bf16.mxu0 %v507
  %959 = vmatmul.mubr.bf16.gmra.mrb[0].mxu0 %v506
  %v960 = vpop.f32.mrb[0].mxu0
  %v961 = vadd.f32 %v182, %v960
  %v962 = vpop.f32.mrb[0].mxu0
  %v963 = vpop.f32.mrb[0].mxu0
  %v964 = vadd.f32 %v182, %v963
  %v965 = vpop.f32.mrb[0].mxu0
  %966 = vmatprep.mubr.bf16.mxu0 %v511
  %967 = vmatmul.mubr.bf16.gmra.mrb[0].mxu0 %v510
  %v968 = vpop.f32.mrb[0].mxu0
  %v969 = vadd.f32 %v182, %v968
  %v970 = vpop.f32.mrb[0].mxu0
  %v971 = vpop.f32.mrb[0].mxu0
  %v972 = vadd.f32 %v182, %v971
  %v973 = vpop.f32.mrb[0].mxu0
  %974 = vmatprep.mubr.bf16.mxu0 %v515
  %975 = vmatmul.mubr.bf16.gmra.mrb[0].mxu0 %v514
  %v976 = vpop.f32.mrb[0].mxu0
  %v977 = vadd.f32 %v182, %v976
  %v978 = vpop.f32.mrb[0].mxu0
  %v979 = vpop.f32.mrb[0].mxu0
  %v980 = vadd.f32 %v182, %v979
  %v981 = vpop.f32.mrb[0].mxu0
  %982 = vmatprep.mubr.bf16.mxu0 %v519
  %983 = vmatmul.mubr.bf16.gmra.mrb[0].mxu0 %v518
  %v984 = vpop.f32.mrb[0].mxu0
  %v985 = vadd.f32 %v182, %v984
  %v986 = vpop.f32.mrb[0].mxu0
  %v987 = vpop.f32.mrb[0].mxu0
  %v988 = vadd.f32 %v182, %v987
  %v989 = vpop.f32.mrb[0].mxu0
  %990 = vmatprep.mubr.bf16.mxu0 %v523
  %991 = vmatmul.mubr.bf16.gmra.mrb[0].mxu0 %v522
  %v992 = vpop.f32.mrb[0].mxu0
  %v993 = vadd.f32 %v182, %v992
  %v994 = vpop.f32.mrb[0].mxu0
  %v995 = vpop.f32.mrb[0].mxu0
  %v996 = vadd.f32 %v182, %v995
  %v997 = vpop.f32.mrb[0].mxu0
  %998 = vmatprep.mubr.bf16.mxu0 %v527
  %999 = vmatmul.mubr.bf16.gmra.mrb[0].mxu0 %v526
  %v1000 = vpop.f32.mrb[0].mxu0
  %v1001 = vadd.f32 %v182, %v1000
  %v1002 = vpop.f32.mrb[0].mxu0
  %v1003 = vpop.f32.mrb[0].mxu0
  %v1004 = vadd.f32 %v182, %v1003
  %v1005 = vpop.f32.mrb[0].mxu0
  %1006 = vmatprep.mubr.bf16.mxu0 %v531
  %1007 = vmatmul.mubr.bf16.gmra.mrb[0].mxu0 %v530
  %v1008 = vpop.f32.mrb[0].mxu0
  %v1009 = vadd.f32 %v182, %v1008
  %v1010 = vpop.f32.mrb[0].mxu0
  %v1011 = vpop.f32.mrb[0].mxu0
  %v1012 = vadd.f32 %v182, %v1011
  %v1013 = vpop.f32.mrb[0].mxu0
  %1014 = vmatprep.mubr.bf16.mxu0 %v535
  %1015 = vmatmul.mubr.bf16.gmra.mrb[0].mxu0 %v534
  %v1016 = vpop.f32.mrb[0].mxu0
  %v1017 = vadd.f32 %v182, %v1016
  %v1018 = vpop.f32.mrb[0].mxu0
  %v1019 = vpop.f32.mrb[0].mxu0
  %v1020 = vadd.f32 %v182, %v1019
  %v1021 = vpop.f32.mrb[0].mxu0
  %1022 = vmatprep.mubr.bf16.mxu0 %v539
  %1023 = vmatmul.mubr.bf16.gmra.mrb[0].mxu0 %v538
  %v1024 = vpop.f32.mrb[0].mxu0
  %v1025 = vadd.f32 %v182, %v1024
  %v1026 = vpop.f32.mrb[0].mxu0
  %v1027 = vpop.f32.mrb[0].mxu0
  %v1028 = vadd.f32 %v182, %v1027
  %v1029 = vpop.f32.mrb[0].mxu0
  %1030 = vmatprep.mubr.bf16.mxu0 %v543
  %1031 = vmatmul.mubr.bf16.gmra.mrb[0].mxu0 %v542
  %v1032 = vpop.f32.mrb[0].mxu0
  %v1033 = vadd.f32 %v182, %v1032
  %v1034 = vpop.f32.mrb[0].mxu0
  %v1035 = vpop.f32.mrb[0].mxu0
  %v1036 = vadd.f32 %v182, %v1035
  %v1037 = vpop.f32.mrb[0].mxu0
  %1038 = vmatprep.mubr.bf16.mxu0 %v547
  %1039 = vmatmul.mubr.bf16.gmra.mrb[0].mxu0 %v546
  %v1040 = vpop.f32.mrb[0].mxu0
  %v1041 = vadd.f32 %v182, %v1040
  %v1042 = vpop.f32.mrb[0].mxu0
  %v1043 = vpop.f32.mrb[0].mxu0
  %v1044 = vadd.f32 %v182, %v1043
  %v1045 = vpop.f32.mrb[0].mxu0
  %1046 = vmatprep.mubr.bf16.mxu0 %v551
  %1047 = vmatmul.mubr.bf16.gmra.mrb[0].mxu0 %v550
  %v1048 = vpop.f32.mrb[0].mxu0
  %v1049 = vadd.f32 %v182, %v1048
  %v1050 = vpop.f32.mrb[0].mxu0
  %v1051 = vpop.f32.mrb[0].mxu0
  %v1052 = vadd.f32 %v182, %v1051
  %v1053 = vpop.f32.mrb[0].mxu0
  %1054 = vmatprep.mubr.bf16.mxu0 %v555
  %1055 = vmatmul.mubr.bf16.gmra.mrb[0].mxu0 %v554
  %v1056 = vpop.f32.mrb[0].mxu0
  %v1057 = vadd.f32 %v182, %v1056
  %v1058 = vpop.f32.mrb[0].mxu0
  %v1059 = vpop.f32.mrb[0].mxu0
  %v1060 = vadd.f32 %v182, %v1059
  %v1061 = vpop.f32.mrb[0].mxu0
  %1062 = vmatprep.mubr.bf16.mxu0 %v559
  %1063 = vmatmul.mubr.bf16.gmra.mrb[0].mxu0 %v558
  %v1064 = vpop.f32.mrb[0].mxu0
  %v1065 = vadd.f32 %v182, %v1064
  %v1066 = vpop.f32.mrb[0].mxu0
  %v1067 = vpop.f32.mrb[0].mxu0
  %v1068 = vadd.f32 %v182, %v1067
  %v1069 = vpop.f32.mrb[0].mxu0
  %1070 = vmatprep.mubr.bf16.mxu0 %v563
  %1071 = vmatmul.mubr.bf16.gmra.mrb[0].mxu0 %v562
  %v1072 = vpop.f32.mrb[0].mxu0
  %v1073 = vadd.f32 %v182, %v1072
  %v1074 = vpop.f32.mrb[0].mxu0
  %v1075 = vpop.f32.mrb[0].mxu0
  %v1076 = vadd.f32 %v182, %v1075
  %v1077 = vpop.f32.mrb[0].mxu0
  %1078 = vmatprep.mubr.bf16.mxu0 %v567
  %1079 = vmatmul.mubr.bf16.gmra.mrb[0].mxu0 %v566
  %v1080 = vpop.f32.mrb[0].mxu0
  %v1081 = vadd.f32 %v182, %v1080
  %v1082 = vpop.f32.mrb[0].mxu0
  %v1083 = vpop.f32.mrb[0].mxu0
  %v1084 = vadd.f32 %v182, %v1083
  %v1085 = vpop.f32.mrb[0].mxu0
  %1086 = vmatprep.mubr.bf16.mxu0 %v571
  %1087 = vmatmul.mubr.bf16.gmra.mrb[0].mxu0 %v570
  %v1088 = vpop.f32.mrb[0].mxu0
  %v1089 = vadd.f32 %v182, %v1088
  %v1090 = vpop.f32.mrb[0].mxu0
  %v1091 = vpop.f32.mrb[0].mxu0
  %v1092 = vadd.f32 %v182, %v1091
  %v1093 = vpop.f32.mrb[0].mxu0
  %1094 = vmatprep.mubr.bf16.mxu0 %v575
  %1095 = vmatmul.mubr.bf16.gmra.mrb[0].mxu0 %v574
  %v1096 = vpop.f32.mrb[0].mxu0
  %v1097 = vadd.f32 %v182, %v1096
  %v1098 = vpop.f32.mrb[0].mxu0
  %v1099 = vpop.f32.mrb[0].mxu0
  %v1100 = vpop.f32.mrb[0].mxu0
  %1101 = vdwg.mxu0
  %1102 = vmatprep.subr.bf16.mxu0 0
  %1103 = vmatpush1.bf16.msra.mxu0 %v822
  %1104 = vmatprep.subr.bf16.mxu0 0
  %1105 = vmatpush1.bf16.msra.mxu0 %v823
  %1106 = vmatprep.subr.bf16.mxu0 0
  %1107 = vmatpush1.bf16.msra.mxu0 %v824
  %1108 = vmatprep.subr.bf16.mxu0 0
  %1109 = vmatpush1.bf16.msra.mxu0 %v825
  %1110 = vmatprep.subr.bf16.mxu0 0
  %1111 = vmatpush1.bf16.msra.mxu0 %v826
  %1112 = vmatprep.subr.bf16.mxu0 0
  %1113 = vmatpush1.bf16.msra.mxu0 %v827
  %1114 = vmatprep.subr.bf16.mxu0 0
  %1115 = vmatpush1.bf16.msra.mxu0 %v828
  %1116 = vmatprep.subr.bf16.mxu0 0
  %1117 = vmatpush1.bf16.msra.mxu0 %v829
  %1118 = vmatprep.subr.bf16.mxu0 0
  %1119 = vmatpush1.bf16.msra.mxu0 %v830
  %1120 = vmatprep.subr.bf16.mxu0 0
  %1121 = vmatpush1.bf16.msra.mxu0 %v831
  %1122 = vmatprep.subr.bf16.mxu0 0
  %1123 = vmatpush1.bf16.msra.mxu0 %v832
  %1124 = vmatprep.subr.bf16.mxu0 0
  %1125 = vmatpush1.bf16.msra.mxu0 %v833
  %1126 = vmatprep.subr.bf16.mxu0 0
  %1127 = vmatpush1.bf16.msra.mxu0 %v834
  %1128 = vmatprep.subr.bf16.mxu0 0
  %1129 = vmatpush1.bf16.msra.mxu0 %v835
  %1130 = vmatprep.subr.bf16.mxu0 0
  %1131 = vmatpush1.bf16.msra.mxu0 %v836
  %1132 = vmatprep.subr.bf16.mxu0 0
  %1133 = vmatpush1.bf16.msra.mxu0 %v837
  %1134 = vmatprep.mubr.bf16.mxu0 %v481
  %1135 = vmatmul.mubr.bf16.gmra.mrb[0].mxu0 %v480
  %v1136 = vpop.f32.mrb[0].mxu0
  %v1137 = vadd.f32 %v905, %v1136
  %v1138 = vpop.f32.mrb[0].mxu0
  %v1139 = vpop.f32.mrb[0].mxu0
  %v1140 = vadd.f32 %v908, %v1139
  %v1141 = vpop.f32.mrb[0].mxu0
  %1142 = vmatprep.mubr.bf16.mxu0 %v485
  %1143 = vmatmul.mubr.bf16.gmra.mrb[0].mxu0 %v484
  %v1144 = vpop.f32.mrb[0].mxu0
  %v1145 = vadd.f32 %v913, %v1144
  %v1146 = vpop.f32.mrb[0].mxu0
  %v1147 = vpop.f32.mrb[0].mxu0
  %v1148 = vadd.f32 %v916, %v1147
  %v1149 = vpop.f32.mrb[0].mxu0
  %1150 = vmatprep.mubr.bf16.mxu0 %v489
  %1151 = vmatmul.mubr.bf16.gmra.mrb[0].mxu0 %v488
  %v1152 = vpop.f32.mrb[0].mxu0
  %v1153 = vadd.f32 %v921, %v1152
  %v1154 = vpop.f32.mrb[0].mxu0
  %v1155 = vpop.f32.mrb[0].mxu0
  %v1156 = vadd.f32 %v924, %v1155
  %v1157 = vpop.f32.mrb[0].mxu0
  %1158 = vmatprep.mubr.bf16.mxu0 %v493
  %1159 = vmatmul.mubr.bf16.gmra.mrb[0].mxu0 %v492
  %v1160 = vpop.f32.mrb[0].mxu0
  %v1161 = vadd.f32 %v929, %v1160
  %v1162 = vpop.f32.mrb[0].mxu0
  %v1163 = vpop.f32.mrb[0].mxu0
  %v1164 = vadd.f32 %v932, %v1163
  %v1165 = vpop.f32.mrb[0].mxu0
  %1166 = vmatprep.mubr.bf16.mxu0 %v497
  %1167 = vmatmul.mubr.bf16.gmra.mrb[0].mxu0 %v496
  %v1168 = vpop.f32.mrb[0].mxu0
  %v1169 = vadd.f32 %v937, %v1168
  %v1170 = vpop.f32.mrb[0].mxu0
  %v1171 = vpop.f32.mrb[0].mxu0
  %v1172 = vadd.f32 %v940, %v1171
  %v1173 = vpop.f32.mrb[0].mxu0
  %1174 = vmatprep.mubr.bf16.mxu0 %v501
  %1175 = vmatmul.mubr.bf16.gmra.mrb[0].mxu0 %v500
  %v1176 = vpop.f32.mrb[0].mxu0
  %v1177 = vadd.f32 %v945, %v1176
  %v1178 = vpop.f32.mrb[0].mxu0
  %v1179 = vpop.f32.mrb[0].mxu0
  %v1180 = vadd.f32 %v948, %v1179
  %v1181 = vpop.f32.mrb[0].mxu0
  %1182 = vmatprep.mubr.bf16.mxu0 %v505
  %1183 = vmatmul.mubr.bf16.gmra.mrb[0].mxu0 %v504
  %v1184 = vpop.f32.mrb[0].mxu0
  %v1185 = vadd.f32 %v953, %v1184
  %v1186 = vpop.f32.mrb[0].mxu0
  %v1187 = vpop.f32.mrb[0].mxu0
  %v1188 = vadd.f32 %v956, %v1187
  %v1189 = vpop.f32.mrb[0].mxu0
  %1190 = vmatprep.mubr.bf16.mxu0 %v509
  %1191 = vmatmul.mubr.bf16.gmra.mrb[0].mxu0 %v508
  %v1192 = vpop.f32.mrb[0].mxu0
  %v1193 = vadd.f32 %v961, %v1192
  %v1194 = vpop.f32.mrb[0].mxu0
  %v1195 = vpop.f32.mrb[0].mxu0
  %v1196 = vadd.f32 %v964, %v1195
  %v1197 = vpop.f32.mrb[0].mxu0
  %1198 = vmatprep.mubr.bf16.mxu0 %v513
  %1199 = vmatmul.mubr.bf16.gmra.mrb[0].mxu0 %v512
  %v1200 = vpop.f32.mrb[0].mxu0
  %v1201 = vadd.f32 %v969, %v1200
  %v1202 = vpop.f32.mrb[0].mxu0
  %v1203 = vpop.f32.mrb[0].mxu0
  %v1204 = vadd.f32 %v972, %v1203
  %v1205 = vpop.f32.mrb[0].mxu0
  %1206 = vmatprep.mubr.bf16.mxu0 %v517
  %1207 = vmatmul.mubr.bf16.gmra.mrb[0].mxu0 %v516
  %v1208 = vpop.f32.mrb[0].mxu0
  %v1209 = vadd.f32 %v977, %v1208
  %v1210 = vpop.f32.mrb[0].mxu0
  %v1211 = vpop.f32.mrb[0].mxu0
  %v1212 = vadd.f32 %v980, %v1211
  %v1213 = vpop.f32.mrb[0].mxu0
  %1214 = vmatprep.mubr.bf16.mxu0 %v521
  %1215 = vmatmul.mubr.bf16.gmra.mrb[0].mxu0 %v520
  %v1216 = vpop.f32.mrb[0].mxu0
  %v1217 = vadd.f32 %v985, %v1216
  %v1218 = vpop.f32.mrb[0].mxu0
  %v1219 = vpop.f32.mrb[0].mxu0
  %v1220 = vadd.f32 %v988, %v1219
  %v1221 = vpop.f32.mrb[0].mxu0
  %1222 = vmatprep.mubr.bf16.mxu0 %v525
  %1223 = vmatmul.mubr.bf16.gmra.mrb[0].mxu0 %v524
  %v1224 = vpop.f32.mrb[0].mxu0
  %v1225 = vadd.f32 %v993, %v1224
  %v1226 = vpop.f32.mrb[0].mxu0
  %v1227 = vpop.f32.mrb[0].mxu0
  %v1228 = vadd.f32 %v996, %v1227
  %v1229 = vpop.f32.mrb[0].mxu0
  %1230 = vmatprep.mubr.bf16.mxu0 %v529
  %1231 = vmatmul.mubr.bf16.gmra.mrb[0].mxu0 %v528
  %v1232 = vpop.f32.mrb[0].mxu0
  %v1233 = vadd.f32 %v1001, %v1232
  %v1234 = vpop.f32.mrb[0].mxu0
  %v1235 = vpop.f32.mrb[0].mxu0
  %v1236 = vadd.f32 %v1004, %v1235
  %v1237 = vpop.f32.mrb[0].mxu0
  %1238 = vmatprep.mubr.bf16.mxu0 %v533
  %1239 = vmatmul.mubr.bf16.gmra.mrb[0].mxu0 %v532
  %v1240 = vpop.f32.mrb[0].mxu0
  %v1241 = vadd.f32 %v1009, %v1240
  %v1242 = vpop.f32.mrb[0].mxu0
  %v1243 = vpop.f32.mrb[0].mxu0
  %v1244 = vadd.f32 %v1012, %v1243
  %v1245 = vpop.f32.mrb[0].mxu0
  %1246 = vmatprep.mubr.bf16.mxu0 %v537
  %1247 = vmatmul.mubr.bf16.gmra.mrb[0].mxu0 %v536
  %v1248 = vpop.f32.mrb[0].mxu0
  %v1249 = vadd.f32 %v1017, %v1248
  %v1250 = vpop.f32.mrb[0].mxu0
  %v1251 = vpop.f32.mrb[0].mxu0
  %v1252 = vadd.f32 %v1020, %v1251
  %v1253 = vpop.f32.mrb[0].mxu0
  %1254 = vmatprep.mubr.bf16.mxu0 %v541
  %1255 = vmatmul.mubr.bf16.gmra.mrb[0].mxu0 %v540
  %v1256 = vpop.f32.mrb[0].mxu0
  %v1257 = vadd.f32 %v1025, %v1256
  %v1258 = vpop.f32.mrb[0].mxu0
  %v1259 = vpop.f32.mrb[0].mxu0
  %v1260 = vadd.f32 %v1028, %v1259
  %v1261 = vpop.f32.mrb[0].mxu0
  %1262 = vmatprep.mubr.bf16.mxu0 %v545
  %1263 = vmatmul.mubr.bf16.gmra.mrb[0].mxu0 %v544
  %v1264 = vpop.f32.mrb[0].mxu0
  %v1265 = vadd.f32 %v1033, %v1264
  %v1266 = vpop.f32.mrb[0].mxu0
  %v1267 = vpop.f32.mrb[0].mxu0
  %v1268 = vadd.f32 %v1036, %v1267
  %v1269 = vpop.f32.mrb[0].mxu0
  %1270 = vmatprep.mubr.bf16.mxu0 %v549
  %1271 = vmatmul.mubr.bf16.gmra.mrb[0].mxu0 %v548
  %v1272 = vpop.f32.mrb[0].mxu0
  %v1273 = vadd.f32 %v1041, %v1272
  %v1274 = vpop.f32.mrb[0].mxu0
  %v1275 = vpop.f32.mrb[0].mxu0
  %v1276 = vadd.f32 %v1044, %v1275
  %v1277 = vpop.f32.mrb[0].mxu0
  %1278 = vmatprep.mubr.bf16.mxu0 %v553
  %1279 = vmatmul.mubr.bf16.gmra.mrb[0].mxu0 %v552
  %v1280 = vpop.f32.mrb[0].mxu0
  %v1281 = vadd.f32 %v1049, %v1280
  %v1282 = vpop.f32.mrb[0].mxu0
  %v1283 = vpop.f32.mrb[0].mxu0
  %v1284 = vadd.f32 %v1052, %v1283
  %v1285 = vpop.f32.mrb[0].mxu0
  %1286 = vmatprep.mubr.bf16.mxu0 %v557
  %1287 = vmatmul.mubr.bf16.gmra.mrb[0].mxu0 %v556
  %v1288 = vpop.f32.mrb[0].mxu0
  %v1289 = vadd.f32 %v1057, %v1288
  %v1290 = vpop.f32.mrb[0].mxu0
  %v1291 = vpop.f32.mrb[0].mxu0
  %v1292 = vadd.f32 %v1060, %v1291
  %v1293 = vpop.f32.mrb[0].mxu0
  %1294 = vmatprep.mubr.bf16.mxu0 %v561
  %1295 = vmatmul.mubr.bf16.gmra.mrb[0].mxu0 %v560
  %v1296 = vpop.f32.mrb[0].mxu0
  %v1297 = vadd.f32 %v1065, %v1296
  %v1298 = vpop.f32.mrb[0].mxu0
  %v1299 = vpop.f32.mrb[0].mxu0
  %v1300 = vadd.f32 %v1068, %v1299
  %v1301 = vpop.f32.mrb[0].mxu0
  %1302 = vmatprep.mubr.bf16.mxu0 %v565
  %1303 = vmatmul.mubr.bf16.gmra.mrb[0].mxu0 %v564
  %v1304 = vpop.f32.mrb[0].mxu0
  %v1305 = vadd.f32 %v1073, %v1304
  %v1306 = vpop.f32.mrb[0].mxu0
  %v1307 = vpop.f32.mrb[0].mxu0
  %v1308 = vadd.f32 %v1076, %v1307
  %v1309 = vpop.f32.mrb[0].mxu0
  %1310 = vmatprep.mubr.bf16.mxu0 %v569
  %1311 = vmatmul.mubr.bf16.gmra.mrb[0].mxu0 %v568
  %v1312 = vpop.f32.mrb[0].mxu0
  %v1313 = vadd.f32 %v1081, %v1312
  %v1314 = vpop.f32.mrb[0].mxu0
  %v1315 = vpop.f32.mrb[0].mxu0
  %v1316 = vadd.f32 %v1084, %v1315
  %v1317 = vpop.f32.mrb[0].mxu0
  %1318 = vmatprep.mubr.bf16.mxu0 %v573
  %1319 = vmatmul.mubr.bf16.gmra.mrb[0].mxu0 %v572
  %v1320 = vpop.f32.mrb[0].mxu0
  %v1321 = vadd.f32 %v1089, %v1320
  %v1322 = vpop.f32.mrb[0].mxu0
  %v1323 = vpop.f32.mrb[0].mxu0
  %v1324 = vadd.f32 %v1092, %v1323
  %v1325 = vpop.f32.mrb[0].mxu0
  %1326 = vmatprep.mubr.bf16.mxu0 %v577
  %1327 = vmatmul.mubr.bf16.gmra.mrb[0].mxu0 %v576
  %v1328 = vpop.f32.mrb[0].mxu0
  %v1329 = vadd.f32 %v1097, %v1328
  %v1330 = vpop.f32.mrb[0].mxu0
  %v1331 = vpop.f32.mrb[0].mxu0
  %v1332 = vpop.f32.mrb[0].mxu0
  %1333 = vdwg.mxu0
  %v1334 = vmax.f32 %v1137, 0.0
  %v1335 = vmax.f32 %v1140, 0.0
  %v1336 = vmax.f32 %v1145, 0.0
  %v1337 = vmax.f32 %v1148, 0.0
  %v1338 = vmax.f32 %v1153, 0.0
  %v1339 = vmax.f32 %v1156, 0.0
  %v1340 = vmax.f32 %v1161, 0.0
  %v1341 = vmax.f32 %v1164, 0.0
  %v1342 = vmax.f32 %v1169, 0.0
  %v1343 = vmax.f32 %v1172, 0.0
  %v1344 = vmax.f32 %v1177, 0.0
  %v1345 = vmax.f32 %v1180, 0.0
  %v1346 = vmax.f32 %v1185, 0.0
  %v1347 = vmax.f32 %v1188, 0.0
  %v1348 = vmax.f32 %v1193, 0.0
  %v1349 = vmax.f32 %v1196, 0.0
  %v1350 = vmax.f32 %v1201, 0.0
  %v1351 = vmax.f32 %v1204, 0.0
  %v1352 = vmax.f32 %v1209, 0.0
  %v1353 = vmax.f32 %v1212, 0.0
  %v1354 = vmax.f32 %v1217, 0.0
  %v1355 = vmax.f32 %v1220, 0.0
  %v1356 = vmax.f32 %v1225, 0.0
  %v1357 = vmax.f32 %v1228, 0.0
  %v1358 = vmax.f32 %v1233, 0.0
  %v1359 = vmax.f32 %v1236, 0.0
  %v1360 = vmax.f32 %v1241, 0.0
  %v1361 = vmax.f32 %v1244, 0.0
  %v1362 = vmax.f32 %v1249, 0.0
  %v1363 = vmax.f32 %v1252, 0.0
  %v1364 = vmax.f32 %v1257, 0.0
  %v1365 = vmax.f32 %v1260, 0.0
  %v1366 = vmax.f32 %v1265, 0.0
  %v1367 = vmax.f32 %v1268, 0.0
  %v1368 = vmax.f32 %v1273, 0.0
  %v1369 = vmax.f32 %v1276, 0.0
  %v1370 = vmax.f32 %v1281, 0.0
  %v1371 = vmax.f32 %v1284, 0.0
  %v1372 = vmax.f32 %v1289, 0.0
  %v1373 = vmax.f32 %v1292, 0.0
  %v1374 = vmax.f32 %v1297, 0.0
  %v1375 = vmax.f32 %v1300, 0.0
  %v1376 = vmax.f32 %v1305, 0.0
  %v1377 = vmax.f32 %v1308, 0.0
  %v1378 = vmax.f32 %v1313, 0.0
  %v1379 = vmax.f32 %v1316, 0.0
  %v1380 = vmax.f32 %v1321, 0.0
  %v1381 = vmax.f32 %v1324, 0.0
  %v1382 = vmax.f32 %v1329, 0.0
  %vm1383 = vcmask 523264
  %1384 = vst.msk [vmem:[%s3] sm:$0xff] %vm1383, %v1334
  %1385 = vst.msk [vmem:[%s3 + $0x8] sm:$0xff] %vm1383, %v1335
  %1386 = vst.msk [vmem:[%s3 + $0x10] sm:$0xff] %vm1383, %v1336
  %1387 = vst.msk [vmem:[%s3 + $0x18] sm:$0xff] %vm1383, %v1337
  %1388 = vst.msk [vmem:[%s3 + $0x20] sm:$0xff] %vm1383, %v1338
  %1389 = vst.msk [vmem:[%s3 + $0x28] sm:$0xff] %vm1383, %v1339
  %1390 = vst.msk [vmem:[%s3 + $0x30] sm:$0xff] %vm1383, %v1340
  %1391 = vst.msk [vmem:[%s3 + $0x38] sm:$0xff] %vm1383, %v1341
  %1392 = vst.msk [vmem:[%s3 + $0x40] sm:$0xff] %vm1383, %v1342
  %1393 = vst.msk [vmem:[%s3 + $0x48] sm:$0xff] %vm1383, %v1343
  %1394 = vst.msk [vmem:[%s3 + $0x50] sm:$0xff] %vm1383, %v1344
  %1395 = vst.msk [vmem:[%s3 + $0x58] sm:$0xff] %vm1383, %v1345
  %1396 = vst.msk [vmem:[%s3 + $0x60] sm:$0xff] %vm1383, %v1346
  %1397 = vst.msk [vmem:[%s3 + $0x68] sm:$0xff] %vm1383, %v1347
  %1398 = vst.msk [vmem:[%s3 + $0x70] sm:$0xff] %vm1383, %v1348
  %1399 = vst.msk [vmem:[%s3 + $0x78] sm:$0xff] %vm1383, %v1349
  %1400 = vst.msk [vmem:[%s3 + $0x80] sm:$0xff] %vm1383, %v1350
  %1401 = vst.msk [vmem:[%s3 + $0x88] sm:$0xff] %vm1383, %v1351
  %1402 = vst.msk [vmem:[%s3 + $0x90] sm:$0xff] %vm1383, %v1352
  %1403 = vst.msk [vmem:[%s3 + $0x98] sm:$0xff] %vm1383, %v1353
  %1404 = vst.msk [vmem:[%s3 + $0xa0] sm:$0xff] %vm1383, %v1354
  %1405 = vst.msk [vmem:[%s3 + $0xa8] sm:$0xff] %vm1383, %v1355
  %1406 = vst.msk [vmem:[%s3 + $0xb0] sm:$0xff] %vm1383, %v1356
  %1407 = vst.msk [vmem:[%s3 + $0xb8] sm:$0xff] %vm1383, %v1357
  %1408 = vst.msk [vmem:[%s3 + $0xc0] sm:$0xff] %vm1383, %v1358
  %1409 = vst.msk [vmem:[%s3 + $0xc8] sm:$0xff] %vm1383, %v1359
  %1410 = vst.msk [vmem:[%s3 + $0xd0] sm:$0xff] %vm1383, %v1360
  %1411 = vst.msk [vmem:[%s3 + $0xd8] sm:$0xff] %vm1383, %v1361
  %1412 = vst.msk [vmem:[%s3 + $0xe0] sm:$0xff] %vm1383, %v1362
  %1413 = vst.msk [vmem:[%s3 + $0xe8] sm:$0xff] %vm1383, %v1363
  %1414 = vst.msk [vmem:[%s3 + $0xf0] sm:$0xff] %vm1383, %v1364
  %1415 = vst.msk [vmem:[%s3 + $0xf8] sm:$0xff] %vm1383, %v1365
  %1416 = vst.msk [vmem:[%s3 + $0x100] sm:$0xff] %vm1383, %v1366
  %1417 = vst.msk [vmem:[%s3 + $0x108] sm:$0xff] %vm1383, %v1367
  %1418 = vst.msk [vmem:[%s3 + $0x110] sm:$0xff] %vm1383, %v1368
  %1419 = vst.msk [vmem:[%s3 + $0x118] sm:$0xff] %vm1383, %v1369
  %1420 = vst.msk [vmem:[%s3 + $0x120] sm:$0xff] %vm1383, %v1370
  %1421 = vst.msk [vmem:[%s3 + $0x128] sm:$0xff] %vm1383, %v1371
  %1422 = vst.msk [vmem:[%s3 + $0x130] sm:$0xff] %vm1383, %v1372
  %1423 = vst.msk [vmem:[%s3 + $0x138] sm:$0xff] %vm1383, %v1373
  %1424 = vst.msk [vmem:[%s3 + $0x140] sm:$0xff] %vm1383, %v1374
  %1425 = vst.msk [vmem:[%s3 + $0x148] sm:$0xff] %vm1383, %v1375
  %1426 = vst.msk [vmem:[%s3 + $0x150] sm:$0xff] %vm1383, %v1376
  %1427 = vst.msk [vmem:[%s3 + $0x158] sm:$0xff] %vm1383, %v1377
  %1428 = vst.msk [vmem:[%s3 + $0x160] sm:$0xff] %vm1383, %v1378
  %1429 = vst.msk [vmem:[%s3 + $0x168] sm:$0xff] %vm1383, %v1379
  %1430 = vst.msk [vmem:[%s3 + $0x170] sm:$0xff] %vm1383, %v1380
  %1431 = vst.msk [vmem:[%s3 + $0x178] sm:$0xff] %vm1383, %v1381
  %1432 = vst.msk [vmem:[%s3 + $0x180] sm:$0xff] %vm1383, %v1382
  // Predicated region
  $region14: #{network_forward.8} parent=0 // pred_check
    _
  $region15: #{network_forward.8} parent=0 // pred_check_branch
    %1434 = sbr.rel (0) target = $region17
  $region16: #{network_forward.8} parent=0 // pred_region
    _
  $region17: #{network_forward.8} parent=0 // pred_fallthru
    _
  // Predicated region
  $region18: #{network_forward.8} parent=0 // pred_check
    _
  $region19: #{network_forward.8} parent=0 // pred_check_branch
    %1436 = sbr.rel (0) target = $region21
  $region20: #{network_forward.8} parent=0 // pred_region
    _
  $region21: #{network_forward.8} parent=0 // pred_fallthru
    _

// kernel: network_forward.9
$region0: #{network_forward.9}
  #allocation0 [shape = 'u32[]', space=smem, size = 0x4, offset = 0x4, fixed_abs, tag = 'smem constant byte address 0x4 - core index']
  #allocation1 [shape = 'u32[144,128]{1,0:T(1,128)}', space=vmem, size = 0x12000, scoped, tag = 'internal scratch']
  %s0 = inlined_call_operand.vmem [shape: bf16[288,576], index: 0, kind: input, shape index: {}]
  %s1 = inlined_call_operand.vmem [shape: bf16[576,64], index: 1, kind: input, shape index: {}]
  %s2 = inlined_call_operand.vmem [shape: f32[1,64], index: 2, kind: input, shape index: {}]
  %s3 = inlined_call_operand.vmem [shape: f32[288,64], index: 3, kind: output, shape index: {}]
  %s4 = sld [smem:[#allocation0]]
  $region22: #{network_forward.9} parent=0
    _
  %s6 = ssub.s32 1, %s4
  %s7 = scalar_select 0, %s6, %s4
  // Predicated region
  $region2: #{network_forward.9} parent=0 // pred_check
    _
  $region3: #{network_forward.9} parent=0 // pred_check_branch
    %9 = sbr.rel (0) target = $region5
  $region4: #{network_forward.9} parent=0 // pred_region
    _
  $region5: #{network_forward.9} parent=0 // pred_fallthru
    _
  // Predicated region
  $region6: #{network_forward.9} parent=0 // pred_check
    _
  $region7: #{network_forward.9} parent=0 // pred_check_branch
    %11 = sbr.rel (0) target = $region9
  $region8: #{network_forward.9} parent=0 // pred_region
    _
  $region9: #{network_forward.9} parent=0 // pred_fallthru
    _
  // Predicated region
  $region10: #{network_forward.9} parent=0 // pred_check
    _
  $region11: #{network_forward.9} parent=0 // pred_check_branch
    %13 = sbr.rel (0) target = $region13
  $region12: #{network_forward.9} parent=0 // pred_region
    _
  $region13: #{network_forward.9} parent=0 // pred_fallthru
    _
  %v15 = vld [vmem:[%s0] sm:$0xff]
  %v16 = vld [vmem:[%s0 + $0x8] sm:$0xff]
  %v17 = vld [vmem:[%s0 + $0x10] sm:$0xf]
  %v18 = vld [vmem:[%s0 + $0x14] sm:$0xff]
  %v19 = vld [vmem:[%s0 + $0x1c] sm:$0xff]
  %v20 = vld [vmem:[%s0 + $0x24] sm:$0xf]
  %v21 = vld [vmem:[%s0 + $0x28] sm:$0xff]
  %v22 = vld [vmem:[%s0 + $0x30] sm:$0xff]
  %v23 = vld [vmem:[%s0 + $0x38] sm:$0xf]
  %v24 = vld [vmem:[%s0 + $0x3c] sm:$0xff]
  %v25 = vld [vmem:[%s0 + $0x44] sm:$0xff]
  %v26 = vld [vmem:[%s0 + $0x4c] sm:$0xf]
  %v27 = vld [vmem:[%s0 + $0x50] sm:$0xff]
  %v28 = vld [vmem:[%s0 + $0x58] sm:$0xff]
  %v29 = vld [vmem:[%s0 + $0x60] sm:$0xf]
  %v30 = vld [vmem:[%s0 + $0x64] sm:$0xff]
  %v31 = vld [vmem:[%s0 + $0x6c] sm:$0xff]
  %v32 = vld [vmem:[%s0 + $0x74] sm:$0xf]
  %v33 = vld [vmem:[%s0 + $0x78] sm:$0xff]
  %v34 = vld [vmem:[%s0 + $0x80] sm:$0xff]
  %v35 = vld [vmem:[%s0 + $0x88] sm:$0xf]
  %v36 = vld [vmem:[%s0 + $0x8c] sm:$0xff]
  %v37 = vld [vmem:[%s0 + $0x94] sm:$0xff]
  %v38 = vld [vmem:[%s0 + $0x9c] sm:$0xf]
  %v39 = vld [vmem:[%s0 + $0xa0] sm:$0xff]
  %v40 = vld [vmem:[%s0 + $0xa8] sm:$0xff]
  %v41 = vld [vmem:[%s0 + $0xb0] sm:$0xf]
  %v42 = vld [vmem:[%s0 + $0xb4] sm:$0xff]
  %v43 = vld [vmem:[%s0 + $0xbc] sm:$0xff]
  %v44 = vld [vmem:[%s0 + $0xc4] sm:$0xf]
  %v45 = vld [vmem:[%s0 + $0xc8] sm:$0xff]
  %v46 = vld [vmem:[%s0 + $0xd0] sm:$0xff]
  %v47 = vld [vmem:[%s0 + $0xd8] sm:$0xf]
  %v48 = vld [vmem:[%s0 + $0xdc] sm:$0xff]
  %v49 = vld [vmem:[%s0 + $0xe4] sm:$0xff]
  %v50 = vld [vmem:[%s0 + $0xec] sm:$0xf]
  %v51 = vld [vmem:[%s0 + $0xf0] sm:$0xff]
  %v52 = vld [vmem:[%s0 + $0xf8] sm:$0xff]
  %v53 = vld [vmem:[%s0 + $0x100] sm:$0xf]
  %v54 = vld [vmem:[%s0 + $0x104] sm:$0xff]
  %v55 = vld [vmem:[%s0 + $0x10c] sm:$0xff]
  %v56 = vld [vmem:[%s0 + $0x114] sm:$0xf]
  %v57 = vld [vmem:[%s0 + $0x118] sm:$0xff]
  %v58 = vld [vmem:[%s0 + $0x120] sm:$0xff]
  %v59 = vld [vmem:[%s0 + $0x128] sm:$0xf]
  %v60 = vld [vmem:[%s0 + $0x12c] sm:$0xff]
  %v61 = vld [vmem:[%s0 + $0x134] sm:$0xff]
  %v62 = vld [vmem:[%s0 + $0x13c] sm:$0xf]
  %v63 = vld [vmem:[%s0 + $0x140] sm:$0xff]
  %v64 = vld [vmem:[%s0 + $0x148] sm:$0xff]
  %v65 = vld [vmem:[%s0 + $0x150] sm:$0xf]
  %v66 = vld [vmem:[%s0 + $0x154] sm:$0xff]
  %v67 = vld [vmem:[%s0 + $0x15c] sm:$0xff]
  %v68 = vld [vmem:[%s0 + $0x164] sm:$0xf]
  %v69 = vld [vmem:[%s0 + $0x168] sm:$0xff]
  %v70 = vld [vmem:[%s0 + $0x170] sm:$0xff]
  %v71 = vld [vmem:[%s0 + $0x178] sm:$0xf]
  %v72 = vld [vmem:[%s0 + $0x17c] sm:$0xff]
  %v73 = vld [vmem:[%s0 + $0x184] sm:$0xff]
  %v74 = vld [vmem:[%s0 + $0x18c] sm:$0xf]
  %v75 = vld [vmem:[%s0 + $0x190] sm:$0xff]
  %v76 = vld [vmem:[%s0 + $0x198] sm:$0xff]
  %v77 = vld [vmem:[%s0 + $0x1a0] sm:$0xf]
  %v78 = vld [vmem:[%s0 + $0x1a4] sm:$0xff]
  %v79 = vld [vmem:[%s0 + $0x1ac] sm:$0xff]
  %v80 = vld [vmem:[%s0 + $0x1b4] sm:$0xf]
  %v81 = vld [vmem:[%s0 + $0x1b8] sm:$0xff]
  %v82 = vld [vmem:[%s0 + $0x1c0] sm:$0xff]
  %v83 = vld [vmem:[%s0 + $0x1c8] sm:$0xf]
  %v84 = vld [vmem:[%s0 + $0x1cc] sm:$0xff]
  %v85 = vld [vmem:[%s0 + $0x1d4] sm:$0xff]
  %v86 = vld [vmem:[%s0 + $0x1dc] sm:$0xf]
  %v87 = vld [vmem:[%s0 + $0x1e0] sm:$0xff]
  %v88 = vld [vmem:[%s0 + $0x1e8] sm:$0xff]
  %v89 = vld [vmem:[%s0 + $0x1f0] sm:$0xf]
  %v90 = vld [vmem:[%s0 + $0x1f4] sm:$0xff]
  %v91 = vld [vmem:[%s0 + $0x1fc] sm:$0xff]
  %v92 = vld [vmem:[%s0 + $0x204] sm:$0xf]
  %v93 = vld [vmem:[%s0 + $0x208] sm:$0xff]
  %v94 = vld [vmem:[%s0 + $0x210] sm:$0xff]
  %v95 = vld [vmem:[%s0 + $0x218] sm:$0xf]
  %v96 = vld [vmem:[%s0 + $0x21c] sm:$0xff]
  %v97 = vld [vmem:[%s0 + $0x224] sm:$0xff]
  %v98 = vld [vmem:[%s0 + $0x22c] sm:$0xf]
  %v99 = vld [vmem:[%s0 + $0x230] sm:$0xff]
  %v100 = vld [vmem:[%s0 + $0x238] sm:$0xff]
  %v101 = vld [vmem:[%s0 + $0x240] sm:$0xf]
  %v102 = vld [vmem:[%s0 + $0x244] sm:$0xff]
  %v103 = vld [vmem:[%s0 + $0x24c] sm:$0xff]
  %v104 = vld [vmem:[%s0 + $0x254] sm:$0xf]
  %v105 = vld [vmem:[%s0 + $0x258] sm:$0xff]
  %v106 = vld [vmem:[%s0 + $0x260] sm:$0xff]
  %v107 = vld [vmem:[%s0 + $0x268] sm:$0xf]
  %v108 = vld [vmem:[%s0 + $0x26c] sm:$0xff]
  %v109 = vld [vmem:[%s0 + $0x274] sm:$0xff]
  %v110 = vld [vmem:[%s0 + $0x27c] sm:$0xf]
  %v111 = vld [vmem:[%s0 + $0x280] sm:$0xff]
  %v112 = vld [vmem:[%s0 + $0x288] sm:$0xff]
  %v113 = vld [vmem:[%s0 + $0x290] sm:$0xf]
  %v114 = vld [vmem:[%s0 + $0x294] sm:$0xff]
  %v115 = vld [vmem:[%s0 + $0x29c] sm:$0xff]
  %v116 = vld [vmem:[%s0 + $0x2a4] sm:$0xf]
  %v117 = vld [vmem:[%s0 + $0x2a8] sm:$0xff]
  %v118 = vld [vmem:[%s0 + $0x2b0] sm:$0xff]
  %v119 = vld [vmem:[%s0 + $0x2b8] sm:$0xf]
  %v120 = vld [vmem:[%s0 + $0x2bc] sm:$0xff]
  %v121 = vld [vmem:[%s0 + $0x2c4] sm:$0xff]
  %v122 = vld [vmem:[%s0 + $0x2cc] sm:$0xf]
  %v123 = vld [vmem:[%s1] sm:$0xf]
  %v124 = vld [vmem:[%s1 + $0x4] sm:$0xf]
  %v125 = vld [vmem:[%s1 + $0x8] sm:$0xf]
  %v126 = vld [vmem:[%s1 + $0xc] sm:$0xf]
  %v127 = vld [vmem:[%s1 + $0x10] sm:$0xf]
  %v128 = vld [vmem:[%s1 + $0x14] sm:$0xf]
  %v129 = vld [vmem:[%s1 + $0x18] sm:$0xf]
  %v130 = vld [vmem:[%s1 + $0x1c] sm:$0xf]
  %v131 = vld [vmem:[%s1 + $0x20] sm:$0xf]
  %v132 = vld [vmem:[%s1 + $0x24] sm:$0xf]
  %v133 = vld [vmem:[%s1 + $0x28] sm:$0xf]
  %v134 = vld [vmem:[%s1 + $0x2c] sm:$0xf]
  %v135 = vld [vmem:[%s1 + $0x30] sm:$0xf]
  %v136 = vld [vmem:[%s1 + $0x34] sm:$0xf]
  %v137 = vld [vmem:[%s1 + $0x38] sm:$0xf]
  %v138 = vld [vmem:[%s1 + $0x3c] sm:$0xf]
  %v139 = vld [vmem:[%s1 + $0x40] sm:$0xf]
  %v140 = vld [vmem:[%s1 + $0x44] sm:$0xf]
  %v141 = vld [vmem:[%s1 + $0x48] sm:$0xf]
  %v142 = vld [vmem:[%s1 + $0x4c] sm:$0xf]
  %v143 = vld [vmem:[%s1 + $0x50] sm:$0xf]
  %v144 = vld [vmem:[%s1 + $0x54] sm:$0xf]
  %v145 = vld [vmem:[%s1 + $0x58] sm:$0xf]
  %v146 = vld [vmem:[%s1 + $0x5c] sm:$0xf]
  %v147 = vld [vmem:[%s1 + $0x60] sm:$0xf]
  %v148 = vld [vmem:[%s1 + $0x64] sm:$0xf]
  %v149 = vld [vmem:[%s1 + $0x68] sm:$0xf]
  %v150 = vld [vmem:[%s1 + $0x6c] sm:$0xf]
  %v151 = vld [vmem:[%s1 + $0x70] sm:$0xf]
  %v152 = vld [vmem:[%s1 + $0x74] sm:$0xf]
  %v153 = vld [vmem:[%s1 + $0x78] sm:$0xf]
  %v154 = vld [vmem:[%s1 + $0x7c] sm:$0xf]
  %v155 = vld [vmem:[%s1 + $0x80] sm:$0xf]
  %v156 = vld [vmem:[%s1 + $0x84] sm:$0xf]
  %v157 = vld [vmem:[%s1 + $0x88] sm:$0xf]
  %v158 = vld [vmem:[%s1 + $0x8c] sm:$0xf]
  %v159 = vld [vmem:[%s1 + $0x90] sm:$0xf]
  %v160 = vld [vmem:[%s1 + $0x94] sm:$0xf]
  %v161 = vld [vmem:[%s1 + $0x98] sm:$0xf]
  %v162 = vld [vmem:[%s1 + $0x9c] sm:$0xf]
  %v163 = vld [vmem:[%s1 + $0xa0] sm:$0xf]
  %v164 = vld [vmem:[%s1 + $0xa4] sm:$0xf]
  %v165 = vld [vmem:[%s1 + $0xa8] sm:$0xf]
  %v166 = vld [vmem:[%s1 + $0xac] sm:$0xf]
  %v167 = vld [vmem:[%s1 + $0xb0] sm:$0xf]
  %v168 = vld [vmem:[%s1 + $0xb4] sm:$0xf]
  %v169 = vld [vmem:[%s1 + $0xb8] sm:$0xf]
  %v170 = vld [vmem:[%s1 + $0xbc] sm:$0xf]
  %v171 = vld [vmem:[%s1 + $0xc0] sm:$0xf]
  %v172 = vld [vmem:[%s1 + $0xc4] sm:$0xf]
  %v173 = vld [vmem:[%s1 + $0xc8] sm:$0xf]
  %v174 = vld [vmem:[%s1 + $0xcc] sm:$0xf]
  %v175 = vld [vmem:[%s1 + $0xd0] sm:$0xf]
  %v176 = vld [vmem:[%s1 + $0xd4] sm:$0xf]
  %v177 = vld [vmem:[%s1 + $0xd8] sm:$0xf]
  %v178 = vld [vmem:[%s1 + $0xdc] sm:$0xf]
  %v179 = vld [vmem:[%s1 + $0xe0] sm:$0xf]
  %v180 = vld [vmem:[%s1 + $0xe4] sm:$0xf]
  %v181 = vld [vmem:[%s1 + $0xe8] sm:$0xf]
  %v182 = vld [vmem:[%s1 + $0xec] sm:$0xf]
  %v183 = vld [vmem:[%s1 + $0xf0] sm:$0xf]
  %v184 = vld [vmem:[%s1 + $0xf4] sm:$0xf]
  %v185 = vld [vmem:[%s1 + $0xf8] sm:$0xf]
  %v186 = vld [vmem:[%s1 + $0xfc] sm:$0xf]
  %v187 = vld [vmem:[%s1 + $0x100] sm:$0xf]
  %v188 = vld [vmem:[%s1 + $0x104] sm:$0xf]
  %v189 = vld [vmem:[%s1 + $0x108] sm:$0xf]
  %v190 = vld [vmem:[%s1 + $0x10c] sm:$0xf]
  %v191 = vld [vmem:[%s1 + $0x110] sm:$0xf]
  %v192 = vld [vmem:[%s1 + $0x114] sm:$0xf]
  %v193 = vld [vmem:[%s1 + $0x118] sm:$0xf]
  %v194 = vld [vmem:[%s1 + $0x11c] sm:$0xf]
  %v195 = vld [vmem:[%s2] sm:$0x1]
  %v197 = vlaneseq
  %v198 = vshrl.u32 %v197, 7
  %v199 = vsub.s32 0, %v198
  %v200 = vrot.slane %v195, %v199
  %v310 = vunpack.c.l.b16 %v15
  %v311 = vunpack.c.h.b16 %v15
  %v312 = vunpack.c.l.b16 %v16
  %v313 = vunpack.c.h.b16 %v16
  %v314 = vunpack.c.l.b16 %v17
  %v315 = vunpack.c.l.b16 %v18
  %v316 = vunpack.c.h.b16 %v18
  %v317 = vunpack.c.l.b16 %v19
  %v318 = vunpack.c.h.b16 %v19
  %v319 = vunpack.c.l.b16 %v20
  %v320 = vunpack.c.l.b16 %v21
  %v321 = vunpack.c.h.b16 %v21
  %v322 = vunpack.c.l.b16 %v22
  %v323 = vunpack.c.h.b16 %v22
  %v324 = vunpack.c.l.b16 %v23
  %v325 = vunpack.c.l.b16 %v24
  %v326 = vunpack.c.h.b16 %v24
  %v327 = vunpack.c.l.b16 %v25
  %v328 = vunpack.c.h.b16 %v25
  %v329 = vunpack.c.l.b16 %v26
  %v330 = vunpack.c.l.b16 %v27
  %v331 = vunpack.c.h.b16 %v27
  %v332 = vunpack.c.l.b16 %v28
  %v333 = vunpack.c.h.b16 %v28
  %v334 = vunpack.c.l.b16 %v29
  %v335 = vunpack.c.l.b16 %v30
  %v336 = vunpack.c.h.b16 %v30
  %v337 = vunpack.c.l.b16 %v31
  %v338 = vunpack.c.h.b16 %v31
  %v339 = vunpack.c.l.b16 %v32
  %v340 = vunpack.c.l.b16 %v33
  %v341 = vunpack.c.h.b16 %v33
  %v342 = vunpack.c.l.b16 %v34
  %v343 = vunpack.c.h.b16 %v34
  %v344 = vunpack.c.l.b16 %v35
  %v345 = vunpack.c.l.b16 %v36
  %v346 = vunpack.c.h.b16 %v36
  %v347 = vunpack.c.l.b16 %v37
  %v348 = vunpack.c.h.b16 %v37
  %v349 = vunpack.c.l.b16 %v38
  %v350 = vunpack.c.l.b16 %v39
  %v351 = vunpack.c.h.b16 %v39
  %v352 = vunpack.c.l.b16 %v40
  %v353 = vunpack.c.h.b16 %v40
  %v354 = vunpack.c.l.b16 %v41
  %v355 = vunpack.c.l.b16 %v42
  %v356 = vunpack.c.h.b16 %v42
  %v357 = vunpack.c.l.b16 %v43
  %v358 = vunpack.c.h.b16 %v43
  %v359 = vunpack.c.l.b16 %v44
  %v360 = vunpack.c.l.b16 %v45
  %v361 = vunpack.c.h.b16 %v45
  %v362 = vunpack.c.l.b16 %v46
  %v363 = vunpack.c.h.b16 %v46
  %v364 = vunpack.c.l.b16 %v47
  %v365 = vunpack.c.l.b16 %v48
  %v366 = vunpack.c.h.b16 %v48
  %v367 = vunpack.c.l.b16 %v49
  %v368 = vunpack.c.h.b16 %v49
  %v369 = vunpack.c.l.b16 %v50
  %v370 = vunpack.c.l.b16 %v51
  %v371 = vunpack.c.h.b16 %v51
  %v372 = vunpack.c.l.b16 %v52
  %v373 = vunpack.c.h.b16 %v52
  %v374 = vunpack.c.l.b16 %v53
  %v375 = vunpack.c.l.b16 %v54
  %v376 = vunpack.c.h.b16 %v54
  %v377 = vunpack.c.l.b16 %v55
  %v378 = vunpack.c.h.b16 %v55
  %v379 = vunpack.c.l.b16 %v56
  %v380 = vunpack.c.l.b16 %v57
  %v381 = vunpack.c.h.b16 %v57
  %v382 = vunpack.c.l.b16 %v58
  %v383 = vunpack.c.h.b16 %v58
  %v384 = vunpack.c.l.b16 %v59
  %v385 = vunpack.c.l.b16 %v60
  %v386 = vunpack.c.h.b16 %v60
  %v387 = vunpack.c.l.b16 %v61
  %v388 = vunpack.c.h.b16 %v61
  %v389 = vunpack.c.l.b16 %v62
  %v390 = vunpack.c.l.b16 %v63
  %v391 = vunpack.c.h.b16 %v63
  %v392 = vunpack.c.l.b16 %v64
  %v393 = vunpack.c.h.b16 %v64
  %v394 = vunpack.c.l.b16 %v65
  %v395 = vunpack.c.l.b16 %v66
  %v396 = vunpack.c.h.b16 %v66
  %v397 = vunpack.c.l.b16 %v67
  %v398 = vunpack.c.h.b16 %v67
  %v399 = vunpack.c.l.b16 %v68
  %v400 = vunpack.c.l.b16 %v69
  %v401 = vunpack.c.h.b16 %v69
  %v402 = vunpack.c.l.b16 %v70
  %v403 = vunpack.c.h.b16 %v70
  %v404 = vunpack.c.l.b16 %v71
  %v405 = vunpack.c.l.b16 %v72
  %v406 = vunpack.c.h.b16 %v72
  %v407 = vunpack.c.l.b16 %v73
  %v408 = vunpack.c.h.b16 %v73
  %v409 = vunpack.c.l.b16 %v74
  %v410 = vunpack.c.l.b16 %v75
  %v411 = vunpack.c.h.b16 %v75
  %v412 = vunpack.c.l.b16 %v76
  %v413 = vunpack.c.h.b16 %v76
  %v414 = vunpack.c.l.b16 %v77
  %v415 = vunpack.c.l.b16 %v78
  %v416 = vunpack.c.h.b16 %v78
  %v417 = vunpack.c.l.b16 %v79
  %v418 = vunpack.c.h.b16 %v79
  %v419 = vunpack.c.l.b16 %v80
  %v420 = vunpack.c.l.b16 %v81
  %v421 = vunpack.c.h.b16 %v81
  %v422 = vunpack.c.l.b16 %v82
  %v423 = vunpack.c.h.b16 %v82
  %v424 = vunpack.c.l.b16 %v83
  %v425 = vunpack.c.l.b16 %v84
  %v426 = vunpack.c.h.b16 %v84
  %v427 = vunpack.c.l.b16 %v85
  %v428 = vunpack.c.h.b16 %v85
  %v429 = vunpack.c.l.b16 %v86
  %v430 = vunpack.c.l.b16 %v87
  %v431 = vunpack.c.h.b16 %v87
  %v432 = vunpack.c.l.b16 %v88
  %v433 = vunpack.c.h.b16 %v88
  %v434 = vunpack.c.l.b16 %v89
  %v435 = vunpack.c.l.b16 %v90
  %v436 = vunpack.c.h.b16 %v90
  %v437 = vunpack.c.l.b16 %v91
  %v438 = vunpack.c.h.b16 %v91
  %v439 = vunpack.c.l.b16 %v92
  %v440 = vunpack.c.l.b16 %v93
  %v441 = vunpack.c.h.b16 %v93
  %v442 = vunpack.c.l.b16 %v94
  %v443 = vunpack.c.h.b16 %v94
  %v444 = vunpack.c.l.b16 %v95
  %v445 = vunpack.c.l.b16 %v96
  %v446 = vunpack.c.h.b16 %v96
  %v447 = vunpack.c.l.b16 %v97
  %v448 = vunpack.c.h.b16 %v97
  %v449 = vunpack.c.l.b16 %v98
  %v450 = vunpack.c.l.b16 %v99
  %v451 = vunpack.c.h.b16 %v99
  %v452 = vunpack.c.l.b16 %v100
  %v453 = vunpack.c.h.b16 %v100
  %v454 = vunpack.c.l.b16 %v101
  %v455 = vunpack.c.l.b16 %v102
  %v456 = vunpack.c.h.b16 %v102
  %v457 = vunpack.c.l.b16 %v103
  %v458 = vunpack.c.h.b16 %v103
  %v459 = vunpack.c.l.b16 %v104
  %v460 = vunpack.c.l.b16 %v105
  %v461 = vunpack.c.h.b16 %v105
  %v462 = vunpack.c.l.b16 %v106
  %v463 = vunpack.c.h.b16 %v106
  %v464 = vunpack.c.l.b16 %v107
  %v465 = vunpack.c.l.b16 %v108
  %v466 = vunpack.c.h.b16 %v108
  %v467 = vunpack.c.l.b16 %v109
  %v468 = vunpack.c.h.b16 %v109
  %v469 = vunpack.c.l.b16 %v110
  %v470 = vunpack.c.l.b16 %v111
  %v471 = vunpack.c.h.b16 %v111
  %v472 = vunpack.c.l.b16 %v112
  %v473 = vunpack.c.h.b16 %v112
  %v474 = vunpack.c.l.b16 %v113
  %v475 = vunpack.c.l.b16 %v114
  %v476 = vunpack.c.h.b16 %v114
  %v477 = vunpack.c.l.b16 %v115
  %v478 = vunpack.c.h.b16 %v115
  %v479 = vunpack.c.l.b16 %v116
  %v480 = vunpack.c.l.b16 %v117
  %v481 = vunpack.c.h.b16 %v117
  %v482 = vunpack.c.l.b16 %v118
  %v483 = vunpack.c.h.b16 %v118
  %v484 = vunpack.c.l.b16 %v119
  %v485 = vunpack.c.l.b16 %v120
  %v486 = vunpack.c.h.b16 %v120
  %v487 = vunpack.c.l.b16 %v121
  %v488 = vunpack.c.h.b16 %v121
  %v489 = vunpack.c.l.b16 %v122
  %v490 = vpack.c.b16 %v315, %v310
  %v491 = vpack.c.b16 %v316, %v311
  %v492 = vpack.c.b16 %v317, %v312
  %v493 = vpack.c.b16 %v318, %v313
  %v494 = vpack.c.b16 %v319, %v314
  %v495 = vpack.c.b16 %v325, %v320
  %v496 = vpack.c.b16 %v326, %v321
  %v497 = vpack.c.b16 %v327, %v322
  %v498 = vpack.c.b16 %v328, %v323
  %v499 = vpack.c.b16 %v329, %v324
  %v500 = vpack.c.b16 %v335, %v330
  %v501 = vpack.c.b16 %v336, %v331
  %v502 = vpack.c.b16 %v337, %v332
  %v503 = vpack.c.b16 %v338, %v333
  %v504 = vpack.c.b16 %v339, %v334
  %v505 = vpack.c.b16 %v345, %v340
  %v506 = vpack.c.b16 %v346, %v341
  %v507 = vpack.c.b16 %v347, %v342
  %v508 = vpack.c.b16 %v348, %v343
  %v509 = vpack.c.b16 %v349, %v344
  %v510 = vpack.c.b16 %v355, %v350
  %v511 = vpack.c.b16 %v356, %v351
  %v512 = vpack.c.b16 %v357, %v352
  %v513 = vpack.c.b16 %v358, %v353
  %v514 = vpack.c.b16 %v359, %v354
  %v515 = vpack.c.b16 %v365, %v360
  %v516 = vpack.c.b16 %v366, %v361
  %v517 = vpack.c.b16 %v367, %v362
  %v518 = vpack.c.b16 %v368, %v363
  %v519 = vpack.c.b16 %v369, %v364
  %v520 = vpack.c.b16 %v375, %v370
  %v521 = vpack.c.b16 %v376, %v371
  %v522 = vpack.c.b16 %v377, %v372
  %v523 = vpack.c.b16 %v378, %v373
  %v524 = vpack.c.b16 %v379, %v374
  %v525 = vpack.c.b16 %v385, %v380
  %v526 = vpack.c.b16 %v386, %v381
  %v527 = vpack.c.b16 %v387, %v382
  %v528 = vpack.c.b16 %v388, %v383
  %v529 = vpack.c.b16 %v389, %v384
  %v530 = vpack.c.b16 %v395, %v390
  %v531 = vpack.c.b16 %v396, %v391
  %v532 = vpack.c.b16 %v397, %v392
  %v533 = vpack.c.b16 %v398, %v393
  %v534 = vpack.c.b16 %v399, %v394
  %v535 = vpack.c.b16 %v405, %v400
  %v536 = vpack.c.b16 %v406, %v401
  %v537 = vpack.c.b16 %v407, %v402
  %v538 = vpack.c.b16 %v408, %v403
  %v539 = vpack.c.b16 %v409, %v404
  %v540 = vpack.c.b16 %v415, %v410
  %v541 = vpack.c.b16 %v416, %v411
  %v542 = vpack.c.b16 %v417, %v412
  %v543 = vpack.c.b16 %v418, %v413
  %v544 = vpack.c.b16 %v419, %v414
  %v545 = vpack.c.b16 %v425, %v420
  %v546 = vpack.c.b16 %v426, %v421
  %v547 = vpack.c.b16 %v427, %v422
  %v548 = vpack.c.b16 %v428, %v423
  %v549 = vpack.c.b16 %v429, %v424
  %v550 = vpack.c.b16 %v435, %v430
  %v551 = vpack.c.b16 %v436, %v431
  %v552 = vpack.c.b16 %v437, %v432
  %v553 = vpack.c.b16 %v438, %v433
  %v554 = vpack.c.b16 %v439, %v434
  %v555 = vpack.c.b16 %v445, %v440
  %v556 = vpack.c.b16 %v446, %v441
  %v557 = vpack.c.b16 %v447, %v442
  %v558 = vpack.c.b16 %v448, %v443
  %v559 = vpack.c.b16 %v449, %v444
  %v560 = vpack.c.b16 %v455, %v450
  %v561 = vpack.c.b16 %v456, %v451
  %v562 = vpack.c.b16 %v457, %v452
  %v563 = vpack.c.b16 %v458, %v453
  %v564 = vpack.c.b16 %v459, %v454
  %v565 = vpack.c.b16 %v465, %v460
  %v566 = vpack.c.b16 %v466, %v461
  %v567 = vpack.c.b16 %v467, %v462
  %v568 = vpack.c.b16 %v468, %v463
  %v569 = vpack.c.b16 %v469, %v464
  %v570 = vpack.c.b16 %v475, %v470
  %v571 = vpack.c.b16 %v476, %v471
  %v572 = vpack.c.b16 %v477, %v472
  %v573 = vpack.c.b16 %v478, %v473
  %v574 = vpack.c.b16 %v479, %v474
  %v575 = vpack.c.b16 %v485, %v480
  %v576 = vpack.c.b16 %v486, %v481
  %v577 = vpack.c.b16 %v487, %v482
  %v578 = vpack.c.b16 %v488, %v483
  %v579 = vpack.c.b16 %v489, %v484
  %v724 = vunpack.c.l.b16 %v123
  %v725 = vunpack.c.l.b16 %v124
  %v726 = vunpack.c.l.b16 %v125
  %v727 = vunpack.c.l.b16 %v126
  %v728 = vunpack.c.l.b16 %v127
  %v729 = vunpack.c.l.b16 %v128
  %v730 = vunpack.c.l.b16 %v129
  %v731 = vunpack.c.l.b16 %v130
  %v732 = vunpack.c.l.b16 %v131
  %v733 = vunpack.c.l.b16 %v132
  %v734 = vunpack.c.l.b16 %v133
  %v735 = vunpack.c.l.b16 %v134
  %v736 = vunpack.c.l.b16 %v135
  %v737 = vunpack.c.l.b16 %v136
  %v738 = vunpack.c.l.b16 %v137
  %v739 = vunpack.c.l.b16 %v138
  %v740 = vunpack.c.l.b16 %v139
  %v741 = vunpack.c.l.b16 %v140
  %v742 = vunpack.c.l.b16 %v141
  %v743 = vunpack.c.l.b16 %v142
  %v744 = vunpack.c.l.b16 %v143
  %v745 = vunpack.c.l.b16 %v144
  %v746 = vunpack.c.l.b16 %v145
  %v747 = vunpack.c.l.b16 %v146
  %v748 = vunpack.c.l.b16 %v147
  %v749 = vunpack.c.l.b16 %v148
  %v750 = vunpack.c.l.b16 %v149
  %v751 = vunpack.c.l.b16 %v150
  %v752 = vunpack.c.l.b16 %v151
  %v753 = vunpack.c.l.b16 %v152
  %v754 = vunpack.c.l.b16 %v153
  %v755 = vunpack.c.l.b16 %v154
  %v756 = vunpack.c.l.b16 %v155
  %v757 = vunpack.c.l.b16 %v156
  %v758 = vunpack.c.l.b16 %v157
  %v759 = vunpack.c.l.b16 %v158
  %v760 = vunpack.c.l.b16 %v159
  %v761 = vunpack.c.l.b16 %v160
  %v762 = vunpack.c.l.b16 %v161
  %v763 = vunpack.c.l.b16 %v162
  %v764 = vunpack.c.l.b16 %v163
  %v765 = vunpack.c.l.b16 %v164
  %v766 = vunpack.c.l.b16 %v165
  %v767 = vunpack.c.l.b16 %v166
  %v768 = vunpack.c.l.b16 %v167
  %v769 = vunpack.c.l.b16 %v168
  %v770 = vunpack.c.l.b16 %v169
  %v771 = vunpack.c.l.b16 %v170
  %v772 = vunpack.c.l.b16 %v171
  %v773 = vunpack.c.l.b16 %v172
  %v774 = vunpack.c.l.b16 %v173
  %v775 = vunpack.c.l.b16 %v174
  %v776 = vunpack.c.l.b16 %v175
  %v777 = vunpack.c.l.b16 %v176
  %v778 = vunpack.c.l.b16 %v177
  %v779 = vunpack.c.l.b16 %v178
  %v780 = vunpack.c.l.b16 %v179
  %v781 = vunpack.c.l.b16 %v180
  %v782 = vunpack.c.l.b16 %v181
  %v783 = vunpack.c.l.b16 %v182
  %v784 = vunpack.c.l.b16 %v183
  %v785 = vunpack.c.l.b16 %v184
  %v786 = vunpack.c.l.b16 %v185
  %v787 = vunpack.c.l.b16 %v186
  %v788 = vunpack.c.l.b16 %v187
  %v789 = vunpack.c.l.b16 %v188
  %v790 = vunpack.c.l.b16 %v189
  %v791 = vunpack.c.l.b16 %v190
  %v792 = vunpack.c.l.b16 %v191
  %v793 = vunpack.c.l.b16 %v192
  %v794 = vunpack.c.l.b16 %v193
  %v795 = vunpack.c.l.b16 %v194
  %v796 = vpack.c.b16 %v725, %v724
  %v797 = vpack.c.b16 %v727, %v726
  %v798 = vpack.c.b16 %v729, %v728
  %v799 = vpack.c.b16 %v731, %v730
  %v800 = vpack.c.b16 %v733, %v732
  %v801 = vpack.c.b16 %v735, %v734
  %v802 = vpack.c.b16 %v737, %v736
  %v803 = vpack.c.b16 %v739, %v738
  %v804 = vpack.c.b16 %v741, %v740
  %v805 = vpack.c.b16 %v743, %v742
  %v806 = vpack.c.b16 %v745, %v744
  %v807 = vpack.c.b16 %v747, %v746
  %v808 = vpack.c.b16 %v749, %v748
  %v809 = vpack.c.b16 %v751, %v750
  %v810 = vpack.c.b16 %v753, %v752
  %v811 = vpack.c.b16 %v755, %v754
  %v812 = vpack.c.b16 %v757, %v756
  %v813 = vpack.c.b16 %v759, %v758
  %v814 = vpack.c.b16 %v761, %v760
  %v815 = vpack.c.b16 %v763, %v762
  %v816 = vpack.c.b16 %v765, %v764
  %v817 = vpack.c.b16 %v767, %v766
  %v818 = vpack.c.b16 %v769, %v768
  %v819 = vpack.c.b16 %v771, %v770
  %v820 = vpack.c.b16 %v773, %v772
  %v821 = vpack.c.b16 %v775, %v774
  %v822 = vpack.c.b16 %v777, %v776
  %v823 = vpack.c.b16 %v779, %v778
  %v824 = vpack.c.b16 %v781, %v780
  %v825 = vpack.c.b16 %v783, %v782
  %v826 = vpack.c.b16 %v785, %v784
  %v827 = vpack.c.b16 %v787, %v786
  %v828 = vpack.c.b16 %v789, %v788
  %v829 = vpack.c.b16 %v791, %v790
  %v830 = vpack.c.b16 %v793, %v792
  %v831 = vpack.c.b16 %v795, %v794
  %vm868 = vcmask 523264
  %v870 = vsel %vm868, %v494, 0
  %v873 = vsel %vm868, %v499, 0
  %v876 = vsel %vm868, %v504, 0
  %v879 = vsel %vm868, %v509, 0
  %v882 = vsel %vm868, %v514, 0
  %v885 = vsel %vm868, %v519, 0
  %v888 = vsel %vm868, %v524, 0
  %v891 = vsel %vm868, %v529, 0
  %v894 = vsel %vm868, %v534, 0
  %v897 = vsel %vm868, %v539, 0
  %v900 = vsel %vm868, %v544, 0
  %v903 = vsel %vm868, %v549, 0
  %v906 = vsel %vm868, %v554, 0
  %v909 = vsel %vm868, %v559, 0
  %v912 = vsel %vm868, %v564, 0
  %v915 = vsel %vm868, %v569, 0
  %v918 = vsel %vm868, %v574, 0
  %v921 = vsel %vm868, %v579, 0
  %923 = vmatprep.subr.bf16.mxu0 0
  %924 = vmatpush1.bf16.msra.mxu0 %v796
  %925 = vmatprep.subr.bf16.mxu0 0
  %926 = vmatpush1.bf16.msra.mxu0 %v797
  %927 = vmatprep.subr.bf16.mxu0 0
  %928 = vmatpush1.bf16.msra.mxu0 %v798
  %929 = vmatprep.subr.bf16.mxu0 0
  %930 = vmatpush1.bf16.msra.mxu0 %v799
  %931 = vmatprep.subr.bf16.mxu0 0
  %932 = vmatpush1.bf16.msra.mxu0 %v800
  %933 = vmatprep.subr.bf16.mxu0 0
  %934 = vmatpush1.bf16.msra.mxu0 %v801
  %935 = vmatprep.subr.bf16.mxu0 0
  %936 = vmatpush1.bf16.msra.mxu0 %v802
  %937 = vmatprep.subr.bf16.mxu0 0
  %938 = vmatpush1.bf16.msra.mxu0 %v803
  %939 = vmatprep.subr.bf16.mxu0 0
  %940 = vmatpush1.bf16.msra.mxu0 %v804
  %941 = vmatprep.subr.bf16.mxu0 0
  %942 = vmatpush1.bf16.msra.mxu0 %v805
  %943 = vmatprep.subr.bf16.mxu0 0
  %944 = vmatpush1.bf16.msra.mxu0 %v806
  %945 = vmatprep.subr.bf16.mxu0 0
  %946 = vmatpush1.bf16.msra.mxu0 %v807
  %947 = vmatprep.subr.bf16.mxu0 0
  %948 = vmatpush1.bf16.msra.mxu0 %v808
  %949 = vmatprep.subr.bf16.mxu0 0
  %950 = vmatpush1.bf16.msra.mxu0 %v809
  %951 = vmatprep.subr.bf16.mxu0 0
  %952 = vmatpush1.bf16.msra.mxu0 %v810
  %953 = vmatprep.subr.bf16.mxu0 0
  %954 = vmatpush1.bf16.msra.mxu0 %v811
  %955 = vmatprep.mubr.bf16.mxu0 %v491
  %956 = vmatmul.mubr.bf16.gmra.mrb[0].mxu0 %v490
  %v957 = vpop.f32.mrb[0].mxu0
  %v958 = vadd.f32 %v200, %v957
  %v959 = vpop.f32.mrb[0].mxu0
  %v960 = vpop.f32.mrb[0].mxu0
  %v961 = vadd.f32 %v200, %v960
  %v962 = vpop.f32.mrb[0].mxu0
  %963 = vmatprep.mubr.bf16.mxu0 %v496
  %964 = vmatmul.mubr.bf16.gmra.mrb[0].mxu0 %v495
  %v965 = vpop.f32.mrb[0].mxu0
  %v966 = vadd.f32 %v200, %v965
  %v967 = vpop.f32.mrb[0].mxu0
  %v968 = vpop.f32.mrb[0].mxu0
  %v969 = vadd.f32 %v200, %v968
  %v970 = vpop.f32.mrb[0].mxu0
  %971 = vmatprep.mubr.bf16.mxu0 %v501
  %972 = vmatmul.mubr.bf16.gmra.mrb[0].mxu0 %v500
  %v973 = vpop.f32.mrb[0].mxu0
  %v974 = vadd.f32 %v200, %v973
  %v975 = vpop.f32.mrb[0].mxu0
  %v976 = vpop.f32.mrb[0].mxu0
  %v977 = vadd.f32 %v200, %v976
  %v978 = vpop.f32.mrb[0].mxu0
  %979 = vmatprep.mubr.bf16.mxu0 %v506
  %980 = vmatmul.mubr.bf16.gmra.mrb[0].mxu0 %v505
  %v981 = vpop.f32.mrb[0].mxu0
  %v982 = vadd.f32 %v200, %v981
  %v983 = vpop.f32.mrb[0].mxu0
  %v984 = vpop.f32.mrb[0].mxu0
  %v985 = vadd.f32 %v200, %v984
  %v986 = vpop.f32.mrb[0].mxu0
  %987 = vmatprep.mubr.bf16.mxu0 %v511
  %988 = vmatmul.mubr.bf16.gmra.mrb[0].mxu0 %v510
  %v989 = vpop.f32.mrb[0].mxu0
  %v990 = vadd.f32 %v200, %v989
  %v991 = vpop.f32.mrb[0].mxu0
  %v992 = vpop.f32.mrb[0].mxu0
  %v993 = vadd.f32 %v200, %v992
  %v994 = vpop.f32.mrb[0].mxu0
  %995 = vmatprep.mubr.bf16.mxu0 %v516
  %996 = vmatmul.mubr.bf16.gmra.mrb[0].mxu0 %v515
  %v997 = vpop.f32.mrb[0].mxu0
  %v998 = vadd.f32 %v200, %v997
  %v999 = vpop.f32.mrb[0].mxu0
  %v1000 = vpop.f32.mrb[0].mxu0
  %v1001 = vadd.f32 %v200, %v1000
  %v1002 = vpop.f32.mrb[0].mxu0
  %1003 = vmatprep.mubr.bf16.mxu0 %v521
  %1004 = vmatmul.mubr.bf16.gmra.mrb[0].mxu0 %v520
  %v1005 = vpop.f32.mrb[0].mxu0
  %v1006 = vadd.f32 %v200, %v1005
  %v1007 = vpop.f32.mrb[0].mxu0
  %v1008 = vpop.f32.mrb[0].mxu0
  %v1009 = vadd.f32 %v200, %v1008
  %v1010 = vpop.f32.mrb[0].mxu0
  %1011 = vmatprep.mubr.bf16.mxu0 %v526
  %1012 = vmatmul.mubr.bf16.gmra.mrb[0].mxu0 %v525
  %v1013 = vpop.f32.mrb[0].mxu0
  %v1014 = vadd.f32 %v200, %v1013
  %v1015 = vpop.f32.mrb[0].mxu0
  %v1016 = vpop.f32.mrb[0].mxu0
  %v1017 = vadd.f32 %v200, %v1016
  %v1018 = vpop.f32.mrb[0].mxu0
  %1019 = vmatprep.mubr.bf16.mxu0 %v531
  %1020 = vmatmul.mubr.bf16.gmra.mrb[0].mxu0 %v530
  %v1021 = vpop.f32.mrb[0].mxu0
  %v1022 = vadd.f32 %v200, %v1021
  %v1023 = vpop.f32.mrb[0].mxu0
  %v1024 = vpop.f32.mrb[0].mxu0
  %v1025 = vadd.f32 %v200, %v1024
  %v1026 = vpop.f32.mrb[0].mxu0
  %1027 = vmatprep.mubr.bf16.mxu0 %v536
  %1028 = vmatmul.mubr.bf16.gmra.mrb[0].mxu0 %v535
  %v1029 = vpop.f32.mrb[0].mxu0
  %v1030 = vadd.f32 %v200, %v1029
  %v1031 = vpop.f32.mrb[0].mxu0
  %v1032 = vpop.f32.mrb[0].mxu0
  %v1033 = vadd.f32 %v200, %v1032
  %v1034 = vpop.f32.mrb[0].mxu0
  %1035 = vmatprep.mubr.bf16.mxu0 %v541
  %1036 = vmatmul.mubr.bf16.gmra.mrb[0].mxu0 %v540
  %v1037 = vpop.f32.mrb[0].mxu0
  %v1038 = vadd.f32 %v200, %v1037
  %v1039 = vpop.f32.mrb[0].mxu0
  %v1040 = vpop.f32.mrb[0].mxu0
  %v1041 = vadd.f32 %v200, %v1040
  %v1042 = vpop.f32.mrb[0].mxu0
  %1043 = vmatprep.mubr.bf16.mxu0 %v546
  %1044 = vmatmul.mubr.bf16.gmra.mrb[0].mxu0 %v545
  %v1045 = vpop.f32.mrb[0].mxu0
  %v1046 = vadd.f32 %v200, %v1045
  %v1047 = vpop.f32.mrb[0].mxu0
  %v1048 = vpop.f32.mrb[0].mxu0
  %v1049 = vadd.f32 %v200, %v1048
  %v1050 = vpop.f32.mrb[0].mxu0
  %1051 = vmatprep.mubr.bf16.mxu0 %v551
  %1052 = vmatmul.mubr.bf16.gmra.mrb[0].mxu0 %v550
  %v1053 = vpop.f32.mrb[0].mxu0
  %v1054 = vadd.f32 %v200, %v1053
  %v1055 = vpop.f32.mrb[0].mxu0
  %v1056 = vpop.f32.mrb[0].mxu0
  %v1057 = vadd.f32 %v200, %v1056
  %v1058 = vpop.f32.mrb[0].mxu0
  %1059 = vmatprep.mubr.bf16.mxu0 %v556
  %1060 = vmatmul.mubr.bf16.gmra.mrb[0].mxu0 %v555
  %v1061 = vpop.f32.mrb[0].mxu0
  %v1062 = vadd.f32 %v200, %v1061
  %v1063 = vpop.f32.mrb[0].mxu0
  %v1064 = vpop.f32.mrb[0].mxu0
  %v1065 = vadd.f32 %v200, %v1064
  %v1066 = vpop.f32.mrb[0].mxu0
  %1067 = vmatprep.mubr.bf16.mxu0 %v561
  %1068 = vmatmul.mubr.bf16.gmra.mrb[0].mxu0 %v560
  %v1069 = vpop.f32.mrb[0].mxu0
  %v1070 = vadd.f32 %v200, %v1069
  %v1071 = vpop.f32.mrb[0].mxu0
  %v1072 = vpop.f32.mrb[0].mxu0
  %v1073 = vadd.f32 %v200, %v1072
  %v1074 = vpop.f32.mrb[0].mxu0
  %1075 = vmatprep.mubr.bf16.mxu0 %v566
  %1076 = vmatmul.mubr.bf16.gmra.mrb[0].mxu0 %v565
  %v1077 = vpop.f32.mrb[0].mxu0
  %v1078 = vadd.f32 %v200, %v1077
  %v1079 = vpop.f32.mrb[0].mxu0
  %v1080 = vpop.f32.mrb[0].mxu0
  %v1081 = vadd.f32 %v200, %v1080
  %v1082 = vpop.f32.mrb[0].mxu0
  %1083 = vmatprep.mubr.bf16.mxu0 %v571
  %1084 = vmatmul.mubr.bf16.gmra.mrb[0].mxu0 %v570
  %v1085 = vpop.f32.mrb[0].mxu0
  %v1086 = vadd.f32 %v200, %v1085
  %v1087 = vpop.f32.mrb[0].mxu0
  %v1088 = vpop.f32.mrb[0].mxu0
  %v1089 = vadd.f32 %v200, %v1088
  %v1090 = vpop.f32.mrb[0].mxu0
  %1091 = vmatprep.mubr.bf16.mxu0 %v576
  %1092 = vmatmul.mubr.bf16.gmra.mrb[0].mxu0 %v575
  %v1093 = vpop.f32.mrb[0].mxu0
  %v1094 = vadd.f32 %v200, %v1093
  %v1095 = vpop.f32.mrb[0].mxu0
  %v1096 = vpop.f32.mrb[0].mxu0
  %v1097 = vadd.f32 %v200, %v1096
  %v1098 = vpop.f32.mrb[0].mxu0
  %1099 = vdwg.mxu0
  %1100 = vmatprep.subr.bf16.mxu0 0
  %1101 = vmatpush1.bf16.msra.mxu0 %v812
  %1102 = vmatprep.subr.bf16.mxu0 0
  %1103 = vmatpush1.bf16.msra.mxu0 %v813
  %1104 = vmatprep.subr.bf16.mxu0 0
  %1105 = vmatpush1.bf16.msra.mxu0 %v814
  %1106 = vmatprep.subr.bf16.mxu0 0
  %1107 = vmatpush1.bf16.msra.mxu0 %v815
  %1108 = vmatprep.subr.bf16.mxu0 0
  %1109 = vmatpush1.bf16.msra.mxu0 %v816
  %1110 = vmatprep.subr.bf16.mxu0 0
  %1111 = vmatpush1.bf16.msra.mxu0 %v817
  %1112 = vmatprep.subr.bf16.mxu0 0
  %1113 = vmatpush1.bf16.msra.mxu0 %v818
  %1114 = vmatprep.subr.bf16.mxu0 0
  %1115 = vmatpush1.bf16.msra.mxu0 %v819
  %1116 = vmatprep.subr.bf16.mxu0 0
  %1117 = vmatpush1.bf16.msra.mxu0 %v820
  %1118 = vmatprep.subr.bf16.mxu0 0
  %1119 = vmatpush1.bf16.msra.mxu0 %v821
  %1120 = vmatprep.subr.bf16.mxu0 0
  %1121 = vmatpush1.bf16.msra.mxu0 %v822
  %1122 = vmatprep.subr.bf16.mxu0 0
  %1123 = vmatpush1.bf16.msra.mxu0 %v823
  %1124 = vmatprep.subr.bf16.mxu0 0
  %1125 = vmatpush1.bf16.msra.mxu0 %v824
  %1126 = vmatprep.subr.bf16.mxu0 0
  %1127 = vmatpush1.bf16.msra.mxu0 %v825
  %1128 = vmatprep.subr.bf16.mxu0 0
  %1129 = vmatpush1.bf16.msra.mxu0 %v826
  %1130 = vmatprep.subr.bf16.mxu0 0
  %1131 = vmatpush1.bf16.msra.mxu0 %v827
  %1132 = vmatprep.mubr.bf16.mxu0 %v493
  %1133 = vmatmul.mubr.bf16.gmra.mrb[0].mxu0 %v492
  %v1134 = vpop.f32.mrb[0].mxu0
  %v1135 = vadd.f32 %v958, %v1134
  %v1136 = vpop.f32.mrb[0].mxu0
  %v1137 = vpop.f32.mrb[0].mxu0
  %v1138 = vadd.f32 %v961, %v1137
  %v1139 = vpop.f32.mrb[0].mxu0
  %1140 = vmatprep.mubr.bf16.mxu0 %v498
  %1141 = vmatmul.mubr.bf16.gmra.mrb[0].mxu0 %v497
  %v1142 = vpop.f32.mrb[0].mxu0
  %v1143 = vadd.f32 %v966, %v1142
  %v1144 = vpop.f32.mrb[0].mxu0
  %v1145 = vpop.f32.mrb[0].mxu0
  %v1146 = vadd.f32 %v969, %v1145
  %v1147 = vpop.f32.mrb[0].mxu0
  %1148 = vmatprep.mubr.bf16.mxu0 %v503
  %1149 = vmatmul.mubr.bf16.gmra.mrb[0].mxu0 %v502
  %v1150 = vpop.f32.mrb[0].mxu0
  %v1151 = vadd.f32 %v974, %v1150
  %v1152 = vpop.f32.mrb[0].mxu0
  %v1153 = vpop.f32.mrb[0].mxu0
  %v1154 = vadd.f32 %v977, %v1153
  %v1155 = vpop.f32.mrb[0].mxu0
  %1156 = vmatprep.mubr.bf16.mxu0 %v508
  %1157 = vmatmul.mubr.bf16.gmra.mrb[0].mxu0 %v507
  %v1158 = vpop.f32.mrb[0].mxu0
  %v1159 = vadd.f32 %v982, %v1158
  %v1160 = vpop.f32.mrb[0].mxu0
  %v1161 = vpop.f32.mrb[0].mxu0
  %v1162 = vadd.f32 %v985, %v1161
  %v1163 = vpop.f32.mrb[0].mxu0
  %1164 = vmatprep.mubr.bf16.mxu0 %v513
  %1165 = vmatmul.mubr.bf16.gmra.mrb[0].mxu0 %v512
  %v1166 = vpop.f32.mrb[0].mxu0
  %v1167 = vadd.f32 %v990, %v1166
  %v1168 = vpop.f32.mrb[0].mxu0
  %v1169 = vpop.f32.mrb[0].mxu0
  %v1170 = vadd.f32 %v993, %v1169
  %v1171 = vpop.f32.mrb[0].mxu0
  %1172 = vmatprep.mubr.bf16.mxu0 %v518
  %1173 = vmatmul.mubr.bf16.gmra.mrb[0].mxu0 %v517
  %v1174 = vpop.f32.mrb[0].mxu0
  %v1175 = vadd.f32 %v998, %v1174
  %v1176 = vpop.f32.mrb[0].mxu0
  %v1177 = vpop.f32.mrb[0].mxu0
  %v1178 = vadd.f32 %v1001, %v1177
  %v1179 = vpop.f32.mrb[0].mxu0
  %1180 = vmatprep.mubr.bf16.mxu0 %v523
  %1181 = vmatmul.mubr.bf16.gmra.mrb[0].mxu0 %v522
  %v1182 = vpop.f32.mrb[0].mxu0
  %v1183 = vadd.f32 %v1006, %v1182
  %v1184 = vpop.f32.mrb[0].mxu0
  %v1185 = vpop.f32.mrb[0].mxu0
  %v1186 = vadd.f32 %v1009, %v1185
  %v1187 = vpop.f32.mrb[0].mxu0
  %1188 = vmatprep.mubr.bf16.mxu0 %v528
  %1189 = vmatmul.mubr.bf16.gmra.mrb[0].mxu0 %v527
  %v1190 = vpop.f32.mrb[0].mxu0
  %v1191 = vadd.f32 %v1014, %v1190
  %v1192 = vpop.f32.mrb[0].mxu0
  %v1193 = vpop.f32.mrb[0].mxu0
  %v1194 = vadd.f32 %v1017, %v1193
  %v1195 = vpop.f32.mrb[0].mxu0
  %1196 = vmatprep.mubr.bf16.mxu0 %v533
  %1197 = vmatmul.mubr.bf16.gmra.mrb[0].mxu0 %v532
  %v1198 = vpop.f32.mrb[0].mxu0
  %v1199 = vadd.f32 %v1022, %v1198
  %v1200 = vpop.f32.mrb[0].mxu0
  %v1201 = vpop.f32.mrb[0].mxu0
  %v1202 = vadd.f32 %v1025, %v1201
  %v1203 = vpop.f32.mrb[0].mxu0
  %1204 = vmatprep.mubr.bf16.mxu0 %v538
  %1205 = vmatmul.mubr.bf16.gmra.mrb[0].mxu0 %v537
  %v1206 = vpop.f32.mrb[0].mxu0
  %v1207 = vadd.f32 %v1030, %v1206
  %v1208 = vpop.f32.mrb[0].mxu0
  %v1209 = vpop.f32.mrb[0].mxu0
  %v1210 = vadd.f32 %v1033, %v1209
  %v1211 = vpop.f32.mrb[0].mxu0
  %1212 = vmatprep.mubr.bf16.mxu0 %v543
  %1213 = vmatmul.mubr.bf16.gmra.mrb[0].mxu0 %v542
  %v1214 = vpop.f32.mrb[0].mxu0
  %v1215 = vadd.f32 %v1038, %v1214
  %v1216 = vpop.f32.mrb[0].mxu0
  %v1217 = vpop.f32.mrb[0].mxu0
  %v1218 = vadd.f32 %v1041, %v1217
  %v1219 = vpop.f32.mrb[0].mxu0
  %1220 = vmatprep.mubr.bf16.mxu0 %v548
  %1221 = vmatmul.mubr.bf16.gmra.mrb[0].mxu0 %v547
  %v1222 = vpop.f32.mrb[0].mxu0
  %v1223 = vadd.f32 %v1046, %v1222
  %v1224 = vpop.f32.mrb[0].mxu0
  %v1225 = vpop.f32.mrb[0].mxu0
  %v1226 = vadd.f32 %v1049, %v1225
  %v1227 = vpop.f32.mrb[0].mxu0
  %1228 = vmatprep.mubr.bf16.mxu0 %v553
  %1229 = vmatmul.mubr.bf16.gmra.mrb[0].mxu0 %v552
  %v1230 = vpop.f32.mrb[0].mxu0
  %v1231 = vadd.f32 %v1054, %v1230
  %v1232 = vpop.f32.mrb[0].mxu0
  %v1233 = vpop.f32.mrb[0].mxu0
  %v1234 = vadd.f32 %v1057, %v1233
  %v1235 = vpop.f32.mrb[0].mxu0
  %1236 = vmatprep.mubr.bf16.mxu0 %v558
  %1237 = vmatmul.mubr.bf16.gmra.mrb[0].mxu0 %v557
  %v1238 = vpop.f32.mrb[0].mxu0
  %v1239 = vadd.f32 %v1062, %v1238
  %v1240 = vpop.f32.mrb[0].mxu0
  %v1241 = vpop.f32.mrb[0].mxu0
  %v1242 = vadd.f32 %v1065, %v1241
  %v1243 = vpop.f32.mrb[0].mxu0
  %1244 = vmatprep.mubr.bf16.mxu0 %v563
  %1245 = vmatmul.mubr.bf16.gmra.mrb[0].mxu0 %v562
  %v1246 = vpop.f32.mrb[0].mxu0
  %v1247 = vadd.f32 %v1070, %v1246
  %v1248 = vpop.f32.mrb[0].mxu0
  %v1249 = vpop.f32.mrb[0].mxu0
  %v1250 = vadd.f32 %v1073, %v1249
  %v1251 = vpop.f32.mrb[0].mxu0
  %1252 = vmatprep.mubr.bf16.mxu0 %v568
  %1253 = vmatmul.mubr.bf16.gmra.mrb[0].mxu0 %v567
  %v1254 = vpop.f32.mrb[0].mxu0
  %v1255 = vadd.f32 %v1078, %v1254
  %v1256 = vpop.f32.mrb[0].mxu0
  %v1257 = vpop.f32.mrb[0].mxu0
  %v1258 = vadd.f32 %v1081, %v1257
  %v1259 = vpop.f32.mrb[0].mxu0
  %1260 = vmatprep.mubr.bf16.mxu0 %v573
  %1261 = vmatmul.mubr.bf16.gmra.mrb[0].mxu0 %v572
  %v1262 = vpop.f32.mrb[0].mxu0
  %v1263 = vadd.f32 %v1086, %v1262
  %v1264 = vpop.f32.mrb[0].mxu0
  %v1265 = vpop.f32.mrb[0].mxu0
  %v1266 = vadd.f32 %v1089, %v1265
  %v1267 = vpop.f32.mrb[0].mxu0
  %1268 = vmatprep.mubr.bf16.mxu0 %v578
  %1269 = vmatmul.mubr.bf16.gmra.mrb[0].mxu0 %v577
  %v1270 = vpop.f32.mrb[0].mxu0
  %v1271 = vadd.f32 %v1094, %v1270
  %v1272 = vpop.f32.mrb[0].mxu0
  %v1273 = vpop.f32.mrb[0].mxu0
  %v1274 = vadd.f32 %v1097, %v1273
  %v1275 = vpop.f32.mrb[0].mxu0
  %1276 = vdwg.mxu0
  %1277 = vmatprep.subr.bf16.mxu0 0
  %1278 = vmatpush1.bf16.msra.mxu0 %v828
  %1279 = vmatprep.subr.bf16.mxu0 0
  %1280 = vmatpush1.bf16.msra.mxu0 %v829
  %1281 = vmatprep.subr.bf16.mxu0 0
  %1282 = vmatpush1.bf16.msra.mxu0 %v830
  %1283 = vmatprep.subr.bf16.mxu0 0
  %1284 = vmatpush1.bf16.msra.mxu0 %v831
  %1285 = vmatprep.subr.bf16.mxu0 0
  %1286 = vmatpush1.bf16.msra.mxu0 0
  %1287 = vmatprep.subr.bf16.mxu0 0
  %1288 = vmatpush1.bf16.msra.mxu0 0
  %1289 = vmatprep.subr.bf16.mxu0 0
  %1290 = vmatpush1.bf16.msra.mxu0 0
  %1291 = vmatprep.subr.bf16.mxu0 0
  %1292 = vmatpush1.bf16.msra.mxu0 0
  %1293 = vmatprep.subr.bf16.mxu0 0
  %1294 = vmatpush1.bf16.msra.mxu0 0
  %1295 = vmatprep.subr.bf16.mxu0 0
  %1296 = vmatpush1.bf16.msra.mxu0 0
  %1297 = vmatprep.subr.bf16.mxu0 0
  %1298 = vmatpush1.bf16.msra.mxu0 0
  %1299 = vmatprep.subr.bf16.mxu0 0
  %1300 = vmatpush1.bf16.msra.mxu0 0
  %1301 = vmatprep.subr.bf16.mxu0 0
  %1302 = vmatpush1.bf16.msra.mxu0 0
  %1303 = vmatprep.subr.bf16.mxu0 0
  %1304 = vmatpush1.bf16.msra.mxu0 0
  %1305 = vmatprep.subr.bf16.mxu0 0
  %1306 = vmatpush1.bf16.msra.mxu0 0
  %1307 = vmatprep.subr.bf16.mxu0 0
  %1308 = vmatpush1.bf16.msra.mxu0 0
  %1309 = vmatprep.mubr.bf16.mxu0 0
  %1310 = vmatmul.mubr.bf16.gmra.mrb[0].mxu0 %v870
  %v1311 = vpop.f32.mrb[0].mxu0
  %v1312 = vadd.f32 %v1135, %v1311
  %v1313 = vpop.f32.mrb[0].mxu0
  %v1314 = vpop.f32.mrb[0].mxu0
  %v1315 = vadd.f32 %v1138, %v1314
  %v1316 = vpop.f32.mrb[0].mxu0
  %1317 = vmatprep.mubr.bf16.mxu0 0
  %1318 = vmatmul.mubr.bf16.gmra.mrb[0].mxu0 %v873
  %v1319 = vpop.f32.mrb[0].mxu0
  %v1320 = vadd.f32 %v1143, %v1319
  %v1321 = vpop.f32.mrb[0].mxu0
  %v1322 = vpop.f32.mrb[0].mxu0
  %v1323 = vadd.f32 %v1146, %v1322
  %v1324 = vpop.f32.mrb[0].mxu0
  %1325 = vmatprep.mubr.bf16.mxu0 0
  %1326 = vmatmul.mubr.bf16.gmra.mrb[0].mxu0 %v876
  %v1327 = vpop.f32.mrb[0].mxu0
  %v1328 = vadd.f32 %v1151, %v1327
  %v1329 = vpop.f32.mrb[0].mxu0
  %v1330 = vpop.f32.mrb[0].mxu0
  %v1331 = vadd.f32 %v1154, %v1330
  %v1332 = vpop.f32.mrb[0].mxu0
  %1333 = vmatprep.mubr.bf16.mxu0 0
  %1334 = vmatmul.mubr.bf16.gmra.mrb[0].mxu0 %v879
  %v1335 = vpop.f32.mrb[0].mxu0
  %v1336 = vadd.f32 %v1159, %v1335
  %v1337 = vpop.f32.mrb[0].mxu0
  %v1338 = vpop.f32.mrb[0].mxu0
  %v1339 = vadd.f32 %v1162, %v1338
  %v1340 = vpop.f32.mrb[0].mxu0
  %1341 = vmatprep.mubr.bf16.mxu0 0
  %1342 = vmatmul.mubr.bf16.gmra.mrb[0].mxu0 %v882
  %v1343 = vpop.f32.mrb[0].mxu0
  %v1344 = vadd.f32 %v1167, %v1343
  %v1345 = vpop.f32.mrb[0].mxu0
  %v1346 = vpop.f32.mrb[0].mxu0
  %v1347 = vadd.f32 %v1170, %v1346
  %v1348 = vpop.f32.mrb[0].mxu0
  %1349 = vmatprep.mubr.bf16.mxu0 0
  %1350 = vmatmul.mubr.bf16.gmra.mrb[0].mxu0 %v885
  %v1351 = vpop.f32.mrb[0].mxu0
  %v1352 = vadd.f32 %v1175, %v1351
  %v1353 = vpop.f32.mrb[0].mxu0
  %v1354 = vpop.f32.mrb[0].mxu0
  %v1355 = vadd.f32 %v1178, %v1354
  %v1356 = vpop.f32.mrb[0].mxu0
  %1357 = vmatprep.mubr.bf16.mxu0 0
  %1358 = vmatmul.mubr.bf16.gmra.mrb[0].mxu0 %v888
  %v1359 = vpop.f32.mrb[0].mxu0
  %v1360 = vadd.f32 %v1183, %v1359
  %v1361 = vpop.f32.mrb[0].mxu0
  %v1362 = vpop.f32.mrb[0].mxu0
  %v1363 = vadd.f32 %v1186, %v1362
  %v1364 = vpop.f32.mrb[0].mxu0
  %1365 = vmatprep.mubr.bf16.mxu0 0
  %1366 = vmatmul.mubr.bf16.gmra.mrb[0].mxu0 %v891
  %v1367 = vpop.f32.mrb[0].mxu0
  %v1368 = vadd.f32 %v1191, %v1367
  %v1369 = vpop.f32.mrb[0].mxu0
  %v1370 = vpop.f32.mrb[0].mxu0
  %v1371 = vadd.f32 %v1194, %v1370
  %v1372 = vpop.f32.mrb[0].mxu0
  %1373 = vmatprep.mubr.bf16.mxu0 0
  %1374 = vmatmul.mubr.bf16.gmra.mrb[0].mxu0 %v894
  %v1375 = vpop.f32.mrb[0].mxu0
  %v1376 = vadd.f32 %v1199, %v1375
  %v1377 = vpop.f32.mrb[0].mxu0
  %v1378 = vpop.f32.mrb[0].mxu0
  %v1379 = vadd.f32 %v1202, %v1378
  %v1380 = vpop.f32.mrb[0].mxu0
  %1381 = vmatprep.mubr.bf16.mxu0 0
  %1382 = vmatmul.mubr.bf16.gmra.mrb[0].mxu0 %v897
  %v1383 = vpop.f32.mrb[0].mxu0
  %v1384 = vadd.f32 %v1207, %v1383
  %v1385 = vpop.f32.mrb[0].mxu0
  %v1386 = vpop.f32.mrb[0].mxu0
  %v1387 = vadd.f32 %v1210, %v1386
  %v1388 = vpop.f32.mrb[0].mxu0
  %1389 = vmatprep.mubr.bf16.mxu0 0
  %1390 = vmatmul.mubr.bf16.gmra.mrb[0].mxu0 %v900
  %v1391 = vpop.f32.mrb[0].mxu0
  %v1392 = vadd.f32 %v1215, %v1391
  %v1393 = vpop.f32.mrb[0].mxu0
  %v1394 = vpop.f32.mrb[0].mxu0
  %v1395 = vadd.f32 %v1218, %v1394
  %v1396 = vpop.f32.mrb[0].mxu0
  %1397 = vmatprep.mubr.bf16.mxu0 0
  %1398 = vmatmul.mubr.bf16.gmra.mrb[0].mxu0 %v903
  %v1399 = vpop.f32.mrb[0].mxu0
  %v1400 = vadd.f32 %v1223, %v1399
  %v1401 = vpop.f32.mrb[0].mxu0
  %v1402 = vpop.f32.mrb[0].mxu0
  %v1403 = vadd.f32 %v1226, %v1402
  %v1404 = vpop.f32.mrb[0].mxu0
  %1405 = vmatprep.mubr.bf16.mxu0 0
  %1406 = vmatmul.mubr.bf16.gmra.mrb[0].mxu0 %v906
  %v1407 = vpop.f32.mrb[0].mxu0
  %v1408 = vadd.f32 %v1231, %v1407
  %v1409 = vpop.f32.mrb[0].mxu0
  %v1410 = vpop.f32.mrb[0].mxu0
  %v1411 = vadd.f32 %v1234, %v1410
  %v1412 = vpop.f32.mrb[0].mxu0
  %1413 = vmatprep.mubr.bf16.mxu0 0
  %1414 = vmatmul.mubr.bf16.gmra.mrb[0].mxu0 %v909
  %v1415 = vpop.f32.mrb[0].mxu0
  %v1416 = vadd.f32 %v1239, %v1415
  %v1417 = vpop.f32.mrb[0].mxu0
  %v1418 = vpop.f32.mrb[0].mxu0
  %v1419 = vadd.f32 %v1242, %v1418
  %v1420 = vpop.f32.mrb[0].mxu0
  %1421 = vmatprep.mubr.bf16.mxu0 0
  %1422 = vmatmul.mubr.bf16.gmra.mrb[0].mxu0 %v912
  %v1423 = vpop.f32.mrb[0].mxu0
  %v1424 = vadd.f32 %v1247, %v1423
  %v1425 = vpop.f32.mrb[0].mxu0
  %v1426 = vpop.f32.mrb[0].mxu0
  %v1427 = vadd.f32 %v1250, %v1426
  %v1428 = vpop.f32.mrb[0].mxu0
  %1429 = vmatprep.mubr.bf16.mxu0 0
  %1430 = vmatmul.mubr.bf16.gmra.mrb[0].mxu0 %v915
  %v1431 = vpop.f32.mrb[0].mxu0
  %v1432 = vadd.f32 %v1255, %v1431
  %v1433 = vpop.f32.mrb[0].mxu0
  %v1434 = vpop.f32.mrb[0].mxu0
  %v1435 = vadd.f32 %v1258, %v1434
  %v1436 = vpop.f32.mrb[0].mxu0
  %1437 = vmatprep.mubr.bf16.mxu0 0
  %1438 = vmatmul.mubr.bf16.gmra.mrb[0].mxu0 %v918
  %v1439 = vpop.f32.mrb[0].mxu0
  %v1440 = vadd.f32 %v1263, %v1439
  %v1441 = vpop.f32.mrb[0].mxu0
  %v1442 = vpop.f32.mrb[0].mxu0
  %v1443 = vadd.f32 %v1266, %v1442
  %v1444 = vpop.f32.mrb[0].mxu0
  %1445 = vmatprep.mubr.bf16.mxu0 0
  %1446 = vmatmul.mubr.bf16.gmra.mrb[0].mxu0 %v921
  %v1447 = vpop.f32.mrb[0].mxu0
  %v1448 = vadd.f32 %v1271, %v1447
  %v1449 = vpop.f32.mrb[0].mxu0
  %v1450 = vpop.f32.mrb[0].mxu0
  %v1451 = vadd.f32 %v1274, %v1450
  %v1452 = vpop.f32.mrb[0].mxu0
  %1453 = vdwg.mxu0
  %v1454 = vmax.f32 %v1312, 0.0
  %v1455 = vmax.f32 %v1315, 0.0
  %v1456 = vmax.f32 %v1320, 0.0
  %v1457 = vmax.f32 %v1323, 0.0
  %v1458 = vmax.f32 %v1328, 0.0
  %v1459 = vmax.f32 %v1331, 0.0
  %v1460 = vmax.f32 %v1336, 0.0
  %v1461 = vmax.f32 %v1339, 0.0
  %v1462 = vmax.f32 %v1344, 0.0
  %v1463 = vmax.f32 %v1347, 0.0
  %v1464 = vmax.f32 %v1352, 0.0
  %v1465 = vmax.f32 %v1355, 0.0
  %v1466 = vmax.f32 %v1360, 0.0
  %v1467 = vmax.f32 %v1363, 0.0
  %v1468 = vmax.f32 %v1368, 0.0
  %v1469 = vmax.f32 %v1371, 0.0
  %v1470 = vmax.f32 %v1376, 0.0
  %v1471 = vmax.f32 %v1379, 0.0
  %v1472 = vmax.f32 %v1384, 0.0
  %v1473 = vmax.f32 %v1387, 0.0
  %v1474 = vmax.f32 %v1392, 0.0
  %v1475 = vmax.f32 %v1395, 0.0
  %v1476 = vmax.f32 %v1400, 0.0
  %v1477 = vmax.f32 %v1403, 0.0
  %v1478 = vmax.f32 %v1408, 0.0
  %v1479 = vmax.f32 %v1411, 0.0
  %v1480 = vmax.f32 %v1416, 0.0
  %v1481 = vmax.f32 %v1419, 0.0
  %v1482 = vmax.f32 %v1424, 0.0
  %v1483 = vmax.f32 %v1427, 0.0
  %v1484 = vmax.f32 %v1432, 0.0
  %v1485 = vmax.f32 %v1435, 0.0
  %v1486 = vmax.f32 %v1440, 0.0
  %v1487 = vmax.f32 %v1443, 0.0
  %v1488 = vmax.f32 %v1448, 0.0
  %v1489 = vmax.f32 %v1451, 0.0
  %1490 = vst.msk [vmem:[%s3] sm:$0xff] %vm868, %v1454
  %1491 = vst.msk [vmem:[%s3 + $0x8] sm:$0xff] %vm868, %v1455
  %1492 = vst.msk [vmem:[%s3 + $0x10] sm:$0xff] %vm868, %v1456
  %1493 = vst.msk [vmem:[%s3 + $0x18] sm:$0xff] %vm868, %v1457
  %1494 = vst.msk [vmem:[%s3 + $0x20] sm:$0xff] %vm868, %v1458
  %1495 = vst.msk [vmem:[%s3 + $0x28] sm:$0xff] %vm868, %v1459
  %1496 = vst.msk [vmem:[%s3 + $0x30] sm:$0xff] %vm868, %v1460
  %1497 = vst.msk [vmem:[%s3 + $0x38] sm:$0xff] %vm868, %v1461
  %1498 = vst.msk [vmem:[%s3 + $0x40] sm:$0xff] %vm868, %v1462
  %1499 = vst.msk [vmem:[%s3 + $0x48] sm:$0xff] %vm868, %v1463
  %1500 = vst.msk [vmem:[%s3 + $0x50] sm:$0xff] %vm868, %v1464
  %1501 = vst.msk [vmem:[%s3 + $0x58] sm:$0xff] %vm868, %v1465
  %1502 = vst.msk [vmem:[%s3 + $0x60] sm:$0xff] %vm868, %v1466
  %1503 = vst.msk [vmem:[%s3 + $0x68] sm:$0xff] %vm868, %v1467
  %1504 = vst.msk [vmem:[%s3 + $0x70] sm:$0xff] %vm868, %v1468
  %1505 = vst.msk [vmem:[%s3 + $0x78] sm:$0xff] %vm868, %v1469
  %1506 = vst.msk [vmem:[%s3 + $0x80] sm:$0xff] %vm868, %v1470
  %1507 = vst.msk [vmem:[%s3 + $0x88] sm:$0xff] %vm868, %v1471
  %1508 = vst.msk [vmem:[%s3 + $0x90] sm:$0xff] %vm868, %v1472
  %1509 = vst.msk [vmem:[%s3 + $0x98] sm:$0xff] %vm868, %v1473
  %1510 = vst.msk [vmem:[%s3 + $0xa0] sm:$0xff] %vm868, %v1474
  %1511 = vst.msk [vmem:[%s3 + $0xa8] sm:$0xff] %vm868, %v1475
  %1512 = vst.msk [vmem:[%s3 + $0xb0] sm:$0xff] %vm868, %v1476
  %1513 = vst.msk [vmem:[%s3 + $0xb8] sm:$0xff] %vm868, %v1477
  %1514 = vst.msk [vmem:[%s3 + $0xc0] sm:$0xff] %vm868, %v1478
  %1515 = vst.msk [vmem:[%s3 + $0xc8] sm:$0xff] %vm868, %v1479
  %1516 = vst.msk [vmem:[%s3 + $0xd0] sm:$0xff] %vm868, %v1480
  %1517 = vst.msk [vmem:[%s3 + $0xd8] sm:$0xff] %vm868, %v1481
  %1518 = vst.msk [vmem:[%s3 + $0xe0] sm:$0xff] %vm868, %v1482
  %1519 = vst.msk [vmem:[%s3 + $0xe8] sm:$0xff] %vm868, %v1483
  %1520 = vst.msk [vmem:[%s3 + $0xf0] sm:$0xff] %vm868, %v1484
  %1521 = vst.msk [vmem:[%s3 + $0xf8] sm:$0xff] %vm868, %v1485
  %1522 = vst.msk [vmem:[%s3 + $0x100] sm:$0xff] %vm868, %v1486
  %1523 = vst.msk [vmem:[%s3 + $0x108] sm:$0xff] %vm868, %v1487
  %1524 = vst.msk [vmem:[%s3 + $0x110] sm:$0xff] %vm868, %v1488
  %1525 = vst.msk [vmem:[%s3 + $0x118] sm:$0xff] %vm868, %v1489
  // Predicated region
  $region14: #{network_forward.9} parent=0 // pred_check
    _
  $region15: #{network_forward.9} parent=0 // pred_check_branch
    %1527 = sbr.rel (0) target = $region17
  $region16: #{network_forward.9} parent=0 // pred_region
    _
  $region17: #{network_forward.9} parent=0 // pred_fallthru
    _
  // Predicated region
  $region18: #{network_forward.9} parent=0 // pred_check
    _
  $region19: #{network_forward.9} parent=0 // pred_check_branch
    %1529 = sbr.rel (0) target = $region21
  $region20: #{network_forward.9} parent=0 // pred_region
    _
  $region21: #{network_forward.9} parent=0 // pred_fallthru
    _

// kernel: network_forward.10
$region0: #{network_forward.10}
  #allocation0 [shape = 'u32[]', space=smem, size = 0x4, offset = 0x4, fixed_abs, tag = 'smem constant byte address 0x4 - core index']
  #allocation1 [shape = 'u32[144,128]{1,0:T(1,128)}', space=vmem, size = 0x12000, scoped, tag = 'internal scratch']
  %s0 = inlined_call_operand.vmem [shape: bf16[200,576], index: 0, kind: input, shape index: {}]
  %s1 = inlined_call_operand.vmem [shape: bf16[576,128], index: 1, kind: input, shape index: {}]
  %s2 = inlined_call_operand.vmem [shape: f32[1,128], index: 2, kind: input, shape index: {}]
  %s3 = inlined_call_operand.vmem [shape: f32[200,128], index: 3, kind: output, shape index: {}]
  %s4 = sld [smem:[#allocation0]]
  $region22: #{network_forward.10} parent=0
    _
  %s6 = ssub.s32 1, %s4
  %s7 = scalar_select 0, %s6, %s4
  // Predicated region
  $region2: #{network_forward.10} parent=0 // pred_check
    _
  $region3: #{network_forward.10} parent=0 // pred_check_branch
    %9 = sbr.rel (0) target = $region5
  $region4: #{network_forward.10} parent=0 // pred_region
    _
  $region5: #{network_forward.10} parent=0 // pred_fallthru
    _
  // Predicated region
  $region6: #{network_forward.10} parent=0 // pred_check
    _
  $region7: #{network_forward.10} parent=0 // pred_check_branch
    %11 = sbr.rel (0) target = $region9
  $region8: #{network_forward.10} parent=0 // pred_region
    _
  $region9: #{network_forward.10} parent=0 // pred_fallthru
    _
  // Predicated region
  $region10: #{network_forward.10} parent=0 // pred_check
    _
  $region11: #{network_forward.10} parent=0 // pred_check_branch
    %13 = sbr.rel (0) target = $region13
  $region12: #{network_forward.10} parent=0 // pred_region
    _
  $region13: #{network_forward.10} parent=0 // pred_fallthru
    _
  %v15 = vld [vmem:[%s0] sm:$0xff]
  %v16 = vld [vmem:[%s0 + $0x8] sm:$0xff]
  %v17 = vld [vmem:[%s0 + $0x10] sm:$0xf]
  %v18 = vld [vmem:[%s0 + $0x14] sm:$0xff]
  %v19 = vld [vmem:[%s0 + $0x1c] sm:$0xff]
  %v20 = vld [vmem:[%s0 + $0x24] sm:$0xf]
  %v21 = vld [vmem:[%s0 + $0x28] sm:$0xff]
  %v22 = vld [vmem:[%s0 + $0x30] sm:$0xff]
  %v23 = vld [vmem:[%s0 + $0x38] sm:$0xf]
  %v24 = vld [vmem:[%s0 + $0x3c] sm:$0xff]
  %v25 = vld [vmem:[%s0 + $0x44] sm:$0xff]
  %v26 = vld [vmem:[%s0 + $0x4c] sm:$0xf]
  %v27 = vld [vmem:[%s0 + $0x50] sm:$0xff]
  %v28 = vld [vmem:[%s0 + $0x58] sm:$0xff]
  %v29 = vld [vmem:[%s0 + $0x60] sm:$0xf]
  %v30 = vld [vmem:[%s0 + $0x64] sm:$0xff]
  %v31 = vld [vmem:[%s0 + $0x6c] sm:$0xff]
  %v32 = vld [vmem:[%s0 + $0x74] sm:$0xf]
  %v33 = vld [vmem:[%s0 + $0x78] sm:$0xff]
  %v34 = vld [vmem:[%s0 + $0x80] sm:$0xff]
  %v35 = vld [vmem:[%s0 + $0x88] sm:$0xf]
  %v36 = vld [vmem:[%s0 + $0x8c] sm:$0xff]
  %v37 = vld [vmem:[%s0 + $0x94] sm:$0xff]
  %v38 = vld [vmem:[%s0 + $0x9c] sm:$0xf]
  %v39 = vld [vmem:[%s0 + $0xa0] sm:$0xff]
  %v40 = vld [vmem:[%s0 + $0xa8] sm:$0xff]
  %v41 = vld [vmem:[%s0 + $0xb0] sm:$0xf]
  %v42 = vld [vmem:[%s0 + $0xb4] sm:$0xff]
  %v43 = vld [vmem:[%s0 + $0xbc] sm:$0xff]
  %v44 = vld [vmem:[%s0 + $0xc4] sm:$0xf]
  %v45 = vld [vmem:[%s0 + $0xc8] sm:$0xff]
  %v46 = vld [vmem:[%s0 + $0xd0] sm:$0xff]
  %v47 = vld [vmem:[%s0 + $0xd8] sm:$0xf]
  %v48 = vld [vmem:[%s0 + $0xdc] sm:$0xff]
  %v49 = vld [vmem:[%s0 + $0xe4] sm:$0xff]
  %v50 = vld [vmem:[%s0 + $0xec] sm:$0xf]
  %v51 = vld [vmem:[%s0 + $0xf0] sm:$0xff]
  %v52 = vld [vmem:[%s0 + $0xf8] sm:$0xff]
  %v53 = vld [vmem:[%s0 + $0x100] sm:$0xf]
  %v54 = vld [vmem:[%s0 + $0x104] sm:$0xff]
  %v55 = vld [vmem:[%s0 + $0x10c] sm:$0xff]
  %v56 = vld [vmem:[%s0 + $0x114] sm:$0xf]
  %v57 = vld [vmem:[%s0 + $0x118] sm:$0xff]
  %v58 = vld [vmem:[%s0 + $0x120] sm:$0xff]
  %v59 = vld [vmem:[%s0 + $0x128] sm:$0xf]
  %v60 = vld [vmem:[%s0 + $0x12c] sm:$0xff]
  %v61 = vld [vmem:[%s0 + $0x134] sm:$0xff]
  %v62 = vld [vmem:[%s0 + $0x13c] sm:$0xf]
  %v63 = vld [vmem:[%s0 + $0x140] sm:$0xff]
  %v64 = vld [vmem:[%s0 + $0x148] sm:$0xff]
  %v65 = vld [vmem:[%s0 + $0x150] sm:$0xf]
  %v66 = vld [vmem:[%s0 + $0x154] sm:$0xff]
  %v67 = vld [vmem:[%s0 + $0x15c] sm:$0xff]
  %v68 = vld [vmem:[%s0 + $0x164] sm:$0xf]
  %v69 = vld [vmem:[%s0 + $0x168] sm:$0xff]
  %v70 = vld [vmem:[%s0 + $0x170] sm:$0xff]
  %v71 = vld [vmem:[%s0 + $0x178] sm:$0xf]
  %v72 = vld [vmem:[%s0 + $0x17c] sm:$0xff]
  %v73 = vld [vmem:[%s0 + $0x184] sm:$0xff]
  %v74 = vld [vmem:[%s0 + $0x18c] sm:$0xf]
  %v75 = vld [vmem:[%s0 + $0x190] sm:$0xff]
  %v76 = vld [vmem:[%s0 + $0x198] sm:$0xff]
  %v77 = vld [vmem:[%s0 + $0x1a0] sm:$0xf]
  %v78 = vld [vmem:[%s0 + $0x1a4] sm:$0xff]
  %v79 = vld [vmem:[%s0 + $0x1ac] sm:$0xff]
  %v80 = vld [vmem:[%s0 + $0x1b4] sm:$0xf]
  %v81 = vld [vmem:[%s0 + $0x1b8] sm:$0xff]
  %v82 = vld [vmem:[%s0 + $0x1c0] sm:$0xff]
  %v83 = vld [vmem:[%s0 + $0x1c8] sm:$0xf]
  %v84 = vld [vmem:[%s0 + $0x1cc] sm:$0xff]
  %v85 = vld [vmem:[%s0 + $0x1d4] sm:$0xff]
  %v86 = vld [vmem:[%s0 + $0x1dc] sm:$0xf]
  %v87 = vld [vmem:[%s0 + $0x1e0] sm:$0xff]
  %v88 = vld [vmem:[%s0 + $0x1e8] sm:$0xff]
  %v89 = vld [vmem:[%s0 + $0x1f0] sm:$0xf]
  %v90 = vld [vmem:[%s1] sm:$0xf]
  %v91 = vld [vmem:[%s1 + $0x4] sm:$0xf]
  %v92 = vld [vmem:[%s1 + $0x8] sm:$0xf]
  %v93 = vld [vmem:[%s1 + $0xc] sm:$0xf]
  %v94 = vld [vmem:[%s1 + $0x10] sm:$0xf]
  %v95 = vld [vmem:[%s1 + $0x14] sm:$0xf]
  %v96 = vld [vmem:[%s1 + $0x18] sm:$0xf]
  %v97 = vld [vmem:[%s1 + $0x1c] sm:$0xf]
  %v98 = vld [vmem:[%s1 + $0x20] sm:$0xf]
  %v99 = vld [vmem:[%s1 + $0x24] sm:$0xf]
  %v100 = vld [vmem:[%s1 + $0x28] sm:$0xf]
  %v101 = vld [vmem:[%s1 + $0x2c] sm:$0xf]
  %v102 = vld [vmem:[%s1 + $0x30] sm:$0xf]
  %v103 = vld [vmem:[%s1 + $0x34] sm:$0xf]
  %v104 = vld [vmem:[%s1 + $0x38] sm:$0xf]
  %v105 = vld [vmem:[%s1 + $0x3c] sm:$0xf]
  %v106 = vld [vmem:[%s1 + $0x40] sm:$0xf]
  %v107 = vld [vmem:[%s1 + $0x44] sm:$0xf]
  %v108 = vld [vmem:[%s1 + $0x48] sm:$0xf]
  %v109 = vld [vmem:[%s1 + $0x4c] sm:$0xf]
  %v110 = vld [vmem:[%s1 + $0x50] sm:$0xf]
  %v111 = vld [vmem:[%s1 + $0x54] sm:$0xf]
  %v112 = vld [vmem:[%s1 + $0x58] sm:$0xf]
  %v113 = vld [vmem:[%s1 + $0x5c] sm:$0xf]
  %v114 = vld [vmem:[%s1 + $0x60] sm:$0xf]
  %v115 = vld [vmem:[%s1 + $0x64] sm:$0xf]
  %v116 = vld [vmem:[%s1 + $0x68] sm:$0xf]
  %v117 = vld [vmem:[%s1 + $0x6c] sm:$0xf]
  %v118 = vld [vmem:[%s1 + $0x70] sm:$0xf]
  %v119 = vld [vmem:[%s1 + $0x74] sm:$0xf]
  %v120 = vld [vmem:[%s1 + $0x78] sm:$0xf]
  %v121 = vld [vmem:[%s1 + $0x7c] sm:$0xf]
  %v122 = vld [vmem:[%s1 + $0x80] sm:$0xf]
  %v123 = vld [vmem:[%s1 + $0x84] sm:$0xf]
  %v124 = vld [vmem:[%s1 + $0x88] sm:$0xf]
  %v125 = vld [vmem:[%s1 + $0x8c] sm:$0xf]
  %v126 = vld [vmem:[%s1 + $0x90] sm:$0xf]
  %v127 = vld [vmem:[%s1 + $0x94] sm:$0xf]
  %v128 = vld [vmem:[%s1 + $0x98] sm:$0xf]
  %v129 = vld [vmem:[%s1 + $0x9c] sm:$0xf]
  %v130 = vld [vmem:[%s1 + $0xa0] sm:$0xf]
  %v131 = vld [vmem:[%s1 + $0xa4] sm:$0xf]
  %v132 = vld [vmem:[%s1 + $0xa8] sm:$0xf]
  %v133 = vld [vmem:[%s1 + $0xac] sm:$0xf]
  %v134 = vld [vmem:[%s1 + $0xb0] sm:$0xf]
  %v135 = vld [vmem:[%s1 + $0xb4] sm:$0xf]
  %v136 = vld [vmem:[%s1 + $0xb8] sm:$0xf]
  %v137 = vld [vmem:[%s1 + $0xbc] sm:$0xf]
  %v138 = vld [vmem:[%s1 + $0xc0] sm:$0xf]
  %v139 = vld [vmem:[%s1 + $0xc4] sm:$0xf]
  %v140 = vld [vmem:[%s1 + $0xc8] sm:$0xf]
  %v141 = vld [vmem:[%s1 + $0xcc] sm:$0xf]
  %v142 = vld [vmem:[%s1 + $0xd0] sm:$0xf]
  %v143 = vld [vmem:[%s1 + $0xd4] sm:$0xf]
  %v144 = vld [vmem:[%s1 + $0xd8] sm:$0xf]
  %v145 = vld [vmem:[%s1 + $0xdc] sm:$0xf]
  %v146 = vld [vmem:[%s1 + $0xe0] sm:$0xf]
  %v147 = vld [vmem:[%s1 + $0xe4] sm:$0xf]
  %v148 = vld [vmem:[%s1 + $0xe8] sm:$0xf]
  %v149 = vld [vmem:[%s1 + $0xec] sm:$0xf]
  %v150 = vld [vmem:[%s1 + $0xf0] sm:$0xf]
  %v151 = vld [vmem:[%s1 + $0xf4] sm:$0xf]
  %v152 = vld [vmem:[%s1 + $0xf8] sm:$0xf]
  %v153 = vld [vmem:[%s1 + $0xfc] sm:$0xf]
  %v154 = vld [vmem:[%s1 + $0x100] sm:$0xf]
  %v155 = vld [vmem:[%s1 + $0x104] sm:$0xf]
  %v156 = vld [vmem:[%s1 + $0x108] sm:$0xf]
  %v157 = vld [vmem:[%s1 + $0x10c] sm:$0xf]
  %v158 = vld [vmem:[%s1 + $0x110] sm:$0xf]
  %v159 = vld [vmem:[%s1 + $0x114] sm:$0xf]
  %v160 = vld [vmem:[%s1 + $0x118] sm:$0xf]
  %v161 = vld [vmem:[%s1 + $0x11c] sm:$0xf]
  %v162 = vld [vmem:[%s2] sm:$0x1]
  %v164 = vlaneseq
  %v165 = vshrl.u32 %v164, 7
  %v166 = vsub.s32 0, %v165
  %v167 = vrot.slane %v162, %v166
  %v244 = vunpack.c.l.b16 %v15
  %v245 = vunpack.c.h.b16 %v15
  %v246 = vunpack.c.l.b16 %v16
  %v247 = vunpack.c.h.b16 %v16
  %v248 = vunpack.c.l.b16 %v17
  %v249 = vunpack.c.l.b16 %v18
  %v250 = vunpack.c.h.b16 %v18
  %v251 = vunpack.c.l.b16 %v19
  %v252 = vunpack.c.h.b16 %v19
  %v253 = vunpack.c.l.b16 %v20
  %v254 = vunpack.c.l.b16 %v21
  %v255 = vunpack.c.h.b16 %v21
  %v256 = vunpack.c.l.b16 %v22
  %v257 = vunpack.c.h.b16 %v22
  %v258 = vunpack.c.l.b16 %v23
  %v259 = vunpack.c.l.b16 %v24
  %v260 = vunpack.c.h.b16 %v24
  %v261 = vunpack.c.l.b16 %v25
  %v262 = vunpack.c.h.b16 %v25
  %v263 = vunpack.c.l.b16 %v26
  %v264 = vunpack.c.l.b16 %v27
  %v265 = vunpack.c.h.b16 %v27
  %v266 = vunpack.c.l.b16 %v28
  %v267 = vunpack.c.h.b16 %v28
  %v268 = vunpack.c.l.b16 %v29
  %v269 = vunpack.c.l.b16 %v30
  %v270 = vunpack.c.h.b16 %v30
  %v271 = vunpack.c.l.b16 %v31
  %v272 = vunpack.c.h.b16 %v31
  %v273 = vunpack.c.l.b16 %v32
  %v274 = vunpack.c.l.b16 %v33
  %v275 = vunpack.c.h.b16 %v33
  %v276 = vunpack.c.l.b16 %v34
  %v277 = vunpack.c.h.b16 %v34
  %v278 = vunpack.c.l.b16 %v35
  %v279 = vunpack.c.l.b16 %v36
  %v280 = vunpack.c.h.b16 %v36
  %v281 = vunpack.c.l.b16 %v37
  %v282 = vunpack.c.h.b16 %v37
  %v283 = vunpack.c.l.b16 %v38
  %v284 = vunpack.c.l.b16 %v39
  %v285 = vunpack.c.h.b16 %v39
  %v286 = vunpack.c.l.b16 %v40
  %v287 = vunpack.c.h.b16 %v40
  %v288 = vunpack.c.l.b16 %v41
  %v289 = vunpack.c.l.b16 %v42
  %v290 = vunpack.c.h.b16 %v42
  %v291 = vunpack.c.l.b16 %v43
  %v292 = vunpack.c.h.b16 %v43
  %v293 = vunpack.c.l.b16 %v44
  %v294 = vunpack.c.l.b16 %v45
  %v295 = vunpack.c.h.b16 %v45
  %v296 = vunpack.c.l.b16 %v46
  %v297 = vunpack.c.h.b16 %v46
  %v298 = vunpack.c.l.b16 %v47
  %v299 = vunpack.c.l.b16 %v48
  %v300 = vunpack.c.h.b16 %v48
  %v301 = vunpack.c.l.b16 %v49
  %v302 = vunpack.c.h.b16 %v49
  %v303 = vunpack.c.l.b16 %v50
  %v304 = vunpack.c.l.b16 %v51
  %v305 = vunpack.c.h.b16 %v51
  %v306 = vunpack.c.l.b16 %v52
  %v307 = vunpack.c.h.b16 %v52
  %v308 = vunpack.c.l.b16 %v53
  %v309 = vunpack.c.l.b16 %v54
  %v310 = vunpack.c.h.b16 %v54
  %v311 = vunpack.c.l.b16 %v55
  %v312 = vunpack.c.h.b16 %v55
  %v313 = vunpack.c.l.b16 %v56
  %v314 = vunpack.c.l.b16 %v57
  %v315 = vunpack.c.h.b16 %v57
  %v316 = vunpack.c.l.b16 %v58
  %v317 = vunpack.c.h.b16 %v58
  %v318 = vunpack.c.l.b16 %v59
  %v319 = vunpack.c.l.b16 %v60
  %v320 = vunpack.c.h.b16 %v60
  %v321 = vunpack.c.l.b16 %v61
  %v322 = vunpack.c.h.b16 %v61
  %v323 = vunpack.c.l.b16 %v62
  %v324 = vunpack.c.l.b16 %v63
  %v325 = vunpack.c.h.b16 %v63
  %v326 = vunpack.c.l.b16 %v64
  %v327 = vunpack.c.h.b16 %v64
  %v328 = vunpack.c.l.b16 %v65
  %v329 = vunpack.c.l.b16 %v66
  %v330 = vunpack.c.h.b16 %v66
  %v331 = vunpack.c.l.b16 %v67
  %v332 = vunpack.c.h.b16 %v67
  %v333 = vunpack.c.l.b16 %v68
  %v334 = vunpack.c.l.b16 %v69
  %v335 = vunpack.c.h.b16 %v69
  %v336 = vunpack.c.l.b16 %v70
  %v337 = vunpack.c.h.b16 %v70
  %v338 = vunpack.c.l.b16 %v71
  %v339 = vunpack.c.l.b16 %v72
  %v340 = vunpack.c.h.b16 %v72
  %v341 = vunpack.c.l.b16 %v73
  %v342 = vunpack.c.h.b16 %v73
  %v343 = vunpack.c.l.b16 %v74
  %v344 = vunpack.c.l.b16 %v75
  %v345 = vunpack.c.h.b16 %v75
  %v346 = vunpack.c.l.b16 %v76
  %v347 = vunpack.c.h.b16 %v76
  %v348 = vunpack.c.l.b16 %v77
  %v349 = vunpack.c.l.b16 %v78
  %v350 = vunpack.c.h.b16 %v78
  %v351 = vunpack.c.l.b16 %v79
  %v352 = vunpack.c.h.b16 %v79
  %v353 = vunpack.c.l.b16 %v80
  %v354 = vunpack.c.l.b16 %v81
  %v355 = vunpack.c.h.b16 %v81
  %v356 = vunpack.c.l.b16 %v82
  %v357 = vunpack.c.h.b16 %v82
  %v358 = vunpack.c.l.b16 %v83
  %v359 = vunpack.c.l.b16 %v84
  %v360 = vunpack.c.h.b16 %v84
  %v361 = vunpack.c.l.b16 %v85
  %v362 = vunpack.c.h.b16 %v85
  %v363 = vunpack.c.l.b16 %v86
  %v364 = vunpack.c.l.b16 %v87
  %v365 = vunpack.c.h.b16 %v87
  %v366 = vunpack.c.l.b16 %v88
  %v367 = vunpack.c.h.b16 %v88
  %v368 = vunpack.c.l.b16 %v89
  %v369 = vpack.c.b16 %v249, %v244
  %v370 = vpack.c.b16 %v250, %v245
  %v371 = vpack.c.b16 %v251, %v246
  %v372 = vpack.c.b16 %v252, %v247
  %v373 = vpack.c.b16 %v253, %v248
  %v374 = vpack.c.b16 %v259, %v254
  %v375 = vpack.c.b16 %v260, %v255
  %v376 = vpack.c.b16 %v261, %v256
  %v377 = vpack.c.b16 %v262, %v257
  %v378 = vpack.c.b16 %v263, %v258
  %v379 = vpack.c.b16 %v269, %v264
  %v380 = vpack.c.b16 %v270, %v265
  %v381 = vpack.c.b16 %v271, %v266
  %v382 = vpack.c.b16 %v272, %v267
  %v383 = vpack.c.b16 %v273, %v268
  %v384 = vpack.c.b16 %v279, %v274
  %v385 = vpack.c.b16 %v280, %v275
  %v386 = vpack.c.b16 %v281, %v276
  %v387 = vpack.c.b16 %v282, %v277
  %v388 = vpack.c.b16 %v283, %v278
  %v389 = vpack.c.b16 %v289, %v284
  %v390 = vpack.c.b16 %v290, %v285
  %v391 = vpack.c.b16 %v291, %v286
  %v392 = vpack.c.b16 %v292, %v287
  %v393 = vpack.c.b16 %v293, %v288
  %v394 = vpack.c.b16 %v299, %v294
  %v395 = vpack.c.b16 %v300, %v295
  %v396 = vpack.c.b16 %v301, %v296
  %v397 = vpack.c.b16 %v302, %v297
  %v398 = vpack.c.b16 %v303, %v298
  %v399 = vpack.c.b16 %v309, %v304
  %v400 = vpack.c.b16 %v310, %v305
  %v401 = vpack.c.b16 %v311, %v306
  %v402 = vpack.c.b16 %v312, %v307
  %v403 = vpack.c.b16 %v313, %v308
  %v404 = vpack.c.b16 %v319, %v314
  %v405 = vpack.c.b16 %v320, %v315
  %v406 = vpack.c.b16 %v321, %v316
  %v407 = vpack.c.b16 %v322, %v317
  %v408 = vpack.c.b16 %v323, %v318
  %v409 = vpack.c.b16 %v329, %v324
  %v410 = vpack.c.b16 %v330, %v325
  %v411 = vpack.c.b16 %v331, %v326
  %v412 = vpack.c.b16 %v332, %v327
  %v413 = vpack.c.b16 %v333, %v328
  %v414 = vpack.c.b16 %v339, %v334
  %v415 = vpack.c.b16 %v340, %v335
  %v416 = vpack.c.b16 %v341, %v336
  %v417 = vpack.c.b16 %v342, %v337
  %v418 = vpack.c.b16 %v343, %v338
  %v419 = vpack.c.b16 %v349, %v344
  %v420 = vpack.c.b16 %v350, %v345
  %v421 = vpack.c.b16 %v351, %v346
  %v422 = vpack.c.b16 %v352, %v347
  %v423 = vpack.c.b16 %v353, %v348
  %v424 = vpack.c.b16 %v359, %v354
  %v425 = vpack.c.b16 %v360, %v355
  %v426 = vpack.c.b16 %v361, %v356
  %v427 = vpack.c.b16 %v362, %v357
  %v428 = vpack.c.b16 %v363, %v358
  %v429 = vpack.c.b16 %v364, %v364
  %v430 = vpack.c.b16 %v365, %v365
  %v431 = vpack.c.b16 %v366, %v366
  %v432 = vpack.c.b16 %v367, %v367
  %v433 = vpack.c.b16 %v368, %v368
  %v558 = vunpack.c.l.b16 %v90
  %v559 = vunpack.c.l.b16 %v91
  %v560 = vunpack.c.l.b16 %v92
  %v561 = vunpack.c.l.b16 %v93
  %v562 = vunpack.c.l.b16 %v94
  %v563 = vunpack.c.l.b16 %v95
  %v564 = vunpack.c.l.b16 %v96
  %v565 = vunpack.c.l.b16 %v97
  %v566 = vunpack.c.l.b16 %v98
  %v567 = vunpack.c.l.b16 %v99
  %v568 = vunpack.c.l.b16 %v100
  %v569 = vunpack.c.l.b16 %v101
  %v570 = vunpack.c.l.b16 %v102
  %v571 = vunpack.c.l.b16 %v103
  %v572 = vunpack.c.l.b16 %v104
  %v573 = vunpack.c.l.b16 %v105
  %v574 = vunpack.c.l.b16 %v106
  %v575 = vunpack.c.l.b16 %v107
  %v576 = vunpack.c.l.b16 %v108
  %v577 = vunpack.c.l.b16 %v109
  %v578 = vunpack.c.l.b16 %v110
  %v579 = vunpack.c.l.b16 %v111
  %v580 = vunpack.c.l.b16 %v112
  %v581 = vunpack.c.l.b16 %v113
  %v582 = vunpack.c.l.b16 %v114
  %v583 = vunpack.c.l.b16 %v115
  %v584 = vunpack.c.l.b16 %v116
  %v585 = vunpack.c.l.b16 %v117
  %v586 = vunpack.c.l.b16 %v118
  %v587 = vunpack.c.l.b16 %v119
  %v588 = vunpack.c.l.b16 %v120
  %v589 = vunpack.c.l.b16 %v121
  %v590 = vunpack.c.l.b16 %v122
  %v591 = vunpack.c.l.b16 %v123
  %v592 = vunpack.c.l.b16 %v124
  %v593 = vunpack.c.l.b16 %v125
  %v594 = vunpack.c.l.b16 %v126
  %v595 = vunpack.c.l.b16 %v127
  %v596 = vunpack.c.l.b16 %v128
  %v597 = vunpack.c.l.b16 %v129
  %v598 = vunpack.c.l.b16 %v130
  %v599 = vunpack.c.l.b16 %v131
  %v600 = vunpack.c.l.b16 %v132
  %v601 = vunpack.c.l.b16 %v133
  %v602 = vunpack.c.l.b16 %v134
  %v603 = vunpack.c.l.b16 %v135
  %v604 = vunpack.c.l.b16 %v136
  %v605 = vunpack.c.l.b16 %v137
  %v606 = vunpack.c.l.b16 %v138
  %v607 = vunpack.c.l.b16 %v139
  %v608 = vunpack.c.l.b16 %v140
  %v609 = vunpack.c.l.b16 %v141
  %v610 = vunpack.c.l.b16 %v142
  %v611 = vunpack.c.l.b16 %v143
  %v612 = vunpack.c.l.b16 %v144
  %v613 = vunpack.c.l.b16 %v145
  %v614 = vunpack.c.l.b16 %v146
  %v615 = vunpack.c.l.b16 %v147
  %v616 = vunpack.c.l.b16 %v148
  %v617 = vunpack.c.l.b16 %v149
  %v618 = vunpack.c.l.b16 %v150
  %v619 = vunpack.c.l.b16 %v151
  %v620 = vunpack.c.l.b16 %v152
  %v621 = vunpack.c.l.b16 %v153
  %v622 = vunpack.c.l.b16 %v154
  %v623 = vunpack.c.l.b16 %v155
  %v624 = vunpack.c.l.b16 %v156
  %v625 = vunpack.c.l.b16 %v157
  %v626 = vunpack.c.l.b16 %v158
  %v627 = vunpack.c.l.b16 %v159
  %v628 = vunpack.c.l.b16 %v160
  %v629 = vunpack.c.l.b16 %v161
  %v630 = vpack.c.b16 %v559, %v558
  %v631 = vpack.c.b16 %v561, %v560
  %v632 = vpack.c.b16 %v563, %v562
  %v633 = vpack.c.b16 %v565, %v564
  %v634 = vpack.c.b16 %v567, %v566
  %v635 = vpack.c.b16 %v569, %v568
  %v636 = vpack.c.b16 %v571, %v570
  %v637 = vpack.c.b16 %v573, %v572
  %v638 = vpack.c.b16 %v575, %v574
  %v639 = vpack.c.b16 %v577, %v576
  %v640 = vpack.c.b16 %v579, %v578
  %v641 = vpack.c.b16 %v581, %v580
  %v642 = vpack.c.b16 %v583, %v582
  %v643 = vpack.c.b16 %v585, %v584
  %v644 = vpack.c.b16 %v587, %v586
  %v645 = vpack.c.b16 %v589, %v588
  %v646 = vpack.c.b16 %v591, %v590
  %v647 = vpack.c.b16 %v593, %v592
  %v648 = vpack.c.b16 %v595, %v594
  %v649 = vpack.c.b16 %v597, %v596
  %v650 = vpack.c.b16 %v599, %v598
  %v651 = vpack.c.b16 %v601, %v600
  %v652 = vpack.c.b16 %v603, %v602
  %v653 = vpack.c.b16 %v605, %v604
  %v654 = vpack.c.b16 %v607, %v606
  %v655 = vpack.c.b16 %v609, %v608
  %v656 = vpack.c.b16 %v611, %v610
  %v657 = vpack.c.b16 %v613, %v612
  %v658 = vpack.c.b16 %v615, %v614
  %v659 = vpack.c.b16 %v617, %v616
  %v660 = vpack.c.b16 %v619, %v618
  %v661 = vpack.c.b16 %v621, %v620
  %v662 = vpack.c.b16 %v623, %v622
  %v663 = vpack.c.b16 %v625, %v624
  %v664 = vpack.c.b16 %v627, %v626
  %v665 = vpack.c.b16 %v629, %v628
  %vm702 = vcmask 523264
  %v704 = vsel %vm702, %v373, 0
  %v707 = vsel %vm702, %v378, 0
  %v710 = vsel %vm702, %v383, 0
  %v713 = vsel %vm702, %v388, 0
  %v716 = vsel %vm702, %v393, 0
  %v719 = vsel %vm702, %v398, 0
  %v722 = vsel %vm702, %v403, 0
  %v725 = vsel %vm702, %v408, 0
  %v728 = vsel %vm702, %v413, 0
  %v731 = vsel %vm702, %v418, 0
  %v734 = vsel %vm702, %v423, 0
  %v737 = vsel %vm702, %v428, 0
  %v740 = vsel %vm702, %v433, 0
  %742 = vmatprep.subr.bf16.mxu0 0
  %743 = vmatpush1.bf16.msra.mxu0 %v630
  %744 = vmatprep.subr.bf16.mxu0 0
  %745 = vmatpush1.bf16.msra.mxu0 %v631
  %746 = vmatprep.subr.bf16.mxu0 0
  %747 = vmatpush1.bf16.msra.mxu0 %v632
  %748 = vmatprep.subr.bf16.mxu0 0
  %749 = vmatpush1.bf16.msra.mxu0 %v633
  %750 = vmatprep.subr.bf16.mxu0 0
  %751 = vmatpush1.bf16.msra.mxu0 %v634
  %752 = vmatprep.subr.bf16.mxu0 0
  %753 = vmatpush1.bf16.msra.mxu0 %v635
  %754 = vmatprep.subr.bf16.mxu0 0
  %755 = vmatpush1.bf16.msra.mxu0 %v636
  %756 = vmatprep.subr.bf16.mxu0 0
  %757 = vmatpush1.bf16.msra.mxu0 %v637
  %758 = vmatprep.subr.bf16.mxu0 0
  %759 = vmatpush1.bf16.msra.mxu0 %v638
  %760 = vmatprep.subr.bf16.mxu0 0
  %761 = vmatpush1.bf16.msra.mxu0 %v639
  %762 = vmatprep.subr.bf16.mxu0 0
  %763 = vmatpush1.bf16.msra.mxu0 %v640
  %764 = vmatprep.subr.bf16.mxu0 0
  %765 = vmatpush1.bf16.msra.mxu0 %v641
  %766 = vmatprep.subr.bf16.mxu0 0
  %767 = vmatpush1.bf16.msra.mxu0 %v642
  %768 = vmatprep.subr.bf16.mxu0 0
  %769 = vmatpush1.bf16.msra.mxu0 %v643
  %770 = vmatprep.subr.bf16.mxu0 0
  %771 = vmatpush1.bf16.msra.mxu0 %v644
  %772 = vmatprep.subr.bf16.mxu0 0
  %773 = vmatpush1.bf16.msra.mxu0 %v645
  %774 = vmatprep.mubr.bf16.mxu0 %v370
  %775 = vmatmul.mubr.bf16.gmra.mrb[0].mxu0 %v369
  %v776 = vpop.f32.mrb[0].mxu0
  %v777 = vadd.f32 %v167, %v776
  %v778 = vpop.f32.mrb[0].mxu0
  %v779 = vpop.f32.mrb[0].mxu0
  %v780 = vadd.f32 %v167, %v779
  %v781 = vpop.f32.mrb[0].mxu0
  %782 = vmatprep.mubr.bf16.mxu0 %v375
  %783 = vmatmul.mubr.bf16.gmra.mrb[0].mxu0 %v374
  %v784 = vpop.f32.mrb[0].mxu0
  %v785 = vadd.f32 %v167, %v784
  %v786 = vpop.f32.mrb[0].mxu0
  %v787 = vpop.f32.mrb[0].mxu0
  %v788 = vadd.f32 %v167, %v787
  %v789 = vpop.f32.mrb[0].mxu0
  %790 = vmatprep.mubr.bf16.mxu0 %v380
  %791 = vmatmul.mubr.bf16.gmra.mrb[0].mxu0 %v379
  %v792 = vpop.f32.mrb[0].mxu0
  %v793 = vadd.f32 %v167, %v792
  %v794 = vpop.f32.mrb[0].mxu0
  %v795 = vpop.f32.mrb[0].mxu0
  %v796 = vadd.f32 %v167, %v795
  %v797 = vpop.f32.mrb[0].mxu0
  %798 = vmatprep.mubr.bf16.mxu0 %v385
  %799 = vmatmul.mubr.bf16.gmra.mrb[0].mxu0 %v384
  %v800 = vpop.f32.mrb[0].mxu0
  %v801 = vadd.f32 %v167, %v800
  %v802 = vpop.f32.mrb[0].mxu0
  %v803 = vpop.f32.mrb[0].mxu0
  %v804 = vadd.f32 %v167, %v803
  %v805 = vpop.f32.mrb[0].mxu0
  %806 = vmatprep.mubr.bf16.mxu0 %v390
  %807 = vmatmul.mubr.bf16.gmra.mrb[0].mxu0 %v389
  %v808 = vpop.f32.mrb[0].mxu0
  %v809 = vadd.f32 %v167, %v808
  %v810 = vpop.f32.mrb[0].mxu0
  %v811 = vpop.f32.mrb[0].mxu0
  %v812 = vadd.f32 %v167, %v811
  %v813 = vpop.f32.mrb[0].mxu0
  %814 = vmatprep.mubr.bf16.mxu0 %v395
  %815 = vmatmul.mubr.bf16.gmra.mrb[0].mxu0 %v394
  %v816 = vpop.f32.mrb[0].mxu0
  %v817 = vadd.f32 %v167, %v816
  %v818 = vpop.f32.mrb[0].mxu0
  %v819 = vpop.f32.mrb[0].mxu0
  %v820 = vadd.f32 %v167, %v819
  %v821 = vpop.f32.mrb[0].mxu0
  %822 = vmatprep.mubr.bf16.mxu0 %v400
  %823 = vmatmul.mubr.bf16.gmra.mrb[0].mxu0 %v399
  %v824 = vpop.f32.mrb[0].mxu0
  %v825 = vadd.f32 %v167, %v824
  %v826 = vpop.f32.mrb[0].mxu0
  %v827 = vpop.f32.mrb[0].mxu0
  %v828 = vadd.f32 %v167, %v827
  %v829 = vpop.f32.mrb[0].mxu0
  %830 = vmatprep.mubr.bf16.mxu0 %v405
  %831 = vmatmul.mubr.bf16.gmra.mrb[0].mxu0 %v404
  %v832 = vpop.f32.mrb[0].mxu0
  %v833 = vadd.f32 %v167, %v832
  %v834 = vpop.f32.mrb[0].mxu0
  %v835 = vpop.f32.mrb[0].mxu0
  %v836 = vadd.f32 %v167, %v835
  %v837 = vpop.f32.mrb[0].mxu0
  %838 = vmatprep.mubr.bf16.mxu0 %v410
  %839 = vmatmul.mubr.bf16.gmra.mrb[0].mxu0 %v409
  %v840 = vpop.f32.mrb[0].mxu0
  %v841 = vadd.f32 %v167, %v840
  %v842 = vpop.f32.mrb[0].mxu0
  %v843 = vpop.f32.mrb[0].mxu0
  %v844 = vadd.f32 %v167, %v843
  %v845 = vpop.f32.mrb[0].mxu0
  %846 = vmatprep.mubr.bf16.mxu0 %v415
  %847 = vmatmul.mubr.bf16.gmra.mrb[0].mxu0 %v414
  %v848 = vpop.f32.mrb[0].mxu0
  %v849 = vadd.f32 %v167, %v848
  %v850 = vpop.f32.mrb[0].mxu0
  %v851 = vpop.f32.mrb[0].mxu0
  %v852 = vadd.f32 %v167, %v851
  %v853 = vpop.f32.mrb[0].mxu0
  %854 = vmatprep.mubr.bf16.mxu0 %v420
  %855 = vmatmul.mubr.bf16.gmra.mrb[0].mxu0 %v419
  %v856 = vpop.f32.mrb[0].mxu0
  %v857 = vadd.f32 %v167, %v856
  %v858 = vpop.f32.mrb[0].mxu0
  %v859 = vpop.f32.mrb[0].mxu0
  %v860 = vadd.f32 %v167, %v859
  %v861 = vpop.f32.mrb[0].mxu0
  %862 = vmatprep.mubr.bf16.mxu0 %v425
  %863 = vmatmul.mubr.bf16.gmra.mrb[0].mxu0 %v424
  %v864 = vpop.f32.mrb[0].mxu0
  %v865 = vadd.f32 %v167, %v864
  %v866 = vpop.f32.mrb[0].mxu0
  %v867 = vpop.f32.mrb[0].mxu0
  %v868 = vadd.f32 %v167, %v867
  %v869 = vpop.f32.mrb[0].mxu0
  %870 = vmatprep.mubr.bf16.mxu0 %v430
  %871 = vmatmul.mubr.bf16.gmra.mrb[0].mxu0 %v429
  %v872 = vpop.f32.mrb[0].mxu0
  %v873 = vadd.f32 %v167, %v872
  %v874 = vpop.f32.mrb[0].mxu0
  %v875 = vpop.f32.mrb[0].mxu0
  %v876 = vpop.f32.mrb[0].mxu0
  %877 = vdwg.mxu0
  %878 = vmatprep.subr.bf16.mxu0 0
  %879 = vmatpush1.bf16.msra.mxu0 %v646
  %880 = vmatprep.subr.bf16.mxu0 0
  %881 = vmatpush1.bf16.msra.mxu0 %v647
  %882 = vmatprep.subr.bf16.mxu0 0
  %883 = vmatpush1.bf16.msra.mxu0 %v648
  %884 = vmatprep.subr.bf16.mxu0 0
  %885 = vmatpush1.bf16.msra.mxu0 %v649
  %886 = vmatprep.subr.bf16.mxu0 0
  %887 = vmatpush1.bf16.msra.mxu0 %v650
  %888 = vmatprep.subr.bf16.mxu0 0
  %889 = vmatpush1.bf16.msra.mxu0 %v651
  %890 = vmatprep.subr.bf16.mxu0 0
  %891 = vmatpush1.bf16.msra.mxu0 %v652
  %892 = vmatprep.subr.bf16.mxu0 0
  %893 = vmatpush1.bf16.msra.mxu0 %v653
  %894 = vmatprep.subr.bf16.mxu0 0
  %895 = vmatpush1.bf16.msra.mxu0 %v654
  %896 = vmatprep.subr.bf16.mxu0 0
  %897 = vmatpush1.bf16.msra.mxu0 %v655
  %898 = vmatprep.subr.bf16.mxu0 0
  %899 = vmatpush1.bf16.msra.mxu0 %v656
  %900 = vmatprep.subr.bf16.mxu0 0
  %901 = vmatpush1.bf16.msra.mxu0 %v657
  %902 = vmatprep.subr.bf16.mxu0 0
  %903 = vmatpush1.bf16.msra.mxu0 %v658
  %904 = vmatprep.subr.bf16.mxu0 0
  %905 = vmatpush1.bf16.msra.mxu0 %v659
  %906 = vmatprep.subr.bf16.mxu0 0
  %907 = vmatpush1.bf16.msra.mxu0 %v660
  %908 = vmatprep.subr.bf16.mxu0 0
  %909 = vmatpush1.bf16.msra.mxu0 %v661
  %910 = vmatprep.mubr.bf16.mxu0 %v372
  %911 = vmatmul.mubr.bf16.gmra.mrb[0].mxu0 %v371
  %v912 = vpop.f32.mrb[0].mxu0
  %v913 = vadd.f32 %v777, %v912
  %v914 = vpop.f32.mrb[0].mxu0
  %v915 = vpop.f32.mrb[0].mxu0
  %v916 = vadd.f32 %v780, %v915
  %v917 = vpop.f32.mrb[0].mxu0
  %918 = vmatprep.mubr.bf16.mxu0 %v377
  %919 = vmatmul.mubr.bf16.gmra.mrb[0].mxu0 %v376
  %v920 = vpop.f32.mrb[0].mxu0
  %v921 = vadd.f32 %v785, %v920
  %v922 = vpop.f32.mrb[0].mxu0
  %v923 = vpop.f32.mrb[0].mxu0
  %v924 = vadd.f32 %v788, %v923
  %v925 = vpop.f32.mrb[0].mxu0
  %926 = vmatprep.mubr.bf16.mxu0 %v382
  %927 = vmatmul.mubr.bf16.gmra.mrb[0].mxu0 %v381
  %v928 = vpop.f32.mrb[0].mxu0
  %v929 = vadd.f32 %v793, %v928
  %v930 = vpop.f32.mrb[0].mxu0
  %v931 = vpop.f32.mrb[0].mxu0
  %v932 = vadd.f32 %v796, %v931
  %v933 = vpop.f32.mrb[0].mxu0
  %934 = vmatprep.mubr.bf16.mxu0 %v387
  %935 = vmatmul.mubr.bf16.gmra.mrb[0].mxu0 %v386
  %v936 = vpop.f32.mrb[0].mxu0
  %v937 = vadd.f32 %v801, %v936
  %v938 = vpop.f32.mrb[0].mxu0
  %v939 = vpop.f32.mrb[0].mxu0
  %v940 = vadd.f32 %v804, %v939
  %v941 = vpop.f32.mrb[0].mxu0
  %942 = vmatprep.mubr.bf16.mxu0 %v392
  %943 = vmatmul.mubr.bf16.gmra.mrb[0].mxu0 %v391
  %v944 = vpop.f32.mrb[0].mxu0
  %v945 = vadd.f32 %v809, %v944
  %v946 = vpop.f32.mrb[0].mxu0
  %v947 = vpop.f32.mrb[0].mxu0
  %v948 = vadd.f32 %v812, %v947
  %v949 = vpop.f32.mrb[0].mxu0
  %950 = vmatprep.mubr.bf16.mxu0 %v397
  %951 = vmatmul.mubr.bf16.gmra.mrb[0].mxu0 %v396
  %v952 = vpop.f32.mrb[0].mxu0
  %v953 = vadd.f32 %v817, %v952
  %v954 = vpop.f32.mrb[0].mxu0
  %v955 = vpop.f32.mrb[0].mxu0
  %v956 = vadd.f32 %v820, %v955
  %v957 = vpop.f32.mrb[0].mxu0
  %958 = vmatprep.mubr.bf16.mxu0 %v402
  %959 = vmatmul.mubr.bf16.gmra.mrb[0].mxu0 %v401
  %v960 = vpop.f32.mrb[0].mxu0
  %v961 = vadd.f32 %v825, %v960
  %v962 = vpop.f32.mrb[0].mxu0
  %v963 = vpop.f32.mrb[0].mxu0
  %v964 = vadd.f32 %v828, %v963
  %v965 = vpop.f32.mrb[0].mxu0
  %966 = vmatprep.mubr.bf16.mxu0 %v407
  %967 = vmatmul.mubr.bf16.gmra.mrb[0].mxu0 %v406
  %v968 = vpop.f32.mrb[0].mxu0
  %v969 = vadd.f32 %v833, %v968
  %v970 = vpop.f32.mrb[0].mxu0
  %v971 = vpop.f32.mrb[0].mxu0
  %v972 = vadd.f32 %v836, %v971
  %v973 = vpop.f32.mrb[0].mxu0
  %974 = vmatprep.mubr.bf16.mxu0 %v412
  %975 = vmatmul.mubr.bf16.gmra.mrb[0].mxu0 %v411
  %v976 = vpop.f32.mrb[0].mxu0
  %v977 = vadd.f32 %v841, %v976
  %v978 = vpop.f32.mrb[0].mxu0
  %v979 = vpop.f32.mrb[0].mxu0
  %v980 = vadd.f32 %v844, %v979
  %v981 = vpop.f32.mrb[0].mxu0
  %982 = vmatprep.mubr.bf16.mxu0 %v417
  %983 = vmatmul.mubr.bf16.gmra.mrb[0].mxu0 %v416
  %v984 = vpop.f32.mrb[0].mxu0
  %v985 = vadd.f32 %v849, %v984
  %v986 = vpop.f32.mrb[0].mxu0
  %v987 = vpop.f32.mrb[0].mxu0
  %v988 = vadd.f32 %v852, %v987
  %v989 = vpop.f32.mrb[0].mxu0
  %990 = vmatprep.mubr.bf16.mxu0 %v422
  %991 = vmatmul.mubr.bf16.gmra.mrb[0].mxu0 %v421
  %v992 = vpop.f32.mrb[0].mxu0
  %v993 = vadd.f32 %v857, %v992
  %v994 = vpop.f32.mrb[0].mxu0
  %v995 = vpop.f32.mrb[0].mxu0
  %v996 = vadd.f32 %v860, %v995
  %v997 = vpop.f32.mrb[0].mxu0
  %998 = vmatprep.mubr.bf16.mxu0 %v427
  %999 = vmatmul.mubr.bf16.gmra.mrb[0].mxu0 %v426
  %v1000 = vpop.f32.mrb[0].mxu0
  %v1001 = vadd.f32 %v865, %v1000
  %v1002 = vpop.f32.mrb[0].mxu0
  %v1003 = vpop.f32.mrb[0].mxu0
  %v1004 = vadd.f32 %v868, %v1003
  %v1005 = vpop.f32.mrb[0].mxu0
  %1006 = vmatprep.mubr.bf16.mxu0 %v432
  %1007 = vmatmul.mubr.bf16.gmra.mrb[0].mxu0 %v431
  %v1008 = vpop.f32.mrb[0].mxu0
  %v1009 = vadd.f32 %v873, %v1008
  %v1010 = vpop.f32.mrb[0].mxu0
  %v1011 = vpop.f32.mrb[0].mxu0
  %v1012 = vpop.f32.mrb[0].mxu0
  %1013 = vdwg.mxu0
  %1014 = vmatprep.subr.bf16.mxu0 0
  %1015 = vmatpush1.bf16.msra.mxu0 %v662
  %1016 = vmatprep.subr.bf16.mxu0 0
  %1017 = vmatpush1.bf16.msra.mxu0 %v663
  %1018 = vmatprep.subr.bf16.mxu0 0
  %1019 = vmatpush1.bf16.msra.mxu0 %v664
  %1020 = vmatprep.subr.bf16.mxu0 0
  %1021 = vmatpush1.bf16.msra.mxu0 %v665
  %1022 = vmatprep.subr.bf16.mxu0 0
  %1023 = vmatpush1.bf16.msra.mxu0 0
  %1024 = vmatprep.subr.bf16.mxu0 0
  %1025 = vmatpush1.bf16.msra.mxu0 0
  %1026 = vmatprep.subr.bf16.mxu0 0
  %1027 = vmatpush1.bf16.msra.mxu0 0
  %1028 = vmatprep.subr.bf16.mxu0 0
  %1029 = vmatpush1.bf16.msra.mxu0 0
  %1030 = vmatprep.subr.bf16.mxu0 0
  %1031 = vmatpush1.bf16.msra.mxu0 0
  %1032 = vmatprep.subr.bf16.mxu0 0
  %1033 = vmatpush1.bf16.msra.mxu0 0
  %1034 = vmatprep.subr.bf16.mxu0 0
  %1035 = vmatpush1.bf16.msra.mxu0 0
  %1036 = vmatprep.subr.bf16.mxu0 0
  %1037 = vmatpush1.bf16.msra.mxu0 0
  %1038 = vmatprep.subr.bf16.mxu0 0
  %1039 = vmatpush1.bf16.msra.mxu0 0
  %1040 = vmatprep.subr.bf16.mxu0 0
  %1041 = vmatpush1.bf16.msra.mxu0 0
  %1042 = vmatprep.subr.bf16.mxu0 0
  %1043 = vmatpush1.bf16.msra.mxu0 0
  %1044 = vmatprep.subr.bf16.mxu0 0
  %1045 = vmatpush1.bf16.msra.mxu0 0
  %1046 = vmatprep.mubr.bf16.mxu0 0
  %1047 = vmatmul.mubr.bf16.gmra.mrb[0].mxu0 %v704
  %v1048 = vpop.f32.mrb[0].mxu0
  %v1049 = vadd.f32 %v913, %v1048
  %v1050 = vpop.f32.mrb[0].mxu0
  %v1051 = vpop.f32.mrb[0].mxu0
  %v1052 = vadd.f32 %v916, %v1051
  %v1053 = vpop.f32.mrb[0].mxu0
  %1054 = vmatprep.mubr.bf16.mxu0 0
  %1055 = vmatmul.mubr.bf16.gmra.mrb[0].mxu0 %v707
  %v1056 = vpop.f32.mrb[0].mxu0
  %v1057 = vadd.f32 %v921, %v1056
  %v1058 = vpop.f32.mrb[0].mxu0
  %v1059 = vpop.f32.mrb[0].mxu0
  %v1060 = vadd.f32 %v924, %v1059
  %v1061 = vpop.f32.mrb[0].mxu0
  %1062 = vmatprep.mubr.bf16.mxu0 0
  %1063 = vmatmul.mubr.bf16.gmra.mrb[0].mxu0 %v710
  %v1064 = vpop.f32.mrb[0].mxu0
  %v1065 = vadd.f32 %v929, %v1064
  %v1066 = vpop.f32.mrb[0].mxu0
  %v1067 = vpop.f32.mrb[0].mxu0
  %v1068 = vadd.f32 %v932, %v1067
  %v1069 = vpop.f32.mrb[0].mxu0
  %1070 = vmatprep.mubr.bf16.mxu0 0
  %1071 = vmatmul.mubr.bf16.gmra.mrb[0].mxu0 %v713
  %v1072 = vpop.f32.mrb[0].mxu0
  %v1073 = vadd.f32 %v937, %v1072
  %v1074 = vpop.f32.mrb[0].mxu0
  %v1075 = vpop.f32.mrb[0].mxu0
  %v1076 = vadd.f32 %v940, %v1075
  %v1077 = vpop.f32.mrb[0].mxu0
  %1078 = vmatprep.mubr.bf16.mxu0 0
  %1079 = vmatmul.mubr.bf16.gmra.mrb[0].mxu0 %v716
  %v1080 = vpop.f32.mrb[0].mxu0
  %v1081 = vadd.f32 %v945, %v1080
  %v1082 = vpop.f32.mrb[0].mxu0
  %v1083 = vpop.f32.mrb[0].mxu0
  %v1084 = vadd.f32 %v948, %v1083
  %v1085 = vpop.f32.mrb[0].mxu0
  %1086 = vmatprep.mubr.bf16.mxu0 0
  %1087 = vmatmul.mubr.bf16.gmra.mrb[0].mxu0 %v719
  %v1088 = vpop.f32.mrb[0].mxu0
  %v1089 = vadd.f32 %v953, %v1088
  %v1090 = vpop.f32.mrb[0].mxu0
  %v1091 = vpop.f32.mrb[0].mxu0
  %v1092 = vadd.f32 %v956, %v1091
  %v1093 = vpop.f32.mrb[0].mxu0
  %1094 = vmatprep.mubr.bf16.mxu0 0
  %1095 = vmatmul.mubr.bf16.gmra.mrb[0].mxu0 %v722
  %v1096 = vpop.f32.mrb[0].mxu0
  %v1097 = vadd.f32 %v961, %v1096
  %v1098 = vpop.f32.mrb[0].mxu0
  %v1099 = vpop.f32.mrb[0].mxu0
  %v1100 = vadd.f32 %v964, %v1099
  %v1101 = vpop.f32.mrb[0].mxu0
  %1102 = vmatprep.mubr.bf16.mxu0 0
  %1103 = vmatmul.mubr.bf16.gmra.mrb[0].mxu0 %v725
  %v1104 = vpop.f32.mrb[0].mxu0
  %v1105 = vadd.f32 %v969, %v1104
  %v1106 = vpop.f32.mrb[0].mxu0
  %v1107 = vpop.f32.mrb[0].mxu0
  %v1108 = vadd.f32 %v972, %v1107
  %v1109 = vpop.f32.mrb[0].mxu0
  %1110 = vmatprep.mubr.bf16.mxu0 0
  %1111 = vmatmul.mubr.bf16.gmra.mrb[0].mxu0 %v728
  %v1112 = vpop.f32.mrb[0].mxu0
  %v1113 = vadd.f32 %v977, %v1112
  %v1114 = vpop.f32.mrb[0].mxu0
  %v1115 = vpop.f32.mrb[0].mxu0
  %v1116 = vadd.f32 %v980, %v1115
  %v1117 = vpop.f32.mrb[0].mxu0
  %1118 = vmatprep.mubr.bf16.mxu0 0
  %1119 = vmatmul.mubr.bf16.gmra.mrb[0].mxu0 %v731
  %v1120 = vpop.f32.mrb[0].mxu0
  %v1121 = vadd.f32 %v985, %v1120
  %v1122 = vpop.f32.mrb[0].mxu0
  %v1123 = vpop.f32.mrb[0].mxu0
  %v1124 = vadd.f32 %v988, %v1123
  %v1125 = vpop.f32.mrb[0].mxu0
  %1126 = vmatprep.mubr.bf16.mxu0 0
  %1127 = vmatmul.mubr.bf16.gmra.mrb[0].mxu0 %v734
  %v1128 = vpop.f32.mrb[0].mxu0
  %v1129 = vadd.f32 %v993, %v1128
  %v1130 = vpop.f32.mrb[0].mxu0
  %v1131 = vpop.f32.mrb[0].mxu0
  %v1132 = vadd.f32 %v996, %v1131
  %v1133 = vpop.f32.mrb[0].mxu0
  %1134 = vmatprep.mubr.bf16.mxu0 0
  %1135 = vmatmul.mubr.bf16.gmra.mrb[0].mxu0 %v737
  %v1136 = vpop.f32.mrb[0].mxu0
  %v1137 = vadd.f32 %v1001, %v1136
  %v1138 = vpop.f32.mrb[0].mxu0
  %v1139 = vpop.f32.mrb[0].mxu0
  %v1140 = vadd.f32 %v1004, %v1139
  %v1141 = vpop.f32.mrb[0].mxu0
  %1142 = vmatprep.mubr.bf16.mxu0 0
  %1143 = vmatmul.mubr.bf16.gmra.mrb[0].mxu0 %v740
  %v1144 = vpop.f32.mrb[0].mxu0
  %v1145 = vadd.f32 %v1009, %v1144
  %v1146 = vpop.f32.mrb[0].mxu0
  %v1147 = vpop.f32.mrb[0].mxu0
  %v1148 = vpop.f32.mrb[0].mxu0
  %1149 = vdwg.mxu0
  %v1150 = vmax.f32 %v1049, 0.0
  %v1151 = vmax.f32 %v1052, 0.0
  %v1152 = vmax.f32 %v1057, 0.0
  %v1153 = vmax.f32 %v1060, 0.0
  %v1154 = vmax.f32 %v1065, 0.0
  %v1155 = vmax.f32 %v1068, 0.0
  %v1156 = vmax.f32 %v1073, 0.0
  %v1157 = vmax.f32 %v1076, 0.0
  %v1158 = vmax.f32 %v1081, 0.0
  %v1159 = vmax.f32 %v1084, 0.0
  %v1160 = vmax.f32 %v1089, 0.0
  %v1161 = vmax.f32 %v1092, 0.0
  %v1162 = vmax.f32 %v1097, 0.0
  %v1163 = vmax.f32 %v1100, 0.0
  %v1164 = vmax.f32 %v1105, 0.0
  %v1165 = vmax.f32 %v1108, 0.0
  %v1166 = vmax.f32 %v1113, 0.0
  %v1167 = vmax.f32 %v1116, 0.0
  %v1168 = vmax.f32 %v1121, 0.0
  %v1169 = vmax.f32 %v1124, 0.0
  %v1170 = vmax.f32 %v1129, 0.0
  %v1171 = vmax.f32 %v1132, 0.0
  %v1172 = vmax.f32 %v1137, 0.0
  %v1173 = vmax.f32 %v1140, 0.0
  %v1174 = vmax.f32 %v1145, 0.0
  %1175 = vst [vmem:[%s3] sm:$0xff] %v1150
  %1176 = vst [vmem:[%s3 + $0x8] sm:$0xff] %v1151
  %1177 = vst [vmem:[%s3 + $0x10] sm:$0xff] %v1152
  %1178 = vst [vmem:[%s3 + $0x18] sm:$0xff] %v1153
  %1179 = vst [vmem:[%s3 + $0x20] sm:$0xff] %v1154
  %1180 = vst [vmem:[%s3 + $0x28] sm:$0xff] %v1155
  %1181 = vst [vmem:[%s3 + $0x30] sm:$0xff] %v1156
  %1182 = vst [vmem:[%s3 + $0x38] sm:$0xff] %v1157
  %1183 = vst [vmem:[%s3 + $0x40] sm:$0xff] %v1158
  %1184 = vst [vmem:[%s3 + $0x48] sm:$0xff] %v1159
  %1185 = vst [vmem:[%s3 + $0x50] sm:$0xff] %v1160
  %1186 = vst [vmem:[%s3 + $0x58] sm:$0xff] %v1161
  %1187 = vst [vmem:[%s3 + $0x60] sm:$0xff] %v1162
  %1188 = vst [vmem:[%s3 + $0x68] sm:$0xff] %v1163
  %1189 = vst [vmem:[%s3 + $0x70] sm:$0xff] %v1164
  %1190 = vst [vmem:[%s3 + $0x78] sm:$0xff] %v1165
  %1191 = vst [vmem:[%s3 + $0x80] sm:$0xff] %v1166
  %1192 = vst [vmem:[%s3 + $0x88] sm:$0xff] %v1167
  %1193 = vst [vmem:[%s3 + $0x90] sm:$0xff] %v1168
  %1194 = vst [vmem:[%s3 + $0x98] sm:$0xff] %v1169
  %1195 = vst [vmem:[%s3 + $0xa0] sm:$0xff] %v1170
  %1196 = vst [vmem:[%s3 + $0xa8] sm:$0xff] %v1171
  %1197 = vst [vmem:[%s3 + $0xb0] sm:$0xff] %v1172
  %1198 = vst [vmem:[%s3 + $0xb8] sm:$0xff] %v1173
  %1199 = vst [vmem:[%s3 + $0xc0] sm:$0xff] %v1174
  // Predicated region
  $region14: #{network_forward.10} parent=0 // pred_check
    _
  $region15: #{network_forward.10} parent=0 // pred_check_branch
    %1201 = sbr.rel (0) target = $region17
  $region16: #{network_forward.10} parent=0 // pred_region
    _
  $region17: #{network_forward.10} parent=0 // pred_fallthru
    _
  // Predicated region
  $region18: #{network_forward.10} parent=0 // pred_check
    _
  $region19: #{network_forward.10} parent=0 // pred_check_branch
    %1203 = sbr.rel (0) target = $region21
  $region20: #{network_forward.10} parent=0 // pred_region
    _
  $region21: #{network_forward.10} parent=0 // pred_fallthru
    _

// kernel: network_forward.11
$region0: #{network_forward.11}
  #allocation0 [shape = 'u32[]', space=smem, size = 0x4, offset = 0x4, fixed_abs, tag = 'smem constant byte address 0x4 - core index']
  #allocation1 [shape = 'u32[144,128]{1,0:T(1,128)}', space=vmem, size = 0x12000, scoped, tag = 'internal scratch']
  %s0 = inlined_call_operand.vmem [shape: bf16[8,12800], index: 0, kind: input, shape index: {}]
  %s1 = inlined_call_operand.vmem [shape: bf16[12800,512], index: 1, kind: input, shape index: {}]
  %s2 = inlined_call_operand.vmem [shape: f32[1,512], index: 2, kind: input, shape index: {}]
  %s3 = inlined_call_operand.vmem [shape: f32[8,512], index: 3, kind: output, shape index: {}]
  %s4 = sld [smem:[#allocation0]]
  $region91: #{network_forward.11} parent=0
    _
  %s6 = ssub.s32 1, %s4
  %s7 = scalar_select 0, %s6, %s4
  $region1: #{network_forward.11} parent=0
    #allocation2 [shape = 'u8[2621440]{0}', space=vmem, size = 0x280000, scoped, tag = 'input window, operand 1']
    loop: start=0, step=1, limit=12
    $region2: #{network_forward.11} parent=1 // loop_pre_header
      _
    $region3: #{network_forward.11} parent=1 // loop_header
      %s9 = sphi 0, %s13
      %p10 = scmp.ge.s32.totalorder %s9, 12
      %s16 = sphi 0, %s35
      %s17 = sphi 0, %s31
      %s18 = sphi 0, %s27
      %s19 = sphi 0, %s16
      %s20 = sphi 0, %s17
      %s21 = sphi 0, %s18
      %s22 = sphi 0, %s19
      %s23 = sphi 0, %s20
      %s24 = sphi 0, %s21
      %s40 = sphi 0, %s42
      %s43 = sphi 0, %s40
      %s44 = sphi 0, %s43
      %s60 = sphi 0, %s44
      %s68 = sphi 0, %s70
      %s71 = sphi 0, %s68
      %s72 = sphi 0, %s71
      %s88 = sphi 0, %s72
      %s94 = sphi 0, %s96
      %s97 = sphi 0, %s94
      %s98 = sphi 0, %s97
      %s114 = sphi 0, %s98
      %s122 = sphi 0, %s124
      %s125 = sphi 0, %s122
      %s126 = sphi 0, %s125
      %s142 = sphi 0, %s126
    $region4: #{network_forward.11} parent=1 // loop_header_branch
      %12 = sbr.rel (%p10) target = $region8
    $region5: #{network_forward.11} parent=1 // loop_body
      %s14 = ssub.s32 %s9, 1
      %s15 = ssub.s32 %s9, 2
      %s25 = sadd.s32 1, %s18
      %p26 = scmp.ge.s32.totalorder %s25, 5
      %s27 = scalar_select %p26, 0, %s25
      %s28 = sadd.s32 1, %s17
      %s29 = scalar_select %p26, %s28, %s17
      %p30 = scmp.ge.s32.totalorder %s29, 2
      %s31 = scalar_select %p30, 0, %s29
      %s32 = sadd.s32 1, %s16
      %s33 = scalar_select %p30, %s32, %s16
      %p34 = scmp.ge.s32.totalorder %s33, 1
      %s35 = scalar_select %p34, 0, %s33
      %s36 = ssub.s32 %s16, %s35
      %s37 = ssub.s32 %s18, %s27
      %s38 = sor.u32 %s36, %s37
      %p39 = scmp.eq.s32.totalorder %s38, 0
      %s41 = sadd.s32 %s40, 1
      %s42 = scalar_select %p39, %s40, %s41
      %p45 = pneg %p39
      %p46 = scmp.eq.s32.totalorder %s9, 9
      %p47 = por %p45, %p46
      %p48 = scmp.ne.s32.totalorder %s40, %s43
      %p49 = scmp.eq.s32.totalorder %s9, 0
      %p50 = por %p48, %p49
      %p51 = scmp.ne.s32.totalorder %s40, %s43
      %p52 = scmp.eq.s32.totalorder %s14, 9
      %p53 = por %p51, %p52
      %p54 = scmp.ne.s32.totalorder %s43, %s44
      %p55 = scmp.eq.s32.totalorder %s14, 0
      %p56 = por %p54, %p55
      %p57 = scmp.ne.s32.totalorder %s43, %s44
      %p58 = scmp.eq.s32.totalorder %s15, 9
      %p59 = por %p57, %p58
      %p61 = scmp.ne.s32.totalorder %s44, %s60
      %p62 = scmp.eq.s32.totalorder %s15, 0
      %p63 = por %p61, %p62
      %s64 = ssub.s32 %s18, %s27
      %s65 = ssub.s32 %s17, %s31
      %s66 = sor.u32 %s64, %s65
      %p67 = scmp.eq.s32.totalorder %s66, 0
      %s69 = sadd.s32 %s68, 1
      %s70 = scalar_select %p67, %s68, %s69
      %p73 = pneg %p67
      %p74 = scmp.eq.s32.totalorder %s9, 9
      %p75 = por %p73, %p74
      %p76 = scmp.ne.s32.totalorder %s68, %s71
      %p77 = scmp.eq.s32.totalorder %s9, 0
      %p78 = por %p76, %p77
      %p79 = scmp.ne.s32.totalorder %s68, %s71
      %p80 = scmp.eq.s32.totalorder %s14, 9
      %p81 = por %p79, %p80
      %p82 = scmp.ne.s32.totalorder %s71, %s72
      %p83 = scmp.eq.s32.totalorder %s14, 0
      %p84 = por %p82, %p83
      %p85 = scmp.ne.s32.totalorder %s71, %s72
      %p86 = scmp.eq.s32.totalorder %s15, 9
      %p87 = por %p85, %p86
      %p89 = scmp.ne.s32.totalorder %s72, %s88
      %p90 = scmp.eq.s32.totalorder %s15, 0
      %p91 = por %p89, %p90
      %s92 = ssub.s32 %s17, %s31
      %p93 = scmp.eq.s32.totalorder %s92, 0
      %s95 = sadd.s32 %s94, 1
      %s96 = scalar_select %p93, %s94, %s95
      %p99 = pneg %p93
      %p100 = scmp.eq.s32.totalorder %s9, 9
      %p101 = por %p99, %p100
      %p102 = scmp.ne.s32.totalorder %s94, %s97
      %p103 = scmp.eq.s32.totalorder %s9, 0
      %p104 = por %p102, %p103
      %p105 = scmp.ne.s32.totalorder %s94, %s97
      %p106 = scmp.eq.s32.totalorder %s14, 9
      %p107 = por %p105, %p106
      %p108 = scmp.ne.s32.totalorder %s97, %s98
      %p109 = scmp.eq.s32.totalorder %s14, 0
      %p110 = por %p108, %p109
      %p111 = scmp.ne.s32.totalorder %s97, %s98
      %p112 = scmp.eq.s32.totalorder %s15, 9
      %p113 = por %p111, %p112
      %p115 = scmp.ne.s32.totalorder %s98, %s114
      %p116 = scmp.eq.s32.totalorder %s15, 0
      %p117 = por %p115, %p116
      %s118 = ssub.s32 %s16, %s35
      %s119 = ssub.s32 %s17, %s31
      %s120 = sor.u32 %s118, %s119
      %p121 = scmp.eq.s32.totalorder %s120, 0
      %s123 = sadd.s32 %s122, 1
      %s124 = scalar_select %p121, %s122, %s123
      %p127 = pneg %p121
      %p128 = scmp.eq.s32.totalorder %s9, 9
      %p129 = por %p127, %p128
      %p130 = scmp.ne.s32.totalorder %s122, %s125
      %p131 = scmp.eq.s32.totalorder %s9, 0
      %p132 = por %p130, %p131
      %p133 = scmp.ne.s32.totalorder %s122, %s125
      %p134 = scmp.eq.s32.totalorder %s14, 9
      %p135 = por %p133, %p134
      %p136 = scmp.ne.s32.totalorder %s125, %s126
      %p137 = scmp.eq.s32.totalorder %s14, 0
      %p138 = por %p136, %p137
      %p139 = scmp.ne.s32.totalorder %s125, %s126
      %p140 = scmp.eq.s32.totalorder %s15, 9
      %p141 = por %p139, %p140
      %p143 = scmp.ne.s32.totalorder %s126, %s142
      %p144 = scmp.eq.s32.totalorder %s15, 0
      %p145 = por %p143, %p144
      %p146 = scmp.le.s32.totalorder 1, %s9
      %p147 = scmp.lt.s32.totalorder %s9, 11
      %p148 = pnand %p146, %p147
      %p149 = pneg %p148
      // Predicated region
      $region9: #{network_forward.11} parent=5 // pred_check
        _
      $region10: #{network_forward.11} parent=5 // pred_check_branch
        %151 = sbr.rel (%p148) target = $region12
      $region11: #{network_forward.11} parent=5 // pred_region
        %s152 = ssub.s32 %s9, 1
      $region12: #{network_forward.11} parent=5 // pred_fallthru
        _
      %p153 = scmp.lt.s32.totalorder %s9, 10
      // Predicated region
      $region13: #{network_forward.11} parent=5 // pred_check
        %p154 = pneg %p153
      $region14: #{network_forward.11} parent=5 // pred_check_branch
        %156 = sbr.rel (%p154) target = $region16
      $region15: #{network_forward.11} parent=5 // pred_region
        // Predicated region
        $region17: #{network_forward.11} parent=15 // pred_check
          %p157 = pneg %p50
        $region18: #{network_forward.11} parent=15 // pred_check_branch
          %159 = sbr.rel (%p157) target = $region20
        $region19: #{network_forward.11} parent=15 // pred_region
          %s160 = smul.u32 20, %s18
          %p161 = scmp.lt.s32.totalorder %s16, 0
          %s162 = scalar_select %p161, %s16, 0
          %p163 = scmp.lt.s32.totalorder %s160, 99
          %s164 = scalar_select %p163, %s160, 99
          %s165 = smul.addr %s162, 100
          %s166 = sadd.s32 %s164, %s165
          %s167 = smul.addr %s166, 4
          %s168 = scalar_lea.vmem %s0, %s167
          %s169 = smul.u32 20, %s18
        $region20: #{network_forward.11} parent=15 // pred_fallthru
          _
        // Predicated region
        $region21: #{network_forward.11} parent=15 // pred_check
          %p170 = pneg %p78
        $region22: #{network_forward.11} parent=15 // pred_check_branch
          %172 = sbr.rel (%p170) target = $region24
        $region23: #{network_forward.11} parent=15 // pred_region
          %s173 = sand.u32 %s68, 1
          %s174 = sand.u32 %s68, 1
          %s175 = smul.addr %s174, 2560
          %s176 = scalar_lea.vmem [#allocation2], %s175
          %s177 = smul.u32 320, %s18
          %s178 = smul.u32 2, %s17
          %s179 = smul.addr %s177, 4
          %s180 = sadd.s32 %s178, %s179
          %s181 = smul.addr %s180, 4
          %s182 = scalar_lea.vmem %s1, %s181
          // Predicated region
          $region25: #{network_forward.11} parent=23 // pred_check
            _
          $region26: #{network_forward.11} parent=23 // pred_check_branch
            %184 = sbr.rel (0) target = $region28
          $region27: #{network_forward.11} parent=23 // pred_region
            // Predicated region
            $region29: #{network_forward.11} parent=27 // pred_check
              _
            $region30: #{network_forward.11} parent=27 // pred_check_branch
              %186 = sbr.rel (0) target = $region32
            $region31: #{network_forward.11} parent=27 // pred_region
              // Predicated region
              $region44: #{network_forward.11} parent=31 // pred_check
                _
              $region45: #{network_forward.11} parent=31 // pred_check_branch
                %839 = sbr.rel (0) target = $region47
              $region46: #{network_forward.11} parent=31 // pred_region
                loop: start=0, step=1, limit=1
                $region48: #{network_forward.11} parent=46 // loop_pre_header
                  _
                $region49: #{network_forward.11} parent=46 // loop_header
                  %s841 = sphi 0, %s845
                  %p842 = scmp.ge.s32.totalorder %s841, 1
                  %s846 = sphi %s182, %s182
                  %s847 = sphi %s176, %s176
                $region50: #{network_forward.11} parent=46 // loop_header_branch
                  %844 = sbr.rel (%p842) target = $region54
                $region51: #{network_forward.11} parent=46 // loop_body
                  %v848 = vld [vmem:[%s846] sm:$0xff]
                  %849 = vst [vmem:[%s847] sm:$0xff] %v848
                  %v850 = vld [vmem:[%s846 + $0x10] sm:$0xff]
                  %851 = vst [vmem:[%s847 + $0x8] sm:$0xff] %v850
                  %v852 = vld [vmem:[%s846 + $0x20] sm:$0xff]
                  %853 = vst [vmem:[%s847 + $0x10] sm:$0xff] %v852
                  %v854 = vld [vmem:[%s846 + $0x30] sm:$0xff]
                  %855 = vst [vmem:[%s847 + $0x18] sm:$0xff] %v854
                  %v856 = vld [vmem:[%s846 + $0x40] sm:$0xff]
                  %857 = vst [vmem:[%s847 + $0x20] sm:$0xff] %v856
                  %v858 = vld [vmem:[%s846 + $0x50] sm:$0xff]
                  %859 = vst [vmem:[%s847 + $0x28] sm:$0xff] %v858
                  %v860 = vld [vmem:[%s846 + $0x60] sm:$0xff]
                  %861 = vst [vmem:[%s847 + $0x30] sm:$0xff] %v860
                  %v862 = vld [vmem:[%s846 + $0x70] sm:$0xff]
                  %863 = vst [vmem:[%s847 + $0x38] sm:$0xff] %v862
                  %v864 = vld [vmem:[%s846 + $0x80] sm:$0xff]
                  %865 = vst [vmem:[%s847 + $0x40] sm:$0xff] %v864
                  %v866 = vld [vmem:[%s846 + $0x90] sm:$0xff]
                  %867 = vst [vmem:[%s847 + $0x48] sm:$0xff] %v866
                  %v868 = vld [vmem:[%s846 + $0xa0] sm:$0xff]
                  %869 = vst [vmem:[%s847 + $0x50] sm:$0xff] %v868
                  %v870 = vld [vmem:[%s846 + $0xb0] sm:$0xff]
                  %871 = vst [vmem:[%s847 + $0x58] sm:$0xff] %v870
                  %v872 = vld [vmem:[%s846 + $0xc0] sm:$0xff]
                  %873 = vst [vmem:[%s847 + $0x60] sm:$0xff] %v872
                  %v874 = vld [vmem:[%s846 + $0xd0] sm:$0xff]
                  %875 = vst [vmem:[%s847 + $0x68] sm:$0xff] %v874
                  %v876 = vld [vmem:[%s846 + $0xe0] sm:$0xff]
                  %877 = vst [vmem:[%s847 + $0x70] sm:$0xff] %v876
                  %v878 = vld [vmem:[%s846 + $0xf0] sm:$0xff]
                  %879 = vst [vmem:[%s847 + $0x78] sm:$0xff] %v878
                  %v880 = vld [vmem:[%s846 + $0x100] sm:$0xff]
                  %881 = vst [vmem:[%s847 + $0x80] sm:$0xff] %v880
                  %v882 = vld [vmem:[%s846 + $0x110] sm:$0xff]
                  %883 = vst [vmem:[%s847 + $0x88] sm:$0xff] %v882
                  %v884 = vld [vmem:[%s846 + $0x120] sm:$0xff]
                  %885 = vst [vmem:[%s847 + $0x90] sm:$0xff] %v884
                  %v886 = vld [vmem:[%s846 + $0x130] sm:$0xff]
                  %887 = vst [vmem:[%s847 + $0x98] sm:$0xff] %v886
                  %v888 = vld [vmem:[%s846 + $0x140] sm:$0xff]
                  %889 = vst [vmem:[%s847 + $0xa0] sm:$0xff] %v888
                  %v890 = vld [vmem:[%s846 + $0x150] sm:$0xff]
                  %891 = vst [vmem:[%s847 + $0xa8] sm:$0xff] %v890
                  %v892 = vld [vmem:[%s846 + $0x160] sm:$0xff]
                  %893 = vst [vmem:[%s847 + $0xb0] sm:$0xff] %v892
                  %v894 = vld [vmem:[%s846 + $0x170] sm:$0xff]
                  %895 = vst [vmem:[%s847 + $0xb8] sm:$0xff] %v894
                  %v896 = vld [vmem:[%s846 + $0x180] sm:$0xff]
                  %897 = vst [vmem:[%s847 + $0xc0] sm:$0xff] %v896
                  %v898 = vld [vmem:[%s846 + $0x190] sm:$0xff]
                  %899 = vst [vmem:[%s847 + $0xc8] sm:$0xff] %v898
                  %v900 = vld [vmem:[%s846 + $0x1a0] sm:$0xff]
                  %901 = vst [vmem:[%s847 + $0xd0] sm:$0xff] %v900
                  %v902 = vld [vmem:[%s846 + $0x1b0] sm:$0xff]
                  %903 = vst [vmem:[%s847 + $0xd8] sm:$0xff] %v902
                  %v904 = vld [vmem:[%s846 + $0x1c0] sm:$0xff]
                  %905 = vst [vmem:[%s847 + $0xe0] sm:$0xff] %v904
                  %v906 = vld [vmem:[%s846 + $0x1d0] sm:$0xff]
                  %907 = vst [vmem:[%s847 + $0xe8] sm:$0xff] %v906
                  %v908 = vld [vmem:[%s846 + $0x1e0] sm:$0xff]
                  %909 = vst [vmem:[%s847 + $0xf0] sm:$0xff] %v908
                  %v910 = vld [vmem:[%s846 + $0x1f0] sm:$0xff]
                  %911 = vst [vmem:[%s847 + $0xf8] sm:$0xff] %v910
                  %v912 = vld [vmem:[%s846 + $0x200] sm:$0xff]
                  %913 = vst [vmem:[%s847 + $0x100] sm:$0xff] %v912
                  %v914 = vld [vmem:[%s846 + $0x210] sm:$0xff]
                  %915 = vst [vmem:[%s847 + $0x108] sm:$0xff] %v914
                  %v916 = vld [vmem:[%s846 + $0x220] sm:$0xff]
                  %917 = vst [vmem:[%s847 + $0x110] sm:$0xff] %v916
                  %v918 = vld [vmem:[%s846 + $0x230] sm:$0xff]
                  %919 = vst [vmem:[%s847 + $0x118] sm:$0xff] %v918
                  %v920 = vld [vmem:[%s846 + $0x240] sm:$0xff]
                  %921 = vst [vmem:[%s847 + $0x120] sm:$0xff] %v920
                  %v922 = vld [vmem:[%s846 + $0x250] sm:$0xff]
                  %923 = vst [vmem:[%s847 + $0x128] sm:$0xff] %v922
                  %v924 = vld [vmem:[%s846 + $0x260] sm:$0xff]
                  %925 = vst [vmem:[%s847 + $0x130] sm:$0xff] %v924
                  %v926 = vld [vmem:[%s846 + $0x270] sm:$0xff]
                  %927 = vst [vmem:[%s847 + $0x138] sm:$0xff] %v926
                  %v928 = vld [vmem:[%s846 + $0x280] sm:$0xff]
                  %929 = vst [vmem:[%s847 + $0x140] sm:$0xff] %v928
                  %v930 = vld [vmem:[%s846 + $0x290] sm:$0xff]
                  %931 = vst [vmem:[%s847 + $0x148] sm:$0xff] %v930
                  %v932 = vld [vmem:[%s846 + $0x2a0] sm:$0xff]
                  %933 = vst [vmem:[%s847 + $0x150] sm:$0xff] %v932
                  %v934 = vld [vmem:[%s846 + $0x2b0] sm:$0xff]
                  %935 = vst [vmem:[%s847 + $0x158] sm:$0xff] %v934
                  %v936 = vld [vmem:[%s846 + $0x2c0] sm:$0xff]
                  %937 = vst [vmem:[%s847 + $0x160] sm:$0xff] %v936
                  %v938 = vld [vmem:[%s846 + $0x2d0] sm:$0xff]
                  %939 = vst [vmem:[%s847 + $0x168] sm:$0xff] %v938
                  %v940 = vld [vmem:[%s846 + $0x2e0] sm:$0xff]
                  %941 = vst [vmem:[%s847 + $0x170] sm:$0xff] %v940
                  %v942 = vld [vmem:[%s846 + $0x2f0] sm:$0xff]
                  %943 = vst [vmem:[%s847 + $0x178] sm:$0xff] %v942
                  %v944 = vld [vmem:[%s846 + $0x300] sm:$0xff]
                  %945 = vst [vmem:[%s847 + $0x180] sm:$0xff] %v944
                  %v946 = vld [vmem:[%s846 + $0x310] sm:$0xff]
                  %947 = vst [vmem:[%s847 + $0x188] sm:$0xff] %v946
                  %v948 = vld [vmem:[%s846 + $0x320] sm:$0xff]
                  %949 = vst [vmem:[%s847 + $0x190] sm:$0xff] %v948
                  %v950 = vld [vmem:[%s846 + $0x330] sm:$0xff]
                  %951 = vst [vmem:[%s847 + $0x198] sm:$0xff] %v950
                  %v952 = vld [vmem:[%s846 + $0x340] sm:$0xff]
                  %953 = vst [vmem:[%s847 + $0x1a0] sm:$0xff] %v952
                  %v954 = vld [vmem:[%s846 + $0x350] sm:$0xff]
                  %955 = vst [vmem:[%s847 + $0x1a8] sm:$0xff] %v954
                  %v956 = vld [vmem:[%s846 + $0x360] sm:$0xff]
                  %957 = vst [vmem:[%s847 + $0x1b0] sm:$0xff] %v956
                  %v958 = vld [vmem:[%s846 + $0x370] sm:$0xff]
                  %959 = vst [vmem:[%s847 + $0x1b8] sm:$0xff] %v958
                  %v960 = vld [vmem:[%s846 + $0x380] sm:$0xff]
                  %961 = vst [vmem:[%s847 + $0x1c0] sm:$0xff] %v960
                  %v962 = vld [vmem:[%s846 + $0x390] sm:$0xff]
                  %963 = vst [vmem:[%s847 + $0x1c8] sm:$0xff] %v962
                  %v964 = vld [vmem:[%s846 + $0x3a0] sm:$0xff]
                  %965 = vst [vmem:[%s847 + $0x1d0] sm:$0xff] %v964
                  %v966 = vld [vmem:[%s846 + $0x3b0] sm:$0xff]
                  %967 = vst [vmem:[%s847 + $0x1d8] sm:$0xff] %v966
                  %v968 = vld [vmem:[%s846 + $0x3c0] sm:$0xff]
                  %969 = vst [vmem:[%s847 + $0x1e0] sm:$0xff] %v968
                  %v970 = vld [vmem:[%s846 + $0x3d0] sm:$0xff]
                  %971 = vst [vmem:[%s847 + $0x1e8] sm:$0xff] %v970
                  %v972 = vld [vmem:[%s846 + $0x3e0] sm:$0xff]
                  %973 = vst [vmem:[%s847 + $0x1f0] sm:$0xff] %v972
                  %v974 = vld [vmem:[%s846 + $0x3f0] sm:$0xff]
                  %975 = vst [vmem:[%s847 + $0x1f8] sm:$0xff] %v974
                  %v976 = vld [vmem:[%s846 + $0x400] sm:$0xff]
                  %977 = vst [vmem:[%s847 + $0x200] sm:$0xff] %v976
                  %v978 = vld [vmem:[%s846 + $0x410] sm:$0xff]
                  %979 = vst [vmem:[%s847 + $0x208] sm:$0xff] %v978
                  %v980 = vld [vmem:[%s846 + $0x420] sm:$0xff]
                  %981 = vst [vmem:[%s847 + $0x210] sm:$0xff] %v980
                  %v982 = vld [vmem:[%s846 + $0x430] sm:$0xff]
                  %983 = vst [vmem:[%s847 + $0x218] sm:$0xff] %v982
                  %v984 = vld [vmem:[%s846 + $0x440] sm:$0xff]
                  %985 = vst [vmem:[%s847 + $0x220] sm:$0xff] %v984
                  %v986 = vld [vmem:[%s846 + $0x450] sm:$0xff]
                  %987 = vst [vmem:[%s847 + $0x228] sm:$0xff] %v986
                  %v988 = vld [vmem:[%s846 + $0x460] sm:$0xff]
                  %989 = vst [vmem:[%s847 + $0x230] sm:$0xff] %v988
                  %v990 = vld [vmem:[%s846 + $0x470] sm:$0xff]
                  %991 = vst [vmem:[%s847 + $0x238] sm:$0xff] %v990
                  %v992 = vld [vmem:[%s846 + $0x480] sm:$0xff]
                  %993 = vst [vmem:[%s847 + $0x240] sm:$0xff] %v992
                  %v994 = vld [vmem:[%s846 + $0x490] sm:$0xff]
                  %995 = vst [vmem:[%s847 + $0x248] sm:$0xff] %v994
                  %v996 = vld [vmem:[%s846 + $0x4a0] sm:$0xff]
                  %997 = vst [vmem:[%s847 + $0x250] sm:$0xff] %v996
                  %v998 = vld [vmem:[%s846 + $0x4b0] sm:$0xff]
                  %999 = vst [vmem:[%s847 + $0x258] sm:$0xff] %v998
                  %v1000 = vld [vmem:[%s846 + $0x4c0] sm:$0xff]
                  %1001 = vst [vmem:[%s847 + $0x260] sm:$0xff] %v1000
                  %v1002 = vld [vmem:[%s846 + $0x4d0] sm:$0xff]
                  %1003 = vst [vmem:[%s847 + $0x268] sm:$0xff] %v1002
                  %v1004 = vld [vmem:[%s846 + $0x4e0] sm:$0xff]
                  %1005 = vst [vmem:[%s847 + $0x270] sm:$0xff] %v1004
                  %v1006 = vld [vmem:[%s846 + $0x4f0] sm:$0xff]
                  %1007 = vst [vmem:[%s847 + $0x278] sm:$0xff] %v1006
                  %v1008 = vld [vmem:[%s846 + $0x500] sm:$0xff]
                  %1009 = vst [vmem:[%s847 + $0x280] sm:$0xff] %v1008
                  %v1010 = vld [vmem:[%s846 + $0x510] sm:$0xff]
                  %1011 = vst [vmem:[%s847 + $0x288] sm:$0xff] %v1010
                  %v1012 = vld [vmem:[%s846 + $0x520] sm:$0xff]
                  %1013 = vst [vmem:[%s847 + $0x290] sm:$0xff] %v1012
                  %v1014 = vld [vmem:[%s846 + $0x530] sm:$0xff]
                  %1015 = vst [vmem:[%s847 + $0x298] sm:$0xff] %v1014
                  %v1016 = vld [vmem:[%s846 + $0x540] sm:$0xff]
                  %1017 = vst [vmem:[%s847 + $0x2a0] sm:$0xff] %v1016
                  %v1018 = vld [vmem:[%s846 + $0x550] sm:$0xff]
                  %1019 = vst [vmem:[%s847 + $0x2a8] sm:$0xff] %v1018
                  %v1020 = vld [vmem:[%s846 + $0x560] sm:$0xff]
                  %1021 = vst [vmem:[%s847 + $0x2b0] sm:$0xff] %v1020
                  %v1022 = vld [vmem:[%s846 + $0x570] sm:$0xff]
                  %1023 = vst [vmem:[%s847 + $0x2b8] sm:$0xff] %v1022
                  %v1024 = vld [vmem:[%s846 + $0x580] sm:$0xff]
                  %1025 = vst [vmem:[%s847 + $0x2c0] sm:$0xff] %v1024
                  %v1026 = vld [vmem:[%s846 + $0x590] sm:$0xff]
                  %1027 = vst [vmem:[%s847 + $0x2c8] sm:$0xff] %v1026
                  %v1028 = vld [vmem:[%s846 + $0x5a0] sm:$0xff]
                  %1029 = vst [vmem:[%s847 + $0x2d0] sm:$0xff] %v1028
                  %v1030 = vld [vmem:[%s846 + $0x5b0] sm:$0xff]
                  %1031 = vst [vmem:[%s847 + $0x2d8] sm:$0xff] %v1030
                  %v1032 = vld [vmem:[%s846 + $0x5c0] sm:$0xff]
                  %1033 = vst [vmem:[%s847 + $0x2e0] sm:$0xff] %v1032
                  %v1034 = vld [vmem:[%s846 + $0x5d0] sm:$0xff]
                  %1035 = vst [vmem:[%s847 + $0x2e8] sm:$0xff] %v1034
                  %v1036 = vld [vmem:[%s846 + $0x5e0] sm:$0xff]
                  %1037 = vst [vmem:[%s847 + $0x2f0] sm:$0xff] %v1036
                  %v1038 = vld [vmem:[%s846 + $0x5f0] sm:$0xff]
                  %1039 = vst [vmem:[%s847 + $0x2f8] sm:$0xff] %v1038
                  %v1040 = vld [vmem:[%s846 + $0x600] sm:$0xff]
                  %1041 = vst [vmem:[%s847 + $0x300] sm:$0xff] %v1040
                  %v1042 = vld [vmem:[%s846 + $0x610] sm:$0xff]
                  %1043 = vst [vmem:[%s847 + $0x308] sm:$0xff] %v1042
                  %v1044 = vld [vmem:[%s846 + $0x620] sm:$0xff]
                  %1045 = vst [vmem:[%s847 + $0x310] sm:$0xff] %v1044
                  %v1046 = vld [vmem:[%s846 + $0x630] sm:$0xff]
                  %1047 = vst [vmem:[%s847 + $0x318] sm:$0xff] %v1046
                  %v1048 = vld [vmem:[%s846 + $0x640] sm:$0xff]
                  %1049 = vst [vmem:[%s847 + $0x320] sm:$0xff] %v1048
                  %v1050 = vld [vmem:[%s846 + $0x650] sm:$0xff]
                  %1051 = vst [vmem:[%s847 + $0x328] sm:$0xff] %v1050
                  %v1052 = vld [vmem:[%s846 + $0x660] sm:$0xff]
                  %1053 = vst [vmem:[%s847 + $0x330] sm:$0xff] %v1052
                  %v1054 = vld [vmem:[%s846 + $0x670] sm:$0xff]
                  %1055 = vst [vmem:[%s847 + $0x338] sm:$0xff] %v1054
                  %v1056 = vld [vmem:[%s846 + $0x680] sm:$0xff]
                  %1057 = vst [vmem:[%s847 + $0x340] sm:$0xff] %v1056
                  %v1058 = vld [vmem:[%s846 + $0x690] sm:$0xff]
                  %1059 = vst [vmem:[%s847 + $0x348] sm:$0xff] %v1058
                  %v1060 = vld [vmem:[%s846 + $0x6a0] sm:$0xff]
                  %1061 = vst [vmem:[%s847 + $0x350] sm:$0xff] %v1060
                  %v1062 = vld [vmem:[%s846 + $0x6b0] sm:$0xff]
                  %1063 = vst [vmem:[%s847 + $0x358] sm:$0xff] %v1062
                  %v1064 = vld [vmem:[%s846 + $0x6c0] sm:$0xff]
                  %1065 = vst [vmem:[%s847 + $0x360] sm:$0xff] %v1064
                  %v1066 = vld [vmem:[%s846 + $0x6d0] sm:$0xff]
                  %1067 = vst [vmem:[%s847 + $0x368] sm:$0xff] %v1066
                  %v1068 = vld [vmem:[%s846 + $0x6e0] sm:$0xff]
                  %1069 = vst [vmem:[%s847 + $0x370] sm:$0xff] %v1068
                  %v1070 = vld [vmem:[%s846 + $0x6f0] sm:$0xff]
                  %1071 = vst [vmem:[%s847 + $0x378] sm:$0xff] %v1070
                  %v1072 = vld [vmem:[%s846 + $0x700] sm:$0xff]
                  %1073 = vst [vmem:[%s847 + $0x380] sm:$0xff] %v1072
                  %v1074 = vld [vmem:[%s846 + $0x710] sm:$0xff]
                  %1075 = vst [vmem:[%s847 + $0x388] sm:$0xff] %v1074
                  %v1076 = vld [vmem:[%s846 + $0x720] sm:$0xff]
                  %1077 = vst [vmem:[%s847 + $0x390] sm:$0xff] %v1076
                  %v1078 = vld [vmem:[%s846 + $0x730] sm:$0xff]
                  %1079 = vst [vmem:[%s847 + $0x398] sm:$0xff] %v1078
                  %v1080 = vld [vmem:[%s846 + $0x740] sm:$0xff]
                  %1081 = vst [vmem:[%s847 + $0x3a0] sm:$0xff] %v1080
                  %v1082 = vld [vmem:[%s846 + $0x750] sm:$0xff]
                  %1083 = vst [vmem:[%s847 + $0x3a8] sm:$0xff] %v1082
                  %v1084 = vld [vmem:[%s846 + $0x760] sm:$0xff]
                  %1085 = vst [vmem:[%s847 + $0x3b0] sm:$0xff] %v1084
                  %v1086 = vld [vmem:[%s846 + $0x770] sm:$0xff]
                  %1087 = vst [vmem:[%s847 + $0x3b8] sm:$0xff] %v1086
                  %v1088 = vld [vmem:[%s846 + $0x780] sm:$0xff]
                  %1089 = vst [vmem:[%s847 + $0x3c0] sm:$0xff] %v1088
                  %v1090 = vld [vmem:[%s846 + $0x790] sm:$0xff]
                  %1091 = vst [vmem:[%s847 + $0x3c8] sm:$0xff] %v1090
                  %v1092 = vld [vmem:[%s846 + $0x7a0] sm:$0xff]
                  %1093 = vst [vmem:[%s847 + $0x3d0] sm:$0xff] %v1092
                  %v1094 = vld [vmem:[%s846 + $0x7b0] sm:$0xff]
                  %1095 = vst [vmem:[%s847 + $0x3d8] sm:$0xff] %v1094
                  %v1096 = vld [vmem:[%s846 + $0x7c0] sm:$0xff]
                  %1097 = vst [vmem:[%s847 + $0x3e0] sm:$0xff] %v1096
                  %v1098 = vld [vmem:[%s846 + $0x7d0] sm:$0xff]
                  %1099 = vst [vmem:[%s847 + $0x3e8] sm:$0xff] %v1098
                  %v1100 = vld [vmem:[%s846 + $0x7e0] sm:$0xff]
                  %1101 = vst [vmem:[%s847 + $0x3f0] sm:$0xff] %v1100
                  %v1102 = vld [vmem:[%s846 + $0x7f0] sm:$0xff]
                  %1103 = vst [vmem:[%s847 + $0x3f8] sm:$0xff] %v1102
                  %v1104 = vld [vmem:[%s846 + $0x800] sm:$0xff]
                  %1105 = vst [vmem:[%s847 + $0x400] sm:$0xff] %v1104
                  %v1106 = vld [vmem:[%s846 + $0x810] sm:$0xff]
                  %1107 = vst [vmem:[%s847 + $0x408] sm:$0xff] %v1106
                  %v1108 = vld [vmem:[%s846 + $0x820] sm:$0xff]
                  %1109 = vst [vmem:[%s847 + $0x410] sm:$0xff] %v1108
                  %v1110 = vld [vmem:[%s846 + $0x830] sm:$0xff]
                  %1111 = vst [vmem:[%s847 + $0x418] sm:$0xff] %v1110
                  %v1112 = vld [vmem:[%s846 + $0x840] sm:$0xff]
                  %1113 = vst [vmem:[%s847 + $0x420] sm:$0xff] %v1112
                  %v1114 = vld [vmem:[%s846 + $0x850] sm:$0xff]
                  %1115 = vst [vmem:[%s847 + $0x428] sm:$0xff] %v1114
                  %v1116 = vld [vmem:[%s846 + $0x860] sm:$0xff]
                  %1117 = vst [vmem:[%s847 + $0x430] sm:$0xff] %v1116
                  %v1118 = vld [vmem:[%s846 + $0x870] sm:$0xff]
                  %1119 = vst [vmem:[%s847 + $0x438] sm:$0xff] %v1118
                  %v1120 = vld [vmem:[%s846 + $0x880] sm:$0xff]
                  %1121 = vst [vmem:[%s847 + $0x440] sm:$0xff] %v1120
                  %v1122 = vld [vmem:[%s846 + $0x890] sm:$0xff]
                  %1123 = vst [vmem:[%s847 + $0x448] sm:$0xff] %v1122
                  %v1124 = vld [vmem:[%s846 + $0x8a0] sm:$0xff]
                  %1125 = vst [vmem:[%s847 + $0x450] sm:$0xff] %v1124
                  %v1126 = vld [vmem:[%s846 + $0x8b0] sm:$0xff]
                  %1127 = vst [vmem:[%s847 + $0x458] sm:$0xff] %v1126
                  %v1128 = vld [vmem:[%s846 + $0x8c0] sm:$0xff]
                  %1129 = vst [vmem:[%s847 + $0x460] sm:$0xff] %v1128
                  %v1130 = vld [vmem:[%s846 + $0x8d0] sm:$0xff]
                  %1131 = vst [vmem:[%s847 + $0x468] sm:$0xff] %v1130
                  %v1132 = vld [vmem:[%s846 + $0x8e0] sm:$0xff]
                  %1133 = vst [vmem:[%s847 + $0x470] sm:$0xff] %v1132
                  %v1134 = vld [vmem:[%s846 + $0x8f0] sm:$0xff]
                  %1135 = vst [vmem:[%s847 + $0x478] sm:$0xff] %v1134
                  %v1136 = vld [vmem:[%s846 + $0x900] sm:$0xff]
                  %1137 = vst [vmem:[%s847 + $0x480] sm:$0xff] %v1136
                  %v1138 = vld [vmem:[%s846 + $0x910] sm:$0xff]
                  %1139 = vst [vmem:[%s847 + $0x488] sm:$0xff] %v1138
                  %v1140 = vld [vmem:[%s846 + $0x920] sm:$0xff]
                  %1141 = vst [vmem:[%s847 + $0x490] sm:$0xff] %v1140
                  %v1142 = vld [vmem:[%s846 + $0x930] sm:$0xff]
                  %1143 = vst [vmem:[%s847 + $0x498] sm:$0xff] %v1142
                  %v1144 = vld [vmem:[%s846 + $0x940] sm:$0xff]
                  %1145 = vst [vmem:[%s847 + $0x4a0] sm:$0xff] %v1144
                  %v1146 = vld [vmem:[%s846 + $0x950] sm:$0xff]
                  %1147 = vst [vmem:[%s847 + $0x4a8] sm:$0xff] %v1146
                  %v1148 = vld [vmem:[%s846 + $0x960] sm:$0xff]
                  %1149 = vst [vmem:[%s847 + $0x4b0] sm:$0xff] %v1148
                  %v1150 = vld [vmem:[%s846 + $0x970] sm:$0xff]
                  %1151 = vst [vmem:[%s847 + $0x4b8] sm:$0xff] %v1150
                  %v1152 = vld [vmem:[%s846 + $0x980] sm:$0xff]
                  %1153 = vst [vmem:[%s847 + $0x4c0] sm:$0xff] %v1152
                  %v1154 = vld [vmem:[%s846 + $0x990] sm:$0xff]
                  %1155 = vst [vmem:[%s847 + $0x4c8] sm:$0xff] %v1154
                  %v1156 = vld [vmem:[%s846 + $0x9a0] sm:$0xff]
                  %1157 = vst [vmem:[%s847 + $0x4d0] sm:$0xff] %v1156
                  %v1158 = vld [vmem:[%s846 + $0x9b0] sm:$0xff]
                  %1159 = vst [vmem:[%s847 + $0x4d8] sm:$0xff] %v1158
                  %v1160 = vld [vmem:[%s846 + $0x9c0] sm:$0xff]
                  %1161 = vst [vmem:[%s847 + $0x4e0] sm:$0xff] %v1160
                  %v1162 = vld [vmem:[%s846 + $0x9d0] sm:$0xff]
                  %1163 = vst [vmem:[%s847 + $0x4e8] sm:$0xff] %v1162
                  %v1164 = vld [vmem:[%s846 + $0x9e0] sm:$0xff]
                  %1165 = vst [vmem:[%s847 + $0x4f0] sm:$0xff] %v1164
                  %v1166 = vld [vmem:[%s846 + $0x9f0] sm:$0xff]
                  %1167 = vst [vmem:[%s847 + $0x4f8] sm:$0xff] %v1166
                  %v1168 = vld [vmem:[%s846 + $0xa00] sm:$0xff]
                  %1169 = vst [vmem:[%s847 + $0x500] sm:$0xff] %v1168
                  %v1170 = vld [vmem:[%s846 + $0xa10] sm:$0xff]
                  %1171 = vst [vmem:[%s847 + $0x508] sm:$0xff] %v1170
                  %v1172 = vld [vmem:[%s846 + $0xa20] sm:$0xff]
                  %1173 = vst [vmem:[%s847 + $0x510] sm:$0xff] %v1172
                  %v1174 = vld [vmem:[%s846 + $0xa30] sm:$0xff]
                  %1175 = vst [vmem:[%s847 + $0x518] sm:$0xff] %v1174
                  %v1176 = vld [vmem:[%s846 + $0xa40] sm:$0xff]
                  %1177 = vst [vmem:[%s847 + $0x520] sm:$0xff] %v1176
                  %v1178 = vld [vmem:[%s846 + $0xa50] sm:$0xff]
                  %1179 = vst [vmem:[%s847 + $0x528] sm:$0xff] %v1178
                  %v1180 = vld [vmem:[%s846 + $0xa60] sm:$0xff]
                  %1181 = vst [vmem:[%s847 + $0x530] sm:$0xff] %v1180
                  %v1182 = vld [vmem:[%s846 + $0xa70] sm:$0xff]
                  %1183 = vst [vmem:[%s847 + $0x538] sm:$0xff] %v1182
                  %v1184 = vld [vmem:[%s846 + $0xa80] sm:$0xff]
                  %1185 = vst [vmem:[%s847 + $0x540] sm:$0xff] %v1184
                  %v1186 = vld [vmem:[%s846 + $0xa90] sm:$0xff]
                  %1187 = vst [vmem:[%s847 + $0x548] sm:$0xff] %v1186
                  %v1188 = vld [vmem:[%s846 + $0xaa0] sm:$0xff]
                  %1189 = vst [vmem:[%s847 + $0x550] sm:$0xff] %v1188
                  %v1190 = vld [vmem:[%s846 + $0xab0] sm:$0xff]
                  %1191 = vst [vmem:[%s847 + $0x558] sm:$0xff] %v1190
                  %v1192 = vld [vmem:[%s846 + $0xac0] sm:$0xff]
                  %1193 = vst [vmem:[%s847 + $0x560] sm:$0xff] %v1192
                  %v1194 = vld [vmem:[%s846 + $0xad0] sm:$0xff]
                  %1195 = vst [vmem:[%s847 + $0x568] sm:$0xff] %v1194
                  %v1196 = vld [vmem:[%s846 + $0xae0] sm:$0xff]
                  %1197 = vst [vmem:[%s847 + $0x570] sm:$0xff] %v1196
                  %v1198 = vld [vmem:[%s846 + $0xaf0] sm:$0xff]
                  %1199 = vst [vmem:[%s847 + $0x578] sm:$0xff] %v1198
                  %v1200 = vld [vmem:[%s846 + $0xb00] sm:$0xff]
                  %1201 = vst [vmem:[%s847 + $0x580] sm:$0xff] %v1200
                  %v1202 = vld [vmem:[%s846 + $0xb10] sm:$0xff]
                  %1203 = vst [vmem:[%s847 + $0x588] sm:$0xff] %v1202
                  %v1204 = vld [vmem:[%s846 + $0xb20] sm:$0xff]
                  %1205 = vst [vmem:[%s847 + $0x590] sm:$0xff] %v1204
                  %v1206 = vld [vmem:[%s846 + $0xb30] sm:$0xff]
                  %1207 = vst [vmem:[%s847 + $0x598] sm:$0xff] %v1206
                  %v1208 = vld [vmem:[%s846 + $0xb40] sm:$0xff]
                  %1209 = vst [vmem:[%s847 + $0x5a0] sm:$0xff] %v1208
                  %v1210 = vld [vmem:[%s846 + $0xb50] sm:$0xff]
                  %1211 = vst [vmem:[%s847 + $0x5a8] sm:$0xff] %v1210
                  %v1212 = vld [vmem:[%s846 + $0xb60] sm:$0xff]
                  %1213 = vst [vmem:[%s847 + $0x5b0] sm:$0xff] %v1212
                  %v1214 = vld [vmem:[%s846 + $0xb70] sm:$0xff]
                  %1215 = vst [vmem:[%s847 + $0x5b8] sm:$0xff] %v1214
                  %v1216 = vld [vmem:[%s846 + $0xb80] sm:$0xff]
                  %1217 = vst [vmem:[%s847 + $0x5c0] sm:$0xff] %v1216
                  %v1218 = vld [vmem:[%s846 + $0xb90] sm:$0xff]
                  %1219 = vst [vmem:[%s847 + $0x5c8] sm:$0xff] %v1218
                  %v1220 = vld [vmem:[%s846 + $0xba0] sm:$0xff]
                  %1221 = vst [vmem:[%s847 + $0x5d0] sm:$0xff] %v1220
                  %v1222 = vld [vmem:[%s846 + $0xbb0] sm:$0xff]
                  %1223 = vst [vmem:[%s847 + $0x5d8] sm:$0xff] %v1222
                  %v1224 = vld [vmem:[%s846 + $0xbc0] sm:$0xff]
                  %1225 = vst [vmem:[%s847 + $0x5e0] sm:$0xff] %v1224
                  %v1226 = vld [vmem:[%s846 + $0xbd0] sm:$0xff]
                  %1227 = vst [vmem:[%s847 + $0x5e8] sm:$0xff] %v1226
                  %v1228 = vld [vmem:[%s846 + $0xbe0] sm:$0xff]
                  %1229 = vst [vmem:[%s847 + $0x5f0] sm:$0xff] %v1228
                  %v1230 = vld [vmem:[%s846 + $0xbf0] sm:$0xff]
                  %1231 = vst [vmem:[%s847 + $0x5f8] sm:$0xff] %v1230
                  %v1232 = vld [vmem:[%s846 + $0xc00] sm:$0xff]
                  %1233 = vst [vmem:[%s847 + $0x600] sm:$0xff] %v1232
                  %v1234 = vld [vmem:[%s846 + $0xc10] sm:$0xff]
                  %1235 = vst [vmem:[%s847 + $0x608] sm:$0xff] %v1234
                  %v1236 = vld [vmem:[%s846 + $0xc20] sm:$0xff]
                  %1237 = vst [vmem:[%s847 + $0x610] sm:$0xff] %v1236
                  %v1238 = vld [vmem:[%s846 + $0xc30] sm:$0xff]
                  %1239 = vst [vmem:[%s847 + $0x618] sm:$0xff] %v1238
                  %v1240 = vld [vmem:[%s846 + $0xc40] sm:$0xff]
                  %1241 = vst [vmem:[%s847 + $0x620] sm:$0xff] %v1240
                  %v1242 = vld [vmem:[%s846 + $0xc50] sm:$0xff]
                  %1243 = vst [vmem:[%s847 + $0x628] sm:$0xff] %v1242
                  %v1244 = vld [vmem:[%s846 + $0xc60] sm:$0xff]
                  %1245 = vst [vmem:[%s847 + $0x630] sm:$0xff] %v1244
                  %v1246 = vld [vmem:[%s846 + $0xc70] sm:$0xff]
                  %1247 = vst [vmem:[%s847 + $0x638] sm:$0xff] %v1246
                  %v1248 = vld [vmem:[%s846 + $0xc80] sm:$0xff]
                  %1249 = vst [vmem:[%s847 + $0x640] sm:$0xff] %v1248
                  %v1250 = vld [vmem:[%s846 + $0xc90] sm:$0xff]
                  %1251 = vst [vmem:[%s847 + $0x648] sm:$0xff] %v1250
                  %v1252 = vld [vmem:[%s846 + $0xca0] sm:$0xff]
                  %1253 = vst [vmem:[%s847 + $0x650] sm:$0xff] %v1252
                  %v1254 = vld [vmem:[%s846 + $0xcb0] sm:$0xff]
                  %1255 = vst [vmem:[%s847 + $0x658] sm:$0xff] %v1254
                  %v1256 = vld [vmem:[%s846 + $0xcc0] sm:$0xff]
                  %1257 = vst [vmem:[%s847 + $0x660] sm:$0xff] %v1256
                  %v1258 = vld [vmem:[%s846 + $0xcd0] sm:$0xff]
                  %1259 = vst [vmem:[%s847 + $0x668] sm:$0xff] %v1258
                  %v1260 = vld [vmem:[%s846 + $0xce0] sm:$0xff]
                  %1261 = vst [vmem:[%s847 + $0x670] sm:$0xff] %v1260
                  %v1262 = vld [vmem:[%s846 + $0xcf0] sm:$0xff]
                  %1263 = vst [vmem:[%s847 + $0x678] sm:$0xff] %v1262
                  %v1264 = vld [vmem:[%s846 + $0xd00] sm:$0xff]
                  %1265 = vst [vmem:[%s847 + $0x680] sm:$0xff] %v1264
                  %v1266 = vld [vmem:[%s846 + $0xd10] sm:$0xff]
                  %1267 = vst [vmem:[%s847 + $0x688] sm:$0xff] %v1266
                  %v1268 = vld [vmem:[%s846 + $0xd20] sm:$0xff]
                  %1269 = vst [vmem:[%s847 + $0x690] sm:$0xff] %v1268
                  %v1270 = vld [vmem:[%s846 + $0xd30] sm:$0xff]
                  %1271 = vst [vmem:[%s847 + $0x698] sm:$0xff] %v1270
                  %v1272 = vld [vmem:[%s846 + $0xd40] sm:$0xff]
                  %1273 = vst [vmem:[%s847 + $0x6a0] sm:$0xff] %v1272
                  %v1274 = vld [vmem:[%s846 + $0xd50] sm:$0xff]
                  %1275 = vst [vmem:[%s847 + $0x6a8] sm:$0xff] %v1274
                  %v1276 = vld [vmem:[%s846 + $0xd60] sm:$0xff]
                  %1277 = vst [vmem:[%s847 + $0x6b0] sm:$0xff] %v1276
                  %v1278 = vld [vmem:[%s846 + $0xd70] sm:$0xff]
                  %1279 = vst [vmem:[%s847 + $0x6b8] sm:$0xff] %v1278
                  %v1280 = vld [vmem:[%s846 + $0xd80] sm:$0xff]
                  %1281 = vst [vmem:[%s847 + $0x6c0] sm:$0xff] %v1280
                  %v1282 = vld [vmem:[%s846 + $0xd90] sm:$0xff]
                  %1283 = vst [vmem:[%s847 + $0x6c8] sm:$0xff] %v1282
                  %v1284 = vld [vmem:[%s846 + $0xda0] sm:$0xff]
                  %1285 = vst [vmem:[%s847 + $0x6d0] sm:$0xff] %v1284
                  %v1286 = vld [vmem:[%s846 + $0xdb0] sm:$0xff]
                  %1287 = vst [vmem:[%s847 + $0x6d8] sm:$0xff] %v1286
                  %v1288 = vld [vmem:[%s846 + $0xdc0] sm:$0xff]
                  %1289 = vst [vmem:[%s847 + $0x6e0] sm:$0xff] %v1288
                  %v1290 = vld [vmem:[%s846 + $0xdd0] sm:$0xff]
                  %1291 = vst [vmem:[%s847 + $0x6e8] sm:$0xff] %v1290
                  %v1292 = vld [vmem:[%s846 + $0xde0] sm:$0xff]
                  %1293 = vst [vmem:[%s847 + $0x6f0] sm:$0xff] %v1292
                  %v1294 = vld [vmem:[%s846 + $0xdf0] sm:$0xff]
                  %1295 = vst [vmem:[%s847 + $0x6f8] sm:$0xff] %v1294
                  %v1296 = vld [vmem:[%s846 + $0xe00] sm:$0xff]
                  %1297 = vst [vmem:[%s847 + $0x700] sm:$0xff] %v1296
                  %v1298 = vld [vmem:[%s846 + $0xe10] sm:$0xff]
                  %1299 = vst [vmem:[%s847 + $0x708] sm:$0xff] %v1298
                  %v1300 = vld [vmem:[%s846 + $0xe20] sm:$0xff]
                  %1301 = vst [vmem:[%s847 + $0x710] sm:$0xff] %v1300
                  %v1302 = vld [vmem:[%s846 + $0xe30] sm:$0xff]
                  %1303 = vst [vmem:[%s847 + $0x718] sm:$0xff] %v1302
                  %v1304 = vld [vmem:[%s846 + $0xe40] sm:$0xff]
                  %1305 = vst [vmem:[%s847 + $0x720] sm:$0xff] %v1304
                  %v1306 = vld [vmem:[%s846 + $0xe50] sm:$0xff]
                  %1307 = vst [vmem:[%s847 + $0x728] sm:$0xff] %v1306
                  %v1308 = vld [vmem:[%s846 + $0xe60] sm:$0xff]
                  %1309 = vst [vmem:[%s847 + $0x730] sm:$0xff] %v1308
                  %v1310 = vld [vmem:[%s846 + $0xe70] sm:$0xff]
                  %1311 = vst [vmem:[%s847 + $0x738] sm:$0xff] %v1310
                  %v1312 = vld [vmem:[%s846 + $0xe80] sm:$0xff]
                  %1313 = vst [vmem:[%s847 + $0x740] sm:$0xff] %v1312
                  %v1314 = vld [vmem:[%s846 + $0xe90] sm:$0xff]
                  %1315 = vst [vmem:[%s847 + $0x748] sm:$0xff] %v1314
                  %v1316 = vld [vmem:[%s846 + $0xea0] sm:$0xff]
                  %1317 = vst [vmem:[%s847 + $0x750] sm:$0xff] %v1316
                  %v1318 = vld [vmem:[%s846 + $0xeb0] sm:$0xff]
                  %1319 = vst [vmem:[%s847 + $0x758] sm:$0xff] %v1318
                  %v1320 = vld [vmem:[%s846 + $0xec0] sm:$0xff]
                  %1321 = vst [vmem:[%s847 + $0x760] sm:$0xff] %v1320
                  %v1322 = vld [vmem:[%s846 + $0xed0] sm:$0xff]
                  %1323 = vst [vmem:[%s847 + $0x768] sm:$0xff] %v1322
                  %v1324 = vld [vmem:[%s846 + $0xee0] sm:$0xff]
                  %1325 = vst [vmem:[%s847 + $0x770] sm:$0xff] %v1324
                  %v1326 = vld [vmem:[%s846 + $0xef0] sm:$0xff]
                  %1327 = vst [vmem:[%s847 + $0x778] sm:$0xff] %v1326
                  %v1328 = vld [vmem:[%s846 + $0xf00] sm:$0xff]
                  %1329 = vst [vmem:[%s847 + $0x780] sm:$0xff] %v1328
                  %v1330 = vld [vmem:[%s846 + $0xf10] sm:$0xff]
                  %1331 = vst [vmem:[%s847 + $0x788] sm:$0xff] %v1330
                  %v1332 = vld [vmem:[%s846 + $0xf20] sm:$0xff]
                  %1333 = vst [vmem:[%s847 + $0x790] sm:$0xff] %v1332
                  %v1334 = vld [vmem:[%s846 + $0xf30] sm:$0xff]
                  %1335 = vst [vmem:[%s847 + $0x798] sm:$0xff] %v1334
                  %v1336 = vld [vmem:[%s846 + $0xf40] sm:$0xff]
                  %1337 = vst [vmem:[%s847 + $0x7a0] sm:$0xff] %v1336
                  %v1338 = vld [vmem:[%s846 + $0xf50] sm:$0xff]
                  %1339 = vst [vmem:[%s847 + $0x7a8] sm:$0xff] %v1338
                  %v1340 = vld [vmem:[%s846 + $0xf60] sm:$0xff]
                  %1341 = vst [vmem:[%s847 + $0x7b0] sm:$0xff] %v1340
                  %v1342 = vld [vmem:[%s846 + $0xf70] sm:$0xff]
                  %1343 = vst [vmem:[%s847 + $0x7b8] sm:$0xff] %v1342
                  %v1344 = vld [vmem:[%s846 + $0xf80] sm:$0xff]
                  %1345 = vst [vmem:[%s847 + $0x7c0] sm:$0xff] %v1344
                  %v1346 = vld [vmem:[%s846 + $0xf90] sm:$0xff]
                  %1347 = vst [vmem:[%s847 + $0x7c8] sm:$0xff] %v1346
                  %v1348 = vld [vmem:[%s846 + $0xfa0] sm:$0xff]
                  %1349 = vst [vmem:[%s847 + $0x7d0] sm:$0xff] %v1348
                  %v1350 = vld [vmem:[%s846 + $0xfb0] sm:$0xff]
                  %1351 = vst [vmem:[%s847 + $0x7d8] sm:$0xff] %v1350
                  %v1352 = vld [vmem:[%s846 + $0xfc0] sm:$0xff]
                  %1353 = vst [vmem:[%s847 + $0x7e0] sm:$0xff] %v1352
                  %v1354 = vld [vmem:[%s846 + $0xfd0] sm:$0xff]
                  %1355 = vst [vmem:[%s847 + $0x7e8] sm:$0xff] %v1354
                  %v1356 = vld [vmem:[%s846 + $0xfe0] sm:$0xff]
                  %1357 = vst [vmem:[%s847 + $0x7f0] sm:$0xff] %v1356
                  %v1358 = vld [vmem:[%s846 + $0xff0] sm:$0xff]
                  %1359 = vst [vmem:[%s847 + $0x7f8] sm:$0xff] %v1358
                  %v1360 = vld [vmem:[%s846 + $0x1000] sm:$0xff]
                  %1361 = vst [vmem:[%s847 + $0x800] sm:$0xff] %v1360
                  %v1362 = vld [vmem:[%s846 + $0x1010] sm:$0xff]
                  %1363 = vst [vmem:[%s847 + $0x808] sm:$0xff] %v1362
                  %v1364 = vld [vmem:[%s846 + $0x1020] sm:$0xff]
                  %1365 = vst [vmem:[%s847 + $0x810] sm:$0xff] %v1364
                  %v1366 = vld [vmem:[%s846 + $0x1030] sm:$0xff]
                  %1367 = vst [vmem:[%s847 + $0x818] sm:$0xff] %v1366
                  %v1368 = vld [vmem:[%s846 + $0x1040] sm:$0xff]
                  %1369 = vst [vmem:[%s847 + $0x820] sm:$0xff] %v1368
                  %v1370 = vld [vmem:[%s846 + $0x1050] sm:$0xff]
                  %1371 = vst [vmem:[%s847 + $0x828] sm:$0xff] %v1370
                  %v1372 = vld [vmem:[%s846 + $0x1060] sm:$0xff]
                  %1373 = vst [vmem:[%s847 + $0x830] sm:$0xff] %v1372
                  %v1374 = vld [vmem:[%s846 + $0x1070] sm:$0xff]
                  %1375 = vst [vmem:[%s847 + $0x838] sm:$0xff] %v1374
                  %v1376 = vld [vmem:[%s846 + $0x1080] sm:$0xff]
                  %1377 = vst [vmem:[%s847 + $0x840] sm:$0xff] %v1376
                  %v1378 = vld [vmem:[%s846 + $0x1090] sm:$0xff]
                  %1379 = vst [vmem:[%s847 + $0x848] sm:$0xff] %v1378
                  %v1380 = vld [vmem:[%s846 + $0x10a0] sm:$0xff]
                  %1381 = vst [vmem:[%s847 + $0x850] sm:$0xff] %v1380
                  %v1382 = vld [vmem:[%s846 + $0x10b0] sm:$0xff]
                  %1383 = vst [vmem:[%s847 + $0x858] sm:$0xff] %v1382
                  %v1384 = vld [vmem:[%s846 + $0x10c0] sm:$0xff]
                  %1385 = vst [vmem:[%s847 + $0x860] sm:$0xff] %v1384
                  %v1386 = vld [vmem:[%s846 + $0x10d0] sm:$0xff]
                  %1387 = vst [vmem:[%s847 + $0x868] sm:$0xff] %v1386
                  %v1388 = vld [vmem:[%s846 + $0x10e0] sm:$0xff]
                  %1389 = vst [vmem:[%s847 + $0x870] sm:$0xff] %v1388
                  %v1390 = vld [vmem:[%s846 + $0x10f0] sm:$0xff]
                  %1391 = vst [vmem:[%s847 + $0x878] sm:$0xff] %v1390
                  %v1392 = vld [vmem:[%s846 + $0x1100] sm:$0xff]
                  %1393 = vst [vmem:[%s847 + $0x880] sm:$0xff] %v1392
                  %v1394 = vld [vmem:[%s846 + $0x1110] sm:$0xff]
                  %1395 = vst [vmem:[%s847 + $0x888] sm:$0xff] %v1394
                  %v1396 = vld [vmem:[%s846 + $0x1120] sm:$0xff]
                  %1397 = vst [vmem:[%s847 + $0x890] sm:$0xff] %v1396
                  %v1398 = vld [vmem:[%s846 + $0x1130] sm:$0xff]
                  %1399 = vst [vmem:[%s847 + $0x898] sm:$0xff] %v1398
                  %v1400 = vld [vmem:[%s846 + $0x1140] sm:$0xff]
                  %1401 = vst [vmem:[%s847 + $0x8a0] sm:$0xff] %v1400
                  %v1402 = vld [vmem:[%s846 + $0x1150] sm:$0xff]
                  %1403 = vst [vmem:[%s847 + $0x8a8] sm:$0xff] %v1402
                  %v1404 = vld [vmem:[%s846 + $0x1160] sm:$0xff]
                  %1405 = vst [vmem:[%s847 + $0x8b0] sm:$0xff] %v1404
                  %v1406 = vld [vmem:[%s846 + $0x1170] sm:$0xff]
                  %1407 = vst [vmem:[%s847 + $0x8b8] sm:$0xff] %v1406
                  %v1408 = vld [vmem:[%s846 + $0x1180] sm:$0xff]
                  %1409 = vst [vmem:[%s847 + $0x8c0] sm:$0xff] %v1408
                  %v1410 = vld [vmem:[%s846 + $0x1190] sm:$0xff]
                  %1411 = vst [vmem:[%s847 + $0x8c8] sm:$0xff] %v1410
                  %v1412 = vld [vmem:[%s846 + $0x11a0] sm:$0xff]
                  %1413 = vst [vmem:[%s847 + $0x8d0] sm:$0xff] %v1412
                  %v1414 = vld [vmem:[%s846 + $0x11b0] sm:$0xff]
                  %1415 = vst [vmem:[%s847 + $0x8d8] sm:$0xff] %v1414
                  %v1416 = vld [vmem:[%s846 + $0x11c0] sm:$0xff]
                  %1417 = vst [vmem:[%s847 + $0x8e0] sm:$0xff] %v1416
                  %v1418 = vld [vmem:[%s846 + $0x11d0] sm:$0xff]
                  %1419 = vst [vmem:[%s847 + $0x8e8] sm:$0xff] %v1418
                  %v1420 = vld [vmem:[%s846 + $0x11e0] sm:$0xff]
                  %1421 = vst [vmem:[%s847 + $0x8f0] sm:$0xff] %v1420
                  %v1422 = vld [vmem:[%s846 + $0x11f0] sm:$0xff]
                  %1423 = vst [vmem:[%s847 + $0x8f8] sm:$0xff] %v1422
                  %v1424 = vld [vmem:[%s846 + $0x1200] sm:$0xff]
                  %1425 = vst [vmem:[%s847 + $0x900] sm:$0xff] %v1424
                  %v1426 = vld [vmem:[%s846 + $0x1210] sm:$0xff]
                  %1427 = vst [vmem:[%s847 + $0x908] sm:$0xff] %v1426
                  %v1428 = vld [vmem:[%s846 + $0x1220] sm:$0xff]
                  %1429 = vst [vmem:[%s847 + $0x910] sm:$0xff] %v1428
                  %v1430 = vld [vmem:[%s846 + $0x1230] sm:$0xff]
                  %1431 = vst [vmem:[%s847 + $0x918] sm:$0xff] %v1430
                  %v1432 = vld [vmem:[%s846 + $0x1240] sm:$0xff]
                  %1433 = vst [vmem:[%s847 + $0x920] sm:$0xff] %v1432
                  %v1434 = vld [vmem:[%s846 + $0x1250] sm:$0xff]
                  %1435 = vst [vmem:[%s847 + $0x928] sm:$0xff] %v1434
                  %v1436 = vld [vmem:[%s846 + $0x1260] sm:$0xff]
                  %1437 = vst [vmem:[%s847 + $0x930] sm:$0xff] %v1436
                  %v1438 = vld [vmem:[%s846 + $0x1270] sm:$0xff]
                  %1439 = vst [vmem:[%s847 + $0x938] sm:$0xff] %v1438
                  %v1440 = vld [vmem:[%s846 + $0x1280] sm:$0xff]
                  %1441 = vst [vmem:[%s847 + $0x940] sm:$0xff] %v1440
                  %v1442 = vld [vmem:[%s846 + $0x1290] sm:$0xff]
                  %1443 = vst [vmem:[%s847 + $0x948] sm:$0xff] %v1442
                  %v1444 = vld [vmem:[%s846 + $0x12a0] sm:$0xff]
                  %1445 = vst [vmem:[%s847 + $0x950] sm:$0xff] %v1444
                  %v1446 = vld [vmem:[%s846 + $0x12b0] sm:$0xff]
                  %1447 = vst [vmem:[%s847 + $0x958] sm:$0xff] %v1446
                  %v1448 = vld [vmem:[%s846 + $0x12c0] sm:$0xff]
                  %1449 = vst [vmem:[%s847 + $0x960] sm:$0xff] %v1448
                  %v1450 = vld [vmem:[%s846 + $0x12d0] sm:$0xff]
                  %1451 = vst [vmem:[%s847 + $0x968] sm:$0xff] %v1450
                  %v1452 = vld [vmem:[%s846 + $0x12e0] sm:$0xff]
                  %1453 = vst [vmem:[%s847 + $0x970] sm:$0xff] %v1452
                  %v1454 = vld [vmem:[%s846 + $0x12f0] sm:$0xff]
                  %1455 = vst [vmem:[%s847 + $0x978] sm:$0xff] %v1454
                  %v1456 = vld [vmem:[%s846 + $0x1300] sm:$0xff]
                  %1457 = vst [vmem:[%s847 + $0x980] sm:$0xff] %v1456
                  %v1458 = vld [vmem:[%s846 + $0x1310] sm:$0xff]
                  %1459 = vst [vmem:[%s847 + $0x988] sm:$0xff] %v1458
                  %v1460 = vld [vmem:[%s846 + $0x1320] sm:$0xff]
                  %1461 = vst [vmem:[%s847 + $0x990] sm:$0xff] %v1460
                  %v1462 = vld [vmem:[%s846 + $0x1330] sm:$0xff]
                  %1463 = vst [vmem:[%s847 + $0x998] sm:$0xff] %v1462
                  %v1464 = vld [vmem:[%s846 + $0x1340] sm:$0xff]
                  %1465 = vst [vmem:[%s847 + $0x9a0] sm:$0xff] %v1464
                  %v1466 = vld [vmem:[%s846 + $0x1350] sm:$0xff]
                  %1467 = vst [vmem:[%s847 + $0x9a8] sm:$0xff] %v1466
                  %v1468 = vld [vmem:[%s846 + $0x1360] sm:$0xff]
                  %1469 = vst [vmem:[%s847 + $0x9b0] sm:$0xff] %v1468
                  %v1470 = vld [vmem:[%s846 + $0x1370] sm:$0xff]
                  %1471 = vst [vmem:[%s847 + $0x9b8] sm:$0xff] %v1470
                  %v1472 = vld [vmem:[%s846 + $0x1380] sm:$0xff]
                  %1473 = vst [vmem:[%s847 + $0x9c0] sm:$0xff] %v1472
                  %v1474 = vld [vmem:[%s846 + $0x1390] sm:$0xff]
                  %1475 = vst [vmem:[%s847 + $0x9c8] sm:$0xff] %v1474
                  %v1476 = vld [vmem:[%s846 + $0x13a0] sm:$0xff]
                  %1477 = vst [vmem:[%s847 + $0x9d0] sm:$0xff] %v1476
                  %v1478 = vld [vmem:[%s846 + $0x13b0] sm:$0xff]
                  %1479 = vst [vmem:[%s847 + $0x9d8] sm:$0xff] %v1478
                  %v1480 = vld [vmem:[%s846 + $0x13c0] sm:$0xff]
                  %1481 = vst [vmem:[%s847 + $0x9e0] sm:$0xff] %v1480
                  %v1482 = vld [vmem:[%s846 + $0x13d0] sm:$0xff]
                  %1483 = vst [vmem:[%s847 + $0x9e8] sm:$0xff] %v1482
                  %v1484 = vld [vmem:[%s846 + $0x13e0] sm:$0xff]
                  %1485 = vst [vmem:[%s847 + $0x9f0] sm:$0xff] %v1484
                  %v1486 = vld [vmem:[%s846 + $0x13f0] sm:$0xff]
                  %1487 = vst [vmem:[%s847 + $0x9f8] sm:$0xff] %v1486
                $region52: #{network_forward.11} parent=46 // loop_footer
                  %s845 = sadd.s32 1, %s841
                $region53: #{network_forward.11} parent=46 // loop_footer_branch
                  %840 = sbr.rel target = $region49
                $region54: #{network_forward.11} parent=46 // loop_exit
                  _
              $region47: #{network_forward.11} parent=31 // pred_fallthru
                _
              // Predicated region
              $region55: #{network_forward.11} parent=31 // pred_check
                _
              $region56: #{network_forward.11} parent=31 // pred_check_branch
                %1489 = sbr.rel target = $region58
              $region57: #{network_forward.11} parent=31 // pred_region
                _
              $region58: #{network_forward.11} parent=31 // pred_fallthru
                _
            $region32: #{network_forward.11} parent=27 // pred_fallthru
              _
            // Predicated region
            $region33: #{network_forward.11} parent=27 // pred_check
              _
            $region34: #{network_forward.11} parent=27 // pred_check_branch
              %188 = sbr.rel target = $region36
            $region35: #{network_forward.11} parent=27 // pred_region
              loop: start=0, step=1, limit=1
              $region37: #{network_forward.11} parent=35 // loop_pre_header
                _
              $region38: #{network_forward.11} parent=35 // loop_header
                %s191 = sphi 0, %s195
                %p192 = scmp.ge.s32.totalorder %s191, 1
                %s196 = sphi %s182, %s182
                %s197 = sphi %s176, %s176
              $region39: #{network_forward.11} parent=35 // loop_header_branch
                %194 = sbr.rel (%p192) target = $region43
              $region40: #{network_forward.11} parent=35 // loop_body
                %v198 = vld [vmem:[%s196] sm:$0xff]
                %199 = vst [vmem:[%s197] sm:$0xff] %v198
                %v200 = vld [vmem:[%s196 + $0x10] sm:$0xff]
                %201 = vst [vmem:[%s197 + $0x8] sm:$0xff] %v200
                %v202 = vld [vmem:[%s196 + $0x20] sm:$0xff]
                %203 = vst [vmem:[%s197 + $0x10] sm:$0xff] %v202
                %v204 = vld [vmem:[%s196 + $0x30] sm:$0xff]
                %205 = vst [vmem:[%s197 + $0x18] sm:$0xff] %v204
                %v206 = vld [vmem:[%s196 + $0x40] sm:$0xff]
                %207 = vst [vmem:[%s197 + $0x20] sm:$0xff] %v206
                %v208 = vld [vmem:[%s196 + $0x50] sm:$0xff]
                %209 = vst [vmem:[%s197 + $0x28] sm:$0xff] %v208
                %v210 = vld [vmem:[%s196 + $0x60] sm:$0xff]
                %211 = vst [vmem:[%s197 + $0x30] sm:$0xff] %v210
                %v212 = vld [vmem:[%s196 + $0x70] sm:$0xff]
                %213 = vst [vmem:[%s197 + $0x38] sm:$0xff] %v212
                %v214 = vld [vmem:[%s196 + $0x80] sm:$0xff]
                %215 = vst [vmem:[%s197 + $0x40] sm:$0xff] %v214
                %v216 = vld [vmem:[%s196 + $0x90] sm:$0xff]
                %217 = vst [vmem:[%s197 + $0x48] sm:$0xff] %v216
                %v218 = vld [vmem:[%s196 + $0xa0] sm:$0xff]
                %219 = vst [vmem:[%s197 + $0x50] sm:$0xff] %v218
                %v220 = vld [vmem:[%s196 + $0xb0] sm:$0xff]
                %221 = vst [vmem:[%s197 + $0x58] sm:$0xff] %v220
                %v222 = vld [vmem:[%s196 + $0xc0] sm:$0xff]
                %223 = vst [vmem:[%s197 + $0x60] sm:$0xff] %v222
                %v224 = vld [vmem:[%s196 + $0xd0] sm:$0xff]
                %225 = vst [vmem:[%s197 + $0x68] sm:$0xff] %v224
                %v226 = vld [vmem:[%s196 + $0xe0] sm:$0xff]
                %227 = vst [vmem:[%s197 + $0x70] sm:$0xff] %v226
                %v228 = vld [vmem:[%s196 + $0xf0] sm:$0xff]
                %229 = vst [vmem:[%s197 + $0x78] sm:$0xff] %v228
                %v230 = vld [vmem:[%s196 + $0x100] sm:$0xff]
                %231 = vst [vmem:[%s197 + $0x80] sm:$0xff] %v230
                %v232 = vld [vmem:[%s196 + $0x110] sm:$0xff]
                %233 = vst [vmem:[%s197 + $0x88] sm:$0xff] %v232
                %v234 = vld [vmem:[%s196 + $0x120] sm:$0xff]
                %235 = vst [vmem:[%s197 + $0x90] sm:$0xff] %v234
                %v236 = vld [vmem:[%s196 + $0x130] sm:$0xff]
                %237 = vst [vmem:[%s197 + $0x98] sm:$0xff] %v236
                %v238 = vld [vmem:[%s196 + $0x140] sm:$0xff]
                %239 = vst [vmem:[%s197 + $0xa0] sm:$0xff] %v238
                %v240 = vld [vmem:[%s196 + $0x150] sm:$0xff]
                %241 = vst [vmem:[%s197 + $0xa8] sm:$0xff] %v240
                %v242 = vld [vmem:[%s196 + $0x160] sm:$0xff]
                %243 = vst [vmem:[%s197 + $0xb0] sm:$0xff] %v242
                %v244 = vld [vmem:[%s196 + $0x170] sm:$0xff]
                %245 = vst [vmem:[%s197 + $0xb8] sm:$0xff] %v244
                %v246 = vld [vmem:[%s196 + $0x180] sm:$0xff]
                %247 = vst [vmem:[%s197 + $0xc0] sm:$0xff] %v246
                %v248 = vld [vmem:[%s196 + $0x190] sm:$0xff]
                %249 = vst [vmem:[%s197 + $0xc8] sm:$0xff] %v248
                %v250 = vld [vmem:[%s196 + $0x1a0] sm:$0xff]
                %251 = vst [vmem:[%s197 + $0xd0] sm:$0xff] %v250
                %v252 = vld [vmem:[%s196 + $0x1b0] sm:$0xff]
                %253 = vst [vmem:[%s197 + $0xd8] sm:$0xff] %v252
                %v254 = vld [vmem:[%s196 + $0x1c0] sm:$0xff]
                %255 = vst [vmem:[%s197 + $0xe0] sm:$0xff] %v254
                %v256 = vld [vmem:[%s196 + $0x1d0] sm:$0xff]
                %257 = vst [vmem:[%s197 + $0xe8] sm:$0xff] %v256
                %v258 = vld [vmem:[%s196 + $0x1e0] sm:$0xff]
                %259 = vst [vmem:[%s197 + $0xf0] sm:$0xff] %v258
                %v260 = vld [vmem:[%s196 + $0x1f0] sm:$0xff]
                %261 = vst [vmem:[%s197 + $0xf8] sm:$0xff] %v260
                %v262 = vld [vmem:[%s196 + $0x200] sm:$0xff]
                %263 = vst [vmem:[%s197 + $0x100] sm:$0xff] %v262
                %v264 = vld [vmem:[%s196 + $0x210] sm:$0xff]
                %265 = vst [vmem:[%s197 + $0x108] sm:$0xff] %v264
                %v266 = vld [vmem:[%s196 + $0x220] sm:$0xff]
                %267 = vst [vmem:[%s197 + $0x110] sm:$0xff] %v266
                %v268 = vld [vmem:[%s196 + $0x230] sm:$0xff]
                %269 = vst [vmem:[%s197 + $0x118] sm:$0xff] %v268
                %v270 = vld [vmem:[%s196 + $0x240] sm:$0xff]
                %271 = vst [vmem:[%s197 + $0x120] sm:$0xff] %v270
                %v272 = vld [vmem:[%s196 + $0x250] sm:$0xff]
                %273 = vst [vmem:[%s197 + $0x128] sm:$0xff] %v272
                %v274 = vld [vmem:[%s196 + $0x260] sm:$0xff]
                %275 = vst [vmem:[%s197 + $0x130] sm:$0xff] %v274
                %v276 = vld [vmem:[%s196 + $0x270] sm:$0xff]
                %277 = vst [vmem:[%s197 + $0x138] sm:$0xff] %v276
                %v278 = vld [vmem:[%s196 + $0x280] sm:$0xff]
                %279 = vst [vmem:[%s197 + $0x140] sm:$0xff] %v278
                %v280 = vld [vmem:[%s196 + $0x290] sm:$0xff]
                %281 = vst [vmem:[%s197 + $0x148] sm:$0xff] %v280
                %v282 = vld [vmem:[%s196 + $0x2a0] sm:$0xff]
                %283 = vst [vmem:[%s197 + $0x150] sm:$0xff] %v282
                %v284 = vld [vmem:[%s196 + $0x2b0] sm:$0xff]
                %285 = vst [vmem:[%s197 + $0x158] sm:$0xff] %v284
                %v286 = vld [vmem:[%s196 + $0x2c0] sm:$0xff]
                %287 = vst [vmem:[%s197 + $0x160] sm:$0xff] %v286
                %v288 = vld [vmem:[%s196 + $0x2d0] sm:$0xff]
                %289 = vst [vmem:[%s197 + $0x168] sm:$0xff] %v288
                %v290 = vld [vmem:[%s196 + $0x2e0] sm:$0xff]
                %291 = vst [vmem:[%s197 + $0x170] sm:$0xff] %v290
                %v292 = vld [vmem:[%s196 + $0x2f0] sm:$0xff]
                %293 = vst [vmem:[%s197 + $0x178] sm:$0xff] %v292
                %v294 = vld [vmem:[%s196 + $0x300] sm:$0xff]
                %295 = vst [vmem:[%s197 + $0x180] sm:$0xff] %v294
                %v296 = vld [vmem:[%s196 + $0x310] sm:$0xff]
                %297 = vst [vmem:[%s197 + $0x188] sm:$0xff] %v296
                %v298 = vld [vmem:[%s196 + $0x320] sm:$0xff]
                %299 = vst [vmem:[%s197 + $0x190] sm:$0xff] %v298
                %v300 = vld [vmem:[%s196 + $0x330] sm:$0xff]
                %301 = vst [vmem:[%s197 + $0x198] sm:$0xff] %v300
                %v302 = vld [vmem:[%s196 + $0x340] sm:$0xff]
                %303 = vst [vmem:[%s197 + $0x1a0] sm:$0xff] %v302
                %v304 = vld [vmem:[%s196 + $0x350] sm:$0xff]
                %305 = vst [vmem:[%s197 + $0x1a8] sm:$0xff] %v304
                %v306 = vld [vmem:[%s196 + $0x360] sm:$0xff]
                %307 = vst [vmem:[%s197 + $0x1b0] sm:$0xff] %v306
                %v308 = vld [vmem:[%s196 + $0x370] sm:$0xff]
                %309 = vst [vmem:[%s197 + $0x1b8] sm:$0xff] %v308
                %v310 = vld [vmem:[%s196 + $0x380] sm:$0xff]
                %311 = vst [vmem:[%s197 + $0x1c0] sm:$0xff] %v310
                %v312 = vld [vmem:[%s196 + $0x390] sm:$0xff]
                %313 = vst [vmem:[%s197 + $0x1c8] sm:$0xff] %v312
                %v314 = vld [vmem:[%s196 + $0x3a0] sm:$0xff]
                %315 = vst [vmem:[%s197 + $0x1d0] sm:$0xff] %v314
                %v316 = vld [vmem:[%s196 + $0x3b0] sm:$0xff]
                %317 = vst [vmem:[%s197 + $0x1d8] sm:$0xff] %v316
                %v318 = vld [vmem:[%s196 + $0x3c0] sm:$0xff]
                %319 = vst [vmem:[%s197 + $0x1e0] sm:$0xff] %v318
                %v320 = vld [vmem:[%s196 + $0x3d0] sm:$0xff]
                %321 = vst [vmem:[%s197 + $0x1e8] sm:$0xff] %v320
                %v322 = vld [vmem:[%s196 + $0x3e0] sm:$0xff]
                %323 = vst [vmem:[%s197 + $0x1f0] sm:$0xff] %v322
                %v324 = vld [vmem:[%s196 + $0x3f0] sm:$0xff]
                %325 = vst [vmem:[%s197 + $0x1f8] sm:$0xff] %v324
                %v326 = vld [vmem:[%s196 + $0x400] sm:$0xff]
                %327 = vst [vmem:[%s197 + $0x200] sm:$0xff] %v326
                %v328 = vld [vmem:[%s196 + $0x410] sm:$0xff]
                %329 = vst [vmem:[%s197 + $0x208] sm:$0xff] %v328
                %v330 = vld [vmem:[%s196 + $0x420] sm:$0xff]
                %331 = vst [vmem:[%s197 + $0x210] sm:$0xff] %v330
                %v332 = vld [vmem:[%s196 + $0x430] sm:$0xff]
                %333 = vst [vmem:[%s197 + $0x218] sm:$0xff] %v332
                %v334 = vld [vmem:[%s196 + $0x440] sm:$0xff]
                %335 = vst [vmem:[%s197 + $0x220] sm:$0xff] %v334
                %v336 = vld [vmem:[%s196 + $0x450] sm:$0xff]
                %337 = vst [vmem:[%s197 + $0x228] sm:$0xff] %v336
                %v338 = vld [vmem:[%s196 + $0x460] sm:$0xff]
                %339 = vst [vmem:[%s197 + $0x230] sm:$0xff] %v338
                %v340 = vld [vmem:[%s196 + $0x470] sm:$0xff]
                %341 = vst [vmem:[%s197 + $0x238] sm:$0xff] %v340
                %v342 = vld [vmem:[%s196 + $0x480] sm:$0xff]
                %343 = vst [vmem:[%s197 + $0x240] sm:$0xff] %v342
                %v344 = vld [vmem:[%s196 + $0x490] sm:$0xff]
                %345 = vst [vmem:[%s197 + $0x248] sm:$0xff] %v344
                %v346 = vld [vmem:[%s196 + $0x4a0] sm:$0xff]
                %347 = vst [vmem:[%s197 + $0x250] sm:$0xff] %v346
                %v348 = vld [vmem:[%s196 + $0x4b0] sm:$0xff]
                %349 = vst [vmem:[%s197 + $0x258] sm:$0xff] %v348
                %v350 = vld [vmem:[%s196 + $0x4c0] sm:$0xff]
                %351 = vst [vmem:[%s197 + $0x260] sm:$0xff] %v350
                %v352 = vld [vmem:[%s196 + $0x4d0] sm:$0xff]
                %353 = vst [vmem:[%s197 + $0x268] sm:$0xff] %v352
                %v354 = vld [vmem:[%s196 + $0x4e0] sm:$0xff]
                %355 = vst [vmem:[%s197 + $0x270] sm:$0xff] %v354
                %v356 = vld [vmem:[%s196 + $0x4f0] sm:$0xff]
                %357 = vst [vmem:[%s197 + $0x278] sm:$0xff] %v356
                %v358 = vld [vmem:[%s196 + $0x500] sm:$0xff]
                %359 = vst [vmem:[%s197 + $0x280] sm:$0xff] %v358
                %v360 = vld [vmem:[%s196 + $0x510] sm:$0xff]
                %361 = vst [vmem:[%s197 + $0x288] sm:$0xff] %v360
                %v362 = vld [vmem:[%s196 + $0x520] sm:$0xff]
                %363 = vst [vmem:[%s197 + $0x290] sm:$0xff] %v362
                %v364 = vld [vmem:[%s196 + $0x530] sm:$0xff]
                %365 = vst [vmem:[%s197 + $0x298] sm:$0xff] %v364
                %v366 = vld [vmem:[%s196 + $0x540] sm:$0xff]
                %367 = vst [vmem:[%s197 + $0x2a0] sm:$0xff] %v366
                %v368 = vld [vmem:[%s196 + $0x550] sm:$0xff]
                %369 = vst [vmem:[%s197 + $0x2a8] sm:$0xff] %v368
                %v370 = vld [vmem:[%s196 + $0x560] sm:$0xff]
                %371 = vst [vmem:[%s197 + $0x2b0] sm:$0xff] %v370
                %v372 = vld [vmem:[%s196 + $0x570] sm:$0xff]
                %373 = vst [vmem:[%s197 + $0x2b8] sm:$0xff] %v372
                %v374 = vld [vmem:[%s196 + $0x580] sm:$0xff]
                %375 = vst [vmem:[%s197 + $0x2c0] sm:$0xff] %v374
                %v376 = vld [vmem:[%s196 + $0x590] sm:$0xff]
                %377 = vst [vmem:[%s197 + $0x2c8] sm:$0xff] %v376
                %v378 = vld [vmem:[%s196 + $0x5a0] sm:$0xff]
                %379 = vst [vmem:[%s197 + $0x2d0] sm:$0xff] %v378
                %v380 = vld [vmem:[%s196 + $0x5b0] sm:$0xff]
                %381 = vst [vmem:[%s197 + $0x2d8] sm:$0xff] %v380
                %v382 = vld [vmem:[%s196 + $0x5c0] sm:$0xff]
                %383 = vst [vmem:[%s197 + $0x2e0] sm:$0xff] %v382
                %v384 = vld [vmem:[%s196 + $0x5d0] sm:$0xff]
                %385 = vst [vmem:[%s197 + $0x2e8] sm:$0xff] %v384
                %v386 = vld [vmem:[%s196 + $0x5e0] sm:$0xff]
                %387 = vst [vmem:[%s197 + $0x2f0] sm:$0xff] %v386
                %v388 = vld [vmem:[%s196 + $0x5f0] sm:$0xff]
                %389 = vst [vmem:[%s197 + $0x2f8] sm:$0xff] %v388
                %v390 = vld [vmem:[%s196 + $0x600] sm:$0xff]
                %391 = vst [vmem:[%s197 + $0x300] sm:$0xff] %v390
                %v392 = vld [vmem:[%s196 + $0x610] sm:$0xff]
                %393 = vst [vmem:[%s197 + $0x308] sm:$0xff] %v392
                %v394 = vld [vmem:[%s196 + $0x620] sm:$0xff]
                %395 = vst [vmem:[%s197 + $0x310] sm:$0xff] %v394
                %v396 = vld [vmem:[%s196 + $0x630] sm:$0xff]
                %397 = vst [vmem:[%s197 + $0x318] sm:$0xff] %v396
                %v398 = vld [vmem:[%s196 + $0x640] sm:$0xff]
                %399 = vst [vmem:[%s197 + $0x320] sm:$0xff] %v398
                %v400 = vld [vmem:[%s196 + $0x650] sm:$0xff]
                %401 = vst [vmem:[%s197 + $0x328] sm:$0xff] %v400
                %v402 = vld [vmem:[%s196 + $0x660] sm:$0xff]
                %403 = vst [vmem:[%s197 + $0x330] sm:$0xff] %v402
                %v404 = vld [vmem:[%s196 + $0x670] sm:$0xff]
                %405 = vst [vmem:[%s197 + $0x338] sm:$0xff] %v404
                %v406 = vld [vmem:[%s196 + $0x680] sm:$0xff]
                %407 = vst [vmem:[%s197 + $0x340] sm:$0xff] %v406
                %v408 = vld [vmem:[%s196 + $0x690] sm:$0xff]
                %409 = vst [vmem:[%s197 + $0x348] sm:$0xff] %v408
                %v410 = vld [vmem:[%s196 + $0x6a0] sm:$0xff]
                %411 = vst [vmem:[%s197 + $0x350] sm:$0xff] %v410
                %v412 = vld [vmem:[%s196 + $0x6b0] sm:$0xff]
                %413 = vst [vmem:[%s197 + $0x358] sm:$0xff] %v412
                %v414 = vld [vmem:[%s196 + $0x6c0] sm:$0xff]
                %415 = vst [vmem:[%s197 + $0x360] sm:$0xff] %v414
                %v416 = vld [vmem:[%s196 + $0x6d0] sm:$0xff]
                %417 = vst [vmem:[%s197 + $0x368] sm:$0xff] %v416
                %v418 = vld [vmem:[%s196 + $0x6e0] sm:$0xff]
                %419 = vst [vmem:[%s197 + $0x370] sm:$0xff] %v418
                %v420 = vld [vmem:[%s196 + $0x6f0] sm:$0xff]
                %421 = vst [vmem:[%s197 + $0x378] sm:$0xff] %v420
                %v422 = vld [vmem:[%s196 + $0x700] sm:$0xff]
                %423 = vst [vmem:[%s197 + $0x380] sm:$0xff] %v422
                %v424 = vld [vmem:[%s196 + $0x710] sm:$0xff]
                %425 = vst [vmem:[%s197 + $0x388] sm:$0xff] %v424
                %v426 = vld [vmem:[%s196 + $0x720] sm:$0xff]
                %427 = vst [vmem:[%s197 + $0x390] sm:$0xff] %v426
                %v428 = vld [vmem:[%s196 + $0x730] sm:$0xff]
                %429 = vst [vmem:[%s197 + $0x398] sm:$0xff] %v428
                %v430 = vld [vmem:[%s196 + $0x740] sm:$0xff]
                %431 = vst [vmem:[%s197 + $0x3a0] sm:$0xff] %v430
                %v432 = vld [vmem:[%s196 + $0x750] sm:$0xff]
                %433 = vst [vmem:[%s197 + $0x3a8] sm:$0xff] %v432
                %v434 = vld [vmem:[%s196 + $0x760] sm:$0xff]
                %435 = vst [vmem:[%s197 + $0x3b0] sm:$0xff] %v434
                %v436 = vld [vmem:[%s196 + $0x770] sm:$0xff]
                %437 = vst [vmem:[%s197 + $0x3b8] sm:$0xff] %v436
                %v438 = vld [vmem:[%s196 + $0x780] sm:$0xff]
                %439 = vst [vmem:[%s197 + $0x3c0] sm:$0xff] %v438
                %v440 = vld [vmem:[%s196 + $0x790] sm:$0xff]
                %441 = vst [vmem:[%s197 + $0x3c8] sm:$0xff] %v440
                %v442 = vld [vmem:[%s196 + $0x7a0] sm:$0xff]
                %443 = vst [vmem:[%s197 + $0x3d0] sm:$0xff] %v442
                %v444 = vld [vmem:[%s196 + $0x7b0] sm:$0xff]
                %445 = vst [vmem:[%s197 + $0x3d8] sm:$0xff] %v444
                %v446 = vld [vmem:[%s196 + $0x7c0] sm:$0xff]
                %447 = vst [vmem:[%s197 + $0x3e0] sm:$0xff] %v446
                %v448 = vld [vmem:[%s196 + $0x7d0] sm:$0xff]
                %449 = vst [vmem:[%s197 + $0x3e8] sm:$0xff] %v448
                %v450 = vld [vmem:[%s196 + $0x7e0] sm:$0xff]
                %451 = vst [vmem:[%s197 + $0x3f0] sm:$0xff] %v450
                %v452 = vld [vmem:[%s196 + $0x7f0] sm:$0xff]
                %453 = vst [vmem:[%s197 + $0x3f8] sm:$0xff] %v452
                %v454 = vld [vmem:[%s196 + $0x800] sm:$0xff]
                %455 = vst [vmem:[%s197 + $0x400] sm:$0xff] %v454
                %v456 = vld [vmem:[%s196 + $0x810] sm:$0xff]
                %457 = vst [vmem:[%s197 + $0x408] sm:$0xff] %v456
                %v458 = vld [vmem:[%s196 + $0x820] sm:$0xff]
                %459 = vst [vmem:[%s197 + $0x410] sm:$0xff] %v458
                %v460 = vld [vmem:[%s196 + $0x830] sm:$0xff]
                %461 = vst [vmem:[%s197 + $0x418] sm:$0xff] %v460
                %v462 = vld [vmem:[%s196 + $0x840] sm:$0xff]
                %463 = vst [vmem:[%s197 + $0x420] sm:$0xff] %v462
                %v464 = vld [vmem:[%s196 + $0x850] sm:$0xff]
                %465 = vst [vmem:[%s197 + $0x428] sm:$0xff] %v464
                %v466 = vld [vmem:[%s196 + $0x860] sm:$0xff]
                %467 = vst [vmem:[%s197 + $0x430] sm:$0xff] %v466
                %v468 = vld [vmem:[%s196 + $0x870] sm:$0xff]
                %469 = vst [vmem:[%s197 + $0x438] sm:$0xff] %v468
                %v470 = vld [vmem:[%s196 + $0x880] sm:$0xff]
                %471 = vst [vmem:[%s197 + $0x440] sm:$0xff] %v470
                %v472 = vld [vmem:[%s196 + $0x890] sm:$0xff]
                %473 = vst [vmem:[%s197 + $0x448] sm:$0xff] %v472
                %v474 = vld [vmem:[%s196 + $0x8a0] sm:$0xff]
                %475 = vst [vmem:[%s197 + $0x450] sm:$0xff] %v474
                %v476 = vld [vmem:[%s196 + $0x8b0] sm:$0xff]
                %477 = vst [vmem:[%s197 + $0x458] sm:$0xff] %v476
                %v478 = vld [vmem:[%s196 + $0x8c0] sm:$0xff]
                %479 = vst [vmem:[%s197 + $0x460] sm:$0xff] %v478
                %v480 = vld [vmem:[%s196 + $0x8d0] sm:$0xff]
                %481 = vst [vmem:[%s197 + $0x468] sm:$0xff] %v480
                %v482 = vld [vmem:[%s196 + $0x8e0] sm:$0xff]
                %483 = vst [vmem:[%s197 + $0x470] sm:$0xff] %v482
                %v484 = vld [vmem:[%s196 + $0x8f0] sm:$0xff]
                %485 = vst [vmem:[%s197 + $0x478] sm:$0xff] %v484
                %v486 = vld [vmem:[%s196 + $0x900] sm:$0xff]
                %487 = vst [vmem:[%s197 + $0x480] sm:$0xff] %v486
                %v488 = vld [vmem:[%s196 + $0x910] sm:$0xff]
                %489 = vst [vmem:[%s197 + $0x488] sm:$0xff] %v488
                %v490 = vld [vmem:[%s196 + $0x920] sm:$0xff]
                %491 = vst [vmem:[%s197 + $0x490] sm:$0xff] %v490
                %v492 = vld [vmem:[%s196 + $0x930] sm:$0xff]
                %493 = vst [vmem:[%s197 + $0x498] sm:$0xff] %v492
                %v494 = vld [vmem:[%s196 + $0x940] sm:$0xff]
                %495 = vst [vmem:[%s197 + $0x4a0] sm:$0xff] %v494
                %v496 = vld [vmem:[%s196 + $0x950] sm:$0xff]
                %497 = vst [vmem:[%s197 + $0x4a8] sm:$0xff] %v496
                %v498 = vld [vmem:[%s196 + $0x960] sm:$0xff]
                %499 = vst [vmem:[%s197 + $0x4b0] sm:$0xff] %v498
                %v500 = vld [vmem:[%s196 + $0x970] sm:$0xff]
                %501 = vst [vmem:[%s197 + $0x4b8] sm:$0xff] %v500
                %v502 = vld [vmem:[%s196 + $0x980] sm:$0xff]
                %503 = vst [vmem:[%s197 + $0x4c0] sm:$0xff] %v502
                %v504 = vld [vmem:[%s196 + $0x990] sm:$0xff]
                %505 = vst [vmem:[%s197 + $0x4c8] sm:$0xff] %v504
                %v506 = vld [vmem:[%s196 + $0x9a0] sm:$0xff]
                %507 = vst [vmem:[%s197 + $0x4d0] sm:$0xff] %v506
                %v508 = vld [vmem:[%s196 + $0x9b0] sm:$0xff]
                %509 = vst [vmem:[%s197 + $0x4d8] sm:$0xff] %v508
                %v510 = vld [vmem:[%s196 + $0x9c0] sm:$0xff]
                %511 = vst [vmem:[%s197 + $0x4e0] sm:$0xff] %v510
                %v512 = vld [vmem:[%s196 + $0x9d0] sm:$0xff]
                %513 = vst [vmem:[%s197 + $0x4e8] sm:$0xff] %v512
                %v514 = vld [vmem:[%s196 + $0x9e0] sm:$0xff]
                %515 = vst [vmem:[%s197 + $0x4f0] sm:$0xff] %v514
                %v516 = vld [vmem:[%s196 + $0x9f0] sm:$0xff]
                %517 = vst [vmem:[%s197 + $0x4f8] sm:$0xff] %v516
                %v518 = vld [vmem:[%s196 + $0xa00] sm:$0xff]
                %519 = vst [vmem:[%s197 + $0x500] sm:$0xff] %v518
                %v520 = vld [vmem:[%s196 + $0xa10] sm:$0xff]
                %521 = vst [vmem:[%s197 + $0x508] sm:$0xff] %v520
                %v522 = vld [vmem:[%s196 + $0xa20] sm:$0xff]
                %523 = vst [vmem:[%s197 + $0x510] sm:$0xff] %v522
                %v524 = vld [vmem:[%s196 + $0xa30] sm:$0xff]
                %525 = vst [vmem:[%s197 + $0x518] sm:$0xff] %v524
                %v526 = vld [vmem:[%s196 + $0xa40] sm:$0xff]
                %527 = vst [vmem:[%s197 + $0x520] sm:$0xff] %v526
                %v528 = vld [vmem:[%s196 + $0xa50] sm:$0xff]
                %529 = vst [vmem:[%s197 + $0x528] sm:$0xff] %v528
                %v530 = vld [vmem:[%s196 + $0xa60] sm:$0xff]
                %531 = vst [vmem:[%s197 + $0x530] sm:$0xff] %v530
                %v532 = vld [vmem:[%s196 + $0xa70] sm:$0xff]
                %533 = vst [vmem:[%s197 + $0x538] sm:$0xff] %v532
                %v534 = vld [vmem:[%s196 + $0xa80] sm:$0xff]
                %535 = vst [vmem:[%s197 + $0x540] sm:$0xff] %v534
                %v536 = vld [vmem:[%s196 + $0xa90] sm:$0xff]
                %537 = vst [vmem:[%s197 + $0x548] sm:$0xff] %v536
                %v538 = vld [vmem:[%s196 + $0xaa0] sm:$0xff]
                %539 = vst [vmem:[%s197 + $0x550] sm:$0xff] %v538
                %v540 = vld [vmem:[%s196 + $0xab0] sm:$0xff]
                %541 = vst [vmem:[%s197 + $0x558] sm:$0xff] %v540
                %v542 = vld [vmem:[%s196 + $0xac0] sm:$0xff]
                %543 = vst [vmem:[%s197 + $0x560] sm:$0xff] %v542
                %v544 = vld [vmem:[%s196 + $0xad0] sm:$0xff]
                %545 = vst [vmem:[%s197 + $0x568] sm:$0xff] %v544
                %v546 = vld [vmem:[%s196 + $0xae0] sm:$0xff]
                %547 = vst [vmem:[%s197 + $0x570] sm:$0xff] %v546
                %v548 = vld [vmem:[%s196 + $0xaf0] sm:$0xff]
                %549 = vst [vmem:[%s197 + $0x578] sm:$0xff] %v548
                %v550 = vld [vmem:[%s196 + $0xb00] sm:$0xff]
                %551 = vst [vmem:[%s197 + $0x580] sm:$0xff] %v550
                %v552 = vld [vmem:[%s196 + $0xb10] sm:$0xff]
                %553 = vst [vmem:[%s197 + $0x588] sm:$0xff] %v552
                %v554 = vld [vmem:[%s196 + $0xb20] sm:$0xff]
                %555 = vst [vmem:[%s197 + $0x590] sm:$0xff] %v554
                %v556 = vld [vmem:[%s196 + $0xb30] sm:$0xff]
                %557 = vst [vmem:[%s197 + $0x598] sm:$0xff] %v556
                %v558 = vld [vmem:[%s196 + $0xb40] sm:$0xff]
                %559 = vst [vmem:[%s197 + $0x5a0] sm:$0xff] %v558
                %v560 = vld [vmem:[%s196 + $0xb50] sm:$0xff]
                %561 = vst [vmem:[%s197 + $0x5a8] sm:$0xff] %v560
                %v562 = vld [vmem:[%s196 + $0xb60] sm:$0xff]
                %563 = vst [vmem:[%s197 + $0x5b0] sm:$0xff] %v562
                %v564 = vld [vmem:[%s196 + $0xb70] sm:$0xff]
                %565 = vst [vmem:[%s197 + $0x5b8] sm:$0xff] %v564
                %v566 = vld [vmem:[%s196 + $0xb80] sm:$0xff]
                %567 = vst [vmem:[%s197 + $0x5c0] sm:$0xff] %v566
                %v568 = vld [vmem:[%s196 + $0xb90] sm:$0xff]
                %569 = vst [vmem:[%s197 + $0x5c8] sm:$0xff] %v568
                %v570 = vld [vmem:[%s196 + $0xba0] sm:$0xff]
                %571 = vst [vmem:[%s197 + $0x5d0] sm:$0xff] %v570
                %v572 = vld [vmem:[%s196 + $0xbb0] sm:$0xff]
                %573 = vst [vmem:[%s197 + $0x5d8] sm:$0xff] %v572
                %v574 = vld [vmem:[%s196 + $0xbc0] sm:$0xff]
                %575 = vst [vmem:[%s197 + $0x5e0] sm:$0xff] %v574
                %v576 = vld [vmem:[%s196 + $0xbd0] sm:$0xff]
                %577 = vst [vmem:[%s197 + $0x5e8] sm:$0xff] %v576
                %v578 = vld [vmem:[%s196 + $0xbe0] sm:$0xff]
                %579 = vst [vmem:[%s197 + $0x5f0] sm:$0xff] %v578
                %v580 = vld [vmem:[%s196 + $0xbf0] sm:$0xff]
                %581 = vst [vmem:[%s197 + $0x5f8] sm:$0xff] %v580
                %v582 = vld [vmem:[%s196 + $0xc00] sm:$0xff]
                %583 = vst [vmem:[%s197 + $0x600] sm:$0xff] %v582
                %v584 = vld [vmem:[%s196 + $0xc10] sm:$0xff]
                %585 = vst [vmem:[%s197 + $0x608] sm:$0xff] %v584
                %v586 = vld [vmem:[%s196 + $0xc20] sm:$0xff]
                %587 = vst [vmem:[%s197 + $0x610] sm:$0xff] %v586
                %v588 = vld [vmem:[%s196 + $0xc30] sm:$0xff]
                %589 = vst [vmem:[%s197 + $0x618] sm:$0xff] %v588
                %v590 = vld [vmem:[%s196 + $0xc40] sm:$0xff]
                %591 = vst [vmem:[%s197 + $0x620] sm:$0xff] %v590
                %v592 = vld [vmem:[%s196 + $0xc50] sm:$0xff]
                %593 = vst [vmem:[%s197 + $0x628] sm:$0xff] %v592
                %v594 = vld [vmem:[%s196 + $0xc60] sm:$0xff]
                %595 = vst [vmem:[%s197 + $0x630] sm:$0xff] %v594
                %v596 = vld [vmem:[%s196 + $0xc70] sm:$0xff]
                %597 = vst [vmem:[%s197 + $0x638] sm:$0xff] %v596
                %v598 = vld [vmem:[%s196 + $0xc80] sm:$0xff]
                %599 = vst [vmem:[%s197 + $0x640] sm:$0xff] %v598
                %v600 = vld [vmem:[%s196 + $0xc90] sm:$0xff]
                %601 = vst [vmem:[%s197 + $0x648] sm:$0xff] %v600
                %v602 = vld [vmem:[%s196 + $0xca0] sm:$0xff]
                %603 = vst [vmem:[%s197 + $0x650] sm:$0xff] %v602
                %v604 = vld [vmem:[%s196 + $0xcb0] sm:$0xff]
                %605 = vst [vmem:[%s197 + $0x658] sm:$0xff] %v604
                %v606 = vld [vmem:[%s196 + $0xcc0] sm:$0xff]
                %607 = vst [vmem:[%s197 + $0x660] sm:$0xff] %v606
                %v608 = vld [vmem:[%s196 + $0xcd0] sm:$0xff]
                %609 = vst [vmem:[%s197 + $0x668] sm:$0xff] %v608
                %v610 = vld [vmem:[%s196 + $0xce0] sm:$0xff]
                %611 = vst [vmem:[%s197 + $0x670] sm:$0xff] %v610
                %v612 = vld [vmem:[%s196 + $0xcf0] sm:$0xff]
                %613 = vst [vmem:[%s197 + $0x678] sm:$0xff] %v612
                %v614 = vld [vmem:[%s196 + $0xd00] sm:$0xff]
                %615 = vst [vmem:[%s197 + $0x680] sm:$0xff] %v614
                %v616 = vld [vmem:[%s196 + $0xd10] sm:$0xff]
                %617 = vst [vmem:[%s197 + $0x688] sm:$0xff] %v616
                %v618 = vld [vmem:[%s196 + $0xd20] sm:$0xff]
                %619 = vst [vmem:[%s197 + $0x690] sm:$0xff] %v618
                %v620 = vld [vmem:[%s196 + $0xd30] sm:$0xff]
                %621 = vst [vmem:[%s197 + $0x698] sm:$0xff] %v620
                %v622 = vld [vmem:[%s196 + $0xd40] sm:$0xff]
                %623 = vst [vmem:[%s197 + $0x6a0] sm:$0xff] %v622
                %v624 = vld [vmem:[%s196 + $0xd50] sm:$0xff]
                %625 = vst [vmem:[%s197 + $0x6a8] sm:$0xff] %v624
                %v626 = vld [vmem:[%s196 + $0xd60] sm:$0xff]
                %627 = vst [vmem:[%s197 + $0x6b0] sm:$0xff] %v626
                %v628 = vld [vmem:[%s196 + $0xd70] sm:$0xff]
                %629 = vst [vmem:[%s197 + $0x6b8] sm:$0xff] %v628
                %v630 = vld [vmem:[%s196 + $0xd80] sm:$0xff]
                %631 = vst [vmem:[%s197 + $0x6c0] sm:$0xff] %v630
                %v632 = vld [vmem:[%s196 + $0xd90] sm:$0xff]
                %633 = vst [vmem:[%s197 + $0x6c8] sm:$0xff] %v632
                %v634 = vld [vmem:[%s196 + $0xda0] sm:$0xff]
                %635 = vst [vmem:[%s197 + $0x6d0] sm:$0xff] %v634
                %v636 = vld [vmem:[%s196 + $0xdb0] sm:$0xff]
                %637 = vst [vmem:[%s197 + $0x6d8] sm:$0xff] %v636
                %v638 = vld [vmem:[%s196 + $0xdc0] sm:$0xff]
                %639 = vst [vmem:[%s197 + $0x6e0] sm:$0xff] %v638
                %v640 = vld [vmem:[%s196 + $0xdd0] sm:$0xff]
                %641 = vst [vmem:[%s197 + $0x6e8] sm:$0xff] %v640
                %v642 = vld [vmem:[%s196 + $0xde0] sm:$0xff]
                %643 = vst [vmem:[%s197 + $0x6f0] sm:$0xff] %v642
                %v644 = vld [vmem:[%s196 + $0xdf0] sm:$0xff]
                %645 = vst [vmem:[%s197 + $0x6f8] sm:$0xff] %v644
                %v646 = vld [vmem:[%s196 + $0xe00] sm:$0xff]
                %647 = vst [vmem:[%s197 + $0x700] sm:$0xff] %v646
                %v648 = vld [vmem:[%s196 + $0xe10] sm:$0xff]
                %649 = vst [vmem:[%s197 + $0x708] sm:$0xff] %v648
                %v650 = vld [vmem:[%s196 + $0xe20] sm:$0xff]
                %651 = vst [vmem:[%s197 + $0x710] sm:$0xff] %v650
                %v652 = vld [vmem:[%s196 + $0xe30] sm:$0xff]
                %653 = vst [vmem:[%s197 + $0x718] sm:$0xff] %v652
                %v654 = vld [vmem:[%s196 + $0xe40] sm:$0xff]
                %655 = vst [vmem:[%s197 + $0x720] sm:$0xff] %v654
                %v656 = vld [vmem:[%s196 + $0xe50] sm:$0xff]
                %657 = vst [vmem:[%s197 + $0x728] sm:$0xff] %v656
                %v658 = vld [vmem:[%s196 + $0xe60] sm:$0xff]
                %659 = vst [vmem:[%s197 + $0x730] sm:$0xff] %v658
                %v660 = vld [vmem:[%s196 + $0xe70] sm:$0xff]
                %661 = vst [vmem:[%s197 + $0x738] sm:$0xff] %v660
                %v662 = vld [vmem:[%s196 + $0xe80] sm:$0xff]
                %663 = vst [vmem:[%s197 + $0x740] sm:$0xff] %v662
                %v664 = vld [vmem:[%s196 + $0xe90] sm:$0xff]
                %665 = vst [vmem:[%s197 + $0x748] sm:$0xff] %v664
                %v666 = vld [vmem:[%s196 + $0xea0] sm:$0xff]
                %667 = vst [vmem:[%s197 + $0x750] sm:$0xff] %v666
                %v668 = vld [vmem:[%s196 + $0xeb0] sm:$0xff]
                %669 = vst [vmem:[%s197 + $0x758] sm:$0xff] %v668
                %v670 = vld [vmem:[%s196 + $0xec0] sm:$0xff]
                %671 = vst [vmem:[%s197 + $0x760] sm:$0xff] %v670
                %v672 = vld [vmem:[%s196 + $0xed0] sm:$0xff]
                %673 = vst [vmem:[%s197 + $0x768] sm:$0xff] %v672
                %v674 = vld [vmem:[%s196 + $0xee0] sm:$0xff]
                %675 = vst [vmem:[%s197 + $0x770] sm:$0xff] %v674
                %v676 = vld [vmem:[%s196 + $0xef0] sm:$0xff]
                %677 = vst [vmem:[%s197 + $0x778] sm:$0xff] %v676
                %v678 = vld [vmem:[%s196 + $0xf00] sm:$0xff]
                %679 = vst [vmem:[%s197 + $0x780] sm:$0xff] %v678
                %v680 = vld [vmem:[%s196 + $0xf10] sm:$0xff]
                %681 = vst [vmem:[%s197 + $0x788] sm:$0xff] %v680
                %v682 = vld [vmem:[%s196 + $0xf20] sm:$0xff]
                %683 = vst [vmem:[%s197 + $0x790] sm:$0xff] %v682
                %v684 = vld [vmem:[%s196 + $0xf30] sm:$0xff]
                %685 = vst [vmem:[%s197 + $0x798] sm:$0xff] %v684
                %v686 = vld [vmem:[%s196 + $0xf40] sm:$0xff]
                %687 = vst [vmem:[%s197 + $0x7a0] sm:$0xff] %v686
                %v688 = vld [vmem:[%s196 + $0xf50] sm:$0xff]
                %689 = vst [vmem:[%s197 + $0x7a8] sm:$0xff] %v688
                %v690 = vld [vmem:[%s196 + $0xf60] sm:$0xff]
                %691 = vst [vmem:[%s197 + $0x7b0] sm:$0xff] %v690
                %v692 = vld [vmem:[%s196 + $0xf70] sm:$0xff]
                %693 = vst [vmem:[%s197 + $0x7b8] sm:$0xff] %v692
                %v694 = vld [vmem:[%s196 + $0xf80] sm:$0xff]
                %695 = vst [vmem:[%s197 + $0x7c0] sm:$0xff] %v694
                %v696 = vld [vmem:[%s196 + $0xf90] sm:$0xff]
                %697 = vst [vmem:[%s197 + $0x7c8] sm:$0xff] %v696
                %v698 = vld [vmem:[%s196 + $0xfa0] sm:$0xff]
                %699 = vst [vmem:[%s197 + $0x7d0] sm:$0xff] %v698
                %v700 = vld [vmem:[%s196 + $0xfb0] sm:$0xff]
                %701 = vst [vmem:[%s197 + $0x7d8] sm:$0xff] %v700
                %v702 = vld [vmem:[%s196 + $0xfc0] sm:$0xff]
                %703 = vst [vmem:[%s197 + $0x7e0] sm:$0xff] %v702
                %v704 = vld [vmem:[%s196 + $0xfd0] sm:$0xff]
                %705 = vst [vmem:[%s197 + $0x7e8] sm:$0xff] %v704
                %v706 = vld [vmem:[%s196 + $0xfe0] sm:$0xff]
                %707 = vst [vmem:[%s197 + $0x7f0] sm:$0xff] %v706
                %v708 = vld [vmem:[%s196 + $0xff0] sm:$0xff]
                %709 = vst [vmem:[%s197 + $0x7f8] sm:$0xff] %v708
                %v710 = vld [vmem:[%s196 + $0x1000] sm:$0xff]
                %711 = vst [vmem:[%s197 + $0x800] sm:$0xff] %v710
                %v712 = vld [vmem:[%s196 + $0x1010] sm:$0xff]
                %713 = vst [vmem:[%s197 + $0x808] sm:$0xff] %v712
                %v714 = vld [vmem:[%s196 + $0x1020] sm:$0xff]
                %715 = vst [vmem:[%s197 + $0x810] sm:$0xff] %v714
                %v716 = vld [vmem:[%s196 + $0x1030] sm:$0xff]
                %717 = vst [vmem:[%s197 + $0x818] sm:$0xff] %v716
                %v718 = vld [vmem:[%s196 + $0x1040] sm:$0xff]
                %719 = vst [vmem:[%s197 + $0x820] sm:$0xff] %v718
                %v720 = vld [vmem:[%s196 + $0x1050] sm:$0xff]
                %721 = vst [vmem:[%s197 + $0x828] sm:$0xff] %v720
                %v722 = vld [vmem:[%s196 + $0x1060] sm:$0xff]
                %723 = vst [vmem:[%s197 + $0x830] sm:$0xff] %v722
                %v724 = vld [vmem:[%s196 + $0x1070] sm:$0xff]
                %725 = vst [vmem:[%s197 + $0x838] sm:$0xff] %v724
                %v726 = vld [vmem:[%s196 + $0x1080] sm:$0xff]
                %727 = vst [vmem:[%s197 + $0x840] sm:$0xff] %v726
                %v728 = vld [vmem:[%s196 + $0x1090] sm:$0xff]
                %729 = vst [vmem:[%s197 + $0x848] sm:$0xff] %v728
                %v730 = vld [vmem:[%s196 + $0x10a0] sm:$0xff]
                %731 = vst [vmem:[%s197 + $0x850] sm:$0xff] %v730
                %v732 = vld [vmem:[%s196 + $0x10b0] sm:$0xff]
                %733 = vst [vmem:[%s197 + $0x858] sm:$0xff] %v732
                %v734 = vld [vmem:[%s196 + $0x10c0] sm:$0xff]
                %735 = vst [vmem:[%s197 + $0x860] sm:$0xff] %v734
                %v736 = vld [vmem:[%s196 + $0x10d0] sm:$0xff]
                %737 = vst [vmem:[%s197 + $0x868] sm:$0xff] %v736
                %v738 = vld [vmem:[%s196 + $0x10e0] sm:$0xff]
                %739 = vst [vmem:[%s197 + $0x870] sm:$0xff] %v738
                %v740 = vld [vmem:[%s196 + $0x10f0] sm:$0xff]
                %741 = vst [vmem:[%s197 + $0x878] sm:$0xff] %v740
                %v742 = vld [vmem:[%s196 + $0x1100] sm:$0xff]
                %743 = vst [vmem:[%s197 + $0x880] sm:$0xff] %v742
                %v744 = vld [vmem:[%s196 + $0x1110] sm:$0xff]
                %745 = vst [vmem:[%s197 + $0x888] sm:$0xff] %v744
                %v746 = vld [vmem:[%s196 + $0x1120] sm:$0xff]
                %747 = vst [vmem:[%s197 + $0x890] sm:$0xff] %v746
                %v748 = vld [vmem:[%s196 + $0x1130] sm:$0xff]
                %749 = vst [vmem:[%s197 + $0x898] sm:$0xff] %v748
                %v750 = vld [vmem:[%s196 + $0x1140] sm:$0xff]
                %751 = vst [vmem:[%s197 + $0x8a0] sm:$0xff] %v750
                %v752 = vld [vmem:[%s196 + $0x1150] sm:$0xff]
                %753 = vst [vmem:[%s197 + $0x8a8] sm:$0xff] %v752
                %v754 = vld [vmem:[%s196 + $0x1160] sm:$0xff]
                %755 = vst [vmem:[%s197 + $0x8b0] sm:$0xff] %v754
                %v756 = vld [vmem:[%s196 + $0x1170] sm:$0xff]
                %757 = vst [vmem:[%s197 + $0x8b8] sm:$0xff] %v756
                %v758 = vld [vmem:[%s196 + $0x1180] sm:$0xff]
                %759 = vst [vmem:[%s197 + $0x8c0] sm:$0xff] %v758
                %v760 = vld [vmem:[%s196 + $0x1190] sm:$0xff]
                %761 = vst [vmem:[%s197 + $0x8c8] sm:$0xff] %v760
                %v762 = vld [vmem:[%s196 + $0x11a0] sm:$0xff]
                %763 = vst [vmem:[%s197 + $0x8d0] sm:$0xff] %v762
                %v764 = vld [vmem:[%s196 + $0x11b0] sm:$0xff]
                %765 = vst [vmem:[%s197 + $0x8d8] sm:$0xff] %v764
                %v766 = vld [vmem:[%s196 + $0x11c0] sm:$0xff]
                %767 = vst [vmem:[%s197 + $0x8e0] sm:$0xff] %v766
                %v768 = vld [vmem:[%s196 + $0x11d0] sm:$0xff]
                %769 = vst [vmem:[%s197 + $0x8e8] sm:$0xff] %v768
                %v770 = vld [vmem:[%s196 + $0x11e0] sm:$0xff]
                %771 = vst [vmem:[%s197 + $0x8f0] sm:$0xff] %v770
                %v772 = vld [vmem:[%s196 + $0x11f0] sm:$0xff]
                %773 = vst [vmem:[%s197 + $0x8f8] sm:$0xff] %v772
                %v774 = vld [vmem:[%s196 + $0x1200] sm:$0xff]
                %775 = vst [vmem:[%s197 + $0x900] sm:$0xff] %v774
                %v776 = vld [vmem:[%s196 + $0x1210] sm:$0xff]
                %777 = vst [vmem:[%s197 + $0x908] sm:$0xff] %v776
                %v778 = vld [vmem:[%s196 + $0x1220] sm:$0xff]
                %779 = vst [vmem:[%s197 + $0x910] sm:$0xff] %v778
                %v780 = vld [vmem:[%s196 + $0x1230] sm:$0xff]
                %781 = vst [vmem:[%s197 + $0x918] sm:$0xff] %v780
                %v782 = vld [vmem:[%s196 + $0x1240] sm:$0xff]
                %783 = vst [vmem:[%s197 + $0x920] sm:$0xff] %v782
                %v784 = vld [vmem:[%s196 + $0x1250] sm:$0xff]
                %785 = vst [vmem:[%s197 + $0x928] sm:$0xff] %v784
                %v786 = vld [vmem:[%s196 + $0x1260] sm:$0xff]
                %787 = vst [vmem:[%s197 + $0x930] sm:$0xff] %v786
                %v788 = vld [vmem:[%s196 + $0x1270] sm:$0xff]
                %789 = vst [vmem:[%s197 + $0x938] sm:$0xff] %v788
                %v790 = vld [vmem:[%s196 + $0x1280] sm:$0xff]
                %791 = vst [vmem:[%s197 + $0x940] sm:$0xff] %v790
                %v792 = vld [vmem:[%s196 + $0x1290] sm:$0xff]
                %793 = vst [vmem:[%s197 + $0x948] sm:$0xff] %v792
                %v794 = vld [vmem:[%s196 + $0x12a0] sm:$0xff]
                %795 = vst [vmem:[%s197 + $0x950] sm:$0xff] %v794
                %v796 = vld [vmem:[%s196 + $0x12b0] sm:$0xff]
                %797 = vst [vmem:[%s197 + $0x958] sm:$0xff] %v796
                %v798 = vld [vmem:[%s196 + $0x12c0] sm:$0xff]
                %799 = vst [vmem:[%s197 + $0x960] sm:$0xff] %v798
                %v800 = vld [vmem:[%s196 + $0x12d0] sm:$0xff]
                %801 = vst [vmem:[%s197 + $0x968] sm:$0xff] %v800
                %v802 = vld [vmem:[%s196 + $0x12e0] sm:$0xff]
                %803 = vst [vmem:[%s197 + $0x970] sm:$0xff] %v802
                %v804 = vld [vmem:[%s196 + $0x12f0] sm:$0xff]
                %805 = vst [vmem:[%s197 + $0x978] sm:$0xff] %v804
                %v806 = vld [vmem:[%s196 + $0x1300] sm:$0xff]
                %807 = vst [vmem:[%s197 + $0x980] sm:$0xff] %v806
                %v808 = vld [vmem:[%s196 + $0x1310] sm:$0xff]
                %809 = vst [vmem:[%s197 + $0x988] sm:$0xff] %v808
                %v810 = vld [vmem:[%s196 + $0x1320] sm:$0xff]
                %811 = vst [vmem:[%s197 + $0x990] sm:$0xff] %v810
                %v812 = vld [vmem:[%s196 + $0x1330] sm:$0xff]
                %813 = vst [vmem:[%s197 + $0x998] sm:$0xff] %v812
                %v814 = vld [vmem:[%s196 + $0x1340] sm:$0xff]
                %815 = vst [vmem:[%s197 + $0x9a0] sm:$0xff] %v814
                %v816 = vld [vmem:[%s196 + $0x1350] sm:$0xff]
                %817 = vst [vmem:[%s197 + $0x9a8] sm:$0xff] %v816
                %v818 = vld [vmem:[%s196 + $0x1360] sm:$0xff]
                %819 = vst [vmem:[%s197 + $0x9b0] sm:$0xff] %v818
                %v820 = vld [vmem:[%s196 + $0x1370] sm:$0xff]
                %821 = vst [vmem:[%s197 + $0x9b8] sm:$0xff] %v820
                %v822 = vld [vmem:[%s196 + $0x1380] sm:$0xff]
                %823 = vst [vmem:[%s197 + $0x9c0] sm:$0xff] %v822
                %v824 = vld [vmem:[%s196 + $0x1390] sm:$0xff]
                %825 = vst [vmem:[%s197 + $0x9c8] sm:$0xff] %v824
                %v826 = vld [vmem:[%s196 + $0x13a0] sm:$0xff]
                %827 = vst [vmem:[%s197 + $0x9d0] sm:$0xff] %v826
                %v828 = vld [vmem:[%s196 + $0x13b0] sm:$0xff]
                %829 = vst [vmem:[%s197 + $0x9d8] sm:$0xff] %v828
                %v830 = vld [vmem:[%s196 + $0x13c0] sm:$0xff]
                %831 = vst [vmem:[%s197 + $0x9e0] sm:$0xff] %v830
                %v832 = vld [vmem:[%s196 + $0x13d0] sm:$0xff]
                %833 = vst [vmem:[%s197 + $0x9e8] sm:$0xff] %v832
                %v834 = vld [vmem:[%s196 + $0x13e0] sm:$0xff]
                %835 = vst [vmem:[%s197 + $0x9f0] sm:$0xff] %v834
                %v836 = vld [vmem:[%s196 + $0x13f0] sm:$0xff]
                %837 = vst [vmem:[%s197 + $0x9f8] sm:$0xff] %v836
              $region41: #{network_forward.11} parent=35 // loop_footer
                %s195 = sadd.s32 1, %s191
              $region42: #{network_forward.11} parent=35 // loop_footer_branch
                %190 = sbr.rel target = $region38
              $region43: #{network_forward.11} parent=35 // loop_exit
                _
            $region36: #{network_forward.11} parent=27 // pred_fallthru
              _
          $region28: #{network_forward.11} parent=23 // pred_fallthru
            _
          %1490 = vnop
        $region24: #{network_forward.11} parent=15 // pred_fallthru
          _
        // Predicated region
        $region59: #{network_forward.11} parent=15 // pred_check
          %p1491 = pneg %p104
        $region60: #{network_forward.11} parent=15 // pred_check_branch
          %1493 = sbr.rel (%p1491) target = $region62
        $region61: #{network_forward.11} parent=15 // pred_region
          %s1494 = smul.u32 2, %s17
          %p1495 = scmp.lt.s32.totalorder %s1494, 3
          %s1496 = scalar_select %p1495, %s1494, 3
          %s1497 = scalar_lea.vmem %s2, %s1496
          %s1498 = smul.u32 2, %s17
        $region62: #{network_forward.11} parent=15 // pred_fallthru
          _
      $region16: #{network_forward.11} parent=5 // pred_fallthru
        _
      %p1499 = scmp.le.s32.totalorder 1, %s9
      %p1500 = scmp.lt.s32.totalorder %s9, 11
      %p1501 = pnand %p1499, %p1500
      %p1502 = pneg %p1501
      // Predicated region
      $region63: #{network_forward.11} parent=5 // pred_check
        _
      $region64: #{network_forward.11} parent=5 // pred_check_branch
        %1504 = sbr.rel (%p1501) target = $region66
      $region65: #{network_forward.11} parent=5 // pred_region
        %s1505 = ssub.s32 %s9, 1
        %s1506 = sand.u32 %s71, 1
        %s1507 = sand.u32 %s71, 1
        %s1508 = smul.addr %s1507, 2560
        %s1509 = scalar_lea.vmem [#allocation2], %s1508
        // Predicated region
        $region67: #{network_forward.11} parent=65 // pred_check
          %p1510 = pneg %p84
        $region68: #{network_forward.11} parent=65 // pred_check_branch
          %1512 = sbr.rel (%p1510) target = $region70
        $region69: #{network_forward.11} parent=65 // pred_region
          _
        $region70: #{network_forward.11} parent=65 // pred_fallthru
          _
        %s1513 = smul.u32 20, %s21
        %p1514 = scmp.lt.s32.totalorder %s19, 0
        %s1515 = scalar_select %p1514, %s19, 0
        %p1516 = scmp.lt.s32.totalorder %s1513, 99
        %s1517 = scalar_select %p1516, %s1513, 99
        %s1518 = smul.addr %s1515, 100
        %s1519 = sadd.s32 %s1517, %s1518
        %s1520 = smul.addr %s1519, 4
        %s1521 = scalar_lea.vmem %s0, %s1520
        %p1522 = pneg %p56
        %p1523 = pneg %p53
        %s1524 = sand.u32 %s71, 1
        %s1525 = sand.u32 %s71, 1
        %s1526 = smul.addr %s1525, 2560
        %s1527 = scalar_lea.vmem [#allocation2], %s1526
        %p1528 = pneg %p84
        %p1529 = pneg %p81
        %s1530 = smul.u32 2, %s20
        %p1531 = scmp.lt.s32.totalorder %s1530, 3
        %s1532 = scalar_select %p1531, %s1530, 3
        %s1533 = scalar_lea.vmem %s2, %s1532
        %p1534 = pneg %p110
        %p1535 = pneg %p107
        %p1536 = pneg %p138
        %p1537 = pneg %p135
        %s1538 = smul.u32 2, %s20
        %p1539 = scmp.lt.s32.totalorder %s19, 0
        %s1540 = scalar_select %p1539, %s19, 0
        %p1541 = scmp.lt.s32.totalorder %s1538, 3
        %s1542 = scalar_select %p1541, %s1538, 3
        %s1543 = smul.addr %s1540, 4
        %s1544 = sadd.s32 %s1542, %s1543
        %s1545 = smul.addr %s1544, 8
        %s1546 = scalar_lea.vmem %s3, %s1545
        %s1547 = smul.u32 20, %s21
        %p1548 = scmp.lt.s32.totalorder %s19, 0
        %s1549 = scalar_select %p1548, %s19, 0
        %p1550 = scmp.lt.s32.totalorder %s1547, 99
        %s1551 = scalar_select %p1550, %s1547, 99
        %s1552 = smul.addr %s1549, 100
        %s1553 = sadd.s32 %s1551, %s1552
        %s1554 = smul.addr %s1553, 4
        %s1555 = scalar_lea.vmem %s0, %s1554
        %s1556 = smul.u32 20, %s21
        %s1557 = smul.u32 320, %s21
        %s1558 = smul.u32 2, %s20
        %s1559 = smul.u32 2, %s20
        %p1560 = scmp.lt.s32.totalorder %s1559, 3
        %s1561 = scalar_select %p1560, %s1559, 3
        %s1562 = scalar_lea.vmem %s2, %s1561
        %s1563 = smul.u32 2, %s20
        %s1564 = smul.u32 2, %s20
        %p1565 = scmp.lt.s32.totalorder %s19, 0
        %s1566 = scalar_select %p1565, %s19, 0
        %p1567 = scmp.lt.s32.totalorder %s1564, 3
        %s1568 = scalar_select %p1567, %s1564, 3
        %s1569 = smul.addr %s1566, 4
        %s1570 = sadd.s32 %s1568, %s1569
        %s1571 = smul.addr %s1570, 8
        %s1572 = scalar_lea.vmem %s3, %s1571
        %s1573 = smul.u32 2, %s20
        %p1574 = scmp.eq.s32.totalorder %s21, 0
        // Predicated region
        $region71: #{network_forward.11} parent=65 // pred_check
          %p1575 = pneg %p1574
        $region72: #{network_forward.11} parent=65 // pred_check_branch
          %1577 = sbr.rel (%p1575) target = $region74
        $region73: #{network_forward.11} parent=65 // pred_region
          %1578 = vst [vmem:[%s1572] sm:$0xff] 0.0
          %1579 = vst [vmem:[%s1572 + $0x8] sm:$0xff] 0.0
        $region74: #{network_forward.11} parent=65 // pred_fallthru
          _
        %v1580 = vld [vmem:[%s1572] sm:$0xff]
        %v1581 = vld [vmem:[%s1572 + $0x8] sm:$0xff]
        %v1582 = vld [vmem:[%s1555] sm:$0xff]
        %v1583 = vld [vmem:[%s1555 + $0x8] sm:$0xff]
        %v1584 = vld [vmem:[%s1555 + $0x10] sm:$0xff]
        %v1585 = vld [vmem:[%s1555 + $0x18] sm:$0xff]
        %v1586 = vld [vmem:[%s1555 + $0x20] sm:$0xff]
        %v1587 = vld [vmem:[%s1555 + $0x28] sm:$0xff]
        %v1588 = vld [vmem:[%s1555 + $0x30] sm:$0xff]
        %v1589 = vld [vmem:[%s1555 + $0x38] sm:$0xff]
        %v1590 = vld [vmem:[%s1555 + $0x40] sm:$0xff]
        %v1591 = vld [vmem:[%s1555 + $0x48] sm:$0xff]
        %v1592 = vld [vmem:[%s1509] sm:$0xff]
        %v1593 = vld [vmem:[%s1509 + $0x8] sm:$0xff]
        %v1594 = vld [vmem:[%s1509 + $0x10] sm:$0xff]
        %v1595 = vld [vmem:[%s1509 + $0x18] sm:$0xff]
        %v1596 = vld [vmem:[%s1509 + $0x20] sm:$0xff]
        %v1597 = vld [vmem:[%s1509 + $0x28] sm:$0xff]
        %v1598 = vld [vmem:[%s1509 + $0x30] sm:$0xff]
        %v1599 = vld [vmem:[%s1509 + $0x38] sm:$0xff]
        %v1600 = vld [vmem:[%s1509 + $0x40] sm:$0xff]
        %v1601 = vld [vmem:[%s1509 + $0x48] sm:$0xff]
        %v1602 = vld [vmem:[%s1509 + $0x50] sm:$0xff]
        %v1603 = vld [vmem:[%s1509 + $0x58] sm:$0xff]
        %v1604 = vld [vmem:[%s1509 + $0x60] sm:$0xff]
        %v1605 = vld [vmem:[%s1509 + $0x68] sm:$0xff]
        %v1606 = vld [vmem:[%s1509 + $0x70] sm:$0xff]
        %v1607 = vld [vmem:[%s1509 + $0x78] sm:$0xff]
        %v1608 = vld [vmem:[%s1509 + $0x80] sm:$0xff]
        %v1609 = vld [vmem:[%s1509 + $0x88] sm:$0xff]
        %v1610 = vld [vmem:[%s1509 + $0x90] sm:$0xff]
        %v1611 = vld [vmem:[%s1509 + $0x98] sm:$0xff]
        %v1612 = vld [vmem:[%s1509 + $0xa0] sm:$0xff]
        %v1613 = vld [vmem:[%s1509 + $0xa8] sm:$0xff]
        %v1614 = vld [vmem:[%s1509 + $0xb0] sm:$0xff]
        %v1615 = vld [vmem:[%s1509 + $0xb8] sm:$0xff]
        %v1616 = vld [vmem:[%s1509 + $0xc0] sm:$0xff]
        %v1617 = vld [vmem:[%s1509 + $0xc8] sm:$0xff]
        %v1618 = vld [vmem:[%s1509 + $0xd0] sm:$0xff]
        %v1619 = vld [vmem:[%s1509 + $0xd8] sm:$0xff]
        %v1620 = vld [vmem:[%s1509 + $0xe0] sm:$0xff]
        %v1621 = vld [vmem:[%s1509 + $0xe8] sm:$0xff]
        %v1622 = vld [vmem:[%s1509 + $0xf0] sm:$0xff]
        %v1623 = vld [vmem:[%s1509 + $0xf8] sm:$0xff]
        %v1624 = vld [vmem:[%s1509 + $0x100] sm:$0xff]
        %v1625 = vld [vmem:[%s1509 + $0x108] sm:$0xff]
        %v1626 = vld [vmem:[%s1509 + $0x110] sm:$0xff]
        %v1627 = vld [vmem:[%s1509 + $0x118] sm:$0xff]
        %v1628 = vld [vmem:[%s1509 + $0x120] sm:$0xff]
        %v1629 = vld [vmem:[%s1509 + $0x128] sm:$0xff]
        %v1630 = vld [vmem:[%s1509 + $0x130] sm:$0xff]
        %v1631 = vld [vmem:[%s1509 + $0x138] sm:$0xff]
        %v1632 = vld [vmem:[%s1509 + $0x140] sm:$0xff]
        %v1633 = vld [vmem:[%s1509 + $0x148] sm:$0xff]
        %v1634 = vld [vmem:[%s1509 + $0x150] sm:$0xff]
        %v1635 = vld [vmem:[%s1509 + $0x158] sm:$0xff]
        %v1636 = vld [vmem:[%s1509 + $0x160] sm:$0xff]
        %v1637 = vld [vmem:[%s1509 + $0x168] sm:$0xff]
        %v1638 = vld [vmem:[%s1509 + $0x170] sm:$0xff]
        %v1639 = vld [vmem:[%s1509 + $0x178] sm:$0xff]
        %v1640 = vld [vmem:[%s1509 + $0x180] sm:$0xff]
        %v1641 = vld [vmem:[%s1509 + $0x188] sm:$0xff]
        %v1642 = vld [vmem:[%s1509 + $0x190] sm:$0xff]
        %v1643 = vld [vmem:[%s1509 + $0x198] sm:$0xff]
        %v1644 = vld [vmem:[%s1509 + $0x1a0] sm:$0xff]
        %v1645 = vld [vmem:[%s1509 + $0x1a8] sm:$0xff]
        %v1646 = vld [vmem:[%s1509 + $0x1b0] sm:$0xff]
        %v1647 = vld [vmem:[%s1509 + $0x1b8] sm:$0xff]
        %v1648 = vld [vmem:[%s1509 + $0x1c0] sm:$0xff]
        %v1649 = vld [vmem:[%s1509 + $0x1c8] sm:$0xff]
        %v1650 = vld [vmem:[%s1509 + $0x1d0] sm:$0xff]
        %v1651 = vld [vmem:[%s1509 + $0x1d8] sm:$0xff]
        %v1652 = vld [vmem:[%s1509 + $0x1e0] sm:$0xff]
        %v1653 = vld [vmem:[%s1509 + $0x1e8] sm:$0xff]
        %v1654 = vld [vmem:[%s1509 + $0x1f0] sm:$0xff]
        %v1655 = vld [vmem:[%s1509 + $0x1f8] sm:$0xff]
        %v1656 = vld [vmem:[%s1509 + $0x200] sm:$0xff]
        %v1657 = vld [vmem:[%s1509 + $0x208] sm:$0xff]
        %v1658 = vld [vmem:[%s1509 + $0x210] sm:$0xff]
        %v1659 = vld [vmem:[%s1509 + $0x218] sm:$0xff]
        %v1660 = vld [vmem:[%s1509 + $0x220] sm:$0xff]
        %v1661 = vld [vmem:[%s1509 + $0x228] sm:$0xff]
        %v1662 = vld [vmem:[%s1509 + $0x230] sm:$0xff]
        %v1663 = vld [vmem:[%s1509 + $0x238] sm:$0xff]
        %v1664 = vld [vmem:[%s1509 + $0x240] sm:$0xff]
        %v1665 = vld [vmem:[%s1509 + $0x248] sm:$0xff]
        %v1666 = vld [vmem:[%s1509 + $0x250] sm:$0xff]
        %v1667 = vld [vmem:[%s1509 + $0x258] sm:$0xff]
        %v1668 = vld [vmem:[%s1509 + $0x260] sm:$0xff]
        %v1669 = vld [vmem:[%s1509 + $0x268] sm:$0xff]
        %v1670 = vld [vmem:[%s1509 + $0x270] sm:$0xff]
        %v1671 = vld [vmem:[%s1509 + $0x278] sm:$0xff]
        %v1672 = vld [vmem:[%s1509 + $0x280] sm:$0xff]
        %v1673 = vld [vmem:[%s1509 + $0x288] sm:$0xff]
        %v1674 = vld [vmem:[%s1509 + $0x290] sm:$0xff]
        %v1675 = vld [vmem:[%s1509 + $0x298] sm:$0xff]
        %v1676 = vld [vmem:[%s1509 + $0x2a0] sm:$0xff]
        %v1677 = vld [vmem:[%s1509 + $0x2a8] sm:$0xff]
        %v1678 = vld [vmem:[%s1509 + $0x2b0] sm:$0xff]
        %v1679 = vld [vmem:[%s1509 + $0x2b8] sm:$0xff]
        %v1680 = vld [vmem:[%s1509 + $0x2c0] sm:$0xff]
        %v1681 = vld [vmem:[%s1509 + $0x2c8] sm:$0xff]
        %v1682 = vld [vmem:[%s1509 + $0x2d0] sm:$0xff]
        %v1683 = vld [vmem:[%s1509 + $0x2d8] sm:$0xff]
        %v1684 = vld [vmem:[%s1509 + $0x2e0] sm:$0xff]
        %v1685 = vld [vmem:[%s1509 + $0x2e8] sm:$0xff]
        %v1686 = vld [vmem:[%s1509 + $0x2f0] sm:$0xff]
        %v1687 = vld [vmem:[%s1509 + $0x2f8] sm:$0xff]
        %v1688 = vld [vmem:[%s1509 + $0x300] sm:$0xff]
        %v1689 = vld [vmem:[%s1509 + $0x308] sm:$0xff]
        %v1690 = vld [vmem:[%s1509 + $0x310] sm:$0xff]
        %v1691 = vld [vmem:[%s1509 + $0x318] sm:$0xff]
        %v1692 = vld [vmem:[%s1509 + $0x320] sm:$0xff]
        %v1693 = vld [vmem:[%s1509 + $0x328] sm:$0xff]
        %v1694 = vld [vmem:[%s1509 + $0x330] sm:$0xff]
        %v1695 = vld [vmem:[%s1509 + $0x338] sm:$0xff]
        %v1696 = vld [vmem:[%s1509 + $0x340] sm:$0xff]
        %v1697 = vld [vmem:[%s1509 + $0x348] sm:$0xff]
        %v1698 = vld [vmem:[%s1509 + $0x350] sm:$0xff]
        %v1699 = vld [vmem:[%s1509 + $0x358] sm:$0xff]
        %v1700 = vld [vmem:[%s1509 + $0x360] sm:$0xff]
        %v1701 = vld [vmem:[%s1509 + $0x368] sm:$0xff]
        %v1702 = vld [vmem:[%s1509 + $0x370] sm:$0xff]
        %v1703 = vld [vmem:[%s1509 + $0x378] sm:$0xff]
        %v1704 = vld [vmem:[%s1509 + $0x380] sm:$0xff]
        %v1705 = vld [vmem:[%s1509 + $0x388] sm:$0xff]
        %v1706 = vld [vmem:[%s1509 + $0x390] sm:$0xff]
        %v1707 = vld [vmem:[%s1509 + $0x398] sm:$0xff]
        %v1708 = vld [vmem:[%s1509 + $0x3a0] sm:$0xff]
        %v1709 = vld [vmem:[%s1509 + $0x3a8] sm:$0xff]
        %v1710 = vld [vmem:[%s1509 + $0x3b0] sm:$0xff]
        %v1711 = vld [vmem:[%s1509 + $0x3b8] sm:$0xff]
        %v1712 = vld [vmem:[%s1509 + $0x3c0] sm:$0xff]
        %v1713 = vld [vmem:[%s1509 + $0x3c8] sm:$0xff]
        %v1714 = vld [vmem:[%s1509 + $0x3d0] sm:$0xff]
        %v1715 = vld [vmem:[%s1509 + $0x3d8] sm:$0xff]
        %v1716 = vld [vmem:[%s1509 + $0x3e0] sm:$0xff]
        %v1717 = vld [vmem:[%s1509 + $0x3e8] sm:$0xff]
        %v1718 = vld [vmem:[%s1509 + $0x3f0] sm:$0xff]
        %v1719 = vld [vmem:[%s1509 + $0x3f8] sm:$0xff]
        %v1720 = vld [vmem:[%s1509 + $0x400] sm:$0xff]
        %v1721 = vld [vmem:[%s1509 + $0x408] sm:$0xff]
        %v1722 = vld [vmem:[%s1509 + $0x410] sm:$0xff]
        %v1723 = vld [vmem:[%s1509 + $0x418] sm:$0xff]
        %v1724 = vld [vmem:[%s1509 + $0x420] sm:$0xff]
        %v1725 = vld [vmem:[%s1509 + $0x428] sm:$0xff]
        %v1726 = vld [vmem:[%s1509 + $0x430] sm:$0xff]
        %v1727 = vld [vmem:[%s1509 + $0x438] sm:$0xff]
        %v1728 = vld [vmem:[%s1509 + $0x440] sm:$0xff]
        %v1729 = vld [vmem:[%s1509 + $0x448] sm:$0xff]
        %v1730 = vld [vmem:[%s1509 + $0x450] sm:$0xff]
        %v1731 = vld [vmem:[%s1509 + $0x458] sm:$0xff]
        %v1732 = vld [vmem:[%s1509 + $0x460] sm:$0xff]
        %v1733 = vld [vmem:[%s1509 + $0x468] sm:$0xff]
        %v1734 = vld [vmem:[%s1509 + $0x470] sm:$0xff]
        %v1735 = vld [vmem:[%s1509 + $0x478] sm:$0xff]
        %v1736 = vld [vmem:[%s1509 + $0x480] sm:$0xff]
        %v1737 = vld [vmem:[%s1509 + $0x488] sm:$0xff]
        %v1738 = vld [vmem:[%s1509 + $0x490] sm:$0xff]
        %v1739 = vld [vmem:[%s1509 + $0x498] sm:$0xff]
        %v1740 = vld [vmem:[%s1509 + $0x4a0] sm:$0xff]
        %v1741 = vld [vmem:[%s1509 + $0x4a8] sm:$0xff]
        %v1742 = vld [vmem:[%s1509 + $0x4b0] sm:$0xff]
        %v1743 = vld [vmem:[%s1509 + $0x4b8] sm:$0xff]
        %v1744 = vld [vmem:[%s1509 + $0x4c0] sm:$0xff]
        %v1745 = vld [vmem:[%s1509 + $0x4c8] sm:$0xff]
        %v1746 = vld [vmem:[%s1509 + $0x4d0] sm:$0xff]
        %v1747 = vld [vmem:[%s1509 + $0x4d8] sm:$0xff]
        %v1748 = vld [vmem:[%s1509 + $0x4e0] sm:$0xff]
        %v1749 = vld [vmem:[%s1509 + $0x4e8] sm:$0xff]
        %v1750 = vld [vmem:[%s1509 + $0x4f0] sm:$0xff]
        %v1751 = vld [vmem:[%s1509 + $0x4f8] sm:$0xff]
        %v1752 = vld [vmem:[%s1509 + $0x500] sm:$0xff]
        %v1753 = vld [vmem:[%s1509 + $0x508] sm:$0xff]
        %v1754 = vld [vmem:[%s1509 + $0x510] sm:$0xff]
        %v1755 = vld [vmem:[%s1509 + $0x518] sm:$0xff]
        %v1756 = vld [vmem:[%s1509 + $0x520] sm:$0xff]
        %v1757 = vld [vmem:[%s1509 + $0x528] sm:$0xff]
        %v1758 = vld [vmem:[%s1509 + $0x530] sm:$0xff]
        %v1759 = vld [vmem:[%s1509 + $0x538] sm:$0xff]
        %v1760 = vld [vmem:[%s1509 + $0x540] sm:$0xff]
        %v1761 = vld [vmem:[%s1509 + $0x548] sm:$0xff]
        %v1762 = vld [vmem:[%s1509 + $0x550] sm:$0xff]
        %v1763 = vld [vmem:[%s1509 + $0x558] sm:$0xff]
        %v1764 = vld [vmem:[%s1509 + $0x560] sm:$0xff]
        %v1765 = vld [vmem:[%s1509 + $0x568] sm:$0xff]
        %v1766 = vld [vmem:[%s1509 + $0x570] sm:$0xff]
        %v1767 = vld [vmem:[%s1509 + $0x578] sm:$0xff]
        %v1768 = vld [vmem:[%s1509 + $0x580] sm:$0xff]
        %v1769 = vld [vmem:[%s1509 + $0x588] sm:$0xff]
        %v1770 = vld [vmem:[%s1509 + $0x590] sm:$0xff]
        %v1771 = vld [vmem:[%s1509 + $0x598] sm:$0xff]
        %v1772 = vld [vmem:[%s1509 + $0x5a0] sm:$0xff]
        %v1773 = vld [vmem:[%s1509 + $0x5a8] sm:$0xff]
        %v1774 = vld [vmem:[%s1509 + $0x5b0] sm:$0xff]
        %v1775 = vld [vmem:[%s1509 + $0x5b8] sm:$0xff]
        %v1776 = vld [vmem:[%s1509 + $0x5c0] sm:$0xff]
        %v1777 = vld [vmem:[%s1509 + $0x5c8] sm:$0xff]
        %v1778 = vld [vmem:[%s1509 + $0x5d0] sm:$0xff]
        %v1779 = vld [vmem:[%s1509 + $0x5d8] sm:$0xff]
        %v1780 = vld [vmem:[%s1509 + $0x5e0] sm:$0xff]
        %v1781 = vld [vmem:[%s1509 + $0x5e8] sm:$0xff]
        %v1782 = vld [vmem:[%s1509 + $0x5f0] sm:$0xff]
        %v1783 = vld [vmem:[%s1509 + $0x5f8] sm:$0xff]
        %v1784 = vld [vmem:[%s1509 + $0x600] sm:$0xff]
        %v1785 = vld [vmem:[%s1509 + $0x608] sm:$0xff]
        %v1786 = vld [vmem:[%s1509 + $0x610] sm:$0xff]
        %v1787 = vld [vmem:[%s1509 + $0x618] sm:$0xff]
        %v1788 = vld [vmem:[%s1509 + $0x620] sm:$0xff]
        %v1789 = vld [vmem:[%s1509 + $0x628] sm:$0xff]
        %v1790 = vld [vmem:[%s1509 + $0x630] sm:$0xff]
        %v1791 = vld [vmem:[%s1509 + $0x638] sm:$0xff]
        %v1792 = vld [vmem:[%s1509 + $0x640] sm:$0xff]
        %v1793 = vld [vmem:[%s1509 + $0x648] sm:$0xff]
        %v1794 = vld [vmem:[%s1509 + $0x650] sm:$0xff]
        %v1795 = vld [vmem:[%s1509 + $0x658] sm:$0xff]
        %v1796 = vld [vmem:[%s1509 + $0x660] sm:$0xff]
        %v1797 = vld [vmem:[%s1509 + $0x668] sm:$0xff]
        %v1798 = vld [vmem:[%s1509 + $0x670] sm:$0xff]
        %v1799 = vld [vmem:[%s1509 + $0x678] sm:$0xff]
        %v1800 = vld [vmem:[%s1509 + $0x680] sm:$0xff]
        %v1801 = vld [vmem:[%s1509 + $0x688] sm:$0xff]
        %v1802 = vld [vmem:[%s1509 + $0x690] sm:$0xff]
        %v1803 = vld [vmem:[%s1509 + $0x698] sm:$0xff]
        %v1804 = vld [vmem:[%s1509 + $0x6a0] sm:$0xff]
        %v1805 = vld [vmem:[%s1509 + $0x6a8] sm:$0xff]
        %v1806 = vld [vmem:[%s1509 + $0x6b0] sm:$0xff]
        %v1807 = vld [vmem:[%s1509 + $0x6b8] sm:$0xff]
        %v1808 = vld [vmem:[%s1509 + $0x6c0] sm:$0xff]
        %v1809 = vld [vmem:[%s1509 + $0x6c8] sm:$0xff]
        %v1810 = vld [vmem:[%s1509 + $0x6d0] sm:$0xff]
        %v1811 = vld [vmem:[%s1509 + $0x6d8] sm:$0xff]
        %v1812 = vld [vmem:[%s1509 + $0x6e0] sm:$0xff]
        %v1813 = vld [vmem:[%s1509 + $0x6e8] sm:$0xff]
        %v1814 = vld [vmem:[%s1509 + $0x6f0] sm:$0xff]
        %v1815 = vld [vmem:[%s1509 + $0x6f8] sm:$0xff]
        %v1816 = vld [vmem:[%s1509 + $0x700] sm:$0xff]
        %v1817 = vld [vmem:[%s1509 + $0x708] sm:$0xff]
        %v1818 = vld [vmem:[%s1509 + $0x710] sm:$0xff]
        %v1819 = vld [vmem:[%s1509 + $0x718] sm:$0xff]
        %v1820 = vld [vmem:[%s1509 + $0x720] sm:$0xff]
        %v1821 = vld [vmem:[%s1509 + $0x728] sm:$0xff]
        %v1822 = vld [vmem:[%s1509 + $0x730] sm:$0xff]
        %v1823 = vld [vmem:[%s1509 + $0x738] sm:$0xff]
        %v1824 = vld [vmem:[%s1509 + $0x740] sm:$0xff]
        %v1825 = vld [vmem:[%s1509 + $0x748] sm:$0xff]
        %v1826 = vld [vmem:[%s1509 + $0x750] sm:$0xff]
        %v1827 = vld [vmem:[%s1509 + $0x758] sm:$0xff]
        %v1828 = vld [vmem:[%s1509 + $0x760] sm:$0xff]
        %v1829 = vld [vmem:[%s1509 + $0x768] sm:$0xff]
        %v1830 = vld [vmem:[%s1509 + $0x770] sm:$0xff]
        %v1831 = vld [vmem:[%s1509 + $0x778] sm:$0xff]
        %v1832 = vld [vmem:[%s1509 + $0x780] sm:$0xff]
        %v1833 = vld [vmem:[%s1509 + $0x788] sm:$0xff]
        %v1834 = vld [vmem:[%s1509 + $0x790] sm:$0xff]
        %v1835 = vld [vmem:[%s1509 + $0x798] sm:$0xff]
        %v1836 = vld [vmem:[%s1509 + $0x7a0] sm:$0xff]
        %v1837 = vld [vmem:[%s1509 + $0x7a8] sm:$0xff]
        %v1838 = vld [vmem:[%s1509 + $0x7b0] sm:$0xff]
        %v1839 = vld [vmem:[%s1509 + $0x7b8] sm:$0xff]
        %v1840 = vld [vmem:[%s1509 + $0x7c0] sm:$0xff]
        %v1841 = vld [vmem:[%s1509 + $0x7c8] sm:$0xff]
        %v1842 = vld [vmem:[%s1509 + $0x7d0] sm:$0xff]
        %v1843 = vld [vmem:[%s1509 + $0x7d8] sm:$0xff]
        %v1844 = vld [vmem:[%s1509 + $0x7e0] sm:$0xff]
        %v1845 = vld [vmem:[%s1509 + $0x7e8] sm:$0xff]
        %v1846 = vld [vmem:[%s1509 + $0x7f0] sm:$0xff]
        %v1847 = vld [vmem:[%s1509 + $0x7f8] sm:$0xff]
        %v1848 = vld [vmem:[%s1509 + $0x800] sm:$0xff]
        %v1849 = vld [vmem:[%s1509 + $0x808] sm:$0xff]
        %v1850 = vld [vmem:[%s1509 + $0x810] sm:$0xff]
        %v1851 = vld [vmem:[%s1509 + $0x818] sm:$0xff]
        %v1852 = vld [vmem:[%s1509 + $0x820] sm:$0xff]
        %v1853 = vld [vmem:[%s1509 + $0x828] sm:$0xff]
        %v1854 = vld [vmem:[%s1509 + $0x830] sm:$0xff]
        %v1855 = vld [vmem:[%s1509 + $0x838] sm:$0xff]
        %v1856 = vld [vmem:[%s1509 + $0x840] sm:$0xff]
        %v1857 = vld [vmem:[%s1509 + $0x848] sm:$0xff]
        %v1858 = vld [vmem:[%s1509 + $0x850] sm:$0xff]
        %v1859 = vld [vmem:[%s1509 + $0x858] sm:$0xff]
        %v1860 = vld [vmem:[%s1509 + $0x860] sm:$0xff]
        %v1861 = vld [vmem:[%s1509 + $0x868] sm:$0xff]
        %v1862 = vld [vmem:[%s1509 + $0x870] sm:$0xff]
        %v1863 = vld [vmem:[%s1509 + $0x878] sm:$0xff]
        %v1864 = vld [vmem:[%s1509 + $0x880] sm:$0xff]
        %v1865 = vld [vmem:[%s1509 + $0x888] sm:$0xff]
        %v1866 = vld [vmem:[%s1509 + $0x890] sm:$0xff]
        %v1867 = vld [vmem:[%s1509 + $0x898] sm:$0xff]
        %v1868 = vld [vmem:[%s1509 + $0x8a0] sm:$0xff]
        %v1869 = vld [vmem:[%s1509 + $0x8a8] sm:$0xff]
        %v1870 = vld [vmem:[%s1509 + $0x8b0] sm:$0xff]
        %v1871 = vld [vmem:[%s1509 + $0x8b8] sm:$0xff]
        %v1872 = vld [vmem:[%s1509 + $0x8c0] sm:$0xff]
        %v1873 = vld [vmem:[%s1509 + $0x8c8] sm:$0xff]
        %v1874 = vld [vmem:[%s1509 + $0x8d0] sm:$0xff]
        %v1875 = vld [vmem:[%s1509 + $0x8d8] sm:$0xff]
        %v1876 = vld [vmem:[%s1509 + $0x8e0] sm:$0xff]
        %v1877 = vld [vmem:[%s1509 + $0x8e8] sm:$0xff]
        %v1878 = vld [vmem:[%s1509 + $0x8f0] sm:$0xff]
        %v1879 = vld [vmem:[%s1509 + $0x8f8] sm:$0xff]
        %v1880 = vld [vmem:[%s1509 + $0x900] sm:$0xff]
        %v1881 = vld [vmem:[%s1509 + $0x908] sm:$0xff]
        %v1882 = vld [vmem:[%s1509 + $0x910] sm:$0xff]
        %v1883 = vld [vmem:[%s1509 + $0x918] sm:$0xff]
        %v1884 = vld [vmem:[%s1509 + $0x920] sm:$0xff]
        %v1885 = vld [vmem:[%s1509 + $0x928] sm:$0xff]
        %v1886 = vld [vmem:[%s1509 + $0x930] sm:$0xff]
        %v1887 = vld [vmem:[%s1509 + $0x938] sm:$0xff]
        %v1888 = vld [vmem:[%s1509 + $0x940] sm:$0xff]
        %v1889 = vld [vmem:[%s1509 + $0x948] sm:$0xff]
        %v1890 = vld [vmem:[%s1509 + $0x950] sm:$0xff]
        %v1891 = vld [vmem:[%s1509 + $0x958] sm:$0xff]
        %v1892 = vld [vmem:[%s1509 + $0x960] sm:$0xff]
        %v1893 = vld [vmem:[%s1509 + $0x968] sm:$0xff]
        %v1894 = vld [vmem:[%s1509 + $0x970] sm:$0xff]
        %v1895 = vld [vmem:[%s1509 + $0x978] sm:$0xff]
        %v1896 = vld [vmem:[%s1509 + $0x980] sm:$0xff]
        %v1897 = vld [vmem:[%s1509 + $0x988] sm:$0xff]
        %v1898 = vld [vmem:[%s1509 + $0x990] sm:$0xff]
        %v1899 = vld [vmem:[%s1509 + $0x998] sm:$0xff]
        %v1900 = vld [vmem:[%s1509 + $0x9a0] sm:$0xff]
        %v1901 = vld [vmem:[%s1509 + $0x9a8] sm:$0xff]
        %v1902 = vld [vmem:[%s1509 + $0x9b0] sm:$0xff]
        %v1903 = vld [vmem:[%s1509 + $0x9b8] sm:$0xff]
        %v1904 = vld [vmem:[%s1509 + $0x9c0] sm:$0xff]
        %v1905 = vld [vmem:[%s1509 + $0x9c8] sm:$0xff]
        %v1906 = vld [vmem:[%s1509 + $0x9d0] sm:$0xff]
        %v1907 = vld [vmem:[%s1509 + $0x9d8] sm:$0xff]
        %v1908 = vld [vmem:[%s1509 + $0x9e0] sm:$0xff]
        %v1909 = vld [vmem:[%s1509 + $0x9e8] sm:$0xff]
        %v1910 = vld [vmem:[%s1509 + $0x9f0] sm:$0xff]
        %v1911 = vld [vmem:[%s1509 + $0x9f8] sm:$0xff]
        %v1922 = vunpack.c.l.b16 %v1582
        %v1923 = vunpack.c.h.b16 %v1582
        %v1924 = vunpack.c.l.b16 %v1583
        %v1925 = vunpack.c.h.b16 %v1583
        %v1926 = vunpack.c.l.b16 %v1584
        %v1927 = vunpack.c.h.b16 %v1584
        %v1928 = vunpack.c.l.b16 %v1585
        %v1929 = vunpack.c.h.b16 %v1585
        %v1930 = vunpack.c.l.b16 %v1586
        %v1931 = vunpack.c.h.b16 %v1586
        %v1932 = vunpack.c.l.b16 %v1587
        %v1933 = vunpack.c.h.b16 %v1587
        %v1934 = vunpack.c.l.b16 %v1588
        %v1935 = vunpack.c.h.b16 %v1588
        %v1936 = vunpack.c.l.b16 %v1589
        %v1937 = vunpack.c.h.b16 %v1589
        %v1938 = vunpack.c.l.b16 %v1590
        %v1939 = vunpack.c.h.b16 %v1590
        %v1940 = vunpack.c.l.b16 %v1591
        %v1941 = vunpack.c.h.b16 %v1591
        %v1942 = vpack.c.b16 %v1922, %v1922
        %v1943 = vpack.c.b16 %v1923, %v1923
        %v1944 = vpack.c.b16 %v1924, %v1924
        %v1945 = vpack.c.b16 %v1925, %v1925
        %v1946 = vpack.c.b16 %v1926, %v1926
        %v1947 = vpack.c.b16 %v1927, %v1927
        %v1948 = vpack.c.b16 %v1928, %v1928
        %v1949 = vpack.c.b16 %v1929, %v1929
        %v1950 = vpack.c.b16 %v1930, %v1930
        %v1951 = vpack.c.b16 %v1931, %v1931
        %v1952 = vpack.c.b16 %v1932, %v1932
        %v1953 = vpack.c.b16 %v1933, %v1933
        %v1954 = vpack.c.b16 %v1934, %v1934
        %v1955 = vpack.c.b16 %v1935, %v1935
        %v1956 = vpack.c.b16 %v1936, %v1936
        %v1957 = vpack.c.b16 %v1937, %v1937
        %v1958 = vpack.c.b16 %v1938, %v1938
        %v1959 = vpack.c.b16 %v1939, %v1939
        %v1960 = vpack.c.b16 %v1940, %v1940
        %v1961 = vpack.c.b16 %v1941, %v1941
        %v2302 = vunpack.c.l.b16 %v1592
        %v2303 = vunpack.c.h.b16 %v1592
        %v2304 = vunpack.c.l.b16 %v1593
        %v2305 = vunpack.c.h.b16 %v1593
        %v2306 = vunpack.c.l.b16 %v1594
        %v2307 = vunpack.c.h.b16 %v1594
        %v2308 = vunpack.c.l.b16 %v1595
        %v2309 = vunpack.c.h.b16 %v1595
        %v2310 = vunpack.c.l.b16 %v1596
        %v2311 = vunpack.c.h.b16 %v1596
        %v2312 = vunpack.c.l.b16 %v1597
        %v2313 = vunpack.c.h.b16 %v1597
        %v2314 = vunpack.c.l.b16 %v1598
        %v2315 = vunpack.c.h.b16 %v1598
        %v2316 = vunpack.c.l.b16 %v1599
        %v2317 = vunpack.c.h.b16 %v1599
        %v2318 = vunpack.c.l.b16 %v1600
        %v2319 = vunpack.c.h.b16 %v1600
        %v2320 = vunpack.c.l.b16 %v1601
        %v2321 = vunpack.c.h.b16 %v1601
        %v2322 = vunpack.c.l.b16 %v1602
        %v2323 = vunpack.c.h.b16 %v1602
        %v2324 = vunpack.c.l.b16 %v1603
        %v2325 = vunpack.c.h.b16 %v1603
        %v2326 = vunpack.c.l.b16 %v1604
        %v2327 = vunpack.c.h.b16 %v1604
        %v2328 = vunpack.c.l.b16 %v1605
        %v2329 = vunpack.c.h.b16 %v1605
        %v2330 = vunpack.c.l.b16 %v1606
        %v2331 = vunpack.c.h.b16 %v1606
        %v2332 = vunpack.c.l.b16 %v1607
        %v2333 = vunpack.c.h.b16 %v1607
        %v2334 = vunpack.c.l.b16 %v1608
        %v2335 = vunpack.c.h.b16 %v1608
        %v2336 = vunpack.c.l.b16 %v1609
        %v2337 = vunpack.c.h.b16 %v1609
        %v2338 = vunpack.c.l.b16 %v1610
        %v2339 = vunpack.c.h.b16 %v1610
        %v2340 = vunpack.c.l.b16 %v1611
        %v2341 = vunpack.c.h.b16 %v1611
        %v2342 = vunpack.c.l.b16 %v1612
        %v2343 = vunpack.c.h.b16 %v1612
        %v2344 = vunpack.c.l.b16 %v1613
        %v2345 = vunpack.c.h.b16 %v1613
        %v2346 = vunpack.c.l.b16 %v1614
        %v2347 = vunpack.c.h.b16 %v1614
        %v2348 = vunpack.c.l.b16 %v1615
        %v2349 = vunpack.c.h.b16 %v1615
        %v2350 = vunpack.c.l.b16 %v1616
        %v2351 = vunpack.c.h.b16 %v1616
        %v2352 = vunpack.c.l.b16 %v1617
        %v2353 = vunpack.c.h.b16 %v1617
        %v2354 = vunpack.c.l.b16 %v1618
        %v2355 = vunpack.c.h.b16 %v1618
        %v2356 = vunpack.c.l.b16 %v1619
        %v2357 = vunpack.c.h.b16 %v1619
        %v2358 = vunpack.c.l.b16 %v1620
        %v2359 = vunpack.c.h.b16 %v1620
        %v2360 = vunpack.c.l.b16 %v1621
        %v2361 = vunpack.c.h.b16 %v1621
        %v2362 = vunpack.c.l.b16 %v1622
        %v2363 = vunpack.c.h.b16 %v1622
        %v2364 = vunpack.c.l.b16 %v1623
        %v2365 = vunpack.c.h.b16 %v1623
        %v2366 = vunpack.c.l.b16 %v1624
        %v2367 = vunpack.c.h.b16 %v1624
        %v2368 = vunpack.c.l.b16 %v1625
        %v2369 = vunpack.c.h.b16 %v1625
        %v2370 = vunpack.c.l.b16 %v1626
        %v2371 = vunpack.c.h.b16 %v1626
        %v2372 = vunpack.c.l.b16 %v1627
        %v2373 = vunpack.c.h.b16 %v1627
        %v2374 = vunpack.c.l.b16 %v1628
        %v2375 = vunpack.c.h.b16 %v1628
        %v2376 = vunpack.c.l.b16 %v1629
        %v2377 = vunpack.c.h.b16 %v1629
        %v2378 = vunpack.c.l.b16 %v1630
        %v2379 = vunpack.c.h.b16 %v1630
        %v2380 = vunpack.c.l.b16 %v1631
        %v2381 = vunpack.c.h.b16 %v1631
        %v2382 = vunpack.c.l.b16 %v1632
        %v2383 = vunpack.c.h.b16 %v1632
        %v2384 = vunpack.c.l.b16 %v1633
        %v2385 = vunpack.c.h.b16 %v1633
        %v2386 = vunpack.c.l.b16 %v1634
        %v2387 = vunpack.c.h.b16 %v1634
        %v2388 = vunpack.c.l.b16 %v1635
        %v2389 = vunpack.c.h.b16 %v1635
        %v2390 = vunpack.c.l.b16 %v1636
        %v2391 = vunpack.c.h.b16 %v1636
        %v2392 = vunpack.c.l.b16 %v1637
        %v2393 = vunpack.c.h.b16 %v1637
        %v2394 = vunpack.c.l.b16 %v1638
        %v2395 = vunpack.c.h.b16 %v1638
        %v2396 = vunpack.c.l.b16 %v1639
        %v2397 = vunpack.c.h.b16 %v1639
        %v2398 = vunpack.c.l.b16 %v1640
        %v2399 = vunpack.c.h.b16 %v1640
        %v2400 = vunpack.c.l.b16 %v1641
        %v2401 = vunpack.c.h.b16 %v1641
        %v2402 = vunpack.c.l.b16 %v1642
        %v2403 = vunpack.c.h.b16 %v1642
        %v2404 = vunpack.c.l.b16 %v1643
        %v2405 = vunpack.c.h.b16 %v1643
        %v2406 = vunpack.c.l.b16 %v1644
        %v2407 = vunpack.c.h.b16 %v1644
        %v2408 = vunpack.c.l.b16 %v1645
        %v2409 = vunpack.c.h.b16 %v1645
        %v2410 = vunpack.c.l.b16 %v1646
        %v2411 = vunpack.c.h.b16 %v1646
        %v2412 = vunpack.c.l.b16 %v1647
        %v2413 = vunpack.c.h.b16 %v1647
        %v2414 = vunpack.c.l.b16 %v1648
        %v2415 = vunpack.c.h.b16 %v1648
        %v2416 = vunpack.c.l.b16 %v1649
        %v2417 = vunpack.c.h.b16 %v1649
        %v2418 = vunpack.c.l.b16 %v1650
        %v2419 = vunpack.c.h.b16 %v1650
        %v2420 = vunpack.c.l.b16 %v1651
        %v2421 = vunpack.c.h.b16 %v1651
        %v2422 = vunpack.c.l.b16 %v1652
        %v2423 = vunpack.c.h.b16 %v1652
        %v2424 = vunpack.c.l.b16 %v1653
        %v2425 = vunpack.c.h.b16 %v1653
        %v2426 = vunpack.c.l.b16 %v1654
        %v2427 = vunpack.c.h.b16 %v1654
        %v2428 = vunpack.c.l.b16 %v1655
        %v2429 = vunpack.c.h.b16 %v1655
        %v2430 = vunpack.c.l.b16 %v1656
        %v2431 = vunpack.c.h.b16 %v1656
        %v2432 = vunpack.c.l.b16 %v1657
        %v2433 = vunpack.c.h.b16 %v1657
        %v2434 = vunpack.c.l.b16 %v1658
        %v2435 = vunpack.c.h.b16 %v1658
        %v2436 = vunpack.c.l.b16 %v1659
        %v2437 = vunpack.c.h.b16 %v1659
        %v2438 = vunpack.c.l.b16 %v1660
        %v2439 = vunpack.c.h.b16 %v1660
        %v2440 = vunpack.c.l.b16 %v1661
        %v2441 = vunpack.c.h.b16 %v1661
        %v2442 = vunpack.c.l.b16 %v1662
        %v2443 = vunpack.c.h.b16 %v1662
        %v2444 = vunpack.c.l.b16 %v1663
        %v2445 = vunpack.c.h.b16 %v1663
        %v2446 = vunpack.c.l.b16 %v1664
        %v2447 = vunpack.c.h.b16 %v1664
        %v2448 = vunpack.c.l.b16 %v1665
        %v2449 = vunpack.c.h.b16 %v1665
        %v2450 = vunpack.c.l.b16 %v1666
        %v2451 = vunpack.c.h.b16 %v1666
        %v2452 = vunpack.c.l.b16 %v1667
        %v2453 = vunpack.c.h.b16 %v1667
        %v2454 = vunpack.c.l.b16 %v1668
        %v2455 = vunpack.c.h.b16 %v1668
        %v2456 = vunpack.c.l.b16 %v1669
        %v2457 = vunpack.c.h.b16 %v1669
        %v2458 = vunpack.c.l.b16 %v1670
        %v2459 = vunpack.c.h.b16 %v1670
        %v2460 = vunpack.c.l.b16 %v1671
        %v2461 = vunpack.c.h.b16 %v1671
        %v2462 = vunpack.c.l.b16 %v1672
        %v2463 = vunpack.c.h.b16 %v1672
        %v2464 = vunpack.c.l.b16 %v1673
        %v2465 = vunpack.c.h.b16 %v1673
        %v2466 = vunpack.c.l.b16 %v1674
        %v2467 = vunpack.c.h.b16 %v1674
        %v2468 = vunpack.c.l.b16 %v1675
        %v2469 = vunpack.c.h.b16 %v1675
        %v2470 = vunpack.c.l.b16 %v1676
        %v2471 = vunpack.c.h.b16 %v1676
        %v2472 = vunpack.c.l.b16 %v1677
        %v2473 = vunpack.c.h.b16 %v1677
        %v2474 = vunpack.c.l.b16 %v1678
        %v2475 = vunpack.c.h.b16 %v1678
        %v2476 = vunpack.c.l.b16 %v1679
        %v2477 = vunpack.c.h.b16 %v1679
        %v2478 = vunpack.c.l.b16 %v1680
        %v2479 = vunpack.c.h.b16 %v1680
        %v2480 = vunpack.c.l.b16 %v1681
        %v2481 = vunpack.c.h.b16 %v1681
        %v2482 = vunpack.c.l.b16 %v1682
        %v2483 = vunpack.c.h.b16 %v1682
        %v2484 = vunpack.c.l.b16 %v1683
        %v2485 = vunpack.c.h.b16 %v1683
        %v2486 = vunpack.c.l.b16 %v1684
        %v2487 = vunpack.c.h.b16 %v1684
        %v2488 = vunpack.c.l.b16 %v1685
        %v2489 = vunpack.c.h.b16 %v1685
        %v2490 = vunpack.c.l.b16 %v1686
        %v2491 = vunpack.c.h.b16 %v1686
        %v2492 = vunpack.c.l.b16 %v1687
        %v2493 = vunpack.c.h.b16 %v1687
        %v2494 = vunpack.c.l.b16 %v1688
        %v2495 = vunpack.c.h.b16 %v1688
        %v2496 = vunpack.c.l.b16 %v1689
        %v2497 = vunpack.c.h.b16 %v1689
        %v2498 = vunpack.c.l.b16 %v1690
        %v2499 = vunpack.c.h.b16 %v1690
        %v2500 = vunpack.c.l.b16 %v1691
        %v2501 = vunpack.c.h.b16 %v1691
        %v2502 = vunpack.c.l.b16 %v1692
        %v2503 = vunpack.c.h.b16 %v1692
        %v2504 = vunpack.c.l.b16 %v1693
        %v2505 = vunpack.c.h.b16 %v1693
        %v2506 = vunpack.c.l.b16 %v1694
        %v2507 = vunpack.c.h.b16 %v1694
        %v2508 = vunpack.c.l.b16 %v1695
        %v2509 = vunpack.c.h.b16 %v1695
        %v2510 = vunpack.c.l.b16 %v1696
        %v2511 = vunpack.c.h.b16 %v1696
        %v2512 = vunpack.c.l.b16 %v1697
        %v2513 = vunpack.c.h.b16 %v1697
        %v2514 = vunpack.c.l.b16 %v1698
        %v2515 = vunpack.c.h.b16 %v1698
        %v2516 = vunpack.c.l.b16 %v1699
        %v2517 = vunpack.c.h.b16 %v1699
        %v2518 = vunpack.c.l.b16 %v1700
        %v2519 = vunpack.c.h.b16 %v1700
        %v2520 = vunpack.c.l.b16 %v1701
        %v2521 = vunpack.c.h.b16 %v1701
        %v2522 = vunpack.c.l.b16 %v1702
        %v2523 = vunpack.c.h.b16 %v1702
        %v2524 = vunpack.c.l.b16 %v1703
        %v2525 = vunpack.c.h.b16 %v1703
        %v2526 = vunpack.c.l.b16 %v1704
        %v2527 = vunpack.c.h.b16 %v1704
        %v2528 = vunpack.c.l.b16 %v1705
        %v2529 = vunpack.c.h.b16 %v1705
        %v2530 = vunpack.c.l.b16 %v1706
        %v2531 = vunpack.c.h.b16 %v1706
        %v2532 = vunpack.c.l.b16 %v1707
        %v2533 = vunpack.c.h.b16 %v1707
        %v2534 = vunpack.c.l.b16 %v1708
        %v2535 = vunpack.c.h.b16 %v1708
        %v2536 = vunpack.c.l.b16 %v1709
        %v2537 = vunpack.c.h.b16 %v1709
        %v2538 = vunpack.c.l.b16 %v1710
        %v2539 = vunpack.c.h.b16 %v1710
        %v2540 = vunpack.c.l.b16 %v1711
        %v2541 = vunpack.c.h.b16 %v1711
        %v2542 = vunpack.c.l.b16 %v1712
        %v2543 = vunpack.c.h.b16 %v1712
        %v2544 = vunpack.c.l.b16 %v1713
        %v2545 = vunpack.c.h.b16 %v1713
        %v2546 = vunpack.c.l.b16 %v1714
        %v2547 = vunpack.c.h.b16 %v1714
        %v2548 = vunpack.c.l.b16 %v1715
        %v2549 = vunpack.c.h.b16 %v1715
        %v2550 = vunpack.c.l.b16 %v1716
        %v2551 = vunpack.c.h.b16 %v1716
        %v2552 = vunpack.c.l.b16 %v1717
        %v2553 = vunpack.c.h.b16 %v1717
        %v2554 = vunpack.c.l.b16 %v1718
        %v2555 = vunpack.c.h.b16 %v1718
        %v2556 = vunpack.c.l.b16 %v1719
        %v2557 = vunpack.c.h.b16 %v1719
        %v2558 = vunpack.c.l.b16 %v1720
        %v2559 = vunpack.c.h.b16 %v1720
        %v2560 = vunpack.c.l.b16 %v1721
        %v2561 = vunpack.c.h.b16 %v1721
        %v2562 = vunpack.c.l.b16 %v1722
        %v2563 = vunpack.c.h.b16 %v1722
        %v2564 = vunpack.c.l.b16 %v1723
        %v2565 = vunpack.c.h.b16 %v1723
        %v2566 = vunpack.c.l.b16 %v1724
        %v2567 = vunpack.c.h.b16 %v1724
        %v2568 = vunpack.c.l.b16 %v1725
        %v2569 = vunpack.c.h.b16 %v1725
        %v2570 = vunpack.c.l.b16 %v1726
        %v2571 = vunpack.c.h.b16 %v1726
        %v2572 = vunpack.c.l.b16 %v1727
        %v2573 = vunpack.c.h.b16 %v1727
        %v2574 = vunpack.c.l.b16 %v1728
        %v2575 = vunpack.c.h.b16 %v1728
        %v2576 = vunpack.c.l.b16 %v1729
        %v2577 = vunpack.c.h.b16 %v1729
        %v2578 = vunpack.c.l.b16 %v1730
        %v2579 = vunpack.c.h.b16 %v1730
        %v2580 = vunpack.c.l.b16 %v1731
        %v2581 = vunpack.c.h.b16 %v1731
        %v2582 = vunpack.c.l.b16 %v1732
        %v2583 = vunpack.c.h.b16 %v1732
        %v2584 = vunpack.c.l.b16 %v1733
        %v2585 = vunpack.c.h.b16 %v1733
        %v2586 = vunpack.c.l.b16 %v1734
        %v2587 = vunpack.c.h.b16 %v1734
        %v2588 = vunpack.c.l.b16 %v1735
        %v2589 = vunpack.c.h.b16 %v1735
        %v2590 = vunpack.c.l.b16 %v1736
        %v2591 = vunpack.c.h.b16 %v1736
        %v2592 = vunpack.c.l.b16 %v1737
        %v2593 = vunpack.c.h.b16 %v1737
        %v2594 = vunpack.c.l.b16 %v1738
        %v2595 = vunpack.c.h.b16 %v1738
        %v2596 = vunpack.c.l.b16 %v1739
        %v2597 = vunpack.c.h.b16 %v1739
        %v2598 = vunpack.c.l.b16 %v1740
        %v2599 = vunpack.c.h.b16 %v1740
        %v2600 = vunpack.c.l.b16 %v1741
        %v2601 = vunpack.c.h.b16 %v1741
        %v2602 = vunpack.c.l.b16 %v1742
        %v2603 = vunpack.c.h.b16 %v1742
        %v2604 = vunpack.c.l.b16 %v1743
        %v2605 = vunpack.c.h.b16 %v1743
        %v2606 = vunpack.c.l.b16 %v1744
        %v2607 = vunpack.c.h.b16 %v1744
        %v2608 = vunpack.c.l.b16 %v1745
        %v2609 = vunpack.c.h.b16 %v1745
        %v2610 = vunpack.c.l.b16 %v1746
        %v2611 = vunpack.c.h.b16 %v1746
        %v2612 = vunpack.c.l.b16 %v1747
        %v2613 = vunpack.c.h.b16 %v1747
        %v2614 = vunpack.c.l.b16 %v1748
        %v2615 = vunpack.c.h.b16 %v1748
        %v2616 = vunpack.c.l.b16 %v1749
        %v2617 = vunpack.c.h.b16 %v1749
        %v2618 = vunpack.c.l.b16 %v1750
        %v2619 = vunpack.c.h.b16 %v1750
        %v2620 = vunpack.c.l.b16 %v1751
        %v2621 = vunpack.c.h.b16 %v1751
        %v2622 = vunpack.c.l.b16 %v1752
        %v2623 = vunpack.c.h.b16 %v1752
        %v2624 = vunpack.c.l.b16 %v1753
        %v2625 = vunpack.c.h.b16 %v1753
        %v2626 = vunpack.c.l.b16 %v1754
        %v2627 = vunpack.c.h.b16 %v1754
        %v2628 = vunpack.c.l.b16 %v1755
        %v2629 = vunpack.c.h.b16 %v1755
        %v2630 = vunpack.c.l.b16 %v1756
        %v2631 = vunpack.c.h.b16 %v1756
        %v2632 = vunpack.c.l.b16 %v1757
        %v2633 = vunpack.c.h.b16 %v1757
        %v2634 = vunpack.c.l.b16 %v1758
        %v2635 = vunpack.c.h.b16 %v1758
        %v2636 = vunpack.c.l.b16 %v1759
        %v2637 = vunpack.c.h.b16 %v1759
        %v2638 = vunpack.c.l.b16 %v1760
        %v2639 = vunpack.c.h.b16 %v1760
        %v2640 = vunpack.c.l.b16 %v1761
        %v2641 = vunpack.c.h.b16 %v1761
        %v2642 = vunpack.c.l.b16 %v1762
        %v2643 = vunpack.c.h.b16 %v1762
        %v2644 = vunpack.c.l.b16 %v1763
        %v2645 = vunpack.c.h.b16 %v1763
        %v2646 = vunpack.c.l.b16 %v1764
        %v2647 = vunpack.c.h.b16 %v1764
        %v2648 = vunpack.c.l.b16 %v1765
        %v2649 = vunpack.c.h.b16 %v1765
        %v2650 = vunpack.c.l.b16 %v1766
        %v2651 = vunpack.c.h.b16 %v1766
        %v2652 = vunpack.c.l.b16 %v1767
        %v2653 = vunpack.c.h.b16 %v1767
        %v2654 = vunpack.c.l.b16 %v1768
        %v2655 = vunpack.c.h.b16 %v1768
        %v2656 = vunpack.c.l.b16 %v1769
        %v2657 = vunpack.c.h.b16 %v1769
        %v2658 = vunpack.c.l.b16 %v1770
        %v2659 = vunpack.c.h.b16 %v1770
        %v2660 = vunpack.c.l.b16 %v1771
        %v2661 = vunpack.c.h.b16 %v1771
        %v2662 = vunpack.c.l.b16 %v1772
        %v2663 = vunpack.c.h.b16 %v1772
        %v2664 = vunpack.c.l.b16 %v1773
        %v2665 = vunpack.c.h.b16 %v1773
        %v2666 = vunpack.c.l.b16 %v1774
        %v2667 = vunpack.c.h.b16 %v1774
        %v2668 = vunpack.c.l.b16 %v1775
        %v2669 = vunpack.c.h.b16 %v1775
        %v2670 = vunpack.c.l.b16 %v1776
        %v2671 = vunpack.c.h.b16 %v1776
        %v2672 = vunpack.c.l.b16 %v1777
        %v2673 = vunpack.c.h.b16 %v1777
        %v2674 = vunpack.c.l.b16 %v1778
        %v2675 = vunpack.c.h.b16 %v1778
        %v2676 = vunpack.c.l.b16 %v1779
        %v2677 = vunpack.c.h.b16 %v1779
        %v2678 = vunpack.c.l.b16 %v1780
        %v2679 = vunpack.c.h.b16 %v1780
        %v2680 = vunpack.c.l.b16 %v1781
        %v2681 = vunpack.c.h.b16 %v1781
        %v2682 = vunpack.c.l.b16 %v1782
        %v2683 = vunpack.c.h.b16 %v1782
        %v2684 = vunpack.c.l.b16 %v1783
        %v2685 = vunpack.c.h.b16 %v1783
        %v2686 = vunpack.c.l.b16 %v1784
        %v2687 = vunpack.c.h.b16 %v1784
        %v2688 = vunpack.c.l.b16 %v1785
        %v2689 = vunpack.c.h.b16 %v1785
        %v2690 = vunpack.c.l.b16 %v1786
        %v2691 = vunpack.c.h.b16 %v1786
        %v2692 = vunpack.c.l.b16 %v1787
        %v2693 = vunpack.c.h.b16 %v1787
        %v2694 = vunpack.c.l.b16 %v1788
        %v2695 = vunpack.c.h.b16 %v1788
        %v2696 = vunpack.c.l.b16 %v1789
        %v2697 = vunpack.c.h.b16 %v1789
        %v2698 = vunpack.c.l.b16 %v1790
        %v2699 = vunpack.c.h.b16 %v1790
        %v2700 = vunpack.c.l.b16 %v1791
        %v2701 = vunpack.c.h.b16 %v1791
        %v2702 = vunpack.c.l.b16 %v1792
        %v2703 = vunpack.c.h.b16 %v1792
        %v2704 = vunpack.c.l.b16 %v1793
        %v2705 = vunpack.c.h.b16 %v1793
        %v2706 = vunpack.c.l.b16 %v1794
        %v2707 = vunpack.c.h.b16 %v1794
        %v2708 = vunpack.c.l.b16 %v1795
        %v2709 = vunpack.c.h.b16 %v1795
        %v2710 = vunpack.c.l.b16 %v1796
        %v2711 = vunpack.c.h.b16 %v1796
        %v2712 = vunpack.c.l.b16 %v1797
        %v2713 = vunpack.c.h.b16 %v1797
        %v2714 = vunpack.c.l.b16 %v1798
        %v2715 = vunpack.c.h.b16 %v1798
        %v2716 = vunpack.c.l.b16 %v1799
        %v2717 = vunpack.c.h.b16 %v1799
        %v2718 = vunpack.c.l.b16 %v1800
        %v2719 = vunpack.c.h.b16 %v1800
        %v2720 = vunpack.c.l.b16 %v1801
        %v2721 = vunpack.c.h.b16 %v1801
        %v2722 = vunpack.c.l.b16 %v1802
        %v2723 = vunpack.c.h.b16 %v1802
        %v2724 = vunpack.c.l.b16 %v1803
        %v2725 = vunpack.c.h.b16 %v1803
        %v2726 = vunpack.c.l.b16 %v1804
        %v2727 = vunpack.c.h.b16 %v1804
        %v2728 = vunpack.c.l.b16 %v1805
        %v2729 = vunpack.c.h.b16 %v1805
        %v2730 = vunpack.c.l.b16 %v1806
        %v2731 = vunpack.c.h.b16 %v1806
        %v2732 = vunpack.c.l.b16 %v1807
        %v2733 = vunpack.c.h.b16 %v1807
        %v2734 = vunpack.c.l.b16 %v1808
        %v2735 = vunpack.c.h.b16 %v1808
        %v2736 = vunpack.c.l.b16 %v1809
        %v2737 = vunpack.c.h.b16 %v1809
        %v2738 = vunpack.c.l.b16 %v1810
        %v2739 = vunpack.c.h.b16 %v1810
        %v2740 = vunpack.c.l.b16 %v1811
        %v2741 = vunpack.c.h.b16 %v1811
        %v2742 = vunpack.c.l.b16 %v1812
        %v2743 = vunpack.c.h.b16 %v1812
        %v2744 = vunpack.c.l.b16 %v1813
        %v2745 = vunpack.c.h.b16 %v1813
        %v2746 = vunpack.c.l.b16 %v1814
        %v2747 = vunpack.c.h.b16 %v1814
        %v2748 = vunpack.c.l.b16 %v1815
        %v2749 = vunpack.c.h.b16 %v1815
        %v2750 = vunpack.c.l.b16 %v1816
        %v2751 = vunpack.c.h.b16 %v1816
        %v2752 = vunpack.c.l.b16 %v1817
        %v2753 = vunpack.c.h.b16 %v1817
        %v2754 = vunpack.c.l.b16 %v1818
        %v2755 = vunpack.c.h.b16 %v1818
        %v2756 = vunpack.c.l.b16 %v1819
        %v2757 = vunpack.c.h.b16 %v1819
        %v2758 = vunpack.c.l.b16 %v1820
        %v2759 = vunpack.c.h.b16 %v1820
        %v2760 = vunpack.c.l.b16 %v1821
        %v2761 = vunpack.c.h.b16 %v1821
        %v2762 = vunpack.c.l.b16 %v1822
        %v2763 = vunpack.c.h.b16 %v1822
        %v2764 = vunpack.c.l.b16 %v1823
        %v2765 = vunpack.c.h.b16 %v1823
        %v2766 = vunpack.c.l.b16 %v1824
        %v2767 = vunpack.c.h.b16 %v1824
        %v2768 = vunpack.c.l.b16 %v1825
        %v2769 = vunpack.c.h.b16 %v1825
        %v2770 = vunpack.c.l.b16 %v1826
        %v2771 = vunpack.c.h.b16 %v1826
        %v2772 = vunpack.c.l.b16 %v1827
        %v2773 = vunpack.c.h.b16 %v1827
        %v2774 = vunpack.c.l.b16 %v1828
        %v2775 = vunpack.c.h.b16 %v1828
        %v2776 = vunpack.c.l.b16 %v1829
        %v2777 = vunpack.c.h.b16 %v1829
        %v2778 = vunpack.c.l.b16 %v1830
        %v2779 = vunpack.c.h.b16 %v1830
        %v2780 = vunpack.c.l.b16 %v1831
        %v2781 = vunpack.c.h.b16 %v1831
        %v2782 = vunpack.c.l.b16 %v1832
        %v2783 = vunpack.c.h.b16 %v1832
        %v2784 = vunpack.c.l.b16 %v1833
        %v2785 = vunpack.c.h.b16 %v1833
        %v2786 = vunpack.c.l.b16 %v1834
        %v2787 = vunpack.c.h.b16 %v1834
        %v2788 = vunpack.c.l.b16 %v1835
        %v2789 = vunpack.c.h.b16 %v1835
        %v2790 = vunpack.c.l.b16 %v1836
        %v2791 = vunpack.c.h.b16 %v1836
        %v2792 = vunpack.c.l.b16 %v1837
        %v2793 = vunpack.c.h.b16 %v1837
        %v2794 = vunpack.c.l.b16 %v1838
        %v2795 = vunpack.c.h.b16 %v1838
        %v2796 = vunpack.c.l.b16 %v1839
        %v2797 = vunpack.c.h.b16 %v1839
        %v2798 = vunpack.c.l.b16 %v1840
        %v2799 = vunpack.c.h.b16 %v1840
        %v2800 = vunpack.c.l.b16 %v1841
        %v2801 = vunpack.c.h.b16 %v1841
        %v2802 = vunpack.c.l.b16 %v1842
        %v2803 = vunpack.c.h.b16 %v1842
        %v2804 = vunpack.c.l.b16 %v1843
        %v2805 = vunpack.c.h.b16 %v1843
        %v2806 = vunpack.c.l.b16 %v1844
        %v2807 = vunpack.c.h.b16 %v1844
        %v2808 = vunpack.c.l.b16 %v1845
        %v2809 = vunpack.c.h.b16 %v1845
        %v2810 = vunpack.c.l.b16 %v1846
        %v2811 = vunpack.c.h.b16 %v1846
        %v2812 = vunpack.c.l.b16 %v1847
        %v2813 = vunpack.c.h.b16 %v1847
        %v2814 = vunpack.c.l.b16 %v1848
        %v2815 = vunpack.c.h.b16 %v1848
        %v2816 = vunpack.c.l.b16 %v1849
        %v2817 = vunpack.c.h.b16 %v1849
        %v2818 = vunpack.c.l.b16 %v1850
        %v2819 = vunpack.c.h.b16 %v1850
        %v2820 = vunpack.c.l.b16 %v1851
        %v2821 = vunpack.c.h.b16 %v1851
        %v2822 = vunpack.c.l.b16 %v1852
        %v2823 = vunpack.c.h.b16 %v1852
        %v2824 = vunpack.c.l.b16 %v1853
        %v2825 = vunpack.c.h.b16 %v1853
        %v2826 = vunpack.c.l.b16 %v1854
        %v2827 = vunpack.c.h.b16 %v1854
        %v2828 = vunpack.c.l.b16 %v1855
        %v2829 = vunpack.c.h.b16 %v1855
        %v2830 = vunpack.c.l.b16 %v1856
        %v2831 = vunpack.c.h.b16 %v1856
        %v2832 = vunpack.c.l.b16 %v1857
        %v2833 = vunpack.c.h.b16 %v1857
        %v2834 = vunpack.c.l.b16 %v1858
        %v2835 = vunpack.c.h.b16 %v1858
        %v2836 = vunpack.c.l.b16 %v1859
        %v2837 = vunpack.c.h.b16 %v1859
        %v2838 = vunpack.c.l.b16 %v1860
        %v2839 = vunpack.c.h.b16 %v1860
        %v2840 = vunpack.c.l.b16 %v1861
        %v2841 = vunpack.c.h.b16 %v1861
        %v2842 = vunpack.c.l.b16 %v1862
        %v2843 = vunpack.c.h.b16 %v1862
        %v2844 = vunpack.c.l.b16 %v1863
        %v2845 = vunpack.c.h.b16 %v1863
        %v2846 = vunpack.c.l.b16 %v1864
        %v2847 = vunpack.c.h.b16 %v1864
        %v2848 = vunpack.c.l.b16 %v1865
        %v2849 = vunpack.c.h.b16 %v1865
        %v2850 = vunpack.c.l.b16 %v1866
        %v2851 = vunpack.c.h.b16 %v1866
        %v2852 = vunpack.c.l.b16 %v1867
        %v2853 = vunpack.c.h.b16 %v1867
        %v2854 = vunpack.c.l.b16 %v1868
        %v2855 = vunpack.c.h.b16 %v1868
        %v2856 = vunpack.c.l.b16 %v1869
        %v2857 = vunpack.c.h.b16 %v1869
        %v2858 = vunpack.c.l.b16 %v1870
        %v2859 = vunpack.c.h.b16 %v1870
        %v2860 = vunpack.c.l.b16 %v1871
        %v2861 = vunpack.c.h.b16 %v1871
        %v2862 = vunpack.c.l.b16 %v1872
        %v2863 = vunpack.c.h.b16 %v1872
        %v2864 = vunpack.c.l.b16 %v1873
        %v2865 = vunpack.c.h.b16 %v1873
        %v2866 = vunpack.c.l.b16 %v1874
        %v2867 = vunpack.c.h.b16 %v1874
        %v2868 = vunpack.c.l.b16 %v1875
        %v2869 = vunpack.c.h.b16 %v1875
        %v2870 = vunpack.c.l.b16 %v1876
        %v2871 = vunpack.c.h.b16 %v1876
        %v2872 = vunpack.c.l.b16 %v1877
        %v2873 = vunpack.c.h.b16 %v1877
        %v2874 = vunpack.c.l.b16 %v1878
        %v2875 = vunpack.c.h.b16 %v1878
        %v2876 = vunpack.c.l.b16 %v1879
        %v2877 = vunpack.c.h.b16 %v1879
        %v2878 = vunpack.c.l.b16 %v1880
        %v2879 = vunpack.c.h.b16 %v1880
        %v2880 = vunpack.c.l.b16 %v1881
        %v2881 = vunpack.c.h.b16 %v1881
        %v2882 = vunpack.c.l.b16 %v1882
        %v2883 = vunpack.c.h.b16 %v1882
        %v2884 = vunpack.c.l.b16 %v1883
        %v2885 = vunpack.c.h.b16 %v1883
        %v2886 = vunpack.c.l.b16 %v1884
        %v2887 = vunpack.c.h.b16 %v1884
        %v2888 = vunpack.c.l.b16 %v1885
        %v2889 = vunpack.c.h.b16 %v1885
        %v2890 = vunpack.c.l.b16 %v1886
        %v2891 = vunpack.c.h.b16 %v1886
        %v2892 = vunpack.c.l.b16 %v1887
        %v2893 = vunpack.c.h.b16 %v1887
        %v2894 = vunpack.c.l.b16 %v1888
        %v2895 = vunpack.c.h.b16 %v1888
        %v2896 = vunpack.c.l.b16 %v1889
        %v2897 = vunpack.c.h.b16 %v1889
        %v2898 = vunpack.c.l.b16 %v1890
        %v2899 = vunpack.c.h.b16 %v1890
        %v2900 = vunpack.c.l.b16 %v1891
        %v2901 = vunpack.c.h.b16 %v1891
        %v2902 = vunpack.c.l.b16 %v1892
        %v2903 = vunpack.c.h.b16 %v1892
        %v2904 = vunpack.c.l.b16 %v1893
        %v2905 = vunpack.c.h.b16 %v1893
        %v2906 = vunpack.c.l.b16 %v1894
        %v2907 = vunpack.c.h.b16 %v1894
        %v2908 = vunpack.c.l.b16 %v1895
        %v2909 = vunpack.c.h.b16 %v1895
        %v2910 = vunpack.c.l.b16 %v1896
        %v2911 = vunpack.c.h.b16 %v1896
        %v2912 = vunpack.c.l.b16 %v1897
        %v2913 = vunpack.c.h.b16 %v1897
        %v2914 = vunpack.c.l.b16 %v1898
        %v2915 = vunpack.c.h.b16 %v1898
        %v2916 = vunpack.c.l.b16 %v1899
        %v2917 = vunpack.c.h.b16 %v1899
        %v2918 = vunpack.c.l.b16 %v1900
        %v2919 = vunpack.c.h.b16 %v1900
        %v2920 = vunpack.c.l.b16 %v1901
        %v2921 = vunpack.c.h.b16 %v1901
        %v2922 = vunpack.c.l.b16 %v1902
        %v2923 = vunpack.c.h.b16 %v1902
        %v2924 = vunpack.c.l.b16 %v1903
        %v2925 = vunpack.c.h.b16 %v1903
        %v2926 = vunpack.c.l.b16 %v1904
        %v2927 = vunpack.c.h.b16 %v1904
        %v2928 = vunpack.c.l.b16 %v1905
        %v2929 = vunpack.c.h.b16 %v1905
        %v2930 = vunpack.c.l.b16 %v1906
        %v2931 = vunpack.c.h.b16 %v1906
        %v2932 = vunpack.c.l.b16 %v1907
        %v2933 = vunpack.c.h.b16 %v1907
        %v2934 = vunpack.c.l.b16 %v1908
        %v2935 = vunpack.c.h.b16 %v1908
        %v2936 = vunpack.c.l.b16 %v1909
        %v2937 = vunpack.c.h.b16 %v1909
        %v2938 = vunpack.c.l.b16 %v1910
        %v2939 = vunpack.c.h.b16 %v1910
        %v2940 = vunpack.c.l.b16 %v1911
        %v2941 = vunpack.c.h.b16 %v1911
        %v2942 = vpack.c.b16 %v2304, %v2302
        %v2943 = vpack.c.b16 %v2305, %v2303
        %v2944 = vpack.c.b16 %v2308, %v2306
        %v2945 = vpack.c.b16 %v2309, %v2307
        %v2946 = vpack.c.b16 %v2312, %v2310
        %v2947 = vpack.c.b16 %v2313, %v2311
        %v2948 = vpack.c.b16 %v2316, %v2314
        %v2949 = vpack.c.b16 %v2317, %v2315
        %v2950 = vpack.c.b16 %v2320, %v2318
        %v2951 = vpack.c.b16 %v2321, %v2319
        %v2952 = vpack.c.b16 %v2324, %v2322
        %v2953 = vpack.c.b16 %v2325, %v2323
        %v2954 = vpack.c.b16 %v2328, %v2326
        %v2955 = vpack.c.b16 %v2329, %v2327
        %v2956 = vpack.c.b16 %v2332, %v2330
        %v2957 = vpack.c.b16 %v2333, %v2331
        %v2958 = vpack.c.b16 %v2336, %v2334
        %v2959 = vpack.c.b16 %v2337, %v2335
        %v2960 = vpack.c.b16 %v2340, %v2338
        %v2961 = vpack.c.b16 %v2341, %v2339
        %v2962 = vpack.c.b16 %v2344, %v2342
        %v2963 = vpack.c.b16 %v2345, %v2343
        %v2964 = vpack.c.b16 %v2348, %v2346
        %v2965 = vpack.c.b16 %v2349, %v2347
        %v2966 = vpack.c.b16 %v2352, %v2350
        %v2967 = vpack.c.b16 %v2353, %v2351
        %v2968 = vpack.c.b16 %v2356, %v2354
        %v2969 = vpack.c.b16 %v2357, %v2355
        %v2970 = vpack.c.b16 %v2360, %v2358
        %v2971 = vpack.c.b16 %v2361, %v2359
        %v2972 = vpack.c.b16 %v2364, %v2362
        %v2973 = vpack.c.b16 %v2365, %v2363
        %v2974 = vpack.c.b16 %v2368, %v2366
        %v2975 = vpack.c.b16 %v2369, %v2367
        %v2976 = vpack.c.b16 %v2372, %v2370
        %v2977 = vpack.c.b16 %v2373, %v2371
        %v2978 = vpack.c.b16 %v2376, %v2374
        %v2979 = vpack.c.b16 %v2377, %v2375
        %v2980 = vpack.c.b16 %v2380, %v2378
        %v2981 = vpack.c.b16 %v2381, %v2379
        %v2982 = vpack.c.b16 %v2384, %v2382
        %v2983 = vpack.c.b16 %v2385, %v2383
        %v2984 = vpack.c.b16 %v2388, %v2386
        %v2985 = vpack.c.b16 %v2389, %v2387
        %v2986 = vpack.c.b16 %v2392, %v2390
        %v2987 = vpack.c.b16 %v2393, %v2391
        %v2988 = vpack.c.b16 %v2396, %v2394
        %v2989 = vpack.c.b16 %v2397, %v2395
        %v2990 = vpack.c.b16 %v2400, %v2398
        %v2991 = vpack.c.b16 %v2401, %v2399
        %v2992 = vpack.c.b16 %v2404, %v2402
        %v2993 = vpack.c.b16 %v2405, %v2403
        %v2994 = vpack.c.b16 %v2408, %v2406
        %v2995 = vpack.c.b16 %v2409, %v2407
        %v2996 = vpack.c.b16 %v2412, %v2410
        %v2997 = vpack.c.b16 %v2413, %v2411
        %v2998 = vpack.c.b16 %v2416, %v2414
        %v2999 = vpack.c.b16 %v2417, %v2415
        %v3000 = vpack.c.b16 %v2420, %v2418
        %v3001 = vpack.c.b16 %v2421, %v2419
        %v3002 = vpack.c.b16 %v2424, %v2422
        %v3003 = vpack.c.b16 %v2425, %v2423
        %v3004 = vpack.c.b16 %v2428, %v2426
        %v3005 = vpack.c.b16 %v2429, %v2427
        %v3006 = vpack.c.b16 %v2432, %v2430
        %v3007 = vpack.c.b16 %v2433, %v2431
        %v3008 = vpack.c.b16 %v2436, %v2434
        %v3009 = vpack.c.b16 %v2437, %v2435
        %v3010 = vpack.c.b16 %v2440, %v2438
        %v3011 = vpack.c.b16 %v2441, %v2439
        %v3012 = vpack.c.b16 %v2444, %v2442
        %v3013 = vpack.c.b16 %v2445, %v2443
        %v3014 = vpack.c.b16 %v2448, %v2446
        %v3015 = vpack.c.b16 %v2449, %v2447
        %v3016 = vpack.c.b16 %v2452, %v2450
        %v3017 = vpack.c.b16 %v2453, %v2451
        %v3018 = vpack.c.b16 %v2456, %v2454
        %v3019 = vpack.c.b16 %v2457, %v2455
        %v3020 = vpack.c.b16 %v2460, %v2458
        %v3021 = vpack.c.b16 %v2461, %v2459
        %v3022 = vpack.c.b16 %v2464, %v2462
        %v3023 = vpack.c.b16 %v2465, %v2463
        %v3024 = vpack.c.b16 %v2468, %v2466
        %v3025 = vpack.c.b16 %v2469, %v2467
        %v3026 = vpack.c.b16 %v2472, %v2470
        %v3027 = vpack.c.b16 %v2473, %v2471
        %v3028 = vpack.c.b16 %v2476, %v2474
        %v3029 = vpack.c.b16 %v2477, %v2475
        %v3030 = vpack.c.b16 %v2480, %v2478
        %v3031 = vpack.c.b16 %v2481, %v2479
        %v3032 = vpack.c.b16 %v2484, %v2482
        %v3033 = vpack.c.b16 %v2485, %v2483
        %v3034 = vpack.c.b16 %v2488, %v2486
        %v3035 = vpack.c.b16 %v2489, %v2487
        %v3036 = vpack.c.b16 %v2492, %v2490
        %v3037 = vpack.c.b16 %v2493, %v2491
        %v3038 = vpack.c.b16 %v2496, %v2494
        %v3039 = vpack.c.b16 %v2497, %v2495
        %v3040 = vpack.c.b16 %v2500, %v2498
        %v3041 = vpack.c.b16 %v2501, %v2499
        %v3042 = vpack.c.b16 %v2504, %v2502
        %v3043 = vpack.c.b16 %v2505, %v2503
        %v3044 = vpack.c.b16 %v2508, %v2506
        %v3045 = vpack.c.b16 %v2509, %v2507
        %v3046 = vpack.c.b16 %v2512, %v2510
        %v3047 = vpack.c.b16 %v2513, %v2511
        %v3048 = vpack.c.b16 %v2516, %v2514
        %v3049 = vpack.c.b16 %v2517, %v2515
        %v3050 = vpack.c.b16 %v2520, %v2518
        %v3051 = vpack.c.b16 %v2521, %v2519
        %v3052 = vpack.c.b16 %v2524, %v2522
        %v3053 = vpack.c.b16 %v2525, %v2523
        %v3054 = vpack.c.b16 %v2528, %v2526
        %v3055 = vpack.c.b16 %v2529, %v2527
        %v3056 = vpack.c.b16 %v2532, %v2530
        %v3057 = vpack.c.b16 %v2533, %v2531
        %v3058 = vpack.c.b16 %v2536, %v2534
        %v3059 = vpack.c.b16 %v2537, %v2535
        %v3060 = vpack.c.b16 %v2540, %v2538
        %v3061 = vpack.c.b16 %v2541, %v2539
        %v3062 = vpack.c.b16 %v2544, %v2542
        %v3063 = vpack.c.b16 %v2545, %v2543
        %v3064 = vpack.c.b16 %v2548, %v2546
        %v3065 = vpack.c.b16 %v2549, %v2547
        %v3066 = vpack.c.b16 %v2552, %v2550
        %v3067 = vpack.c.b16 %v2553, %v2551
        %v3068 = vpack.c.b16 %v2556, %v2554
        %v3069 = vpack.c.b16 %v2557, %v2555
        %v3070 = vpack.c.b16 %v2560, %v2558
        %v3071 = vpack.c.b16 %v2561, %v2559
        %v3072 = vpack.c.b16 %v2564, %v2562
        %v3073 = vpack.c.b16 %v2565, %v2563
        %v3074 = vpack.c.b16 %v2568, %v2566
        %v3075 = vpack.c.b16 %v2569, %v2567
        %v3076 = vpack.c.b16 %v2572, %v2570
        %v3077 = vpack.c.b16 %v2573, %v2571
        %v3078 = vpack.c.b16 %v2576, %v2574
        %v3079 = vpack.c.b16 %v2577, %v2575
        %v3080 = vpack.c.b16 %v2580, %v2578
        %v3081 = vpack.c.b16 %v2581, %v2579
        %v3082 = vpack.c.b16 %v2584, %v2582
        %v3083 = vpack.c.b16 %v2585, %v2583
        %v3084 = vpack.c.b16 %v2588, %v2586
        %v3085 = vpack.c.b16 %v2589, %v2587
        %v3086 = vpack.c.b16 %v2592, %v2590
        %v3087 = vpack.c.b16 %v2593, %v2591
        %v3088 = vpack.c.b16 %v2596, %v2594
        %v3089 = vpack.c.b16 %v2597, %v2595
        %v3090 = vpack.c.b16 %v2600, %v2598
        %v3091 = vpack.c.b16 %v2601, %v2599
        %v3092 = vpack.c.b16 %v2604, %v2602
        %v3093 = vpack.c.b16 %v2605, %v2603
        %v3094 = vpack.c.b16 %v2608, %v2606
        %v3095 = vpack.c.b16 %v2609, %v2607
        %v3096 = vpack.c.b16 %v2612, %v2610
        %v3097 = vpack.c.b16 %v2613, %v2611
        %v3098 = vpack.c.b16 %v2616, %v2614
        %v3099 = vpack.c.b16 %v2617, %v2615
        %v3100 = vpack.c.b16 %v2620, %v2618
        %v3101 = vpack.c.b16 %v2621, %v2619
        %v3102 = vpack.c.b16 %v2624, %v2622
        %v3103 = vpack.c.b16 %v2625, %v2623
        %v3104 = vpack.c.b16 %v2628, %v2626
        %v3105 = vpack.c.b16 %v2629, %v2627
        %v3106 = vpack.c.b16 %v2632, %v2630
        %v3107 = vpack.c.b16 %v2633, %v2631
        %v3108 = vpack.c.b16 %v2636, %v2634
        %v3109 = vpack.c.b16 %v2637, %v2635
        %v3110 = vpack.c.b16 %v2640, %v2638
        %v3111 = vpack.c.b16 %v2641, %v2639
        %v3112 = vpack.c.b16 %v2644, %v2642
        %v3113 = vpack.c.b16 %v2645, %v2643
        %v3114 = vpack.c.b16 %v2648, %v2646
        %v3115 = vpack.c.b16 %v2649, %v2647
        %v3116 = vpack.c.b16 %v2652, %v2650
        %v3117 = vpack.c.b16 %v2653, %v2651
        %v3118 = vpack.c.b16 %v2656, %v2654
        %v3119 = vpack.c.b16 %v2657, %v2655
        %v3120 = vpack.c.b16 %v2660, %v2658
        %v3121 = vpack.c.b16 %v2661, %v2659
        %v3122 = vpack.c.b16 %v2664, %v2662
        %v3123 = vpack.c.b16 %v2665, %v2663
        %v3124 = vpack.c.b16 %v2668, %v2666
        %v3125 = vpack.c.b16 %v2669, %v2667
        %v3126 = vpack.c.b16 %v2672, %v2670
        %v3127 = vpack.c.b16 %v2673, %v2671
        %v3128 = vpack.c.b16 %v2676, %v2674
        %v3129 = vpack.c.b16 %v2677, %v2675
        %v3130 = vpack.c.b16 %v2680, %v2678
        %v3131 = vpack.c.b16 %v2681, %v2679
        %v3132 = vpack.c.b16 %v2684, %v2682
        %v3133 = vpack.c.b16 %v2685, %v2683
        %v3134 = vpack.c.b16 %v2688, %v2686
        %v3135 = vpack.c.b16 %v2689, %v2687
        %v3136 = vpack.c.b16 %v2692, %v2690
        %v3137 = vpack.c.b16 %v2693, %v2691
        %v3138 = vpack.c.b16 %v2696, %v2694
        %v3139 = vpack.c.b16 %v2697, %v2695
        %v3140 = vpack.c.b16 %v2700, %v2698
        %v3141 = vpack.c.b16 %v2701, %v2699
        %v3142 = vpack.c.b16 %v2704, %v2702
        %v3143 = vpack.c.b16 %v2705, %v2703
        %v3144 = vpack.c.b16 %v2708, %v2706
        %v3145 = vpack.c.b16 %v2709, %v2707
        %v3146 = vpack.c.b16 %v2712, %v2710
        %v3147 = vpack.c.b16 %v2713, %v2711
        %v3148 = vpack.c.b16 %v2716, %v2714
        %v3149 = vpack.c.b16 %v2717, %v2715
        %v3150 = vpack.c.b16 %v2720, %v2718
        %v3151 = vpack.c.b16 %v2721, %v2719
        %v3152 = vpack.c.b16 %v2724, %v2722
        %v3153 = vpack.c.b16 %v2725, %v2723
        %v3154 = vpack.c.b16 %v2728, %v2726
        %v3155 = vpack.c.b16 %v2729, %v2727
        %v3156 = vpack.c.b16 %v2732, %v2730
        %v3157 = vpack.c.b16 %v2733, %v2731
        %v3158 = vpack.c.b16 %v2736, %v2734
        %v3159 = vpack.c.b16 %v2737, %v2735
        %v3160 = vpack.c.b16 %v2740, %v2738
        %v3161 = vpack.c.b16 %v2741, %v2739
        %v3162 = vpack.c.b16 %v2744, %v2742
        %v3163 = vpack.c.b16 %v2745, %v2743
        %v3164 = vpack.c.b16 %v2748, %v2746
        %v3165 = vpack.c.b16 %v2749, %v2747
        %v3166 = vpack.c.b16 %v2752, %v2750
        %v3167 = vpack.c.b16 %v2753, %v2751
        %v3168 = vpack.c.b16 %v2756, %v2754
        %v3169 = vpack.c.b16 %v2757, %v2755
        %v3170 = vpack.c.b16 %v2760, %v2758
        %v3171 = vpack.c.b16 %v2761, %v2759
        %v3172 = vpack.c.b16 %v2764, %v2762
        %v3173 = vpack.c.b16 %v2765, %v2763
        %v3174 = vpack.c.b16 %v2768, %v2766
        %v3175 = vpack.c.b16 %v2769, %v2767
        %v3176 = vpack.c.b16 %v2772, %v2770
        %v3177 = vpack.c.b16 %v2773, %v2771
        %v3178 = vpack.c.b16 %v2776, %v2774
        %v3179 = vpack.c.b16 %v2777, %v2775
        %v3180 = vpack.c.b16 %v2780, %v2778
        %v3181 = vpack.c.b16 %v2781, %v2779
        %v3182 = vpack.c.b16 %v2784, %v2782
        %v3183 = vpack.c.b16 %v2785, %v2783
        %v3184 = vpack.c.b16 %v2788, %v2786
        %v3185 = vpack.c.b16 %v2789, %v2787
        %v3186 = vpack.c.b16 %v2792, %v2790
        %v3187 = vpack.c.b16 %v2793, %v2791
        %v3188 = vpack.c.b16 %v2796, %v2794
        %v3189 = vpack.c.b16 %v2797, %v2795
        %v3190 = vpack.c.b16 %v2800, %v2798
        %v3191 = vpack.c.b16 %v2801, %v2799
        %v3192 = vpack.c.b16 %v2804, %v2802
        %v3193 = vpack.c.b16 %v2805, %v2803
        %v3194 = vpack.c.b16 %v2808, %v2806
        %v3195 = vpack.c.b16 %v2809, %v2807
        %v3196 = vpack.c.b16 %v2812, %v2810
        %v3197 = vpack.c.b16 %v2813, %v2811
        %v3198 = vpack.c.b16 %v2816, %v2814
        %v3199 = vpack.c.b16 %v2817, %v2815
        %v3200 = vpack.c.b16 %v2820, %v2818
        %v3201 = vpack.c.b16 %v2821, %v2819
        %v3202 = vpack.c.b16 %v2824, %v2822
        %v3203 = vpack.c.b16 %v2825, %v2823
        %v3204 = vpack.c.b16 %v2828, %v2826
        %v3205 = vpack.c.b16 %v2829, %v2827
        %v3206 = vpack.c.b16 %v2832, %v2830
        %v3207 = vpack.c.b16 %v2833, %v2831
        %v3208 = vpack.c.b16 %v2836, %v2834
        %v3209 = vpack.c.b16 %v2837, %v2835
        %v3210 = vpack.c.b16 %v2840, %v2838
        %v3211 = vpack.c.b16 %v2841, %v2839
        %v3212 = vpack.c.b16 %v2844, %v2842
        %v3213 = vpack.c.b16 %v2845, %v2843
        %v3214 = vpack.c.b16 %v2848, %v2846
        %v3215 = vpack.c.b16 %v2849, %v2847
        %v3216 = vpack.c.b16 %v2852, %v2850
        %v3217 = vpack.c.b16 %v2853, %v2851
        %v3218 = vpack.c.b16 %v2856, %v2854
        %v3219 = vpack.c.b16 %v2857, %v2855
        %v3220 = vpack.c.b16 %v2860, %v2858
        %v3221 = vpack.c.b16 %v2861, %v2859
        %v3222 = vpack.c.b16 %v2864, %v2862
        %v3223 = vpack.c.b16 %v2865, %v2863
        %v3224 = vpack.c.b16 %v2868, %v2866
        %v3225 = vpack.c.b16 %v2869, %v2867
        %v3226 = vpack.c.b16 %v2872, %v2870
        %v3227 = vpack.c.b16 %v2873, %v2871
        %v3228 = vpack.c.b16 %v2876, %v2874
        %v3229 = vpack.c.b16 %v2877, %v2875
        %v3230 = vpack.c.b16 %v2880, %v2878
        %v3231 = vpack.c.b16 %v2881, %v2879
        %v3232 = vpack.c.b16 %v2884, %v2882
        %v3233 = vpack.c.b16 %v2885, %v2883
        %v3234 = vpack.c.b16 %v2888, %v2886
        %v3235 = vpack.c.b16 %v2889, %v2887
        %v3236 = vpack.c.b16 %v2892, %v2890
        %v3237 = vpack.c.b16 %v2893, %v2891
        %v3238 = vpack.c.b16 %v2896, %v2894
        %v3239 = vpack.c.b16 %v2897, %v2895
        %v3240 = vpack.c.b16 %v2900, %v2898
        %v3241 = vpack.c.b16 %v2901, %v2899
        %v3242 = vpack.c.b16 %v2904, %v2902
        %v3243 = vpack.c.b16 %v2905, %v2903
        %v3244 = vpack.c.b16 %v2908, %v2906
        %v3245 = vpack.c.b16 %v2909, %v2907
        %v3246 = vpack.c.b16 %v2912, %v2910
        %v3247 = vpack.c.b16 %v2913, %v2911
        %v3248 = vpack.c.b16 %v2916, %v2914
        %v3249 = vpack.c.b16 %v2917, %v2915
        %v3250 = vpack.c.b16 %v2920, %v2918
        %v3251 = vpack.c.b16 %v2921, %v2919
        %v3252 = vpack.c.b16 %v2924, %v2922
        %v3253 = vpack.c.b16 %v2925, %v2923
        %v3254 = vpack.c.b16 %v2928, %v2926
        %v3255 = vpack.c.b16 %v2929, %v2927
        %v3256 = vpack.c.b16 %v2932, %v2930
        %v3257 = vpack.c.b16 %v2933, %v2931
        %v3258 = vpack.c.b16 %v2936, %v2934
        %v3259 = vpack.c.b16 %v2937, %v2935
        %v3260 = vpack.c.b16 %v2940, %v2938
        %v3261 = vpack.c.b16 %v2941, %v2939
        %3582 = vmatprep.subr.bf16.mxu0 %v2943
        %3583 = vmatpush1.bf16.msra.mxu0 %v2942
        %3584 = vmatprep.subr.bf16.mxu0 %v2945
        %3585 = vmatpush1.bf16.msra.mxu0 %v2944
        %3586 = vmatprep.subr.bf16.mxu0 %v2947
        %3587 = vmatpush1.bf16.msra.mxu0 %v2946
        %3588 = vmatprep.subr.bf16.mxu0 %v2949
        %3589 = vmatpush1.bf16.msra.mxu0 %v2948
        %3590 = vmatprep.subr.bf16.mxu0 %v2951
        %3591 = vmatpush1.bf16.msra.mxu0 %v2950
        %3592 = vmatprep.subr.bf16.mxu0 %v2953
        %3593 = vmatpush1.bf16.msra.mxu0 %v2952
        %3594 = vmatprep.subr.bf16.mxu0 %v2955
        %3595 = vmatpush1.bf16.msra.mxu0 %v2954
        %3596 = vmatprep.subr.bf16.mxu0 %v2957
        %3597 = vmatpush1.bf16.msra.mxu0 %v2956
        %3598 = vmatprep.subr.bf16.mxu0 %v2959
        %3599 = vmatpush1.bf16.msra.mxu0 %v2958
        %3600 = vmatprep.subr.bf16.mxu0 %v2961
        %3601 = vmatpush1.bf16.msra.mxu0 %v2960
        %3602 = vmatprep.subr.bf16.mxu0 %v2963
        %3603 = vmatpush1.bf16.msra.mxu0 %v2962
        %3604 = vmatprep.subr.bf16.mxu0 %v2965
        %3605 = vmatpush1.bf16.msra.mxu0 %v2964
        %3606 = vmatprep.subr.bf16.mxu0 %v2967
        %3607 = vmatpush1.bf16.msra.mxu0 %v2966
        %3608 = vmatprep.subr.bf16.mxu0 %v2969
        %3609 = vmatpush1.bf16.msra.mxu0 %v2968
        %3610 = vmatprep.subr.bf16.mxu0 %v2971
        %3611 = vmatpush1.bf16.msra.mxu0 %v2970
        %3612 = vmatprep.subr.bf16.mxu0 %v2973
        %3613 = vmatpush1.bf16.msra.mxu0 %v2972
        %3614 = vmatprep.mubr.bf16.mxu0 %v1943
        %3615 = vmatmul.mubr.bf16.gmra.mrb[0].mxu0 %v1942
        %v3616 = vpop.f32.mrb[0].mxu0
        %v3617 = vadd.f32 0.0, %v3616
        %v3618 = vpop.f32.mrb[0].mxu0
        %v3619 = vadd.f32 0.0, %v3618
        %v3620 = vpop.f32.mrb[0].mxu0
        %v3621 = vpop.f32.mrb[0].mxu0
        %3622 = vdwg.mxu0
        %3623 = vmatprep.subr.bf16.mxu0 %v2975
        %3624 = vmatpush1.bf16.msra.mxu0 %v2974
        %3625 = vmatprep.subr.bf16.mxu0 %v2977
        %3626 = vmatpush1.bf16.msra.mxu0 %v2976
        %3627 = vmatprep.subr.bf16.mxu0 %v2979
        %3628 = vmatpush1.bf16.msra.mxu0 %v2978
        %3629 = vmatprep.subr.bf16.mxu0 %v2981
        %3630 = vmatpush1.bf16.msra.mxu0 %v2980
        %3631 = vmatprep.subr.bf16.mxu0 %v2983
        %3632 = vmatpush1.bf16.msra.mxu0 %v2982
        %3633 = vmatprep.subr.bf16.mxu0 %v2985
        %3634 = vmatpush1.bf16.msra.mxu0 %v2984
        %3635 = vmatprep.subr.bf16.mxu0 %v2987
        %3636 = vmatpush1.bf16.msra.mxu0 %v2986
        %3637 = vmatprep.subr.bf16.mxu0 %v2989
        %3638 = vmatpush1.bf16.msra.mxu0 %v2988
        %3639 = vmatprep.subr.bf16.mxu0 %v2991
        %3640 = vmatpush1.bf16.msra.mxu0 %v2990
        %3641 = vmatprep.subr.bf16.mxu0 %v2993
        %3642 = vmatpush1.bf16.msra.mxu0 %v2992
        %3643 = vmatprep.subr.bf16.mxu0 %v2995
        %3644 = vmatpush1.bf16.msra.mxu0 %v2994
        %3645 = vmatprep.subr.bf16.mxu0 %v2997
        %3646 = vmatpush1.bf16.msra.mxu0 %v2996
        %3647 = vmatprep.subr.bf16.mxu0 %v2999
        %3648 = vmatpush1.bf16.msra.mxu0 %v2998
        %3649 = vmatprep.subr.bf16.mxu0 %v3001
        %3650 = vmatpush1.bf16.msra.mxu0 %v3000
        %3651 = vmatprep.subr.bf16.mxu0 %v3003
        %3652 = vmatpush1.bf16.msra.mxu0 %v3002
        %3653 = vmatprep.subr.bf16.mxu0 %v3005
        %3654 = vmatpush1.bf16.msra.mxu0 %v3004
        %3655 = vmatprep.mubr.bf16.mxu0 %v1945
        %3656 = vmatmul.mubr.bf16.gmra.mrb[0].mxu0 %v1944
        %v3657 = vpop.f32.mrb[0].mxu0
        %v3658 = vadd.f32 %v3617, %v3657
        %v3659 = vpop.f32.mrb[0].mxu0
        %v3660 = vadd.f32 %v3619, %v3659
        %v3661 = vpop.f32.mrb[0].mxu0
        %v3662 = vpop.f32.mrb[0].mxu0
        %3663 = vdwg.mxu0
        %3664 = vmatprep.subr.bf16.mxu0 %v3007
        %3665 = vmatpush1.bf16.msra.mxu0 %v3006
        %3666 = vmatprep.subr.bf16.mxu0 %v3009
        %3667 = vmatpush1.bf16.msra.mxu0 %v3008
        %3668 = vmatprep.subr.bf16.mxu0 %v3011
        %3669 = vmatpush1.bf16.msra.mxu0 %v3010
        %3670 = vmatprep.subr.bf16.mxu0 %v3013
        %3671 = vmatpush1.bf16.msra.mxu0 %v3012
        %3672 = vmatprep.subr.bf16.mxu0 %v3015
        %3673 = vmatpush1.bf16.msra.mxu0 %v3014
        %3674 = vmatprep.subr.bf16.mxu0 %v3017
        %3675 = vmatpush1.bf16.msra.mxu0 %v3016
        %3676 = vmatprep.subr.bf16.mxu0 %v3019
        %3677 = vmatpush1.bf16.msra.mxu0 %v3018
        %3678 = vmatprep.subr.bf16.mxu0 %v3021
        %3679 = vmatpush1.bf16.msra.mxu0 %v3020
        %3680 = vmatprep.subr.bf16.mxu0 %v3023
        %3681 = vmatpush1.bf16.msra.mxu0 %v3022
        %3682 = vmatprep.subr.bf16.mxu0 %v3025
        %3683 = vmatpush1.bf16.msra.mxu0 %v3024
        %3684 = vmatprep.subr.bf16.mxu0 %v3027
        %3685 = vmatpush1.bf16.msra.mxu0 %v3026
        %3686 = vmatprep.subr.bf16.mxu0 %v3029
        %3687 = vmatpush1.bf16.msra.mxu0 %v3028
        %3688 = vmatprep.subr.bf16.mxu0 %v3031
        %3689 = vmatpush1.bf16.msra.mxu0 %v3030
        %3690 = vmatprep.subr.bf16.mxu0 %v3033
        %3691 = vmatpush1.bf16.msra.mxu0 %v3032
        %3692 = vmatprep.subr.bf16.mxu0 %v3035
        %3693 = vmatpush1.bf16.msra.mxu0 %v3034
        %3694 = vmatprep.subr.bf16.mxu0 %v3037
        %3695 = vmatpush1.bf16.msra.mxu0 %v3036
        %3696 = vmatprep.mubr.bf16.mxu0 %v1947
        %3697 = vmatmul.mubr.bf16.gmra.mrb[0].mxu0 %v1946
        %v3698 = vpop.f32.mrb[0].mxu0
        %v3699 = vadd.f32 %v3658, %v3698
        %v3700 = vpop.f32.mrb[0].mxu0
        %v3701 = vadd.f32 %v3660, %v3700
        %v3702 = vpop.f32.mrb[0].mxu0
        %v3703 = vpop.f32.mrb[0].mxu0
        %3704 = vdwg.mxu0
        %3705 = vmatprep.subr.bf16.mxu0 %v3039
        %3706 = vmatpush1.bf16.msra.mxu0 %v3038
        %3707 = vmatprep.subr.bf16.mxu0 %v3041
        %3708 = vmatpush1.bf16.msra.mxu0 %v3040
        %3709 = vmatprep.subr.bf16.mxu0 %v3043
        %3710 = vmatpush1.bf16.msra.mxu0 %v3042
        %3711 = vmatprep.subr.bf16.mxu0 %v3045
        %3712 = vmatpush1.bf16.msra.mxu0 %v3044
        %3713 = vmatprep.subr.bf16.mxu0 %v3047
        %3714 = vmatpush1.bf16.msra.mxu0 %v3046
        %3715 = vmatprep.subr.bf16.mxu0 %v3049
        %3716 = vmatpush1.bf16.msra.mxu0 %v3048
        %3717 = vmatprep.subr.bf16.mxu0 %v3051
        %3718 = vmatpush1.bf16.msra.mxu0 %v3050
        %3719 = vmatprep.subr.bf16.mxu0 %v3053
        %3720 = vmatpush1.bf16.msra.mxu0 %v3052
        %3721 = vmatprep.subr.bf16.mxu0 %v3055
        %3722 = vmatpush1.bf16.msra.mxu0 %v3054
        %3723 = vmatprep.subr.bf16.mxu0 %v3057
        %3724 = vmatpush1.bf16.msra.mxu0 %v3056
        %3725 = vmatprep.subr.bf16.mxu0 %v3059
        %3726 = vmatpush1.bf16.msra.mxu0 %v3058
        %3727 = vmatprep.subr.bf16.mxu0 %v3061
        %3728 = vmatpush1.bf16.msra.mxu0 %v3060
        %3729 = vmatprep.subr.bf16.mxu0 %v3063
        %3730 = vmatpush1.bf16.msra.mxu0 %v3062
        %3731 = vmatprep.subr.bf16.mxu0 %v3065
        %3732 = vmatpush1.bf16.msra.mxu0 %v3064
        %3733 = vmatprep.subr.bf16.mxu0 %v3067
        %3734 = vmatpush1.bf16.msra.mxu0 %v3066
        %3735 = vmatprep.subr.bf16.mxu0 %v3069
        %3736 = vmatpush1.bf16.msra.mxu0 %v3068
        %3737 = vmatprep.mubr.bf16.mxu0 %v1949
        %3738 = vmatmul.mubr.bf16.gmra.mrb[0].mxu0 %v1948
        %v3739 = vpop.f32.mrb[0].mxu0
        %v3740 = vadd.f32 %v3699, %v3739
        %v3741 = vpop.f32.mrb[0].mxu0
        %v3742 = vadd.f32 %v3701, %v3741
        %v3743 = vpop.f32.mrb[0].mxu0
        %v3744 = vpop.f32.mrb[0].mxu0
        %3745 = vdwg.mxu0
        %3746 = vmatprep.subr.bf16.mxu0 %v3071
        %3747 = vmatpush1.bf16.msra.mxu0 %v3070
        %3748 = vmatprep.subr.bf16.mxu0 %v3073
        %3749 = vmatpush1.bf16.msra.mxu0 %v3072
        %3750 = vmatprep.subr.bf16.mxu0 %v3075
        %3751 = vmatpush1.bf16.msra.mxu0 %v3074
        %3752 = vmatprep.subr.bf16.mxu0 %v3077
        %3753 = vmatpush1.bf16.msra.mxu0 %v3076
        %3754 = vmatprep.subr.bf16.mxu0 %v3079
        %3755 = vmatpush1.bf16.msra.mxu0 %v3078
        %3756 = vmatprep.subr.bf16.mxu0 %v3081
        %3757 = vmatpush1.bf16.msra.mxu0 %v3080
        %3758 = vmatprep.subr.bf16.mxu0 %v3083
        %3759 = vmatpush1.bf16.msra.mxu0 %v3082
        %3760 = vmatprep.subr.bf16.mxu0 %v3085
        %3761 = vmatpush1.bf16.msra.mxu0 %v3084
        %3762 = vmatprep.subr.bf16.mxu0 %v3087
        %3763 = vmatpush1.bf16.msra.mxu0 %v3086
        %3764 = vmatprep.subr.bf16.mxu0 %v3089
        %3765 = vmatpush1.bf16.msra.mxu0 %v3088
        %3766 = vmatprep.subr.bf16.mxu0 %v3091
        %3767 = vmatpush1.bf16.msra.mxu0 %v3090
        %3768 = vmatprep.subr.bf16.mxu0 %v3093
        %3769 = vmatpush1.bf16.msra.mxu0 %v3092
        %3770 = vmatprep.subr.bf16.mxu0 %v3095
        %3771 = vmatpush1.bf16.msra.mxu0 %v3094
        %3772 = vmatprep.subr.bf16.mxu0 %v3097
        %3773 = vmatpush1.bf16.msra.mxu0 %v3096
        %3774 = vmatprep.subr.bf16.mxu0 %v3099
        %3775 = vmatpush1.bf16.msra.mxu0 %v3098
        %3776 = vmatprep.subr.bf16.mxu0 %v3101
        %3777 = vmatpush1.bf16.msra.mxu0 %v3100
        %3778 = vmatprep.mubr.bf16.mxu0 %v1951
        %3779 = vmatmul.mubr.bf16.gmra.mrb[0].mxu0 %v1950
        %v3780 = vpop.f32.mrb[0].mxu0
        %v3781 = vadd.f32 %v3740, %v3780
        %v3782 = vpop.f32.mrb[0].mxu0
        %v3783 = vadd.f32 %v3742, %v3782
        %v3784 = vpop.f32.mrb[0].mxu0
        %v3785 = vpop.f32.mrb[0].mxu0
        %3786 = vdwg.mxu0
        %3787 = vmatprep.subr.bf16.mxu0 %v3103
        %3788 = vmatpush1.bf16.msra.mxu0 %v3102
        %3789 = vmatprep.subr.bf16.mxu0 %v3105
        %3790 = vmatpush1.bf16.msra.mxu0 %v3104
        %3791 = vmatprep.subr.bf16.mxu0 %v3107
        %3792 = vmatpush1.bf16.msra.mxu0 %v3106
        %3793 = vmatprep.subr.bf16.mxu0 %v3109
        %3794 = vmatpush1.bf16.msra.mxu0 %v3108
        %3795 = vmatprep.subr.bf16.mxu0 %v3111
        %3796 = vmatpush1.bf16.msra.mxu0 %v3110
        %3797 = vmatprep.subr.bf16.mxu0 %v3113
        %3798 = vmatpush1.bf16.msra.mxu0 %v3112
        %3799 = vmatprep.subr.bf16.mxu0 %v3115
        %3800 = vmatpush1.bf16.msra.mxu0 %v3114
        %3801 = vmatprep.subr.bf16.mxu0 %v3117
        %3802 = vmatpush1.bf16.msra.mxu0 %v3116
        %3803 = vmatprep.subr.bf16.mxu0 %v3119
        %3804 = vmatpush1.bf16.msra.mxu0 %v3118
        %3805 = vmatprep.subr.bf16.mxu0 %v3121
        %3806 = vmatpush1.bf16.msra.mxu0 %v3120
        %3807 = vmatprep.subr.bf16.mxu0 %v3123
        %3808 = vmatpush1.bf16.msra.mxu0 %v3122
        %3809 = vmatprep.subr.bf16.mxu0 %v3125
        %3810 = vmatpush1.bf16.msra.mxu0 %v3124
        %3811 = vmatprep.subr.bf16.mxu0 %v3127
        %3812 = vmatpush1.bf16.msra.mxu0 %v3126
        %3813 = vmatprep.subr.bf16.mxu0 %v3129
        %3814 = vmatpush1.bf16.msra.mxu0 %v3128
        %3815 = vmatprep.subr.bf16.mxu0 %v3131
        %3816 = vmatpush1.bf16.msra.mxu0 %v3130
        %3817 = vmatprep.subr.bf16.mxu0 %v3133
        %3818 = vmatpush1.bf16.msra.mxu0 %v3132
        %3819 = vmatprep.mubr.bf16.mxu0 %v1953
        %3820 = vmatmul.mubr.bf16.gmra.mrb[0].mxu0 %v1952
        %v3821 = vpop.f32.mrb[0].mxu0
        %v3822 = vadd.f32 %v3781, %v3821
        %v3823 = vpop.f32.mrb[0].mxu0
        %v3824 = vadd.f32 %v3783, %v3823
        %v3825 = vpop.f32.mrb[0].mxu0
        %v3826 = vpop.f32.mrb[0].mxu0
        %3827 = vdwg.mxu0
        %3828 = vmatprep.subr.bf16.mxu0 %v3135
        %3829 = vmatpush1.bf16.msra.mxu0 %v3134
        %3830 = vmatprep.subr.bf16.mxu0 %v3137
        %3831 = vmatpush1.bf16.msra.mxu0 %v3136
        %3832 = vmatprep.subr.bf16.mxu0 %v3139
        %3833 = vmatpush1.bf16.msra.mxu0 %v3138
        %3834 = vmatprep.subr.bf16.mxu0 %v3141
        %3835 = vmatpush1.bf16.msra.mxu0 %v3140
        %3836 = vmatprep.subr.bf16.mxu0 %v3143
        %3837 = vmatpush1.bf16.msra.mxu0 %v3142
        %3838 = vmatprep.subr.bf16.mxu0 %v3145
        %3839 = vmatpush1.bf16.msra.mxu0 %v3144
        %3840 = vmatprep.subr.bf16.mxu0 %v3147
        %3841 = vmatpush1.bf16.msra.mxu0 %v3146
        %3842 = vmatprep.subr.bf16.mxu0 %v3149
        %3843 = vmatpush1.bf16.msra.mxu0 %v3148
        %3844 = vmatprep.subr.bf16.mxu0 %v3151
        %3845 = vmatpush1.bf16.msra.mxu0 %v3150
        %3846 = vmatprep.subr.bf16.mxu0 %v3153
        %3847 = vmatpush1.bf16.msra.mxu0 %v3152
        %3848 = vmatprep.subr.bf16.mxu0 %v3155
        %3849 = vmatpush1.bf16.msra.mxu0 %v3154
        %3850 = vmatprep.subr.bf16.mxu0 %v3157
        %3851 = vmatpush1.bf16.msra.mxu0 %v3156
        %3852 = vmatprep.subr.bf16.mxu0 %v3159
        %3853 = vmatpush1.bf16.msra.mxu0 %v3158
        %3854 = vmatprep.subr.bf16.mxu0 %v3161
        %3855 = vmatpush1.bf16.msra.mxu0 %v3160
        %3856 = vmatprep.subr.bf16.mxu0 %v3163
        %3857 = vmatpush1.bf16.msra.mxu0 %v3162
        %3858 = vmatprep.subr.bf16.mxu0 %v3165
        %3859 = vmatpush1.bf16.msra.mxu0 %v3164
        %3860 = vmatprep.mubr.bf16.mxu0 %v1955
        %3861 = vmatmul.mubr.bf16.gmra.mrb[0].mxu0 %v1954
        %v3862 = vpop.f32.mrb[0].mxu0
        %v3863 = vadd.f32 %v3822, %v3862
        %v3864 = vpop.f32.mrb[0].mxu0
        %v3865 = vadd.f32 %v3824, %v3864
        %v3866 = vpop.f32.mrb[0].mxu0
        %v3867 = vpop.f32.mrb[0].mxu0
        %3868 = vdwg.mxu0
        %3869 = vmatprep.subr.bf16.mxu0 %v3167
        %3870 = vmatpush1.bf16.msra.mxu0 %v3166
        %3871 = vmatprep.subr.bf16.mxu0 %v3169
        %3872 = vmatpush1.bf16.msra.mxu0 %v3168
        %3873 = vmatprep.subr.bf16.mxu0 %v3171
        %3874 = vmatpush1.bf16.msra.mxu0 %v3170
        %3875 = vmatprep.subr.bf16.mxu0 %v3173
        %3876 = vmatpush1.bf16.msra.mxu0 %v3172
        %3877 = vmatprep.subr.bf16.mxu0 %v3175
        %3878 = vmatpush1.bf16.msra.mxu0 %v3174
        %3879 = vmatprep.subr.bf16.mxu0 %v3177
        %3880 = vmatpush1.bf16.msra.mxu0 %v3176
        %3881 = vmatprep.subr.bf16.mxu0 %v3179
        %3882 = vmatpush1.bf16.msra.mxu0 %v3178
        %3883 = vmatprep.subr.bf16.mxu0 %v3181
        %3884 = vmatpush1.bf16.msra.mxu0 %v3180
        %3885 = vmatprep.subr.bf16.mxu0 %v3183
        %3886 = vmatpush1.bf16.msra.mxu0 %v3182
        %3887 = vmatprep.subr.bf16.mxu0 %v3185
        %3888 = vmatpush1.bf16.msra.mxu0 %v3184
        %3889 = vmatprep.subr.bf16.mxu0 %v3187
        %3890 = vmatpush1.bf16.msra.mxu0 %v3186
        %3891 = vmatprep.subr.bf16.mxu0 %v3189
        %3892 = vmatpush1.bf16.msra.mxu0 %v3188
        %3893 = vmatprep.subr.bf16.mxu0 %v3191
        %3894 = vmatpush1.bf16.msra.mxu0 %v3190
        %3895 = vmatprep.subr.bf16.mxu0 %v3193
        %3896 = vmatpush1.bf16.msra.mxu0 %v3192
        %3897 = vmatprep.subr.bf16.mxu0 %v3195
        %3898 = vmatpush1.bf16.msra.mxu0 %v3194
        %3899 = vmatprep.subr.bf16.mxu0 %v3197
        %3900 = vmatpush1.bf16.msra.mxu0 %v3196
        %3901 = vmatprep.mubr.bf16.mxu0 %v1957
        %3902 = vmatmul.mubr.bf16.gmra.mrb[0].mxu0 %v1956
        %v3903 = vpop.f32.mrb[0].mxu0
        %v3904 = vadd.f32 %v3863, %v3903
        %v3905 = vpop.f32.mrb[0].mxu0
        %v3906 = vadd.f32 %v3865, %v3905
        %v3907 = vpop.f32.mrb[0].mxu0
        %v3908 = vpop.f32.mrb[0].mxu0
        %3909 = vdwg.mxu0
        %3910 = vmatprep.subr.bf16.mxu0 %v3199
        %3911 = vmatpush1.bf16.msra.mxu0 %v3198
        %3912 = vmatprep.subr.bf16.mxu0 %v3201
        %3913 = vmatpush1.bf16.msra.mxu0 %v3200
        %3914 = vmatprep.subr.bf16.mxu0 %v3203
        %3915 = vmatpush1.bf16.msra.mxu0 %v3202
        %3916 = vmatprep.subr.bf16.mxu0 %v3205
        %3917 = vmatpush1.bf16.msra.mxu0 %v3204
        %3918 = vmatprep.subr.bf16.mxu0 %v3207
        %3919 = vmatpush1.bf16.msra.mxu0 %v3206
        %3920 = vmatprep.subr.bf16.mxu0 %v3209
        %3921 = vmatpush1.bf16.msra.mxu0 %v3208
        %3922 = vmatprep.subr.bf16.mxu0 %v3211
        %3923 = vmatpush1.bf16.msra.mxu0 %v3210
        %3924 = vmatprep.subr.bf16.mxu0 %v3213
        %3925 = vmatpush1.bf16.msra.mxu0 %v3212
        %3926 = vmatprep.subr.bf16.mxu0 %v3215
        %3927 = vmatpush1.bf16.msra.mxu0 %v3214
        %3928 = vmatprep.subr.bf16.mxu0 %v3217
        %3929 = vmatpush1.bf16.msra.mxu0 %v3216
        %3930 = vmatprep.subr.bf16.mxu0 %v3219
        %3931 = vmatpush1.bf16.msra.mxu0 %v3218
        %3932 = vmatprep.subr.bf16.mxu0 %v3221
        %3933 = vmatpush1.bf16.msra.mxu0 %v3220
        %3934 = vmatprep.subr.bf16.mxu0 %v3223
        %3935 = vmatpush1.bf16.msra.mxu0 %v3222
        %3936 = vmatprep.subr.bf16.mxu0 %v3225
        %3937 = vmatpush1.bf16.msra.mxu0 %v3224
        %3938 = vmatprep.subr.bf16.mxu0 %v3227
        %3939 = vmatpush1.bf16.msra.mxu0 %v3226
        %3940 = vmatprep.subr.bf16.mxu0 %v3229
        %3941 = vmatpush1.bf16.msra.mxu0 %v3228
        %3942 = vmatprep.mubr.bf16.mxu0 %v1959
        %3943 = vmatmul.mubr.bf16.gmra.mrb[0].mxu0 %v1958
        %v3944 = vpop.f32.mrb[0].mxu0
        %v3945 = vadd.f32 %v3904, %v3944
        %v3946 = vpop.f32.mrb[0].mxu0
        %v3947 = vadd.f32 %v3906, %v3946
        %v3948 = vpop.f32.mrb[0].mxu0
        %v3949 = vpop.f32.mrb[0].mxu0
        %3950 = vdwg.mxu0
        %3951 = vmatprep.subr.bf16.mxu0 %v3231
        %3952 = vmatpush1.bf16.msra.mxu0 %v3230
        %3953 = vmatprep.subr.bf16.mxu0 %v3233
        %3954 = vmatpush1.bf16.msra.mxu0 %v3232
        %3955 = vmatprep.subr.bf16.mxu0 %v3235
        %3956 = vmatpush1.bf16.msra.mxu0 %v3234
        %3957 = vmatprep.subr.bf16.mxu0 %v3237
        %3958 = vmatpush1.bf16.msra.mxu0 %v3236
        %3959 = vmatprep.subr.bf16.mxu0 %v3239
        %3960 = vmatpush1.bf16.msra.mxu0 %v3238
        %3961 = vmatprep.subr.bf16.mxu0 %v3241
        %3962 = vmatpush1.bf16.msra.mxu0 %v3240
        %3963 = vmatprep.subr.bf16.mxu0 %v3243
        %3964 = vmatpush1.bf16.msra.mxu0 %v3242
        %3965 = vmatprep.subr.bf16.mxu0 %v3245
        %3966 = vmatpush1.bf16.msra.mxu0 %v3244
        %3967 = vmatprep.subr.bf16.mxu0 %v3247
        %3968 = vmatpush1.bf16.msra.mxu0 %v3246
        %3969 = vmatprep.subr.bf16.mxu0 %v3249
        %3970 = vmatpush1.bf16.msra.mxu0 %v3248
        %3971 = vmatprep.subr.bf16.mxu0 %v3251
        %3972 = vmatpush1.bf16.msra.mxu0 %v3250
        %3973 = vmatprep.subr.bf16.mxu0 %v3253
        %3974 = vmatpush1.bf16.msra.mxu0 %v3252
        %3975 = vmatprep.subr.bf16.mxu0 %v3255
        %3976 = vmatpush1.bf16.msra.mxu0 %v3254
        %3977 = vmatprep.subr.bf16.mxu0 %v3257
        %3978 = vmatpush1.bf16.msra.mxu0 %v3256
        %3979 = vmatprep.subr.bf16.mxu0 %v3259
        %3980 = vmatpush1.bf16.msra.mxu0 %v3258
        %3981 = vmatprep.subr.bf16.mxu0 %v3261
        %3982 = vmatpush1.bf16.msra.mxu0 %v3260
        %3983 = vmatprep.mubr.bf16.mxu0 %v1961
        %3984 = vmatmul.mubr.bf16.gmra.mrb[0].mxu0 %v1960
        %v3985 = vpop.f32.mrb[0].mxu0
        %v3986 = vadd.f32 %v3945, %v3985
        %v3987 = vpop.f32.mrb[0].mxu0
        %v3988 = vadd.f32 %v3947, %v3987
        %v3989 = vpop.f32.mrb[0].mxu0
        %v3990 = vpop.f32.mrb[0].mxu0
        %3991 = vdwg.mxu0
        %v3992 = vadd.f32 %v1580, %v3986
        %v3993 = vadd.f32 %v1581, %v3988
        %3994 = vst [vmem:[%s1572] sm:$0xff] %v3992
        %3995 = vst [vmem:[%s1572 + $0x8] sm:$0xff] %v3993
        %p3996 = scmp.eq.s32.totalorder %s21, 4
        // Predicated region
        $region75: #{network_forward.11} parent=65 // pred_check
          %p3997 = pneg %p3996
        $region76: #{network_forward.11} parent=65 // pred_check_branch
          %3999 = sbr.rel (%p3997) target = $region78
        $region77: #{network_forward.11} parent=65 // pred_region
          %v4000 = vld [vmem:[%s1572] sm:$0xff]
          %v4001 = vld [vmem:[%s1572 + $0x8] sm:$0xff]
          %v4002 = vld [vmem:[%s1562] sm:$0x3]
          %v4004 = vlaneseq
          %v4005 = vshrl.u32 %v4004, 7
          %v4006 = vsub.s32 0, %v4005
          %v4007 = vrot.slane %v4002, %v4006
          %v4008 = vlaneseq
          %v4009 = vshrl.u32 %v4008, 7
          %v4010 = vsub.s32 1, %v4009
          %v4011 = vrot.slane %v4002, %v4010
          %v4014 = vadd.f32 %v4000, %v4007
          %v4015 = vadd.f32 %v4001, %v4011
          %v4016 = vmax.f32 %v4014, 0.0
          %v4017 = vmax.f32 %v4015, 0.0
          %4018 = vst [vmem:[%s1572] sm:$0xff] %v4016
          %4019 = vst [vmem:[%s1572 + $0x8] sm:$0xff] %v4017
        $region78: #{network_forward.11} parent=65 // pred_fallthru
          _
        %s4020 = smul.u32 2, %s20
        %p4021 = scmp.lt.s32.totalorder %s19, 0
        %s4022 = scalar_select %p4021, %s19, 0
        %p4023 = scmp.lt.s32.totalorder %s4020, 3
        %s4024 = scalar_select %p4023, %s4020, 3
        %s4025 = smul.addr %s4022, 4
        %s4026 = sadd.s32 %s4024, %s4025
        %s4027 = smul.addr %s4026, 8
        %s4028 = scalar_lea.vmem %s3, %s4027
        // Predicated region
        $region79: #{network_forward.11} parent=65 // pred_check
          %p4029 = pneg %p135
        $region80: #{network_forward.11} parent=65 // pred_check_branch
          %4031 = sbr.rel (%p4029) target = $region82
        $region81: #{network_forward.11} parent=65 // pred_region
          %s4032 = smul.u32 2, %s20
        $region82: #{network_forward.11} parent=65 // pred_fallthru
          _
      $region66: #{network_forward.11} parent=5 // pred_fallthru
        _
      %p4033 = scmp.le.s32.totalorder 2, %s9
      // Predicated region
      $region83: #{network_forward.11} parent=5 // pred_check
        %p4034 = pneg %p4033
      $region84: #{network_forward.11} parent=5 // pred_check_branch
        %4036 = sbr.rel (%p4034) target = $region86
      $region85: #{network_forward.11} parent=5 // pred_region
        %s4037 = ssub.s32 %s9, 2
        // Predicated region
        $region87: #{network_forward.11} parent=85 // pred_check
          %p4038 = pneg %p141
        $region88: #{network_forward.11} parent=85 // pred_check_branch
          %4040 = sbr.rel (%p4038) target = $region90
        $region89: #{network_forward.11} parent=85 // pred_region
          %s4041 = smul.u32 2, %s23
          %p4042 = scmp.lt.s32.totalorder %s22, 0
          %s4043 = scalar_select %p4042, %s22, 0
          %p4044 = scmp.lt.s32.totalorder %s4041, 3
          %s4045 = scalar_select %p4044, %s4041, 3
          %s4046 = smul.addr %s4043, 4
          %s4047 = sadd.s32 %s4045, %s4046
          %s4048 = smul.addr %s4047, 8
          %s4049 = scalar_lea.vmem %s3, %s4048
        $region90: #{network_forward.11} parent=85 // pred_fallthru
          _
      $region86: #{network_forward.11} parent=5 // pred_fallthru
        _
    $region6: #{network_forward.11} parent=1 // loop_footer
      %s13 = sadd.s32 1, %s9
    $region7: #{network_forward.11} parent=1 // loop_footer_branch
      %8 = sbr.rel target = $region3
    $region8: #{network_forward.11} parent=1 // loop_exit
      _

// kernel: network_forward.12
$region0: #{network_forward.12}
  #allocation0 [shape = 'u32[]', space=smem, size = 0x4, offset = 0x4, fixed_abs, tag = 'smem constant byte address 0x4 - core index']
  #allocation1 [shape = 'u32[144,128]{1,0:T(1,128)}', space=vmem, size = 0x12000, scoped, tag = 'internal scratch']
  %s0 = inlined_call_operand.vmem [shape: bf16[8,512], index: 0, kind: input, shape index: {}]
  %s1 = inlined_call_operand.vmem [shape: bf16[512,256], index: 1, kind: input, shape index: {}]
  %s2 = inlined_call_operand.vmem [shape: f32[1,256], index: 2, kind: input, shape index: {}]
  %s3 = inlined_call_operand.vmem [shape: f32[8,256], index: 3, kind: output, shape index: {}]
  %s4 = sld [smem:[#allocation0]]
  $region86: #{network_forward.12} parent=0
    _
  %s6 = ssub.s32 1, %s4
  %s7 = scalar_select 0, %s6, %s4
  $region1: #{network_forward.12} parent=0
    #allocation2 [shape = 'u8[262144]{0}', space=vmem, size = 0x40000, scoped, tag = 'input window, operand 1']
    loop: start=0, step=1, limit=4
    $region2: #{network_forward.12} parent=1 // loop_pre_header
      _
    $region3: #{network_forward.12} parent=1 // loop_header
      %s9 = sphi 0, %s13
      %p10 = scmp.ge.s32.totalorder %s9, 4
      %s16 = sphi 0, %s35
      %s17 = sphi 0, %s31
      %s18 = sphi 0, %s27
      %s19 = sphi 0, %s16
      %s20 = sphi 0, %s17
      %s21 = sphi 0, %s18
      %s22 = sphi 0, %s19
      %s23 = sphi 0, %s20
      %s24 = sphi 0, %s21
      %s40 = sphi 0, %s42
      %s43 = sphi 0, %s40
      %s44 = sphi 0, %s43
      %s60 = sphi 0, %s44
      %s68 = sphi 0, %s70
      %s71 = sphi 0, %s68
      %s72 = sphi 0, %s71
      %s88 = sphi 0, %s72
      %s94 = sphi 0, %s96
      %s97 = sphi 0, %s94
      %s98 = sphi 0, %s97
      %s114 = sphi 0, %s98
      %s122 = sphi 0, %s124
      %s125 = sphi 0, %s122
      %s126 = sphi 0, %s125
      %s142 = sphi 0, %s126
    $region4: #{network_forward.12} parent=1 // loop_header_branch
      %12 = sbr.rel (%p10) target = $region8
    $region5: #{network_forward.12} parent=1 // loop_body
      %s14 = ssub.s32 %s9, 1
      %s15 = ssub.s32 %s9, 2
      %s25 = sadd.s32 1, %s18
      %p26 = scmp.ge.s32.totalorder %s25, 1
      %s27 = scalar_select %p26, 0, %s25
      %s28 = sadd.s32 1, %s17
      %s29 = scalar_select %p26, %s28, %s17
      %p30 = scmp.ge.s32.totalorder %s29, 2
      %s31 = scalar_select %p30, 0, %s29
      %s32 = sadd.s32 1, %s16
      %s33 = scalar_select %p30, %s32, %s16
      %p34 = scmp.ge.s32.totalorder %s33, 1
      %s35 = scalar_select %p34, 0, %s33
      %s36 = ssub.s32 %s16, %s35
      %s37 = ssub.s32 %s18, %s27
      %s38 = sor.u32 %s36, %s37
      %p39 = scmp.eq.s32.totalorder %s38, 0
      %s41 = sadd.s32 %s40, 1
      %s42 = scalar_select %p39, %s40, %s41
      %p45 = pneg %p39
      %p46 = scmp.eq.s32.totalorder %s9, 1
      %p47 = por %p45, %p46
      %p48 = scmp.ne.s32.totalorder %s40, %s43
      %p49 = scmp.eq.s32.totalorder %s9, 0
      %p50 = por %p48, %p49
      %p51 = scmp.ne.s32.totalorder %s40, %s43
      %p52 = scmp.eq.s32.totalorder %s14, 1
      %p53 = por %p51, %p52
      %p54 = scmp.ne.s32.totalorder %s43, %s44
      %p55 = scmp.eq.s32.totalorder %s14, 0
      %p56 = por %p54, %p55
      %p57 = scmp.ne.s32.totalorder %s43, %s44
      %p58 = scmp.eq.s32.totalorder %s15, 1
      %p59 = por %p57, %p58
      %p61 = scmp.ne.s32.totalorder %s44, %s60
      %p62 = scmp.eq.s32.totalorder %s15, 0
      %p63 = por %p61, %p62
      %s64 = ssub.s32 %s18, %s27
      %s65 = ssub.s32 %s17, %s31
      %s66 = sor.u32 %s64, %s65
      %p67 = scmp.eq.s32.totalorder %s66, 0
      %s69 = sadd.s32 %s68, 1
      %s70 = scalar_select %p67, %s68, %s69
      %p73 = pneg %p67
      %p74 = scmp.eq.s32.totalorder %s9, 1
      %p75 = por %p73, %p74
      %p76 = scmp.ne.s32.totalorder %s68, %s71
      %p77 = scmp.eq.s32.totalorder %s9, 0
      %p78 = por %p76, %p77
      %p79 = scmp.ne.s32.totalorder %s68, %s71
      %p80 = scmp.eq.s32.totalorder %s14, 1
      %p81 = por %p79, %p80
      %p82 = scmp.ne.s32.totalorder %s71, %s72
      %p83 = scmp.eq.s32.totalorder %s14, 0
      %p84 = por %p82, %p83
      %p85 = scmp.ne.s32.totalorder %s71, %s72
      %p86 = scmp.eq.s32.totalorder %s15, 1
      %p87 = por %p85, %p86
      %p89 = scmp.ne.s32.totalorder %s72, %s88
      %p90 = scmp.eq.s32.totalorder %s15, 0
      %p91 = por %p89, %p90
      %s92 = ssub.s32 %s17, %s31
      %p93 = scmp.eq.s32.totalorder %s92, 0
      %s95 = sadd.s32 %s94, 1
      %s96 = scalar_select %p93, %s94, %s95
      %p99 = pneg %p93
      %p100 = scmp.eq.s32.totalorder %s9, 1
      %p101 = por %p99, %p100
      %p102 = scmp.ne.s32.totalorder %s94, %s97
      %p103 = scmp.eq.s32.totalorder %s9, 0
      %p104 = por %p102, %p103
      %p105 = scmp.ne.s32.totalorder %s94, %s97
      %p106 = scmp.eq.s32.totalorder %s14, 1
      %p107 = por %p105, %p106
      %p108 = scmp.ne.s32.totalorder %s97, %s98
      %p109 = scmp.eq.s32.totalorder %s14, 0
      %p110 = por %p108, %p109
      %p111 = scmp.ne.s32.totalorder %s97, %s98
      %p112 = scmp.eq.s32.totalorder %s15, 1
      %p113 = por %p111, %p112
      %p115 = scmp.ne.s32.totalorder %s98, %s114
      %p116 = scmp.eq.s32.totalorder %s15, 0
      %p117 = por %p115, %p116
      %s118 = ssub.s32 %s16, %s35
      %s119 = ssub.s32 %s17, %s31
      %s120 = sor.u32 %s118, %s119
      %p121 = scmp.eq.s32.totalorder %s120, 0
      %s123 = sadd.s32 %s122, 1
      %s124 = scalar_select %p121, %s122, %s123
      %p127 = pneg %p121
      %p128 = scmp.eq.s32.totalorder %s9, 1
      %p129 = por %p127, %p128
      %p130 = scmp.ne.s32.totalorder %s122, %s125
      %p131 = scmp.eq.s32.totalorder %s9, 0
      %p132 = por %p130, %p131
      %p133 = scmp.ne.s32.totalorder %s122, %s125
      %p134 = scmp.eq.s32.totalorder %s14, 1
      %p135 = por %p133, %p134
      %p136 = scmp.ne.s32.totalorder %s125, %s126
      %p137 = scmp.eq.s32.totalorder %s14, 0
      %p138 = por %p136, %p137
      %p139 = scmp.ne.s32.totalorder %s125, %s126
      %p140 = scmp.eq.s32.totalorder %s15, 1
      %p141 = por %p139, %p140
      %p143 = scmp.ne.s32.totalorder %s126, %s142
      %p144 = scmp.eq.s32.totalorder %s15, 0
      %p145 = por %p143, %p144
      %p146 = scmp.le.s32.totalorder 1, %s9
      %p147 = scmp.lt.s32.totalorder %s9, 3
      %p148 = pnand %p146, %p147
      %p149 = pneg %p148
      // Predicated region
      $region9: #{network_forward.12} parent=5 // pred_check
        _
      $region10: #{network_forward.12} parent=5 // pred_check_branch
        %151 = sbr.rel (%p148) target = $region12
      $region11: #{network_forward.12} parent=5 // pred_region
        %s152 = ssub.s32 %s9, 1
        // Predicated region
        $region13: #{network_forward.12} parent=11 // pred_check
          %p153 = pneg %p56
        $region14: #{network_forward.12} parent=11 // pred_check_branch
          %155 = sbr.rel (%p153) target = $region16
        $region15: #{network_forward.12} parent=11 // pred_region
          %s156 = smul.u32 4, %s21
          %p157 = scmp.lt.s32.totalorder %s19, 0
          %s158 = scalar_select %p157, %s19, 0
          %p159 = scmp.lt.s32.totalorder %s156, 3
          %s160 = scalar_select %p159, %s156, 3
          %s161 = smul.addr %s158, 4
          %s162 = sadd.s32 %s160, %s161
          %s163 = smul.addr %s162, 4
          %s164 = scalar_lea.vmem %s0, %s163
          %s165 = smul.u32 4, %s21
        $region16: #{network_forward.12} parent=11 // pred_fallthru
          _
      $region12: #{network_forward.12} parent=5 // pred_fallthru
        _
      %p166 = scmp.lt.s32.totalorder %s9, 2
      // Predicated region
      $region17: #{network_forward.12} parent=5 // pred_check
        %p167 = pneg %p166
      $region18: #{network_forward.12} parent=5 // pred_check_branch
        %169 = sbr.rel (%p167) target = $region20
      $region19: #{network_forward.12} parent=5 // pred_region
        // Predicated region
        $region21: #{network_forward.12} parent=19 // pred_check
          %p170 = pneg %p78
        $region22: #{network_forward.12} parent=19 // pred_check_branch
          %172 = sbr.rel (%p170) target = $region24
        $region23: #{network_forward.12} parent=19 // pred_region
          %s173 = sand.u32 %s68, 1
          %s174 = sand.u32 %s68, 1
          %s175 = smul.addr %s174, 256
          %s176 = scalar_lea.vmem [#allocation2], %s175
          %s177 = smul.u32 64, %s18
          %s178 = smul.addr %s177, 2
          %s179 = sadd.s32 %s17, %s178
          %s180 = smul.addr %s179, 4
          %s181 = scalar_lea.vmem %s1, %s180
          // Predicated region
          $region25: #{network_forward.12} parent=23 // pred_check
            _
          $region26: #{network_forward.12} parent=23 // pred_check_branch
            %183 = sbr.rel (0) target = $region28
          $region27: #{network_forward.12} parent=23 // pred_region
            // Predicated region
            $region29: #{network_forward.12} parent=27 // pred_check
              _
            $region30: #{network_forward.12} parent=27 // pred_check_branch
              %185 = sbr.rel target = $region32
            $region31: #{network_forward.12} parent=27 // pred_region
              // Predicated region
              $region44: #{network_forward.12} parent=31 // pred_check
                _
              $region45: #{network_forward.12} parent=31 // pred_check_branch
                %326 = sbr.rel (0) target = $region47
              $region46: #{network_forward.12} parent=31 // pred_region
                loop: start=0, step=1, limit=1
                $region48: #{network_forward.12} parent=46 // loop_pre_header
                  _
                $region49: #{network_forward.12} parent=46 // loop_header
                  %s328 = sphi 0, %s332
                  %p329 = scmp.ge.s32.totalorder %s328, 1
                  %s333 = sphi %s181, %s181
                  %s334 = sphi %s176, %s176
                $region50: #{network_forward.12} parent=46 // loop_header_branch
                  %331 = sbr.rel (%p329) target = $region54
                $region51: #{network_forward.12} parent=46 // loop_body
                  _
                $region52: #{network_forward.12} parent=46 // loop_footer
                  %s332 = sadd.s32 1, %s328
                $region53: #{network_forward.12} parent=46 // loop_footer_branch
                  %327 = sbr.rel target = $region49
                $region54: #{network_forward.12} parent=46 // loop_exit
                  _
                loop: start=0, step=1, limit=1
                $region55: #{network_forward.12} parent=46 // loop_pre_header
                  _
                $region56: #{network_forward.12} parent=46 // loop_header
                  %s337 = sphi 0, %s341
                  %p338 = scmp.ge.s32.totalorder %s337, 1
                  %s342 = sphi %s181, %s181
                  %s343 = sphi %s176, %s176
                $region57: #{network_forward.12} parent=46 // loop_header_branch
                  %340 = sbr.rel (%p338) target = $region61
                $region58: #{network_forward.12} parent=46 // loop_body
                  %v344 = vld [vmem:[%s342] sm:$0xf]
                  %345 = vst [vmem:[%s343] sm:$0xf] %v344
                  %v346 = vld [vmem:[%s342 + $0x8] sm:$0xf]
                  %347 = vst [vmem:[%s343 + $0x4] sm:$0xf] %v346
                  %v348 = vld [vmem:[%s342 + $0x10] sm:$0xf]
                  %349 = vst [vmem:[%s343 + $0x8] sm:$0xf] %v348
                  %v350 = vld [vmem:[%s342 + $0x18] sm:$0xf]
                  %351 = vst [vmem:[%s343 + $0xc] sm:$0xf] %v350
                  %v352 = vld [vmem:[%s342 + $0x20] sm:$0xf]
                  %353 = vst [vmem:[%s343 + $0x10] sm:$0xf] %v352
                  %v354 = vld [vmem:[%s342 + $0x28] sm:$0xf]
                  %355 = vst [vmem:[%s343 + $0x14] sm:$0xf] %v354
                  %v356 = vld [vmem:[%s342 + $0x30] sm:$0xf]
                  %357 = vst [vmem:[%s343 + $0x18] sm:$0xf] %v356
                  %v358 = vld [vmem:[%s342 + $0x38] sm:$0xf]
                  %359 = vst [vmem:[%s343 + $0x1c] sm:$0xf] %v358
                  %v360 = vld [vmem:[%s342 + $0x40] sm:$0xf]
                  %361 = vst [vmem:[%s343 + $0x20] sm:$0xf] %v360
                  %v362 = vld [vmem:[%s342 + $0x48] sm:$0xf]
                  %363 = vst [vmem:[%s343 + $0x24] sm:$0xf] %v362
                  %v364 = vld [vmem:[%s342 + $0x50] sm:$0xf]
                  %365 = vst [vmem:[%s343 + $0x28] sm:$0xf] %v364
                  %v366 = vld [vmem:[%s342 + $0x58] sm:$0xf]
                  %367 = vst [vmem:[%s343 + $0x2c] sm:$0xf] %v366
                  %v368 = vld [vmem:[%s342 + $0x60] sm:$0xf]
                  %369 = vst [vmem:[%s343 + $0x30] sm:$0xf] %v368
                  %v370 = vld [vmem:[%s342 + $0x68] sm:$0xf]
                  %371 = vst [vmem:[%s343 + $0x34] sm:$0xf] %v370
                  %v372 = vld [vmem:[%s342 + $0x70] sm:$0xf]
                  %373 = vst [vmem:[%s343 + $0x38] sm:$0xf] %v372
                  %v374 = vld [vmem:[%s342 + $0x78] sm:$0xf]
                  %375 = vst [vmem:[%s343 + $0x3c] sm:$0xf] %v374
                  %v376 = vld [vmem:[%s342 + $0x80] sm:$0xf]
                  %377 = vst [vmem:[%s343 + $0x40] sm:$0xf] %v376
                  %v378 = vld [vmem:[%s342 + $0x88] sm:$0xf]
                  %379 = vst [vmem:[%s343 + $0x44] sm:$0xf] %v378
                  %v380 = vld [vmem:[%s342 + $0x90] sm:$0xf]
                  %381 = vst [vmem:[%s343 + $0x48] sm:$0xf] %v380
                  %v382 = vld [vmem:[%s342 + $0x98] sm:$0xf]
                  %383 = vst [vmem:[%s343 + $0x4c] sm:$0xf] %v382
                  %v384 = vld [vmem:[%s342 + $0xa0] sm:$0xf]
                  %385 = vst [vmem:[%s343 + $0x50] sm:$0xf] %v384
                  %v386 = vld [vmem:[%s342 + $0xa8] sm:$0xf]
                  %387 = vst [vmem:[%s343 + $0x54] sm:$0xf] %v386
                  %v388 = vld [vmem:[%s342 + $0xb0] sm:$0xf]
                  %389 = vst [vmem:[%s343 + $0x58] sm:$0xf] %v388
                  %v390 = vld [vmem:[%s342 + $0xb8] sm:$0xf]
                  %391 = vst [vmem:[%s343 + $0x5c] sm:$0xf] %v390
                  %v392 = vld [vmem:[%s342 + $0xc0] sm:$0xf]
                  %393 = vst [vmem:[%s343 + $0x60] sm:$0xf] %v392
                  %v394 = vld [vmem:[%s342 + $0xc8] sm:$0xf]
                  %395 = vst [vmem:[%s343 + $0x64] sm:$0xf] %v394
                  %v396 = vld [vmem:[%s342 + $0xd0] sm:$0xf]
                  %397 = vst [vmem:[%s343 + $0x68] sm:$0xf] %v396
                  %v398 = vld [vmem:[%s342 + $0xd8] sm:$0xf]
                  %399 = vst [vmem:[%s343 + $0x6c] sm:$0xf] %v398
                  %v400 = vld [vmem:[%s342 + $0xe0] sm:$0xf]
                  %401 = vst [vmem:[%s343 + $0x70] sm:$0xf] %v400
                  %v402 = vld [vmem:[%s342 + $0xe8] sm:$0xf]
                  %403 = vst [vmem:[%s343 + $0x74] sm:$0xf] %v402
                  %v404 = vld [vmem:[%s342 + $0xf0] sm:$0xf]
                  %405 = vst [vmem:[%s343 + $0x78] sm:$0xf] %v404
                  %v406 = vld [vmem:[%s342 + $0xf8] sm:$0xf]
                  %407 = vst [vmem:[%s343 + $0x7c] sm:$0xf] %v406
                  %v408 = vld [vmem:[%s342 + $0x100] sm:$0xf]
                  %409 = vst [vmem:[%s343 + $0x80] sm:$0xf] %v408
                  %v410 = vld [vmem:[%s342 + $0x108] sm:$0xf]
                  %411 = vst [vmem:[%s343 + $0x84] sm:$0xf] %v410
                  %v412 = vld [vmem:[%s342 + $0x110] sm:$0xf]
                  %413 = vst [vmem:[%s343 + $0x88] sm:$0xf] %v412
                  %v414 = vld [vmem:[%s342 + $0x118] sm:$0xf]
                  %415 = vst [vmem:[%s343 + $0x8c] sm:$0xf] %v414
                  %v416 = vld [vmem:[%s342 + $0x120] sm:$0xf]
                  %417 = vst [vmem:[%s343 + $0x90] sm:$0xf] %v416
                  %v418 = vld [vmem:[%s342 + $0x128] sm:$0xf]
                  %419 = vst [vmem:[%s343 + $0x94] sm:$0xf] %v418
                  %v420 = vld [vmem:[%s342 + $0x130] sm:$0xf]
                  %421 = vst [vmem:[%s343 + $0x98] sm:$0xf] %v420
                  %v422 = vld [vmem:[%s342 + $0x138] sm:$0xf]
                  %423 = vst [vmem:[%s343 + $0x9c] sm:$0xf] %v422
                  %v424 = vld [vmem:[%s342 + $0x140] sm:$0xf]
                  %425 = vst [vmem:[%s343 + $0xa0] sm:$0xf] %v424
                  %v426 = vld [vmem:[%s342 + $0x148] sm:$0xf]
                  %427 = vst [vmem:[%s343 + $0xa4] sm:$0xf] %v426
                  %v428 = vld [vmem:[%s342 + $0x150] sm:$0xf]
                  %429 = vst [vmem:[%s343 + $0xa8] sm:$0xf] %v428
                  %v430 = vld [vmem:[%s342 + $0x158] sm:$0xf]
                  %431 = vst [vmem:[%s343 + $0xac] sm:$0xf] %v430
                  %v432 = vld [vmem:[%s342 + $0x160] sm:$0xf]
                  %433 = vst [vmem:[%s343 + $0xb0] sm:$0xf] %v432
                  %v434 = vld [vmem:[%s342 + $0x168] sm:$0xf]
                  %435 = vst [vmem:[%s343 + $0xb4] sm:$0xf] %v434
                  %v436 = vld [vmem:[%s342 + $0x170] sm:$0xf]
                  %437 = vst [vmem:[%s343 + $0xb8] sm:$0xf] %v436
                  %v438 = vld [vmem:[%s342 + $0x178] sm:$0xf]
                  %439 = vst [vmem:[%s343 + $0xbc] sm:$0xf] %v438
                  %v440 = vld [vmem:[%s342 + $0x180] sm:$0xf]
                  %441 = vst [vmem:[%s343 + $0xc0] sm:$0xf] %v440
                  %v442 = vld [vmem:[%s342 + $0x188] sm:$0xf]
                  %443 = vst [vmem:[%s343 + $0xc4] sm:$0xf] %v442
                  %v444 = vld [vmem:[%s342 + $0x190] sm:$0xf]
                  %445 = vst [vmem:[%s343 + $0xc8] sm:$0xf] %v444
                  %v446 = vld [vmem:[%s342 + $0x198] sm:$0xf]
                  %447 = vst [vmem:[%s343 + $0xcc] sm:$0xf] %v446
                  %v448 = vld [vmem:[%s342 + $0x1a0] sm:$0xf]
                  %449 = vst [vmem:[%s343 + $0xd0] sm:$0xf] %v448
                  %v450 = vld [vmem:[%s342 + $0x1a8] sm:$0xf]
                  %451 = vst [vmem:[%s343 + $0xd4] sm:$0xf] %v450
                  %v452 = vld [vmem:[%s342 + $0x1b0] sm:$0xf]
                  %453 = vst [vmem:[%s343 + $0xd8] sm:$0xf] %v452
                  %v454 = vld [vmem:[%s342 + $0x1b8] sm:$0xf]
                  %455 = vst [vmem:[%s343 + $0xdc] sm:$0xf] %v454
                  %v456 = vld [vmem:[%s342 + $0x1c0] sm:$0xf]
                  %457 = vst [vmem:[%s343 + $0xe0] sm:$0xf] %v456
                  %v458 = vld [vmem:[%s342 + $0x1c8] sm:$0xf]
                  %459 = vst [vmem:[%s343 + $0xe4] sm:$0xf] %v458
                  %v460 = vld [vmem:[%s342 + $0x1d0] sm:$0xf]
                  %461 = vst [vmem:[%s343 + $0xe8] sm:$0xf] %v460
                  %v462 = vld [vmem:[%s342 + $0x1d8] sm:$0xf]
                  %463 = vst [vmem:[%s343 + $0xec] sm:$0xf] %v462
                  %v464 = vld [vmem:[%s342 + $0x1e0] sm:$0xf]
                  %465 = vst [vmem:[%s343 + $0xf0] sm:$0xf] %v464
                  %v466 = vld [vmem:[%s342 + $0x1e8] sm:$0xf]
                  %467 = vst [vmem:[%s343 + $0xf4] sm:$0xf] %v466
                  %v468 = vld [vmem:[%s342 + $0x1f0] sm:$0xf]
                  %469 = vst [vmem:[%s343 + $0xf8] sm:$0xf] %v468
                  %v470 = vld [vmem:[%s342 + $0x1f8] sm:$0xf]
                  %471 = vst [vmem:[%s343 + $0xfc] sm:$0xf] %v470
                $region59: #{network_forward.12} parent=46 // loop_footer
                  %s341 = sadd.s32 1, %s337
                $region60: #{network_forward.12} parent=46 // loop_footer_branch
                  %336 = sbr.rel target = $region56
                $region61: #{network_forward.12} parent=46 // loop_exit
                  _
              $region47: #{network_forward.12} parent=31 // pred_fallthru
                _
            $region32: #{network_forward.12} parent=27 // pred_fallthru
              _
            // Predicated region
            $region33: #{network_forward.12} parent=27 // pred_check
              _
            $region34: #{network_forward.12} parent=27 // pred_check_branch
              %187 = sbr.rel (0) target = $region36
            $region35: #{network_forward.12} parent=27 // pred_region
              loop: start=0, step=1, limit=1
              $region37: #{network_forward.12} parent=35 // loop_pre_header
                _
              $region38: #{network_forward.12} parent=35 // loop_header
                %s190 = sphi 0, %s194
                %p191 = scmp.ge.s32.totalorder %s190, 1
                %s195 = sphi %s181, %s181
                %s196 = sphi %s176, %s176
              $region39: #{network_forward.12} parent=35 // loop_header_branch
                %193 = sbr.rel (%p191) target = $region43
              $region40: #{network_forward.12} parent=35 // loop_body
                %v197 = vld [vmem:[%s195] sm:$0xf]
                %198 = vst [vmem:[%s196] sm:$0xf] %v197
                %v199 = vld [vmem:[%s195 + $0x8] sm:$0xf]
                %200 = vst [vmem:[%s196 + $0x4] sm:$0xf] %v199
                %v201 = vld [vmem:[%s195 + $0x10] sm:$0xf]
                %202 = vst [vmem:[%s196 + $0x8] sm:$0xf] %v201
                %v203 = vld [vmem:[%s195 + $0x18] sm:$0xf]
                %204 = vst [vmem:[%s196 + $0xc] sm:$0xf] %v203
                %v205 = vld [vmem:[%s195 + $0x20] sm:$0xf]
                %206 = vst [vmem:[%s196 + $0x10] sm:$0xf] %v205
                %v207 = vld [vmem:[%s195 + $0x28] sm:$0xf]
                %208 = vst [vmem:[%s196 + $0x14] sm:$0xf] %v207
                %v209 = vld [vmem:[%s195 + $0x30] sm:$0xf]
                %210 = vst [vmem:[%s196 + $0x18] sm:$0xf] %v209
                %v211 = vld [vmem:[%s195 + $0x38] sm:$0xf]
                %212 = vst [vmem:[%s196 + $0x1c] sm:$0xf] %v211
                %v213 = vld [vmem:[%s195 + $0x40] sm:$0xf]
                %214 = vst [vmem:[%s196 + $0x20] sm:$0xf] %v213
                %v215 = vld [vmem:[%s195 + $0x48] sm:$0xf]
                %216 = vst [vmem:[%s196 + $0x24] sm:$0xf] %v215
                %v217 = vld [vmem:[%s195 + $0x50] sm:$0xf]
                %218 = vst [vmem:[%s196 + $0x28] sm:$0xf] %v217
                %v219 = vld [vmem:[%s195 + $0x58] sm:$0xf]
                %220 = vst [vmem:[%s196 + $0x2c] sm:$0xf] %v219
                %v221 = vld [vmem:[%s195 + $0x60] sm:$0xf]
                %222 = vst [vmem:[%s196 + $0x30] sm:$0xf] %v221
                %v223 = vld [vmem:[%s195 + $0x68] sm:$0xf]
                %224 = vst [vmem:[%s196 + $0x34] sm:$0xf] %v223
                %v225 = vld [vmem:[%s195 + $0x70] sm:$0xf]
                %226 = vst [vmem:[%s196 + $0x38] sm:$0xf] %v225
                %v227 = vld [vmem:[%s195 + $0x78] sm:$0xf]
                %228 = vst [vmem:[%s196 + $0x3c] sm:$0xf] %v227
                %v229 = vld [vmem:[%s195 + $0x80] sm:$0xf]
                %230 = vst [vmem:[%s196 + $0x40] sm:$0xf] %v229
                %v231 = vld [vmem:[%s195 + $0x88] sm:$0xf]
                %232 = vst [vmem:[%s196 + $0x44] sm:$0xf] %v231
                %v233 = vld [vmem:[%s195 + $0x90] sm:$0xf]
                %234 = vst [vmem:[%s196 + $0x48] sm:$0xf] %v233
                %v235 = vld [vmem:[%s195 + $0x98] sm:$0xf]
                %236 = vst [vmem:[%s196 + $0x4c] sm:$0xf] %v235
                %v237 = vld [vmem:[%s195 + $0xa0] sm:$0xf]
                %238 = vst [vmem:[%s196 + $0x50] sm:$0xf] %v237
                %v239 = vld [vmem:[%s195 + $0xa8] sm:$0xf]
                %240 = vst [vmem:[%s196 + $0x54] sm:$0xf] %v239
                %v241 = vld [vmem:[%s195 + $0xb0] sm:$0xf]
                %242 = vst [vmem:[%s196 + $0x58] sm:$0xf] %v241
                %v243 = vld [vmem:[%s195 + $0xb8] sm:$0xf]
                %244 = vst [vmem:[%s196 + $0x5c] sm:$0xf] %v243
                %v245 = vld [vmem:[%s195 + $0xc0] sm:$0xf]
                %246 = vst [vmem:[%s196 + $0x60] sm:$0xf] %v245
                %v247 = vld [vmem:[%s195 + $0xc8] sm:$0xf]
                %248 = vst [vmem:[%s196 + $0x64] sm:$0xf] %v247
                %v249 = vld [vmem:[%s195 + $0xd0] sm:$0xf]
                %250 = vst [vmem:[%s196 + $0x68] sm:$0xf] %v249
                %v251 = vld [vmem:[%s195 + $0xd8] sm:$0xf]
                %252 = vst [vmem:[%s196 + $0x6c] sm:$0xf] %v251
                %v253 = vld [vmem:[%s195 + $0xe0] sm:$0xf]
                %254 = vst [vmem:[%s196 + $0x70] sm:$0xf] %v253
                %v255 = vld [vmem:[%s195 + $0xe8] sm:$0xf]
                %256 = vst [vmem:[%s196 + $0x74] sm:$0xf] %v255
                %v257 = vld [vmem:[%s195 + $0xf0] sm:$0xf]
                %258 = vst [vmem:[%s196 + $0x78] sm:$0xf] %v257
                %v259 = vld [vmem:[%s195 + $0xf8] sm:$0xf]
                %260 = vst [vmem:[%s196 + $0x7c] sm:$0xf] %v259
                %v261 = vld [vmem:[%s195 + $0x100] sm:$0xf]
                %262 = vst [vmem:[%s196 + $0x80] sm:$0xf] %v261
                %v263 = vld [vmem:[%s195 + $0x108] sm:$0xf]
                %264 = vst [vmem:[%s196 + $0x84] sm:$0xf] %v263
                %v265 = vld [vmem:[%s195 + $0x110] sm:$0xf]
                %266 = vst [vmem:[%s196 + $0x88] sm:$0xf] %v265
                %v267 = vld [vmem:[%s195 + $0x118] sm:$0xf]
                %268 = vst [vmem:[%s196 + $0x8c] sm:$0xf] %v267
                %v269 = vld [vmem:[%s195 + $0x120] sm:$0xf]
                %270 = vst [vmem:[%s196 + $0x90] sm:$0xf] %v269
                %v271 = vld [vmem:[%s195 + $0x128] sm:$0xf]
                %272 = vst [vmem:[%s196 + $0x94] sm:$0xf] %v271
                %v273 = vld [vmem:[%s195 + $0x130] sm:$0xf]
                %274 = vst [vmem:[%s196 + $0x98] sm:$0xf] %v273
                %v275 = vld [vmem:[%s195 + $0x138] sm:$0xf]
                %276 = vst [vmem:[%s196 + $0x9c] sm:$0xf] %v275
                %v277 = vld [vmem:[%s195 + $0x140] sm:$0xf]
                %278 = vst [vmem:[%s196 + $0xa0] sm:$0xf] %v277
                %v279 = vld [vmem:[%s195 + $0x148] sm:$0xf]
                %280 = vst [vmem:[%s196 + $0xa4] sm:$0xf] %v279
                %v281 = vld [vmem:[%s195 + $0x150] sm:$0xf]
                %282 = vst [vmem:[%s196 + $0xa8] sm:$0xf] %v281
                %v283 = vld [vmem:[%s195 + $0x158] sm:$0xf]
                %284 = vst [vmem:[%s196 + $0xac] sm:$0xf] %v283
                %v285 = vld [vmem:[%s195 + $0x160] sm:$0xf]
                %286 = vst [vmem:[%s196 + $0xb0] sm:$0xf] %v285
                %v287 = vld [vmem:[%s195 + $0x168] sm:$0xf]
                %288 = vst [vmem:[%s196 + $0xb4] sm:$0xf] %v287
                %v289 = vld [vmem:[%s195 + $0x170] sm:$0xf]
                %290 = vst [vmem:[%s196 + $0xb8] sm:$0xf] %v289
                %v291 = vld [vmem:[%s195 + $0x178] sm:$0xf]
                %292 = vst [vmem:[%s196 + $0xbc] sm:$0xf] %v291
                %v293 = vld [vmem:[%s195 + $0x180] sm:$0xf]
                %294 = vst [vmem:[%s196 + $0xc0] sm:$0xf] %v293
                %v295 = vld [vmem:[%s195 + $0x188] sm:$0xf]
                %296 = vst [vmem:[%s196 + $0xc4] sm:$0xf] %v295
                %v297 = vld [vmem:[%s195 + $0x190] sm:$0xf]
                %298 = vst [vmem:[%s196 + $0xc8] sm:$0xf] %v297
                %v299 = vld [vmem:[%s195 + $0x198] sm:$0xf]
                %300 = vst [vmem:[%s196 + $0xcc] sm:$0xf] %v299
                %v301 = vld [vmem:[%s195 + $0x1a0] sm:$0xf]
                %302 = vst [vmem:[%s196 + $0xd0] sm:$0xf] %v301
                %v303 = vld [vmem:[%s195 + $0x1a8] sm:$0xf]
                %304 = vst [vmem:[%s196 + $0xd4] sm:$0xf] %v303
                %v305 = vld [vmem:[%s195 + $0x1b0] sm:$0xf]
                %306 = vst [vmem:[%s196 + $0xd8] sm:$0xf] %v305
                %v307 = vld [vmem:[%s195 + $0x1b8] sm:$0xf]
                %308 = vst [vmem:[%s196 + $0xdc] sm:$0xf] %v307
                %v309 = vld [vmem:[%s195 + $0x1c0] sm:$0xf]
                %310 = vst [vmem:[%s196 + $0xe0] sm:$0xf] %v309
                %v311 = vld [vmem:[%s195 + $0x1c8] sm:$0xf]
                %312 = vst [vmem:[%s196 + $0xe4] sm:$0xf] %v311
                %v313 = vld [vmem:[%s195 + $0x1d0] sm:$0xf]
                %314 = vst [vmem:[%s196 + $0xe8] sm:$0xf] %v313
                %v315 = vld [vmem:[%s195 + $0x1d8] sm:$0xf]
                %316 = vst [vmem:[%s196 + $0xec] sm:$0xf] %v315
                %v317 = vld [vmem:[%s195 + $0x1e0] sm:$0xf]
                %318 = vst [vmem:[%s196 + $0xf0] sm:$0xf] %v317
                %v319 = vld [vmem:[%s195 + $0x1e8] sm:$0xf]
                %320 = vst [vmem:[%s196 + $0xf4] sm:$0xf] %v319
                %v321 = vld [vmem:[%s195 + $0x1f0] sm:$0xf]
                %322 = vst [vmem:[%s196 + $0xf8] sm:$0xf] %v321
                %v323 = vld [vmem:[%s195 + $0x1f8] sm:$0xf]
                %324 = vst [vmem:[%s196 + $0xfc] sm:$0xf] %v323
              $region41: #{network_forward.12} parent=35 // loop_footer
                %s194 = sadd.s32 1, %s190
              $region42: #{network_forward.12} parent=35 // loop_footer_branch
                %189 = sbr.rel target = $region38
              $region43: #{network_forward.12} parent=35 // loop_exit
                _
            $region36: #{network_forward.12} parent=27 // pred_fallthru
              _
          $region28: #{network_forward.12} parent=23 // pred_fallthru
            _
          %472 = vnop
        $region24: #{network_forward.12} parent=19 // pred_fallthru
          _
        // Predicated region
        $region62: #{network_forward.12} parent=19 // pred_check
          %p473 = pneg %p104
        $region63: #{network_forward.12} parent=19 // pred_check_branch
          %475 = sbr.rel (%p473) target = $region65
        $region64: #{network_forward.12} parent=19 // pred_region
          %p476 = scmp.lt.s32.totalorder %s17, 1
          %s477 = scalar_select %p476, %s17, 1
          %s478 = scalar_lea.vmem %s2, %s477
        $region65: #{network_forward.12} parent=19 // pred_fallthru
          _
      $region20: #{network_forward.12} parent=5 // pred_fallthru
        _
      %p479 = scmp.le.s32.totalorder 1, %s9
      %p480 = scmp.lt.s32.totalorder %s9, 3
      %p481 = pnand %p479, %p480
      %p482 = pneg %p481
      // Predicated region
      $region66: #{network_forward.12} parent=5 // pred_check
        _
      $region67: #{network_forward.12} parent=5 // pred_check_branch
        %484 = sbr.rel (%p481) target = $region69
      $region68: #{network_forward.12} parent=5 // pred_region
        %s485 = ssub.s32 %s9, 1
        %s486 = sand.u32 %s71, 1
        %s487 = sand.u32 %s71, 1
        %s488 = smul.addr %s487, 256
        %s489 = scalar_lea.vmem [#allocation2], %s488
        // Predicated region
        $region70: #{network_forward.12} parent=68 // pred_check
          %p490 = pneg %p84
        $region71: #{network_forward.12} parent=68 // pred_check_branch
          %492 = sbr.rel (%p490) target = $region73
        $region72: #{network_forward.12} parent=68 // pred_region
          _
        $region73: #{network_forward.12} parent=68 // pred_fallthru
          _
        %s493 = smul.u32 4, %s21
        %p494 = scmp.lt.s32.totalorder %s19, 0
        %s495 = scalar_select %p494, %s19, 0
        %p496 = scmp.lt.s32.totalorder %s493, 3
        %s497 = scalar_select %p496, %s493, 3
        %s498 = smul.addr %s495, 4
        %s499 = sadd.s32 %s497, %s498
        %s500 = smul.addr %s499, 4
        %s501 = scalar_lea.vmem %s0, %s500
        %p502 = pneg %p56
        %p503 = pneg %p53
        %s504 = sand.u32 %s71, 1
        %s505 = sand.u32 %s71, 1
        %s506 = smul.addr %s505, 256
        %s507 = scalar_lea.vmem [#allocation2], %s506
        %p508 = pneg %p84
        %p509 = pneg %p81
        %p510 = scmp.lt.s32.totalorder %s20, 1
        %s511 = scalar_select %p510, %s20, 1
        %s512 = scalar_lea.vmem %s2, %s511
        %p513 = pneg %p110
        %p514 = pneg %p107
        %p515 = pneg %p138
        %p516 = pneg %p135
        %p517 = scmp.lt.s32.totalorder %s19, 0
        %s518 = scalar_select %p517, %s19, 0
        %p519 = scmp.lt.s32.totalorder %s20, 1
        %s520 = scalar_select %p519, %s20, 1
        %s521 = smul.addr %s518, 2
        %s522 = sadd.s32 %s520, %s521
        %s523 = smul.addr %s522, 8
        %s524 = scalar_lea.vmem %s3, %s523
        %s525 = smul.u32 4, %s21
        %p526 = scmp.lt.s32.totalorder %s19, 0
        %s527 = scalar_select %p526, %s19, 0
        %p528 = scmp.lt.s32.totalorder %s525, 3
        %s529 = scalar_select %p528, %s525, 3
        %s530 = smul.addr %s527, 4
        %s531 = sadd.s32 %s529, %s530
        %s532 = smul.addr %s531, 4
        %s533 = scalar_lea.vmem %s0, %s532
        %s534 = smul.u32 4, %s21
        %s535 = smul.u32 64, %s21
        %p536 = scmp.lt.s32.totalorder %s20, 1
        %s537 = scalar_select %p536, %s20, 1
        %s538 = scalar_lea.vmem %s2, %s537
        %p539 = scmp.lt.s32.totalorder %s19, 0
        %s540 = scalar_select %p539, %s19, 0
        %p541 = scmp.lt.s32.totalorder %s20, 1
        %s542 = scalar_select %p541, %s20, 1
        %s543 = smul.addr %s540, 2
        %s544 = sadd.s32 %s542, %s543
        %s545 = smul.addr %s544, 8
        %s546 = scalar_lea.vmem %s3, %s545
        %v548 = vld [vmem:[%s533] sm:$0xff]
        %v549 = vld [vmem:[%s533 + $0x8] sm:$0xff]
        %v550 = vld [vmem:[%s489] sm:$0xf]
        %v551 = vld [vmem:[%s489 + $0x4] sm:$0xf]
        %v552 = vld [vmem:[%s489 + $0x8] sm:$0xf]
        %v553 = vld [vmem:[%s489 + $0xc] sm:$0xf]
        %v554 = vld [vmem:[%s489 + $0x10] sm:$0xf]
        %v555 = vld [vmem:[%s489 + $0x14] sm:$0xf]
        %v556 = vld [vmem:[%s489 + $0x18] sm:$0xf]
        %v557 = vld [vmem:[%s489 + $0x1c] sm:$0xf]
        %v558 = vld [vmem:[%s489 + $0x20] sm:$0xf]
        %v559 = vld [vmem:[%s489 + $0x24] sm:$0xf]
        %v560 = vld [vmem:[%s489 + $0x28] sm:$0xf]
        %v561 = vld [vmem:[%s489 + $0x2c] sm:$0xf]
        %v562 = vld [vmem:[%s489 + $0x30] sm:$0xf]
        %v563 = vld [vmem:[%s489 + $0x34] sm:$0xf]
        %v564 = vld [vmem:[%s489 + $0x38] sm:$0xf]
        %v565 = vld [vmem:[%s489 + $0x3c] sm:$0xf]
        %v566 = vld [vmem:[%s489 + $0x40] sm:$0xf]
        %v567 = vld [vmem:[%s489 + $0x44] sm:$0xf]
        %v568 = vld [vmem:[%s489 + $0x48] sm:$0xf]
        %v569 = vld [vmem:[%s489 + $0x4c] sm:$0xf]
        %v570 = vld [vmem:[%s489 + $0x50] sm:$0xf]
        %v571 = vld [vmem:[%s489 + $0x54] sm:$0xf]
        %v572 = vld [vmem:[%s489 + $0x58] sm:$0xf]
        %v573 = vld [vmem:[%s489 + $0x5c] sm:$0xf]
        %v574 = vld [vmem:[%s489 + $0x60] sm:$0xf]
        %v575 = vld [vmem:[%s489 + $0x64] sm:$0xf]
        %v576 = vld [vmem:[%s489 + $0x68] sm:$0xf]
        %v577 = vld [vmem:[%s489 + $0x6c] sm:$0xf]
        %v578 = vld [vmem:[%s489 + $0x70] sm:$0xf]
        %v579 = vld [vmem:[%s489 + $0x74] sm:$0xf]
        %v580 = vld [vmem:[%s489 + $0x78] sm:$0xf]
        %v581 = vld [vmem:[%s489 + $0x7c] sm:$0xf]
        %v582 = vld [vmem:[%s489 + $0x80] sm:$0xf]
        %v583 = vld [vmem:[%s489 + $0x84] sm:$0xf]
        %v584 = vld [vmem:[%s489 + $0x88] sm:$0xf]
        %v585 = vld [vmem:[%s489 + $0x8c] sm:$0xf]
        %v586 = vld [vmem:[%s489 + $0x90] sm:$0xf]
        %v587 = vld [vmem:[%s489 + $0x94] sm:$0xf]
        %v588 = vld [vmem:[%s489 + $0x98] sm:$0xf]
        %v589 = vld [vmem:[%s489 + $0x9c] sm:$0xf]
        %v590 = vld [vmem:[%s489 + $0xa0] sm:$0xf]
        %v591 = vld [vmem:[%s489 + $0xa4] sm:$0xf]
        %v592 = vld [vmem:[%s489 + $0xa8] sm:$0xf]
        %v593 = vld [vmem:[%s489 + $0xac] sm:$0xf]
        %v594 = vld [vmem:[%s489 + $0xb0] sm:$0xf]
        %v595 = vld [vmem:[%s489 + $0xb4] sm:$0xf]
        %v596 = vld [vmem:[%s489 + $0xb8] sm:$0xf]
        %v597 = vld [vmem:[%s489 + $0xbc] sm:$0xf]
        %v598 = vld [vmem:[%s489 + $0xc0] sm:$0xf]
        %v599 = vld [vmem:[%s489 + $0xc4] sm:$0xf]
        %v600 = vld [vmem:[%s489 + $0xc8] sm:$0xf]
        %v601 = vld [vmem:[%s489 + $0xcc] sm:$0xf]
        %v602 = vld [vmem:[%s489 + $0xd0] sm:$0xf]
        %v603 = vld [vmem:[%s489 + $0xd4] sm:$0xf]
        %v604 = vld [vmem:[%s489 + $0xd8] sm:$0xf]
        %v605 = vld [vmem:[%s489 + $0xdc] sm:$0xf]
        %v606 = vld [vmem:[%s489 + $0xe0] sm:$0xf]
        %v607 = vld [vmem:[%s489 + $0xe4] sm:$0xf]
        %v608 = vld [vmem:[%s489 + $0xe8] sm:$0xf]
        %v609 = vld [vmem:[%s489 + $0xec] sm:$0xf]
        %v610 = vld [vmem:[%s489 + $0xf0] sm:$0xf]
        %v611 = vld [vmem:[%s489 + $0xf4] sm:$0xf]
        %v612 = vld [vmem:[%s489 + $0xf8] sm:$0xf]
        %v613 = vld [vmem:[%s489 + $0xfc] sm:$0xf]
        %v614 = vld [vmem:[%s538] sm:$0x1]
        %v616 = vlaneseq
        %v617 = vshrl.u32 %v616, 7
        %v618 = vsub.s32 0, %v617
        %v619 = vrot.slane %v614, %v618
        %v623 = vunpack.c.l.b16 %v548
        %v624 = vunpack.c.h.b16 %v548
        %v625 = vunpack.c.l.b16 %v549
        %v626 = vunpack.c.h.b16 %v549
        %v627 = vpack.c.b16 %v623, %v623
        %v628 = vpack.c.b16 %v624, %v624
        %v629 = vpack.c.b16 %v625, %v625
        %v630 = vpack.c.b16 %v626, %v626
        %v699 = vunpack.c.l.b16 %v550
        %v700 = vunpack.c.l.b16 %v551
        %v701 = vunpack.c.l.b16 %v552
        %v702 = vunpack.c.l.b16 %v553
        %v703 = vunpack.c.l.b16 %v554
        %v704 = vunpack.c.l.b16 %v555
        %v705 = vunpack.c.l.b16 %v556
        %v706 = vunpack.c.l.b16 %v557
        %v707 = vunpack.c.l.b16 %v558
        %v708 = vunpack.c.l.b16 %v559
        %v709 = vunpack.c.l.b16 %v560
        %v710 = vunpack.c.l.b16 %v561
        %v711 = vunpack.c.l.b16 %v562
        %v712 = vunpack.c.l.b16 %v563
        %v713 = vunpack.c.l.b16 %v564
        %v714 = vunpack.c.l.b16 %v565
        %v715 = vunpack.c.l.b16 %v566
        %v716 = vunpack.c.l.b16 %v567
        %v717 = vunpack.c.l.b16 %v568
        %v718 = vunpack.c.l.b16 %v569
        %v719 = vunpack.c.l.b16 %v570
        %v720 = vunpack.c.l.b16 %v571
        %v721 = vunpack.c.l.b16 %v572
        %v722 = vunpack.c.l.b16 %v573
        %v723 = vunpack.c.l.b16 %v574
        %v724 = vunpack.c.l.b16 %v575
        %v725 = vunpack.c.l.b16 %v576
        %v726 = vunpack.c.l.b16 %v577
        %v727 = vunpack.c.l.b16 %v578
        %v728 = vunpack.c.l.b16 %v579
        %v729 = vunpack.c.l.b16 %v580
        %v730 = vunpack.c.l.b16 %v581
        %v731 = vunpack.c.l.b16 %v582
        %v732 = vunpack.c.l.b16 %v583
        %v733 = vunpack.c.l.b16 %v584
        %v734 = vunpack.c.l.b16 %v585
        %v735 = vunpack.c.l.b16 %v586
        %v736 = vunpack.c.l.b16 %v587
        %v737 = vunpack.c.l.b16 %v588
        %v738 = vunpack.c.l.b16 %v589
        %v739 = vunpack.c.l.b16 %v590
        %v740 = vunpack.c.l.b16 %v591
        %v741 = vunpack.c.l.b16 %v592
        %v742 = vunpack.c.l.b16 %v593
        %v743 = vunpack.c.l.b16 %v594
        %v744 = vunpack.c.l.b16 %v595
        %v745 = vunpack.c.l.b16 %v596
        %v746 = vunpack.c.l.b16 %v597
        %v747 = vunpack.c.l.b16 %v598
        %v748 = vunpack.c.l.b16 %v599
        %v749 = vunpack.c.l.b16 %v600
        %v750 = vunpack.c.l.b16 %v601
        %v751 = vunpack.c.l.b16 %v602
        %v752 = vunpack.c.l.b16 %v603
        %v753 = vunpack.c.l.b16 %v604
        %v754 = vunpack.c.l.b16 %v605
        %v755 = vunpack.c.l.b16 %v606
        %v756 = vunpack.c.l.b16 %v607
        %v757 = vunpack.c.l.b16 %v608
        %v758 = vunpack.c.l.b16 %v609
        %v759 = vunpack.c.l.b16 %v610
        %v760 = vunpack.c.l.b16 %v611
        %v761 = vunpack.c.l.b16 %v612
        %v762 = vunpack.c.l.b16 %v613
        %v763 = vpack.c.b16 %v700, %v699
        %v764 = vpack.c.b16 %v702, %v701
        %v765 = vpack.c.b16 %v704, %v703
        %v766 = vpack.c.b16 %v706, %v705
        %v767 = vpack.c.b16 %v708, %v707
        %v768 = vpack.c.b16 %v710, %v709
        %v769 = vpack.c.b16 %v712, %v711
        %v770 = vpack.c.b16 %v714, %v713
        %v771 = vpack.c.b16 %v716, %v715
        %v772 = vpack.c.b16 %v718, %v717
        %v773 = vpack.c.b16 %v720, %v719
        %v774 = vpack.c.b16 %v722, %v721
        %v775 = vpack.c.b16 %v724, %v723
        %v776 = vpack.c.b16 %v726, %v725
        %v777 = vpack.c.b16 %v728, %v727
        %v778 = vpack.c.b16 %v730, %v729
        %v779 = vpack.c.b16 %v732, %v731
        %v780 = vpack.c.b16 %v734, %v733
        %v781 = vpack.c.b16 %v736, %v735
        %v782 = vpack.c.b16 %v738, %v737
        %v783 = vpack.c.b16 %v740, %v739
        %v784 = vpack.c.b16 %v742, %v741
        %v785 = vpack.c.b16 %v744, %v743
        %v786 = vpack.c.b16 %v746, %v745
        %v787 = vpack.c.b16 %v748, %v747
        %v788 = vpack.c.b16 %v750, %v749
        %v789 = vpack.c.b16 %v752, %v751
        %v790 = vpack.c.b16 %v754, %v753
        %v791 = vpack.c.b16 %v756, %v755
        %v792 = vpack.c.b16 %v758, %v757
        %v793 = vpack.c.b16 %v760, %v759
        %v794 = vpack.c.b16 %v762, %v761
        %827 = vmatprep.subr.bf16.mxu0 0
        %828 = vmatpush1.bf16.msra.mxu0 %v763
        %829 = vmatprep.subr.bf16.mxu0 0
        %830 = vmatpush1.bf16.msra.mxu0 %v764
        %831 = vmatprep.subr.bf16.mxu0 0
        %832 = vmatpush1.bf16.msra.mxu0 %v765
        %833 = vmatprep.subr.bf16.mxu0 0
        %834 = vmatpush1.bf16.msra.mxu0 %v766
        %835 = vmatprep.subr.bf16.mxu0 0
        %836 = vmatpush1.bf16.msra.mxu0 %v767
        %837 = vmatprep.subr.bf16.mxu0 0
        %838 = vmatpush1.bf16.msra.mxu0 %v768
        %839 = vmatprep.subr.bf16.mxu0 0
        %840 = vmatpush1.bf16.msra.mxu0 %v769
        %841 = vmatprep.subr.bf16.mxu0 0
        %842 = vmatpush1.bf16.msra.mxu0 %v770
        %843 = vmatprep.subr.bf16.mxu0 0
        %844 = vmatpush1.bf16.msra.mxu0 %v771
        %845 = vmatprep.subr.bf16.mxu0 0
        %846 = vmatpush1.bf16.msra.mxu0 %v772
        %847 = vmatprep.subr.bf16.mxu0 0
        %848 = vmatpush1.bf16.msra.mxu0 %v773
        %849 = vmatprep.subr.bf16.mxu0 0
        %850 = vmatpush1.bf16.msra.mxu0 %v774
        %851 = vmatprep.subr.bf16.mxu0 0
        %852 = vmatpush1.bf16.msra.mxu0 %v775
        %853 = vmatprep.subr.bf16.mxu0 0
        %854 = vmatpush1.bf16.msra.mxu0 %v776
        %855 = vmatprep.subr.bf16.mxu0 0
        %856 = vmatpush1.bf16.msra.mxu0 %v777
        %857 = vmatprep.subr.bf16.mxu0 0
        %858 = vmatpush1.bf16.msra.mxu0 %v778
        %859 = vmatprep.mubr.bf16.mxu0 %v628
        %860 = vmatmul.mubr.bf16.gmra.mrb[0].mxu0 %v627
        %v861 = vpop.f32.mrb[0].mxu0
        %v862 = vadd.f32 %v619, %v861
        %v863 = vpop.f32.mrb[0].mxu0
        %v864 = vpop.f32.mrb[0].mxu0
        %v865 = vpop.f32.mrb[0].mxu0
        %866 = vdwg.mxu0
        %867 = vmatprep.subr.bf16.mxu0 0
        %868 = vmatpush1.bf16.msra.mxu0 %v779
        %869 = vmatprep.subr.bf16.mxu0 0
        %870 = vmatpush1.bf16.msra.mxu0 %v780
        %871 = vmatprep.subr.bf16.mxu0 0
        %872 = vmatpush1.bf16.msra.mxu0 %v781
        %873 = vmatprep.subr.bf16.mxu0 0
        %874 = vmatpush1.bf16.msra.mxu0 %v782
        %875 = vmatprep.subr.bf16.mxu0 0
        %876 = vmatpush1.bf16.msra.mxu0 %v783
        %877 = vmatprep.subr.bf16.mxu0 0
        %878 = vmatpush1.bf16.msra.mxu0 %v784
        %879 = vmatprep.subr.bf16.mxu0 0
        %880 = vmatpush1.bf16.msra.mxu0 %v785
        %881 = vmatprep.subr.bf16.mxu0 0
        %882 = vmatpush1.bf16.msra.mxu0 %v786
        %883 = vmatprep.subr.bf16.mxu0 0
        %884 = vmatpush1.bf16.msra.mxu0 %v787
        %885 = vmatprep.subr.bf16.mxu0 0
        %886 = vmatpush1.bf16.msra.mxu0 %v788
        %887 = vmatprep.subr.bf16.mxu0 0
        %888 = vmatpush1.bf16.msra.mxu0 %v789
        %889 = vmatprep.subr.bf16.mxu0 0
        %890 = vmatpush1.bf16.msra.mxu0 %v790
        %891 = vmatprep.subr.bf16.mxu0 0
        %892 = vmatpush1.bf16.msra.mxu0 %v791
        %893 = vmatprep.subr.bf16.mxu0 0
        %894 = vmatpush1.bf16.msra.mxu0 %v792
        %895 = vmatprep.subr.bf16.mxu0 0
        %896 = vmatpush1.bf16.msra.mxu0 %v793
        %897 = vmatprep.subr.bf16.mxu0 0
        %898 = vmatpush1.bf16.msra.mxu0 %v794
        %899 = vmatprep.mubr.bf16.mxu0 %v630
        %900 = vmatmul.mubr.bf16.gmra.mrb[0].mxu0 %v629
        %v901 = vpop.f32.mrb[0].mxu0
        %v902 = vadd.f32 %v862, %v901
        %v903 = vpop.f32.mrb[0].mxu0
        %v904 = vpop.f32.mrb[0].mxu0
        %v905 = vpop.f32.mrb[0].mxu0
        %906 = vdwg.mxu0
        %v907 = vmax.f32 %v902, 0.0
        %908 = vst [vmem:[%s546] sm:$0xff] %v907
        %p909 = scmp.lt.s32.totalorder %s19, 0
        %s910 = scalar_select %p909, %s19, 0
        %p911 = scmp.lt.s32.totalorder %s20, 1
        %s912 = scalar_select %p911, %s20, 1
        %s913 = smul.addr %s910, 2
        %s914 = sadd.s32 %s912, %s913
        %s915 = smul.addr %s914, 8
        %s916 = scalar_lea.vmem %s3, %s915
        // Predicated region
        $region74: #{network_forward.12} parent=68 // pred_check
          %p917 = pneg %p135
        $region75: #{network_forward.12} parent=68 // pred_check_branch
          %919 = sbr.rel (%p917) target = $region77
        $region76: #{network_forward.12} parent=68 // pred_region
          _
        $region77: #{network_forward.12} parent=68 // pred_fallthru
          _
      $region69: #{network_forward.12} parent=5 // pred_fallthru
        _
      %p920 = scmp.le.s32.totalorder 2, %s9
      // Predicated region
      $region78: #{network_forward.12} parent=5 // pred_check
        %p921 = pneg %p920
      $region79: #{network_forward.12} parent=5 // pred_check_branch
        %923 = sbr.rel (%p921) target = $region81
      $region80: #{network_forward.12} parent=5 // pred_region
        %s924 = ssub.s32 %s9, 2
        // Predicated region
        $region82: #{network_forward.12} parent=80 // pred_check
          %p925 = pneg %p141
        $region83: #{network_forward.12} parent=80 // pred_check_branch
          %927 = sbr.rel (%p925) target = $region85
        $region84: #{network_forward.12} parent=80 // pred_region
          %p928 = scmp.lt.s32.totalorder %s22, 0
          %s929 = scalar_select %p928, %s22, 0
          %p930 = scmp.lt.s32.totalorder %s23, 1
          %s931 = scalar_select %p930, %s23, 1
          %s932 = smul.addr %s929, 2
          %s933 = sadd.s32 %s931, %s932
          %s934 = smul.addr %s933, 8
          %s935 = scalar_lea.vmem %s3, %s934
        $region85: #{network_forward.12} parent=80 // pred_fallthru
          _
      $region81: #{network_forward.12} parent=5 // pred_fallthru
        _
    $region6: #{network_forward.12} parent=1 // loop_footer
      %s13 = sadd.s32 1, %s9
    $region7: #{network_forward.12} parent=1 // loop_footer_branch
      %8 = sbr.rel target = $region3
    $region8: #{network_forward.12} parent=1 // loop_exit
      _

// kernel: network_forward.13
$region0: #{network_forward.13}
  #allocation0 [shape = 'u32[]', space=smem, size = 0x4, offset = 0x4, fixed_abs, tag = 'smem constant byte address 0x4 - core index']
  #allocation1 [shape = 'u32[144,128]{1,0:T(1,128)}', space=vmem, size = 0x12000, scoped, tag = 'internal scratch']
  %s0 = inlined_call_operand.vmem [shape: bf16[8,256], index: 0, kind: input, shape index: {}]
  %s1 = inlined_call_operand.vmem [shape: bf16[256,4], index: 1, kind: input, shape index: {}]
  %s2 = inlined_call_operand.vmem [shape: f32[1,4], index: 2, kind: input, shape index: {}]
  %s3 = inlined_call_operand.vmem [shape: f32[8,4], index: 3, kind: output, shape index: {}]
  %s4 = sld [smem:[#allocation0]]
  $region22: #{network_forward.13} parent=0
    _
  %s6 = ssub.s32 1, %s4
  %s7 = scalar_select 0, %s6, %s4
  // Predicated region
  $region2: #{network_forward.13} parent=0 // pred_check
    _
  $region3: #{network_forward.13} parent=0 // pred_check_branch
    %9 = sbr.rel (0) target = $region5
  $region4: #{network_forward.13} parent=0 // pred_region
    _
  $region5: #{network_forward.13} parent=0 // pred_fallthru
    _
  // Predicated region
  $region6: #{network_forward.13} parent=0 // pred_check
    _
  $region7: #{network_forward.13} parent=0 // pred_check_branch
    %11 = sbr.rel (0) target = $region9
  $region8: #{network_forward.13} parent=0 // pred_region
    _
  $region9: #{network_forward.13} parent=0 // pred_fallthru
    _
  // Predicated region
  $region10: #{network_forward.13} parent=0 // pred_check
    _
  $region11: #{network_forward.13} parent=0 // pred_check_branch
    %13 = sbr.rel (0) target = $region13
  $region12: #{network_forward.13} parent=0 // pred_region
    _
  $region13: #{network_forward.13} parent=0 // pred_fallthru
    _
  %v15 = vld [vmem:[%s0] sm:$0xff]
  %v16 = vld [vmem:[%s1] sm:$0xf]
  %v17 = vld [vmem:[%s1 + $0x4] sm:$0xf]
  %v18 = vld [vmem:[%s1 + $0x8] sm:$0xf]
  %v19 = vld [vmem:[%s1 + $0xc] sm:$0xf]
  %v20 = vld [vmem:[%s1 + $0x10] sm:$0xf]
  %v21 = vld [vmem:[%s1 + $0x14] sm:$0xf]
  %v22 = vld [vmem:[%s1 + $0x18] sm:$0xf]
  %v23 = vld [vmem:[%s1 + $0x1c] sm:$0xf]
  %v24 = vld [vmem:[%s1 + $0x20] sm:$0xf]
  %v25 = vld [vmem:[%s1 + $0x24] sm:$0xf]
  %v26 = vld [vmem:[%s1 + $0x28] sm:$0xf]
  %v27 = vld [vmem:[%s1 + $0x2c] sm:$0xf]
  %v28 = vld [vmem:[%s1 + $0x30] sm:$0xf]
  %v29 = vld [vmem:[%s1 + $0x34] sm:$0xf]
  %v30 = vld [vmem:[%s1 + $0x38] sm:$0xf]
  %v31 = vld [vmem:[%s1 + $0x3c] sm:$0xf]
  %v32 = vld [vmem:[%s1 + $0x40] sm:$0xf]
  %v33 = vld [vmem:[%s1 + $0x44] sm:$0xf]
  %v34 = vld [vmem:[%s1 + $0x48] sm:$0xf]
  %v35 = vld [vmem:[%s1 + $0x4c] sm:$0xf]
  %v36 = vld [vmem:[%s1 + $0x50] sm:$0xf]
  %v37 = vld [vmem:[%s1 + $0x54] sm:$0xf]
  %v38 = vld [vmem:[%s1 + $0x58] sm:$0xf]
  %v39 = vld [vmem:[%s1 + $0x5c] sm:$0xf]
  %v40 = vld [vmem:[%s1 + $0x60] sm:$0xf]
  %v41 = vld [vmem:[%s1 + $0x64] sm:$0xf]
  %v42 = vld [vmem:[%s1 + $0x68] sm:$0xf]
  %v43 = vld [vmem:[%s1 + $0x6c] sm:$0xf]
  %v44 = vld [vmem:[%s1 + $0x70] sm:$0xf]
  %v45 = vld [vmem:[%s1 + $0x74] sm:$0xf]
  %v46 = vld [vmem:[%s1 + $0x78] sm:$0xf]
  %v47 = vld [vmem:[%s1 + $0x7c] sm:$0xf]
  %v48 = vld [vmem:[%s2] sm:$0x1]
  %v50 = vlaneseq
  %v51 = vshrl.u32 %v50, 7
  %v52 = vsub.s32 0, %v51
  %v53 = vrot.slane %v48, %v52
  %v56 = vunpack.c.l.b16 %v15
  %v57 = vunpack.c.h.b16 %v15
  %v58 = vpack.c.b16 %v56, %v56
  %v59 = vpack.c.b16 %v57, %v57
  %v94 = vunpack.c.l.b16 %v16
  %v95 = vunpack.c.l.b16 %v17
  %v96 = vunpack.c.l.b16 %v18
  %v97 = vunpack.c.l.b16 %v19
  %v98 = vunpack.c.l.b16 %v20
  %v99 = vunpack.c.l.b16 %v21
  %v100 = vunpack.c.l.b16 %v22
  %v101 = vunpack.c.l.b16 %v23
  %v102 = vunpack.c.l.b16 %v24
  %v103 = vunpack.c.l.b16 %v25
  %v104 = vunpack.c.l.b16 %v26
  %v105 = vunpack.c.l.b16 %v27
  %v106 = vunpack.c.l.b16 %v28
  %v107 = vunpack.c.l.b16 %v29
  %v108 = vunpack.c.l.b16 %v30
  %v109 = vunpack.c.l.b16 %v31
  %v110 = vunpack.c.l.b16 %v32
  %v111 = vunpack.c.l.b16 %v33
  %v112 = vunpack.c.l.b16 %v34
  %v113 = vunpack.c.l.b16 %v35
  %v114 = vunpack.c.l.b16 %v36
  %v115 = vunpack.c.l.b16 %v37
  %v116 = vunpack.c.l.b16 %v38
  %v117 = vunpack.c.l.b16 %v39
  %v118 = vunpack.c.l.b16 %v40
  %v119 = vunpack.c.l.b16 %v41
  %v120 = vunpack.c.l.b16 %v42
  %v121 = vunpack.c.l.b16 %v43
  %v122 = vunpack.c.l.b16 %v44
  %v123 = vunpack.c.l.b16 %v45
  %v124 = vunpack.c.l.b16 %v46
  %v125 = vunpack.c.l.b16 %v47
  %v126 = vpack.c.b16 %v95, %v94
  %v127 = vpack.c.b16 %v97, %v96
  %v128 = vpack.c.b16 %v99, %v98
  %v129 = vpack.c.b16 %v101, %v100
  %v130 = vpack.c.b16 %v103, %v102
  %v131 = vpack.c.b16 %v105, %v104
  %v132 = vpack.c.b16 %v107, %v106
  %v133 = vpack.c.b16 %v109, %v108
  %v134 = vpack.c.b16 %v111, %v110
  %v135 = vpack.c.b16 %v113, %v112
  %v136 = vpack.c.b16 %v115, %v114
  %v137 = vpack.c.b16 %v117, %v116
  %v138 = vpack.c.b16 %v119, %v118
  %v139 = vpack.c.b16 %v121, %v120
  %v140 = vpack.c.b16 %v123, %v122
  %v141 = vpack.c.b16 %v125, %v124
  %158 = vmatprep.subr.bf16.mxu0 0
  %159 = vmatpush1.bf16.msra.mxu0 %v126
  %160 = vmatprep.subr.bf16.mxu0 0
  %161 = vmatpush1.bf16.msra.mxu0 %v127
  %162 = vmatprep.subr.bf16.mxu0 0
  %163 = vmatpush1.bf16.msra.mxu0 %v128
  %164 = vmatprep.subr.bf16.mxu0 0
  %165 = vmatpush1.bf16.msra.mxu0 %v129
  %166 = vmatprep.subr.bf16.mxu0 0
  %167 = vmatpush1.bf16.msra.mxu0 %v130
  %168 = vmatprep.subr.bf16.mxu0 0
  %169 = vmatpush1.bf16.msra.mxu0 %v131
  %170 = vmatprep.subr.bf16.mxu0 0
  %171 = vmatpush1.bf16.msra.mxu0 %v132
  %172 = vmatprep.subr.bf16.mxu0 0
  %173 = vmatpush1.bf16.msra.mxu0 %v133
  %174 = vmatprep.subr.bf16.mxu0 0
  %175 = vmatpush1.bf16.msra.mxu0 %v134
  %176 = vmatprep.subr.bf16.mxu0 0
  %177 = vmatpush1.bf16.msra.mxu0 %v135
  %178 = vmatprep.subr.bf16.mxu0 0
  %179 = vmatpush1.bf16.msra.mxu0 %v136
  %180 = vmatprep.subr.bf16.mxu0 0
  %181 = vmatpush1.bf16.msra.mxu0 %v137
  %182 = vmatprep.subr.bf16.mxu0 0
  %183 = vmatpush1.bf16.msra.mxu0 %v138
  %184 = vmatprep.subr.bf16.mxu0 0
  %185 = vmatpush1.bf16.msra.mxu0 %v139
  %186 = vmatprep.subr.bf16.mxu0 0
  %187 = vmatpush1.bf16.msra.mxu0 %v140
  %188 = vmatprep.subr.bf16.mxu0 0
  %189 = vmatpush1.bf16.msra.mxu0 %v141
  %190 = vmatprep.mubr.bf16.mxu0 %v59
  %191 = vmatmul.mubr.bf16.gmra.mrb[0].mxu0 %v58
  %v192 = vpop.f32.mrb[0].mxu0
  %v193 = vadd.f32 %v53, %v192
  %v194 = vpop.f32.mrb[0].mxu0
  %v195 = vpop.f32.mrb[0].mxu0
  %v196 = vpop.f32.mrb[0].mxu0
  %197 = vdwg.mxu0
  %vm198 = vcmask 31744
  %199 = vst.msk [vmem:[%s3] sm:$0xff] %vm198, %v193
  // Predicated region
  $region14: #{network_forward.13} parent=0 // pred_check
    _
  $region15: #{network_forward.13} parent=0 // pred_check_branch
    %201 = sbr.rel (0) target = $region17
  $region16: #{network_forward.13} parent=0 // pred_region
    _
  $region17: #{network_forward.13} parent=0 // pred_fallthru
    _
  // Predicated region
  $region18: #{network_forward.13} parent=0 // pred_check
    _
  $region19: #{network_forward.13} parent=0 // pred_check_branch
    %203 = sbr.rel (0) target = $region21
  $region20: #{network_forward.13} parent=0 // pred_region
    _
  $region21: #{network_forward.13} parent=0 // pred_fallthru
    _

</llo_original>
